<compile_context>
chip_gen: v7x
topology: tpu7x:2x2x1
jax: 0.10.0
libtpu: 0.0.40
codegen_flags: <defaults>
</compile_context>

<pallas_src>
import jax
import jax.numpy as jnp
from jax.experimental import pallas as pl
from jax.experimental.pallas import tpu as pltpu

LATENT_DIM = 100        # torch latent_dim
LATENT_PAD = 128        # padded K for layer 1 (one full lane group)
IMG_DIM = 28 * 28       # 784
IMG_PAD = 896           # 7 * 128 -> lane-dense output tile
BN_EPS = 0.8            # nn.BatchNorm1d(dim, 0.8): second positional arg is eps


def _leaky_relu(x, slope=0.2):
    # For slope in (0, 1), LeakyReLU(x) == max(x, slope*x): mul+max (2 VALU ops).
    return jnp.maximum(x, slope * x)


def _mxu_dot(h_f32, w_ref):
    # bf16 x bf16 -> f32 accumulation on the MXU.
    return jnp.dot(h_f32.astype(jnp.bfloat16), w_ref[...],
                   preferred_element_type=jnp.float32)


def generator_kernel(z_ref,
                     w1_ref, b1_ref,
                     w2_ref, b2_ref,
                     w3_ref, b3_ref,
                     w4_ref, b4_ref,
                     w5_ref, b5_ref,
                     o_ref):
    h = z_ref[...]                                         # (TB, 128) f32

    # Block 1: Linear(100->128) (K zero-padded to 128) + LeakyReLU, no BN.
    h = _leaky_relu(_mxu_dot(h, w1_ref) + b1_ref[...])     # (TB, 128)

    # Blocks 2-4: Linear with BatchNorm pre-folded into W/b, then LeakyReLU.
    h = _leaky_relu(_mxu_dot(h, w2_ref) + b2_ref[...])     # (TB, 256)
    h = _leaky_relu(_mxu_dot(h, w3_ref) + b3_ref[...])     # (TB, 512)
    h = _leaky_relu(_mxu_dot(h, w4_ref) + b4_ref[...])     # (TB, 1024)

    # Output: Linear(1024 -> 784, padded to 896) + Tanh (EUP).
    o_ref[...] = jnp.tanh(_mxu_dot(h, w5_ref) + b5_ref[...])


def _round_up(x, m):
    return ((x + m - 1) // m) * m


def _choose_tile_b(B, tile_b):
    """Multiple of 256 (MXU width); never shrink below one 256-row tile for
    small batches; split oversized tiles so big batches get >= 2 grid steps
    (keeps both v7x TensorCores busy)."""
    tile_b = max(256, 256 * (int(tile_b) // 256))
    while tile_b > 256 and pl.cdiv(B, tile_b) < 2:
        tile_b //= 2
    return tile_b


def generator_forward(z, kparams, tile_b=256):
    """z: (B, 100) float -> img: (B, 1, 28, 28) float32.

    kparams: tuple from prepare_params() (BN folded, padded, bf16 weights).
    tile_b: batch tile; 256 is safe on all chips, 512-1024 recommended for
            large batches on v6e/v7x (explicit vmem_limit is set automatically).
    """
    B = z.shape[0]
    tile_b = _choose_tile_b(B, tile_b)
    b_pad = _round_up(B, tile_b)
    grid = (b_pad // tile_b,)

    # Pad latent: columns 100:128 and rows B:b_pad are zero (sliced off below).
    z_pad = jnp.zeros((b_pad, LATENT_PAD), jnp.float32)
    z_pad = z_pad.at[:B, :LATENT_DIM].set(z.astype(jnp.float32))

    args = (z_pad,) + tuple(kparams)

    def batch_spec(cols):
        return pl.BlockSpec((tile_b, cols), lambda i: (i, 0))

    def resident_spec(a):
        # Full-shape block, constant block index, single buffer: weights stay
        # resident in VMEM across all grid steps with no double-buffer copy.
        return pl.BlockSpec(a.shape, lambda i: (0, 0),
                            pipeline_mode=pl.Buffered(1))

    in_specs = [batch_spec(LATENT_PAD)] + [resident_spec(a) for a in args[1:]]

    flops_per_row = 2 * (LATENT_PAD * 128 + 128 * 256 + 256 * 512
                         + 512 * 1024 + 1024 * IMG_PAD)
    bytes_accessed = (sum(int(a.size) * a.dtype.itemsize for a in args)
                      + b_pad * IMG_PAD * 4)

    # tile_b=256 fits every chip's default scoped VMEM; only ask for more when
    # the caller grows the tile (v6e/v7x). 48 MiB stays under v7x's 64 MiB.
    vmem_limit = (48 * 1024 * 1024) if tile_b >= 512 else None

    out = pl.pallas_call(
        generator_kernel,
        out_shape=jax.ShapeDtypeStruct((b_pad, IMG_PAD), jnp.float32),
        grid=grid,
        in_specs=in_specs,
        out_specs=batch_spec(IMG_PAD),
        compiler_params=pltpu.CompilerParams(
            dimension_semantics=("parallel",),
            vmem_limit_bytes=vmem_limit),
        cost_estimate=pl.CostEstimate(
            flops=b_pad * flops_per_row,
            transcendentals=b_pad * IMG_PAD,
            bytes_accessed=bytes_accessed),
    )(*args)

    return out[:B, :IMG_DIM].reshape(B, 1, 28, 28)


def init_params(key):
    """Raw PyTorch-default-init parameters (f32); weights stored (in, out)."""
    def linear(k, fan_in, fan_out):
        kw, kb = jax.random.split(k)
        bound = 1.0 / (fan_in ** 0.5)
        w = jax.random.uniform(kw, (fan_in, fan_out), jnp.float32, -bound, bound)
        b = jax.random.uniform(kb, (1, fan_out), jnp.float32, -bound, bound)
        return w, b

    def batchnorm(n):
        return dict(gamma=jnp.ones((1, n), jnp.float32),
                    beta=jnp.zeros((1, n), jnp.float32),
                    mean=jnp.zeros((1, n), jnp.float32),
                    var=jnp.ones((1, n), jnp.float32),
                    eps=BN_EPS)

    k1, k2, k3, k4, k5 = jax.random.split(key, 5)
    w1, b1 = linear(k1, LATENT_DIM, 128)
    w2, b2 = linear(k2, 128, 256)
    w3, b3 = linear(k3, 256, 512)
    w4, b4 = linear(k4, 512, 1024)
    w5, b5 = linear(k5, 1024, IMG_DIM)
    return dict(w1=w1, b1=b1,
                w2=w2, b2=b2, bn2=batchnorm(256),
                w3=w3, b3=b3, bn3=batchnorm(512),
                w4=w4, b4=b4, bn4=batchnorm(1024),
                w5=w5, b5=b5)


def _fold_bn(bn):
    """Inference-mode BatchNorm -> per-feature (scale, shift), f32."""
    scale = bn["gamma"] / jnp.sqrt(bn["var"] + bn["eps"])
    shift = bn["beta"] - bn["mean"] * scale
    return scale, shift


def prepare_params(raw):
    """Fold BN into (W, b) in f32, pad to lane-dense shapes, cast weights to
    bf16 once. Returns the flat kernel-argument tuple."""
    def fold(w, b, bn):
        s, t = _fold_bn(bn)           # (1, out) broadcasts over (in, out) rows
        return w * s, b * s + t

    w1 = jnp.zeros((LATENT_PAD, 128), jnp.float32).at[:LATENT_DIM].set(raw["w1"])
    b1 = raw["b1"]
    w2, b2 = fold(raw["w2"], raw["b2"], raw["bn2"])
    w3, b3 = fold(raw["w3"], raw["b3"], raw["bn3"])
    w4, b4 = fold(raw["w4"], raw["b4"], raw["bn4"])
    w5 = jnp.zeros((1024, IMG_PAD), jnp.float32).at[:, :IMG_DIM].set(raw["w5"])
    b5 = jnp.zeros((1, IMG_PAD), jnp.float32).at[:, :IMG_DIM].set(raw["b5"])

    bf16 = lambda w: w.astype(jnp.bfloat16)
    return (bf16(w1), b1, bf16(w2), b2, bf16(w3), b3,
            bf16(w4), b4, bf16(w5), b5)


def generator_reference(z, kparams):
    """Pure-JAX reference on the same (BN-folded, bf16-rounded) weights, f32 math."""
    w1, b1, w2, b2, w3, b3, w4, b4, w5, b5 = [
        a.astype(jnp.float32) for a in kparams]
    B = z.shape[0]
    x = jnp.zeros((B, LATENT_PAD), jnp.float32).at[:, :LATENT_DIM].set(
        z.astype(jnp.float32))
    h = _leaky_relu(x @ w1 + b1)
    h = _leaky_relu(h @ w2 + b2)
    h = _leaky_relu(h @ w3 + b3)
    h = _leaky_relu(h @ w4 + b4)
    h = jnp.tanh(h @ w5 + b5)
    return h[:, :IMG_DIM].reshape(B, 1, 28, 28)


if __name__ == "__main__":
    key = jax.random.PRNGKey(0)
    k_params, k_z = jax.random.split(key)

    raw = init_params(k_params)
    kparams = prepare_params(raw)

    B = 8
    z = jax.random.normal(k_z, (B, LATENT_DIM), dtype=jnp.float32)

    img = generator_forward(z, kparams)
    img = jax.block_until_ready(img)

    # Sanity checks: shape, tanh range, and agreement with the JAX reference.
    assert img.shape == (B, 1, 28, 28), img.shape
    assert bool(jnp.all(jnp.isfinite(img)))
    assert bool(jnp.all(jnp.abs(img) <= 1.0))

    ref = generator_reference(z, kparams)
    assert bool(jnp.allclose(img, ref, atol=5e-2, rtol=5e-2))

    print("KERNEL_OK")
</pallas_src>

<mosaic_0001>
module attributes {stable_mosaic.version = 11 : i64} {
  func.func @generator_kernel(%arg0: i32, %arg1: memref<256x128xf32, #tpu.memory_space<vmem>>, %arg2: memref<128x128xbf16, #tpu.memory_space<vmem>>, %arg3: memref<1x128xf32, #tpu.memory_space<vmem>>, %arg4: memref<128x256xbf16, #tpu.memory_space<vmem>>, %arg5: memref<1x256xf32, #tpu.memory_space<vmem>>, %arg6: memref<256x512xbf16, #tpu.memory_space<vmem>>, %arg7: memref<1x512xf32, #tpu.memory_space<vmem>>, %arg8: memref<512x1024xbf16, #tpu.memory_space<vmem>>, %arg9: memref<1x1024xf32, #tpu.memory_space<vmem>>, %arg10: memref<1024x896xbf16, #tpu.memory_space<vmem>>, %arg11: memref<1x896xf32, #tpu.memory_space<vmem>>, %arg12: memref<256x896xf32, #tpu.memory_space<vmem>>) attributes {dimension_semantics = [#tpu.dimension_semantics<parallel>], iteration_bounds = array<i64: 1>, scalar_prefetch = 0 : i64, scratch_operands = 0 : i64, tpu.core_type = #tpu.core_type<tc>, window_params = [{transform_indices = @transform_0, window_bounds = array<i64: 256, 128>}, {pipeline_mode = #tpu.pipeline_mode<synchronous>, transform_indices = @transform_1, window_bounds = array<i64: 128, 128>}, {pipeline_mode = #tpu.pipeline_mode<synchronous>, transform_indices = @transform_2, window_bounds = array<i64: 1, 128>}, {pipeline_mode = #tpu.pipeline_mode<synchronous>, transform_indices = @transform_3, window_bounds = array<i64: 128, 256>}, {pipeline_mode = #tpu.pipeline_mode<synchronous>, transform_indices = @transform_4, window_bounds = array<i64: 1, 256>}, {pipeline_mode = #tpu.pipeline_mode<synchronous>, transform_indices = @transform_5, window_bounds = array<i64: 256, 512>}, {pipeline_mode = #tpu.pipeline_mode<synchronous>, transform_indices = @transform_6, window_bounds = array<i64: 1, 512>}, {pipeline_mode = #tpu.pipeline_mode<synchronous>, transform_indices = @transform_7, window_bounds = array<i64: 512, 1024>}, {pipeline_mode = #tpu.pipeline_mode<synchronous>, transform_indices = @transform_8, window_bounds = array<i64: 1, 1024>}, {pipeline_mode = #tpu.pipeline_mode<synchronous>, transform_indices = @transform_9, window_bounds = array<i64: 1024, 896>}, {pipeline_mode = #tpu.pipeline_mode<synchronous>, transform_indices = @transform_10, window_bounds = array<i64: 1, 896>}, {transform_indices = @transform_11, window_bounds = array<i64: 256, 896>}]} {
    %c0 = arith.constant 0 : index
    %c0_0 = arith.constant 0 : index
    %0 = vector.load %arg1[%c0, %c0_0] : memref<256x128xf32, #tpu.memory_space<vmem>>, vector<256x128xf32>
    %1 = arith.truncf %0 : vector<256x128xf32> to vector<256x128xbf16>
    %c0_1 = arith.constant 0 : index
    %c0_2 = arith.constant 0 : index
    %2 = vector.load %arg2[%c0_1, %c0_2] : memref<128x128xbf16, #tpu.memory_space<vmem>>, vector<128x128xbf16>
    %cst = arith.constant dense<0.000000e+00> : vector<256x128xf32>
    %3 = tpu.matmul %1, %2, %cst {dimension_numbers = #tpu.dot_dimension_numbers<[1], [0], [0], [1], [0, 0, 1, 1], [], []>} : vector<256x128xbf16>, vector<128x128xbf16>, vector<256x128xf32> -> vector<256x128xf32>
    %c0_3 = arith.constant 0 : index
    %c0_4 = arith.constant 0 : index
    %4 = vector.load %arg3[%c0_3, %c0_4] : memref<1x128xf32, #tpu.memory_space<vmem>>, vector<1x128xf32>
    %5 = vector.broadcast %4 : vector<1x128xf32> to vector<256x128xf32>
    %6 = arith.addf %3, %5 : vector<256x128xf32>
    %cst_5 = arith.constant 2.000000e-01 : f32
    %7 = vector.broadcast %cst_5 : f32 to vector<256x128xf32>
    %8 = arith.mulf %7, %6 : vector<256x128xf32>
    %9 = arith.maximumf %6, %8 : vector<256x128xf32>
    %10 = arith.truncf %9 : vector<256x128xf32> to vector<256x128xbf16>
    %c0_6 = arith.constant 0 : index
    %c0_7 = arith.constant 0 : index
    %11 = vector.load %arg4[%c0_6, %c0_7] : memref<128x256xbf16, #tpu.memory_space<vmem>>, vector<128x256xbf16>
    %cst_8 = arith.constant dense<0.000000e+00> : vector<256x256xf32>
    %12 = tpu.matmul %10, %11, %cst_8 {dimension_numbers = #tpu.dot_dimension_numbers<[1], [0], [0], [1], [0, 0, 1, 1], [], []>} : vector<256x128xbf16>, vector<128x256xbf16>, vector<256x256xf32> -> vector<256x256xf32>
    %c0_9 = arith.constant 0 : index
    %c0_10 = arith.constant 0 : index
    %13 = vector.load %arg5[%c0_9, %c0_10] : memref<1x256xf32, #tpu.memory_space<vmem>>, vector<1x256xf32>
    %14 = vector.broadcast %13 : vector<1x256xf32> to vector<256x256xf32>
    %15 = arith.addf %12, %14 : vector<256x256xf32>
    %cst_11 = arith.constant 2.000000e-01 : f32
    %16 = vector.broadcast %cst_11 : f32 to vector<256x256xf32>
    %17 = arith.mulf %16, %15 : vector<256x256xf32>
    %18 = arith.maximumf %15, %17 : vector<256x256xf32>
    %19 = arith.truncf %18 : vector<256x256xf32> to vector<256x256xbf16>
    %c0_12 = arith.constant 0 : index
    %c0_13 = arith.constant 0 : index
    %20 = vector.load %arg6[%c0_12, %c0_13] : memref<256x512xbf16, #tpu.memory_space<vmem>>, vector<256x512xbf16>
    %cst_14 = arith.constant dense<0.000000e+00> : vector<256x512xf32>
    %21 = tpu.matmul %19, %20, %cst_14 {dimension_numbers = #tpu.dot_dimension_numbers<[1], [0], [0], [1], [0, 0, 1, 1], [], []>} : vector<256x256xbf16>, vector<256x512xbf16>, vector<256x512xf32> -> vector<256x512xf32>
    %c0_15 = arith.constant 0 : index
    %c0_16 = arith.constant 0 : index
    %22 = vector.load %arg7[%c0_15, %c0_16] : memref<1x512xf32, #tpu.memory_space<vmem>>, vector<1x512xf32>
    %23 = vector.broadcast %22 : vector<1x512xf32> to vector<256x512xf32>
    %24 = arith.addf %21, %23 : vector<256x512xf32>
    %cst_17 = arith.constant 2.000000e-01 : f32
    %25 = vector.broadcast %cst_17 : f32 to vector<256x512xf32>
    %26 = arith.mulf %25, %24 : vector<256x512xf32>
    %27 = arith.maximumf %24, %26 : vector<256x512xf32>
    %28 = arith.truncf %27 : vector<256x512xf32> to vector<256x512xbf16>
    %c0_18 = arith.constant 0 : index
    %c0_19 = arith.constant 0 : index
    %29 = vector.load %arg8[%c0_18, %c0_19] : memref<512x1024xbf16, #tpu.memory_space<vmem>>, vector<512x1024xbf16>
    %cst_20 = arith.constant dense<0.000000e+00> : vector<256x1024xf32>
    %30 = tpu.matmul %28, %29, %cst_20 {dimension_numbers = #tpu.dot_dimension_numbers<[1], [0], [0], [1], [0, 0, 1, 1], [], []>} : vector<256x512xbf16>, vector<512x1024xbf16>, vector<256x1024xf32> -> vector<256x1024xf32>
    %c0_21 = arith.constant 0 : index
    %c0_22 = arith.constant 0 : index
    %31 = vector.load %arg9[%c0_21, %c0_22] : memref<1x1024xf32, #tpu.memory_space<vmem>>, vector<1x1024xf32>
    %32 = vector.broadcast %31 : vector<1x1024xf32> to vector<256x1024xf32>
    %33 = arith.addf %30, %32 : vector<256x1024xf32>
    %cst_23 = arith.constant 2.000000e-01 : f32
    %34 = vector.broadcast %cst_23 : f32 to vector<256x1024xf32>
    %35 = arith.mulf %34, %33 : vector<256x1024xf32>
    %36 = arith.maximumf %33, %35 : vector<256x1024xf32>
    %37 = arith.truncf %36 : vector<256x1024xf32> to vector<256x1024xbf16>
    %c0_24 = arith.constant 0 : index
    %c0_25 = arith.constant 0 : index
    %38 = vector.load %arg10[%c0_24, %c0_25] : memref<1024x896xbf16, #tpu.memory_space<vmem>>, vector<1024x896xbf16>
    %cst_26 = arith.constant dense<0.000000e+00> : vector<256x896xf32>
    %39 = tpu.matmul %37, %38, %cst_26 {dimension_numbers = #tpu.dot_dimension_numbers<[1], [0], [0], [1], [0, 0, 1, 1], [], []>} : vector<256x1024xbf16>, vector<1024x896xbf16>, vector<256x896xf32> -> vector<256x896xf32>
    %c0_27 = arith.constant 0 : index
    %c0_28 = arith.constant 0 : index
    %40 = vector.load %arg11[%c0_27, %c0_28] : memref<1x896xf32, #tpu.memory_space<vmem>>, vector<1x896xf32>
    %41 = vector.broadcast %40 : vector<1x896xf32> to vector<256x896xf32>
    %42 = arith.addf %39, %41 : vector<256x896xf32>
    %43 = math.tanh %42 : vector<256x896xf32>
    %c0_29 = arith.constant 0 : index
    %c0_30 = arith.constant 0 : index
    %44 = vector.load %arg12[%c0_29, %c0_30] : memref<256x896xf32, #tpu.memory_space<vmem>>, vector<256x896xf32>
    tpu.vector_store %arg12[%c0_29, %c0_30], %43 {strides = array<i32>} : memref<256x896xf32, #tpu.memory_space<vmem>>, vector<256x896xf32>,
    return
  }
  func.func @transform_0(%arg0: i32) -> (i32, i32) {
    %c0_i32 = arith.constant 0 : i32
    %c0_i32_0 = arith.constant 0 : i32
    return %arg0, %c0_i32 : i32, i32
  }
  func.func @transform_1(%arg0: i32) -> (i32, i32) {
    %c0_i32 = arith.constant 0 : i32
    %c0_i32_0 = arith.constant 0 : i32
    %c0_i32_1 = arith.constant 0 : i32
    return %c0_i32, %c0_i32_0 : i32, i32
  }
  func.func @transform_2(%arg0: i32) -> (i32, i32) {
    %c0_i32 = arith.constant 0 : i32
    %c0_i32_0 = arith.constant 0 : i32
    %c0_i32_1 = arith.constant 0 : i32
    return %c0_i32, %c0_i32_0 : i32, i32
  }
  func.func @transform_3(%arg0: i32) -> (i32, i32) {
    %c0_i32 = arith.constant 0 : i32
    %c0_i32_0 = arith.constant 0 : i32
    %c0_i32_1 = arith.constant 0 : i32
    return %c0_i32, %c0_i32_0 : i32, i32
  }
  func.func @transform_4(%arg0: i32) -> (i32, i32) {
    %c0_i32 = arith.constant 0 : i32
    %c0_i32_0 = arith.constant 0 : i32
    %c0_i32_1 = arith.constant 0 : i32
    return %c0_i32, %c0_i32_0 : i32, i32
  }
  func.func @transform_5(%arg0: i32) -> (i32, i32) {
    %c0_i32 = arith.constant 0 : i32
    %c0_i32_0 = arith.constant 0 : i32
    %c0_i32_1 = arith.constant 0 : i32
    return %c0_i32, %c0_i32_0 : i32, i32
  }
  func.func @transform_6(%arg0: i32) -> (i32, i32) {
    %c0_i32 = arith.constant 0 : i32
    %c0_i32_0 = arith.constant 0 : i32
    %c0_i32_1 = arith.constant 0 : i32
    return %c0_i32, %c0_i32_0 : i32, i32
  }
  func.func @transform_7(%arg0: i32) -> (i32, i32) {
    %c0_i32 = arith.constant 0 : i32
    %c0_i32_0 = arith.constant 0 : i32
    %c0_i32_1 = arith.constant 0 : i32
    return %c0_i32, %c0_i32_0 : i32, i32
  }
  func.func @transform_8(%arg0: i32) -> (i32, i32) {
    %c0_i32 = arith.constant 0 : i32
    %c0_i32_0 = arith.constant 0 : i32
    %c0_i32_1 = arith.constant 0 : i32
    return %c0_i32, %c0_i32_0 : i32, i32
  }
  func.func @transform_9(%arg0: i32) -> (i32, i32) {
    %c0_i32 = arith.constant 0 : i32
    %c0_i32_0 = arith.constant 0 : i32
    %c0_i32_1 = arith.constant 0 : i32
    return %c0_i32, %c0_i32_0 : i32, i32
  }
  func.func @transform_10(%arg0: i32) -> (i32, i32) {
    %c0_i32 = arith.constant 0 : i32
    %c0_i32_0 = arith.constant 0 : i32
    %c0_i32_1 = arith.constant 0 : i32
    return %c0_i32, %c0_i32_0 : i32, i32
  }
  func.func @transform_11(%arg0: i32) -> (i32, i32) {
    %c0_i32 = arith.constant 0 : i32
    %c0_i32_0 = arith.constant 0 : i32
    return %arg0, %c0_i32 : i32, i32
  }
}

</mosaic_0001>

<llo_original>
// kernel: tpu_custom_call.1
$region0: #{tpu_custom_call.1}
  #allocation0 [shape = 'u32[]', space=smem, size = 0x4, offset = 0x4, fixed_abs, tag = 'smem constant byte address 0x4 - core index']
  #allocation1 [shape = 'u32[144,128]{1,0:T(1,128)}', space=vmem, size = 0x12000, scoped, tag = 'internal scratch']
  %s0 = inlined_call_operand.hbm [shape: f32[256,128], index: 0, kind: input, shape index: {}]
  %s1 = inlined_call_operand.hbm [shape: bf16[128,128], index: 1, kind: input, shape index: {}]
  %s2 = inlined_call_operand.hbm [shape: f32[1,128], index: 2, kind: input, shape index: {}]
  %s3 = inlined_call_operand.hbm [shape: bf16[128,256], index: 3, kind: input, shape index: {}]
  %s4 = inlined_call_operand.hbm [shape: f32[1,256], index: 4, kind: input, shape index: {}]
  %s5 = inlined_call_operand.hbm [shape: bf16[256,512], index: 5, kind: input, shape index: {}]
  %s6 = inlined_call_operand.hbm [shape: f32[1,512], index: 6, kind: input, shape index: {}]
  %s7 = inlined_call_operand.hbm [shape: bf16[512,1024], index: 7, kind: input, shape index: {}]
  %s8 = inlined_call_operand.hbm [shape: f32[1,1024], index: 8, kind: input, shape index: {}]
  %s9 = inlined_call_operand.hbm [shape: bf16[1024,896], index: 9, kind: input, shape index: {}]
  %s10 = inlined_call_operand.hbm [shape: f32[1,896], index: 10, kind: input, shape index: {}]
  %s11 = inlined_call_operand.hbm [shape: f32[256,896], index: 11, kind: output, shape index: {}]
  %s12 = sld [smem:[#allocation0]]
  $region98: #{tpu_custom_call.1} parent=0
    _
  %s14 = ssub.s32 1, %s12
  %s15 = scalar_select 0, %s14, %s12
  $region1: #{tpu_custom_call.1} parent=0
    #allocation2 [shape = 'u8[131072]{0}', space=vmem, size = 0x20000, scoped, tag = 'input window, operand 0, single buffered']
    #allocation3 [shape = 's32[1]{0}', space=sflag, size = 0x4, scoped, tag = 'scoped memory for tpu_custom_call.1']
    #allocation4 [shape = 's32[1]{0}', space=sflag, size = 0x4, scoped, tag = 'scoped memory for tpu_custom_call.1']
    #allocation5 [shape = 'u8[32768]{0}', space=vmem, size = 0x8000, scoped, tag = 'input window, operand 1, single buffered']
    #allocation6 [shape = 's32[1]{0}', space=sflag, size = 0x4, scoped, tag = 'scoped memory for tpu_custom_call.1']
    #allocation7 [shape = 'u8[512]{0}', space=vmem, size = 0x400, scoped, tag = 'input window, operand 2, single buffered']
    #allocation8 [shape = 'u8[65536]{0}', space=vmem, size = 0x10000, scoped, tag = 'input window, operand 3, single buffered']
    #allocation9 [shape = 's32[1]{0}', space=sflag, size = 0x4, scoped, tag = 'scoped memory for tpu_custom_call.1']
    #allocation10 [shape = 'u8[1024]{0}', space=vmem, size = 0x400, scoped, tag = 'input window, operand 4, single buffered']
    #allocation11 [shape = 'u8[262144]{0}', space=vmem, size = 0x40000, scoped, tag = 'input window, operand 5, single buffered']
    #allocation12 [shape = 's32[1]{0}', space=sflag, size = 0x4, scoped, tag = 'scoped memory for tpu_custom_call.1']
    #allocation13 [shape = 'u8[2048]{0}', space=vmem, size = 0x800, scoped, tag = 'input window, operand 6, single buffered']
    #allocation14 [shape = 'u8[1048576]{0}', space=vmem, size = 0x100000, scoped, tag = 'input window, operand 7, single buffered']
    #allocation15 [shape = 's32[1]{0}', space=sflag, size = 0x4, scoped, tag = 'scoped memory for tpu_custom_call.1']
    #allocation16 [shape = 'u8[4096]{0}', space=vmem, size = 0x1000, scoped, tag = 'input window, operand 8, single buffered']
    #allocation17 [shape = 'u8[1835008]{0}', space=vmem, size = 0x1c0000, scoped, tag = 'input window, operand 9, single buffered']
    #allocation18 [shape = 's32[1]{0}', space=sflag, size = 0x4, scoped, tag = 'scoped memory for tpu_custom_call.1']
    #allocation19 [shape = 'u8[3584]{0}', space=vmem, size = 0x1000, scoped, tag = 'input window, operand 10, single buffered']
    #allocation20 [shape = 'u8[917504]{0}', space=vmem, size = 0xe0000, scoped, tag = 'output window, operand 0, single buffered']
    %16 = vsyncpa [#allocation3], 0
    %17 = vsyncpa [#allocation6], 0
    %18 = vsyncpa [#allocation9], 0
    %19 = vsyncpa [#allocation12], 0
    %20 = vsyncpa [#allocation15], 0
    %21 = vsyncpa [#allocation18], 0
    %22 = vsyncpa [#allocation4], 0
    // Predicated region
    $region2: #{tpu_custom_call.1} parent=1 // pred_check
      _
    $region3: #{tpu_custom_call.1} parent=1 // pred_check_branch
      %24 = sbr.rel (0) target = $region5
    $region4: #{tpu_custom_call.1} parent=1 // pred_region
      %s26 = ssub.s32 4096, 4096
      %27 = vsyncadd [#allocation3], %s26
      %s28 = sshll.u32 [#allocation2], 4
      %s29 = int_to_ptr.vmem [resolvable:$true] %s28
      %34 = dma.hbm_to_vmem [thread:$0]  %s0, 4096, %s29, [#allocation3], 128, 128, 8
    $region5: #{tpu_custom_call.1} parent=1 // pred_fallthru
      _
    // Predicated region
    $region6: #{tpu_custom_call.1} parent=1 // pred_check
      _
    $region7: #{tpu_custom_call.1} parent=1 // pred_check_branch
      %36 = sbr.rel (0) target = $region9
    $region8: #{tpu_custom_call.1} parent=1 // pred_region
      %s38 = ssub.s32 1024, 1024
      %39 = vsyncadd [#allocation6], %s38
      %s40 = sshll.u32 [#allocation5], 4
      %s41 = int_to_ptr.vmem [resolvable:$true] %s40
      %46 = dma.hbm_to_vmem [thread:$0]  %s1, 1024, %s41, [#allocation6], 64, 64, 4
    $region9: #{tpu_custom_call.1} parent=1 // pred_fallthru
      _
    // Predicated region
    $region10: #{tpu_custom_call.1} parent=1 // pred_check
      _
    $region11: #{tpu_custom_call.1} parent=1 // pred_check_branch
      %48 = sbr.rel (0) target = $region13
    $region12: #{tpu_custom_call.1} parent=1 // pred_region
      %s50 = ssub.s32 16, 16
      %51 = vsyncadd [#allocation6], %s50
      %s53 = sshll.u32 [#allocation7], 4
      %s54 = int_to_ptr.vmem [resolvable:$true] %s53
      %56 = dma.hbm_to_vmem [thread:$0]  %s2, 16, %s54, [#allocation6]
    $region13: #{tpu_custom_call.1} parent=1 // pred_fallthru
      _
    // Predicated region
    $region14: #{tpu_custom_call.1} parent=1 // pred_check
      _
    $region15: #{tpu_custom_call.1} parent=1 // pred_check_branch
      %58 = sbr.rel (0) target = $region17
    $region16: #{tpu_custom_call.1} parent=1 // pred_region
      %s60 = ssub.s32 2048, 2048
      %61 = vsyncadd [#allocation9], %s60
      %s62 = sshll.u32 [#allocation8], 4
      %s63 = int_to_ptr.vmem [resolvable:$true] %s62
      %68 = dma.hbm_to_vmem [thread:$0]  %s3, 2048, %s63, [#allocation9], 128, 128, 8
    $region17: #{tpu_custom_call.1} parent=1 // pred_fallthru
      _
    // Predicated region
    $region18: #{tpu_custom_call.1} parent=1 // pred_check
      _
    $region19: #{tpu_custom_call.1} parent=1 // pred_check_branch
      %70 = sbr.rel (0) target = $region21
    $region20: #{tpu_custom_call.1} parent=1 // pred_region
      %s72 = ssub.s32 32, 32
      %73 = vsyncadd [#allocation9], %s72
      %s75 = sshll.u32 [#allocation10], 4
      %s76 = int_to_ptr.vmem [resolvable:$true] %s75
      %78 = dma.hbm_to_vmem [thread:$0]  %s4, 32, %s76, [#allocation9]
    $region21: #{tpu_custom_call.1} parent=1 // pred_fallthru
      _
    // Predicated region
    $region22: #{tpu_custom_call.1} parent=1 // pred_check
      _
    $region23: #{tpu_custom_call.1} parent=1 // pred_check_branch
      %80 = sbr.rel (0) target = $region25
    $region24: #{tpu_custom_call.1} parent=1 // pred_region
      %s82 = ssub.s32 8192, 8192
      %83 = vsyncadd [#allocation12], %s82
      %s84 = sshll.u32 [#allocation11], 4
      %s85 = int_to_ptr.vmem [resolvable:$true] %s84
      %90 = dma.hbm_to_vmem [thread:$0]  %s5, 8192, %s85, [#allocation12], 256, 256, 16
    $region25: #{tpu_custom_call.1} parent=1 // pred_fallthru
      _
    // Predicated region
    $region26: #{tpu_custom_call.1} parent=1 // pred_check
      _
    $region27: #{tpu_custom_call.1} parent=1 // pred_check_branch
      %92 = sbr.rel (0) target = $region29
    $region28: #{tpu_custom_call.1} parent=1 // pred_region
      %s94 = ssub.s32 64, 64
      %95 = vsyncadd [#allocation12], %s94
      %s97 = sshll.u32 [#allocation13], 4
      %s98 = int_to_ptr.vmem [resolvable:$true] %s97
      %100 = dma.hbm_to_vmem [thread:$0]  %s6, 64, %s98, [#allocation12]
    $region29: #{tpu_custom_call.1} parent=1 // pred_fallthru
      _
    // Predicated region
    $region30: #{tpu_custom_call.1} parent=1 // pred_check
      _
    $region31: #{tpu_custom_call.1} parent=1 // pred_check_branch
      %102 = sbr.rel (0) target = $region33
    $region32: #{tpu_custom_call.1} parent=1 // pred_region
      %s104 = ssub.s32 32768, 32768
      %105 = vsyncadd [#allocation15], %s104
      %s106 = sshll.u32 [#allocation14], 4
      %s107 = int_to_ptr.vmem [resolvable:$true] %s106
      %112 = dma.hbm_to_vmem [thread:$0]  %s7, 32768, %s107, [#allocation15], 512, 512, 32
    $region33: #{tpu_custom_call.1} parent=1 // pred_fallthru
      _
    // Predicated region
    $region34: #{tpu_custom_call.1} parent=1 // pred_check
      _
    $region35: #{tpu_custom_call.1} parent=1 // pred_check_branch
      %114 = sbr.rel (0) target = $region37
    $region36: #{tpu_custom_call.1} parent=1 // pred_region
      %s116 = ssub.s32 128, 128
      %117 = vsyncadd [#allocation15], %s116
      %s119 = sshll.u32 [#allocation16], 4
      %s120 = int_to_ptr.vmem [resolvable:$true] %s119
      %122 = dma.hbm_to_vmem [thread:$0]  %s8, 128, %s120, [#allocation15]
    $region37: #{tpu_custom_call.1} parent=1 // pred_fallthru
      _
    // Predicated region
    $region38: #{tpu_custom_call.1} parent=1 // pred_check
      _
    $region39: #{tpu_custom_call.1} parent=1 // pred_check_branch
      %124 = sbr.rel (0) target = $region41
    $region40: #{tpu_custom_call.1} parent=1 // pred_region
      %s126 = ssub.s32 57344, 57344
      %127 = vsyncadd [#allocation18], %s126
      %s128 = sshll.u32 [#allocation17], 4
      %s129 = int_to_ptr.vmem [resolvable:$true] %s128
      %134 = dma.hbm_to_vmem [thread:$0]  %s9, 57344, %s129, [#allocation18], 448, 448, 28
    $region41: #{tpu_custom_call.1} parent=1 // pred_fallthru
      _
    // Predicated region
    $region42: #{tpu_custom_call.1} parent=1 // pred_check
      _
    $region43: #{tpu_custom_call.1} parent=1 // pred_check_branch
      %136 = sbr.rel (0) target = $region45
    $region44: #{tpu_custom_call.1} parent=1 // pred_region
      %s138 = ssub.s32 112, 112
      %139 = vsyncadd [#allocation18], %s138
      %s141 = sshll.u32 [#allocation19], 4
      %s142 = int_to_ptr.vmem [resolvable:$true] %s141
      %144 = dma.hbm_to_vmem [thread:$0]  %s10, 112, %s142, [#allocation18]
    $region45: #{tpu_custom_call.1} parent=1 // pred_fallthru
      _
    // Predicated region
    $region46: #{tpu_custom_call.1} parent=1 // pred_check
      _
    $region47: #{tpu_custom_call.1} parent=1 // pred_check_branch
      %146 = sbr.rel (0) target = $region49
    $region48: #{tpu_custom_call.1} parent=1 // pred_region
      %147 = dma.done [#allocation3], 4096
    $region49: #{tpu_custom_call.1} parent=1 // pred_fallthru
      _
    // Predicated region
    $region50: #{tpu_custom_call.1} parent=1 // pred_check
      _
    $region51: #{tpu_custom_call.1} parent=1 // pred_check_branch
      %149 = sbr.rel (0) target = $region53
    $region52: #{tpu_custom_call.1} parent=1 // pred_region
      %150 = dma.done [#allocation6], 1024
    $region53: #{tpu_custom_call.1} parent=1 // pred_fallthru
      _
    // Predicated region
    $region54: #{tpu_custom_call.1} parent=1 // pred_check
      _
    $region55: #{tpu_custom_call.1} parent=1 // pred_check_branch
      %152 = sbr.rel (0) target = $region57
    $region56: #{tpu_custom_call.1} parent=1 // pred_region
      %153 = dma.done [#allocation6], 16
    $region57: #{tpu_custom_call.1} parent=1 // pred_fallthru
      _
    // Predicated region
    $region58: #{tpu_custom_call.1} parent=1 // pred_check
      _
    $region59: #{tpu_custom_call.1} parent=1 // pred_check_branch
      %155 = sbr.rel (0) target = $region61
    $region60: #{tpu_custom_call.1} parent=1 // pred_region
      %156 = dma.done [#allocation9], 2048
    $region61: #{tpu_custom_call.1} parent=1 // pred_fallthru
      _
    // Predicated region
    $region62: #{tpu_custom_call.1} parent=1 // pred_check
      _
    $region63: #{tpu_custom_call.1} parent=1 // pred_check_branch
      %158 = sbr.rel (0) target = $region65
    $region64: #{tpu_custom_call.1} parent=1 // pred_region
      %159 = dma.done [#allocation9], 32
    $region65: #{tpu_custom_call.1} parent=1 // pred_fallthru
      _
    // Predicated region
    $region66: #{tpu_custom_call.1} parent=1 // pred_check
      _
    $region67: #{tpu_custom_call.1} parent=1 // pred_check_branch
      %161 = sbr.rel (0) target = $region69
    $region68: #{tpu_custom_call.1} parent=1 // pred_region
      %162 = dma.done [#allocation12], 8192
    $region69: #{tpu_custom_call.1} parent=1 // pred_fallthru
      _
    // Predicated region
    $region70: #{tpu_custom_call.1} parent=1 // pred_check
      _
    $region71: #{tpu_custom_call.1} parent=1 // pred_check_branch
      %164 = sbr.rel (0) target = $region73
    $region72: #{tpu_custom_call.1} parent=1 // pred_region
      %165 = dma.done [#allocation12], 64
    $region73: #{tpu_custom_call.1} parent=1 // pred_fallthru
      _
    // Predicated region
    $region74: #{tpu_custom_call.1} parent=1 // pred_check
      _
    $region75: #{tpu_custom_call.1} parent=1 // pred_check_branch
      %167 = sbr.rel (0) target = $region77
    $region76: #{tpu_custom_call.1} parent=1 // pred_region
      %168 = dma.done [#allocation15], 32768
    $region77: #{tpu_custom_call.1} parent=1 // pred_fallthru
      _
    // Predicated region
    $region78: #{tpu_custom_call.1} parent=1 // pred_check
      _
    $region79: #{tpu_custom_call.1} parent=1 // pred_check_branch
      %170 = sbr.rel (0) target = $region81
    $region80: #{tpu_custom_call.1} parent=1 // pred_region
      %171 = dma.done [#allocation15], 128
    $region81: #{tpu_custom_call.1} parent=1 // pred_fallthru
      _
    // Predicated region
    $region82: #{tpu_custom_call.1} parent=1 // pred_check
      _
    $region83: #{tpu_custom_call.1} parent=1 // pred_check_branch
      %173 = sbr.rel (0) target = $region85
    $region84: #{tpu_custom_call.1} parent=1 // pred_region
      %174 = dma.done [#allocation18], 57344
    $region85: #{tpu_custom_call.1} parent=1 // pred_fallthru
      _
    // Predicated region
    $region86: #{tpu_custom_call.1} parent=1 // pred_check
      _
    $region87: #{tpu_custom_call.1} parent=1 // pred_check_branch
      %176 = sbr.rel (0) target = $region89
    $region88: #{tpu_custom_call.1} parent=1 // pred_region
      %177 = dma.done [#allocation18], 112
    $region89: #{tpu_custom_call.1} parent=1 // pred_fallthru
      _
    %v179 = vld [vmem:[#allocation2] sm:$0xff]
    %v180 = vld [vmem:[#allocation2 + $0x8] sm:$0xff]
    %v181 = vld [vmem:[#allocation2 + $0x10] sm:$0xff]
    %v182 = vld [vmem:[#allocation2 + $0x18] sm:$0xff]
    %v183 = vld [vmem:[#allocation2 + $0x20] sm:$0xff]
    %v184 = vld [vmem:[#allocation2 + $0x28] sm:$0xff]
    %v185 = vld [vmem:[#allocation2 + $0x30] sm:$0xff]
    %v186 = vld [vmem:[#allocation2 + $0x38] sm:$0xff]
    %v187 = vld [vmem:[#allocation2 + $0x40] sm:$0xff]
    %v188 = vld [vmem:[#allocation2 + $0x48] sm:$0xff]
    %v189 = vld [vmem:[#allocation2 + $0x50] sm:$0xff]
    %v190 = vld [vmem:[#allocation2 + $0x58] sm:$0xff]
    %v191 = vld [vmem:[#allocation2 + $0x60] sm:$0xff]
    %v192 = vld [vmem:[#allocation2 + $0x68] sm:$0xff]
    %v193 = vld [vmem:[#allocation2 + $0x70] sm:$0xff]
    %v194 = vld [vmem:[#allocation2 + $0x78] sm:$0xff]
    %v195 = vld [vmem:[#allocation2 + $0x80] sm:$0xff]
    %v196 = vld [vmem:[#allocation2 + $0x88] sm:$0xff]
    %v197 = vld [vmem:[#allocation2 + $0x90] sm:$0xff]
    %v198 = vld [vmem:[#allocation2 + $0x98] sm:$0xff]
    %v199 = vld [vmem:[#allocation2 + $0xa0] sm:$0xff]
    %v200 = vld [vmem:[#allocation2 + $0xa8] sm:$0xff]
    %v201 = vld [vmem:[#allocation2 + $0xb0] sm:$0xff]
    %v202 = vld [vmem:[#allocation2 + $0xb8] sm:$0xff]
    %v203 = vld [vmem:[#allocation2 + $0xc0] sm:$0xff]
    %v204 = vld [vmem:[#allocation2 + $0xc8] sm:$0xff]
    %v205 = vld [vmem:[#allocation2 + $0xd0] sm:$0xff]
    %v206 = vld [vmem:[#allocation2 + $0xd8] sm:$0xff]
    %v207 = vld [vmem:[#allocation2 + $0xe0] sm:$0xff]
    %v208 = vld [vmem:[#allocation2 + $0xe8] sm:$0xff]
    %v209 = vld [vmem:[#allocation2 + $0xf0] sm:$0xff]
    %v210 = vld [vmem:[#allocation2 + $0xf8] sm:$0xff]
    %v211 = vpack.c.bf16 %v180, %v179
    %v212 = vpack.c.bf16 %v182, %v181
    %v213 = vpack.c.bf16 %v184, %v183
    %v214 = vpack.c.bf16 %v186, %v185
    %v215 = vpack.c.bf16 %v188, %v187
    %v216 = vpack.c.bf16 %v190, %v189
    %v217 = vpack.c.bf16 %v192, %v191
    %v218 = vpack.c.bf16 %v194, %v193
    %v219 = vpack.c.bf16 %v196, %v195
    %v220 = vpack.c.bf16 %v198, %v197
    %v221 = vpack.c.bf16 %v200, %v199
    %v222 = vpack.c.bf16 %v202, %v201
    %v223 = vpack.c.bf16 %v204, %v203
    %v224 = vpack.c.bf16 %v206, %v205
    %v225 = vpack.c.bf16 %v208, %v207
    %v226 = vpack.c.bf16 %v210, %v209
    %v227 = vld [vmem:[#allocation5] sm:$0xf]
    %v228 = vld [vmem:[#allocation5 + $0x4] sm:$0xf]
    %v229 = vld [vmem:[#allocation5 + $0x8] sm:$0xf]
    %v230 = vld [vmem:[#allocation5 + $0xc] sm:$0xf]
    %v231 = vld [vmem:[#allocation5 + $0x10] sm:$0xf]
    %v232 = vld [vmem:[#allocation5 + $0x14] sm:$0xf]
    %v233 = vld [vmem:[#allocation5 + $0x18] sm:$0xf]
    %v234 = vld [vmem:[#allocation5 + $0x1c] sm:$0xf]
    %v235 = vld [vmem:[#allocation5 + $0x20] sm:$0xf]
    %v236 = vld [vmem:[#allocation5 + $0x24] sm:$0xf]
    %v237 = vld [vmem:[#allocation5 + $0x28] sm:$0xf]
    %v238 = vld [vmem:[#allocation5 + $0x2c] sm:$0xf]
    %v239 = vld [vmem:[#allocation5 + $0x30] sm:$0xf]
    %v240 = vld [vmem:[#allocation5 + $0x34] sm:$0xf]
    %v241 = vld [vmem:[#allocation5 + $0x38] sm:$0xf]
    %v242 = vld [vmem:[#allocation5 + $0x3c] sm:$0xf]
    %v243 = vld [vmem:[#allocation7] sm:$0x1]
    %v245 = vlaneseq
    %v246 = vshrl.u32 %v245, 7
    %v247 = vsub.s32 0, %v246
    %v248 = vrot.slane %v243, %v247
    %v266 = vunpack.c.l.b16 %v227
    %v267 = vunpack.c.l.b16 %v228
    %v268 = vunpack.c.l.b16 %v229
    %v269 = vunpack.c.l.b16 %v230
    %v270 = vunpack.c.l.b16 %v231
    %v271 = vunpack.c.l.b16 %v232
    %v272 = vunpack.c.l.b16 %v233
    %v273 = vunpack.c.l.b16 %v234
    %v274 = vunpack.c.l.b16 %v235
    %v275 = vunpack.c.l.b16 %v236
    %v276 = vunpack.c.l.b16 %v237
    %v277 = vunpack.c.l.b16 %v238
    %v278 = vunpack.c.l.b16 %v239
    %v279 = vunpack.c.l.b16 %v240
    %v280 = vunpack.c.l.b16 %v241
    %v281 = vunpack.c.l.b16 %v242
    %v282 = vpack.c.b16 %v267, %v266
    %v283 = vpack.c.b16 %v269, %v268
    %v284 = vpack.c.b16 %v271, %v270
    %v285 = vpack.c.b16 %v273, %v272
    %v286 = vpack.c.b16 %v275, %v274
    %v287 = vpack.c.b16 %v277, %v276
    %v288 = vpack.c.b16 %v279, %v278
    %v289 = vpack.c.b16 %v281, %v280
    %298 = vmatprep.subr.bf16.mxu0 0
    %299 = vmatpush1.bf16.msra.mxu0 %v282
    %300 = vmatprep.subr.bf16.mxu0 0
    %301 = vmatpush1.bf16.msra.mxu0 %v283
    %302 = vmatprep.subr.bf16.mxu0 0
    %303 = vmatpush1.bf16.msra.mxu0 %v284
    %304 = vmatprep.subr.bf16.mxu0 0
    %305 = vmatpush1.bf16.msra.mxu0 %v285
    %306 = vmatprep.subr.bf16.mxu0 0
    %307 = vmatpush1.bf16.msra.mxu0 %v286
    %308 = vmatprep.subr.bf16.mxu0 0
    %309 = vmatpush1.bf16.msra.mxu0 %v287
    %310 = vmatprep.subr.bf16.mxu0 0
    %311 = vmatpush1.bf16.msra.mxu0 %v288
    %312 = vmatprep.subr.bf16.mxu0 0
    %313 = vmatpush1.bf16.msra.mxu0 %v289
    %314 = vmatprep.subr.bf16.mxu0 0
    %315 = vmatpush1.bf16.msra.mxu0 0
    %316 = vmatprep.subr.bf16.mxu0 0
    %317 = vmatpush1.bf16.msra.mxu0 0
    %318 = vmatprep.subr.bf16.mxu0 0
    %319 = vmatpush1.bf16.msra.mxu0 0
    %320 = vmatprep.subr.bf16.mxu0 0
    %321 = vmatpush1.bf16.msra.mxu0 0
    %322 = vmatprep.subr.bf16.mxu0 0
    %323 = vmatpush1.bf16.msra.mxu0 0
    %324 = vmatprep.subr.bf16.mxu0 0
    %325 = vmatpush1.bf16.msra.mxu0 0
    %326 = vmatprep.subr.bf16.mxu0 0
    %327 = vmatpush1.bf16.msra.mxu0 0
    %328 = vmatprep.subr.bf16.mxu0 0
    %329 = vmatpush1.bf16.msra.mxu0 0
    %330 = vmatprep.mubr.bf16.mxu0 0
    %331 = vmatmul.mubr.bf16.gmra.mrb[0].mxu0 %v211
    %v332 = vpop.f32.mrb[0].mxu0
    %v333 = vadd.f32 %v248, %v332
    %v334 = vpop.f32.mrb[0].mxu0
    %v335 = vpop.f32.mrb[0].mxu0
    %v336 = vadd.f32 %v248, %v335
    %v337 = vpop.f32.mrb[0].mxu0
    %338 = vmatprep.mubr.bf16.mxu0 0
    %339 = vmatmul.mubr.bf16.gmra.mrb[0].mxu0 %v212
    %v340 = vpop.f32.mrb[0].mxu0
    %v341 = vadd.f32 %v248, %v340
    %v342 = vpop.f32.mrb[0].mxu0
    %v343 = vpop.f32.mrb[0].mxu0
    %v344 = vadd.f32 %v248, %v343
    %v345 = vpop.f32.mrb[0].mxu0
    %346 = vmatprep.mubr.bf16.mxu0 0
    %347 = vmatmul.mubr.bf16.gmra.mrb[0].mxu0 %v213
    %v348 = vpop.f32.mrb[0].mxu0
    %v349 = vadd.f32 %v248, %v348
    %v350 = vpop.f32.mrb[0].mxu0
    %v351 = vpop.f32.mrb[0].mxu0
    %v352 = vadd.f32 %v248, %v351
    %v353 = vpop.f32.mrb[0].mxu0
    %354 = vmatprep.mubr.bf16.mxu0 0
    %355 = vmatmul.mubr.bf16.gmra.mrb[0].mxu0 %v214
    %v356 = vpop.f32.mrb[0].mxu0
    %v357 = vadd.f32 %v248, %v356
    %v358 = vpop.f32.mrb[0].mxu0
    %v359 = vpop.f32.mrb[0].mxu0
    %v360 = vadd.f32 %v248, %v359
    %v361 = vpop.f32.mrb[0].mxu0
    %362 = vmatprep.mubr.bf16.mxu0 0
    %363 = vmatmul.mubr.bf16.gmra.mrb[0].mxu0 %v215
    %v364 = vpop.f32.mrb[0].mxu0
    %v365 = vadd.f32 %v248, %v364
    %v366 = vpop.f32.mrb[0].mxu0
    %v367 = vpop.f32.mrb[0].mxu0
    %v368 = vadd.f32 %v248, %v367
    %v369 = vpop.f32.mrb[0].mxu0
    %370 = vmatprep.mubr.bf16.mxu0 0
    %371 = vmatmul.mubr.bf16.gmra.mrb[0].mxu0 %v216
    %v372 = vpop.f32.mrb[0].mxu0
    %v373 = vadd.f32 %v248, %v372
    %v374 = vpop.f32.mrb[0].mxu0
    %v375 = vpop.f32.mrb[0].mxu0
    %v376 = vadd.f32 %v248, %v375
    %v377 = vpop.f32.mrb[0].mxu0
    %378 = vmatprep.mubr.bf16.mxu0 0
    %379 = vmatmul.mubr.bf16.gmra.mrb[0].mxu0 %v217
    %v380 = vpop.f32.mrb[0].mxu0
    %v381 = vadd.f32 %v248, %v380
    %v382 = vpop.f32.mrb[0].mxu0
    %v383 = vpop.f32.mrb[0].mxu0
    %v384 = vadd.f32 %v248, %v383
    %v385 = vpop.f32.mrb[0].mxu0
    %386 = vmatprep.mubr.bf16.mxu0 0
    %387 = vmatmul.mubr.bf16.gmra.mrb[0].mxu0 %v218
    %v388 = vpop.f32.mrb[0].mxu0
    %v389 = vadd.f32 %v248, %v388
    %v390 = vpop.f32.mrb[0].mxu0
    %v391 = vpop.f32.mrb[0].mxu0
    %v392 = vadd.f32 %v248, %v391
    %v393 = vpop.f32.mrb[0].mxu0
    %394 = vmatprep.mubr.bf16.mxu0 0
    %395 = vmatmul.mubr.bf16.gmra.mrb[0].mxu0 %v219
    %v396 = vpop.f32.mrb[0].mxu0
    %v397 = vadd.f32 %v248, %v396
    %v398 = vpop.f32.mrb[0].mxu0
    %v399 = vpop.f32.mrb[0].mxu0
    %v400 = vadd.f32 %v248, %v399
    %v401 = vpop.f32.mrb[0].mxu0
    %402 = vmatprep.mubr.bf16.mxu0 0
    %403 = vmatmul.mubr.bf16.gmra.mrb[0].mxu0 %v220
    %v404 = vpop.f32.mrb[0].mxu0
    %v405 = vadd.f32 %v248, %v404
    %v406 = vpop.f32.mrb[0].mxu0
    %v407 = vpop.f32.mrb[0].mxu0
    %v408 = vadd.f32 %v248, %v407
    %v409 = vpop.f32.mrb[0].mxu0
    %410 = vmatprep.mubr.bf16.mxu0 0
    %411 = vmatmul.mubr.bf16.gmra.mrb[0].mxu0 %v221
    %v412 = vpop.f32.mrb[0].mxu0
    %v413 = vadd.f32 %v248, %v412
    %v414 = vpop.f32.mrb[0].mxu0
    %v415 = vpop.f32.mrb[0].mxu0
    %v416 = vadd.f32 %v248, %v415
    %v417 = vpop.f32.mrb[0].mxu0
    %418 = vmatprep.mubr.bf16.mxu0 0
    %419 = vmatmul.mubr.bf16.gmra.mrb[0].mxu0 %v222
    %v420 = vpop.f32.mrb[0].mxu0
    %v421 = vadd.f32 %v248, %v420
    %v422 = vpop.f32.mrb[0].mxu0
    %v423 = vpop.f32.mrb[0].mxu0
    %v424 = vadd.f32 %v248, %v423
    %v425 = vpop.f32.mrb[0].mxu0
    %426 = vmatprep.mubr.bf16.mxu0 0
    %427 = vmatmul.mubr.bf16.gmra.mrb[0].mxu0 %v223
    %v428 = vpop.f32.mrb[0].mxu0
    %v429 = vadd.f32 %v248, %v428
    %v430 = vpop.f32.mrb[0].mxu0
    %v431 = vpop.f32.mrb[0].mxu0
    %v432 = vadd.f32 %v248, %v431
    %v433 = vpop.f32.mrb[0].mxu0
    %434 = vmatprep.mubr.bf16.mxu0 0
    %435 = vmatmul.mubr.bf16.gmra.mrb[0].mxu0 %v224
    %v436 = vpop.f32.mrb[0].mxu0
    %v437 = vadd.f32 %v248, %v436
    %v438 = vpop.f32.mrb[0].mxu0
    %v439 = vpop.f32.mrb[0].mxu0
    %v440 = vadd.f32 %v248, %v439
    %v441 = vpop.f32.mrb[0].mxu0
    %442 = vmatprep.mubr.bf16.mxu0 0
    %443 = vmatmul.mubr.bf16.gmra.mrb[0].mxu0 %v225
    %v444 = vpop.f32.mrb[0].mxu0
    %v445 = vadd.f32 %v248, %v444
    %v446 = vpop.f32.mrb[0].mxu0
    %v447 = vpop.f32.mrb[0].mxu0
    %v448 = vadd.f32 %v248, %v447
    %v449 = vpop.f32.mrb[0].mxu0
    %450 = vmatprep.mubr.bf16.mxu0 0
    %451 = vmatmul.mubr.bf16.gmra.mrb[0].mxu0 %v226
    %v452 = vpop.f32.mrb[0].mxu0
    %v453 = vadd.f32 %v248, %v452
    %v454 = vpop.f32.mrb[0].mxu0
    %v455 = vpop.f32.mrb[0].mxu0
    %v456 = vadd.f32 %v248, %v455
    %v457 = vpop.f32.mrb[0].mxu0
    %458 = vdwg.mxu0
    %v459 = vmul.f32 %v333, 0.2
    %v460 = vmul.f32 %v336, 0.2
    %v461 = vmul.f32 %v341, 0.2
    %v462 = vmul.f32 %v344, 0.2
    %v463 = vmul.f32 %v349, 0.2
    %v464 = vmul.f32 %v352, 0.2
    %v465 = vmul.f32 %v357, 0.2
    %v466 = vmul.f32 %v360, 0.2
    %v467 = vmul.f32 %v365, 0.2
    %v468 = vmul.f32 %v368, 0.2
    %v469 = vmul.f32 %v373, 0.2
    %v470 = vmul.f32 %v376, 0.2
    %v471 = vmul.f32 %v381, 0.2
    %v472 = vmul.f32 %v384, 0.2
    %v473 = vmul.f32 %v389, 0.2
    %v474 = vmul.f32 %v392, 0.2
    %v475 = vmul.f32 %v397, 0.2
    %v476 = vmul.f32 %v400, 0.2
    %v477 = vmul.f32 %v405, 0.2
    %v478 = vmul.f32 %v408, 0.2
    %v479 = vmul.f32 %v413, 0.2
    %v480 = vmul.f32 %v416, 0.2
    %v481 = vmul.f32 %v421, 0.2
    %v482 = vmul.f32 %v424, 0.2
    %v483 = vmul.f32 %v429, 0.2
    %v484 = vmul.f32 %v432, 0.2
    %v485 = vmul.f32 %v437, 0.2
    %v486 = vmul.f32 %v440, 0.2
    %v487 = vmul.f32 %v445, 0.2
    %v488 = vmul.f32 %v448, 0.2
    %v489 = vmul.f32 %v453, 0.2
    %v490 = vmul.f32 %v456, 0.2
    %v491 = vmax.f32 %v333, %v459
    %v492 = vmax.f32 %v336, %v460
    %v493 = vmax.f32 %v341, %v461
    %v494 = vmax.f32 %v344, %v462
    %v495 = vmax.f32 %v349, %v463
    %v496 = vmax.f32 %v352, %v464
    %v497 = vmax.f32 %v357, %v465
    %v498 = vmax.f32 %v360, %v466
    %v499 = vmax.f32 %v365, %v467
    %v500 = vmax.f32 %v368, %v468
    %v501 = vmax.f32 %v373, %v469
    %v502 = vmax.f32 %v376, %v470
    %v503 = vmax.f32 %v381, %v471
    %v504 = vmax.f32 %v384, %v472
    %v505 = vmax.f32 %v389, %v473
    %v506 = vmax.f32 %v392, %v474
    %v507 = vmax.f32 %v397, %v475
    %v508 = vmax.f32 %v400, %v476
    %v509 = vmax.f32 %v405, %v477
    %v510 = vmax.f32 %v408, %v478
    %v511 = vmax.f32 %v413, %v479
    %v512 = vmax.f32 %v416, %v480
    %v513 = vmax.f32 %v421, %v481
    %v514 = vmax.f32 %v424, %v482
    %v515 = vmax.f32 %v429, %v483
    %v516 = vmax.f32 %v432, %v484
    %v517 = vmax.f32 %v437, %v485
    %v518 = vmax.f32 %v440, %v486
    %v519 = vmax.f32 %v445, %v487
    %v520 = vmax.f32 %v448, %v488
    %v521 = vmax.f32 %v453, %v489
    %v522 = vmax.f32 %v456, %v490
    %v523 = vpack.c.bf16 %v492, %v491
    %v524 = vpack.c.bf16 %v494, %v493
    %v525 = vpack.c.bf16 %v496, %v495
    %v526 = vpack.c.bf16 %v498, %v497
    %v527 = vpack.c.bf16 %v500, %v499
    %v528 = vpack.c.bf16 %v502, %v501
    %v529 = vpack.c.bf16 %v504, %v503
    %v530 = vpack.c.bf16 %v506, %v505
    %v531 = vpack.c.bf16 %v508, %v507
    %v532 = vpack.c.bf16 %v510, %v509
    %v533 = vpack.c.bf16 %v512, %v511
    %v534 = vpack.c.bf16 %v514, %v513
    %v535 = vpack.c.bf16 %v516, %v515
    %v536 = vpack.c.bf16 %v518, %v517
    %v537 = vpack.c.bf16 %v520, %v519
    %v538 = vpack.c.bf16 %v522, %v521
    %v539 = vld [vmem:[#allocation8] sm:$0xff]
    %v540 = vld [vmem:[#allocation8 + $0x8] sm:$0xff]
    %v541 = vld [vmem:[#allocation8 + $0x10] sm:$0xff]
    %v542 = vld [vmem:[#allocation8 + $0x18] sm:$0xff]
    %v543 = vld [vmem:[#allocation8 + $0x20] sm:$0xff]
    %v544 = vld [vmem:[#allocation8 + $0x28] sm:$0xff]
    %v545 = vld [vmem:[#allocation8 + $0x30] sm:$0xff]
    %v546 = vld [vmem:[#allocation8 + $0x38] sm:$0xff]
    %v547 = vld [vmem:[#allocation8 + $0x40] sm:$0xff]
    %v548 = vld [vmem:[#allocation8 + $0x48] sm:$0xff]
    %v549 = vld [vmem:[#allocation8 + $0x50] sm:$0xff]
    %v550 = vld [vmem:[#allocation8 + $0x58] sm:$0xff]
    %v551 = vld [vmem:[#allocation8 + $0x60] sm:$0xff]
    %v552 = vld [vmem:[#allocation8 + $0x68] sm:$0xff]
    %v553 = vld [vmem:[#allocation8 + $0x70] sm:$0xff]
    %v554 = vld [vmem:[#allocation8 + $0x78] sm:$0xff]
    %v555 = vld [vmem:[#allocation10] sm:$0x3]
    %v557 = vlaneseq
    %v558 = vshrl.u32 %v557, 7
    %v559 = vsub.s32 0, %v558
    %v560 = vrot.slane %v555, %v559
    %v561 = vlaneseq
    %v562 = vshrl.u32 %v561, 7
    %v563 = vsub.s32 1, %v562
    %v564 = vrot.slane %v555, %v563
    %v583 = vunpack.c.l.b16 %v539
    %v584 = vunpack.c.h.b16 %v539
    %v585 = vunpack.c.l.b16 %v540
    %v586 = vunpack.c.h.b16 %v540
    %v587 = vunpack.c.l.b16 %v541
    %v588 = vunpack.c.h.b16 %v541
    %v589 = vunpack.c.l.b16 %v542
    %v590 = vunpack.c.h.b16 %v542
    %v591 = vunpack.c.l.b16 %v543
    %v592 = vunpack.c.h.b16 %v543
    %v593 = vunpack.c.l.b16 %v544
    %v594 = vunpack.c.h.b16 %v544
    %v595 = vunpack.c.l.b16 %v545
    %v596 = vunpack.c.h.b16 %v545
    %v597 = vunpack.c.l.b16 %v546
    %v598 = vunpack.c.h.b16 %v546
    %v599 = vunpack.c.l.b16 %v547
    %v600 = vunpack.c.h.b16 %v547
    %v601 = vunpack.c.l.b16 %v548
    %v602 = vunpack.c.h.b16 %v548
    %v603 = vunpack.c.l.b16 %v549
    %v604 = vunpack.c.h.b16 %v549
    %v605 = vunpack.c.l.b16 %v550
    %v606 = vunpack.c.h.b16 %v550
    %v607 = vunpack.c.l.b16 %v551
    %v608 = vunpack.c.h.b16 %v551
    %v609 = vunpack.c.l.b16 %v552
    %v610 = vunpack.c.h.b16 %v552
    %v611 = vunpack.c.l.b16 %v553
    %v612 = vunpack.c.h.b16 %v553
    %v613 = vunpack.c.l.b16 %v554
    %v614 = vunpack.c.h.b16 %v554
    %v615 = vpack.c.b16 %v585, %v583
    %v616 = vpack.c.b16 %v586, %v584
    %v617 = vpack.c.b16 %v589, %v587
    %v618 = vpack.c.b16 %v590, %v588
    %v619 = vpack.c.b16 %v593, %v591
    %v620 = vpack.c.b16 %v594, %v592
    %v621 = vpack.c.b16 %v597, %v595
    %v622 = vpack.c.b16 %v598, %v596
    %v623 = vpack.c.b16 %v601, %v599
    %v624 = vpack.c.b16 %v602, %v600
    %v625 = vpack.c.b16 %v605, %v603
    %v626 = vpack.c.b16 %v606, %v604
    %v627 = vpack.c.b16 %v609, %v607
    %v628 = vpack.c.b16 %v610, %v608
    %v629 = vpack.c.b16 %v613, %v611
    %v630 = vpack.c.b16 %v614, %v612
    %647 = vmatprep.subr.bf16.mxu0 %v616
    %648 = vmatpush1.bf16.msra.mxu0 %v615
    %649 = vmatprep.subr.bf16.mxu0 %v618
    %650 = vmatpush1.bf16.msra.mxu0 %v617
    %651 = vmatprep.subr.bf16.mxu0 %v620
    %652 = vmatpush1.bf16.msra.mxu0 %v619
    %653 = vmatprep.subr.bf16.mxu0 %v622
    %654 = vmatpush1.bf16.msra.mxu0 %v621
    %655 = vmatprep.subr.bf16.mxu0 %v624
    %656 = vmatpush1.bf16.msra.mxu0 %v623
    %657 = vmatprep.subr.bf16.mxu0 %v626
    %658 = vmatpush1.bf16.msra.mxu0 %v625
    %659 = vmatprep.subr.bf16.mxu0 %v628
    %660 = vmatpush1.bf16.msra.mxu0 %v627
    %661 = vmatprep.subr.bf16.mxu0 %v630
    %662 = vmatpush1.bf16.msra.mxu0 %v629
    %663 = vmatprep.subr.bf16.mxu0 0
    %664 = vmatpush1.bf16.msra.mxu0 0
    %665 = vmatprep.subr.bf16.mxu0 0
    %666 = vmatpush1.bf16.msra.mxu0 0
    %667 = vmatprep.subr.bf16.mxu0 0
    %668 = vmatpush1.bf16.msra.mxu0 0
    %669 = vmatprep.subr.bf16.mxu0 0
    %670 = vmatpush1.bf16.msra.mxu0 0
    %671 = vmatprep.subr.bf16.mxu0 0
    %672 = vmatpush1.bf16.msra.mxu0 0
    %673 = vmatprep.subr.bf16.mxu0 0
    %674 = vmatpush1.bf16.msra.mxu0 0
    %675 = vmatprep.subr.bf16.mxu0 0
    %676 = vmatpush1.bf16.msra.mxu0 0
    %677 = vmatprep.subr.bf16.mxu0 0
    %678 = vmatpush1.bf16.msra.mxu0 0
    %679 = vmatprep.mubr.bf16.mxu0 0
    %680 = vmatmul.mubr.bf16.gmra.mrb[0].mxu0 %v523
    %v681 = vpop.f32.mrb[0].mxu0
    %v682 = vadd.f32 %v560, %v681
    %v683 = vpop.f32.mrb[0].mxu0
    %v684 = vadd.f32 %v564, %v683
    %v685 = vpop.f32.mrb[0].mxu0
    %v686 = vadd.f32 %v560, %v685
    %v687 = vpop.f32.mrb[0].mxu0
    %v688 = vadd.f32 %v564, %v687
    %689 = vmatprep.mubr.bf16.mxu0 0
    %690 = vmatmul.mubr.bf16.gmra.mrb[0].mxu0 %v524
    %v691 = vpop.f32.mrb[0].mxu0
    %v692 = vadd.f32 %v560, %v691
    %v693 = vpop.f32.mrb[0].mxu0
    %v694 = vadd.f32 %v564, %v693
    %v695 = vpop.f32.mrb[0].mxu0
    %v696 = vadd.f32 %v560, %v695
    %v697 = vpop.f32.mrb[0].mxu0
    %v698 = vadd.f32 %v564, %v697
    %699 = vmatprep.mubr.bf16.mxu0 0
    %700 = vmatmul.mubr.bf16.gmra.mrb[0].mxu0 %v525
    %v701 = vpop.f32.mrb[0].mxu0
    %v702 = vadd.f32 %v560, %v701
    %v703 = vpop.f32.mrb[0].mxu0
    %v704 = vadd.f32 %v564, %v703
    %v705 = vpop.f32.mrb[0].mxu0
    %v706 = vadd.f32 %v560, %v705
    %v707 = vpop.f32.mrb[0].mxu0
    %v708 = vadd.f32 %v564, %v707
    %709 = vmatprep.mubr.bf16.mxu0 0
    %710 = vmatmul.mubr.bf16.gmra.mrb[0].mxu0 %v526
    %v711 = vpop.f32.mrb[0].mxu0
    %v712 = vadd.f32 %v560, %v711
    %v713 = vpop.f32.mrb[0].mxu0
    %v714 = vadd.f32 %v564, %v713
    %v715 = vpop.f32.mrb[0].mxu0
    %v716 = vadd.f32 %v560, %v715
    %v717 = vpop.f32.mrb[0].mxu0
    %v718 = vadd.f32 %v564, %v717
    %719 = vmatprep.mubr.bf16.mxu0 0
    %720 = vmatmul.mubr.bf16.gmra.mrb[0].mxu0 %v527
    %v721 = vpop.f32.mrb[0].mxu0
    %v722 = vadd.f32 %v560, %v721
    %v723 = vpop.f32.mrb[0].mxu0
    %v724 = vadd.f32 %v564, %v723
    %v725 = vpop.f32.mrb[0].mxu0
    %v726 = vadd.f32 %v560, %v725
    %v727 = vpop.f32.mrb[0].mxu0
    %v728 = vadd.f32 %v564, %v727
    %729 = vmatprep.mubr.bf16.mxu0 0
    %730 = vmatmul.mubr.bf16.gmra.mrb[0].mxu0 %v528
    %v731 = vpop.f32.mrb[0].mxu0
    %v732 = vadd.f32 %v560, %v731
    %v733 = vpop.f32.mrb[0].mxu0
    %v734 = vadd.f32 %v564, %v733
    %v735 = vpop.f32.mrb[0].mxu0
    %v736 = vadd.f32 %v560, %v735
    %v737 = vpop.f32.mrb[0].mxu0
    %v738 = vadd.f32 %v564, %v737
    %739 = vmatprep.mubr.bf16.mxu0 0
    %740 = vmatmul.mubr.bf16.gmra.mrb[0].mxu0 %v529
    %v741 = vpop.f32.mrb[0].mxu0
    %v742 = vadd.f32 %v560, %v741
    %v743 = vpop.f32.mrb[0].mxu0
    %v744 = vadd.f32 %v564, %v743
    %v745 = vpop.f32.mrb[0].mxu0
    %v746 = vadd.f32 %v560, %v745
    %v747 = vpop.f32.mrb[0].mxu0
    %v748 = vadd.f32 %v564, %v747
    %749 = vmatprep.mubr.bf16.mxu0 0
    %750 = vmatmul.mubr.bf16.gmra.mrb[0].mxu0 %v530
    %v751 = vpop.f32.mrb[0].mxu0
    %v752 = vadd.f32 %v560, %v751
    %v753 = vpop.f32.mrb[0].mxu0
    %v754 = vadd.f32 %v564, %v753
    %v755 = vpop.f32.mrb[0].mxu0
    %v756 = vadd.f32 %v560, %v755
    %v757 = vpop.f32.mrb[0].mxu0
    %v758 = vadd.f32 %v564, %v757
    %759 = vmatprep.mubr.bf16.mxu0 0
    %760 = vmatmul.mubr.bf16.gmra.mrb[0].mxu0 %v531
    %v761 = vpop.f32.mrb[0].mxu0
    %v762 = vadd.f32 %v560, %v761
    %v763 = vpop.f32.mrb[0].mxu0
    %v764 = vadd.f32 %v564, %v763
    %v765 = vpop.f32.mrb[0].mxu0
    %v766 = vadd.f32 %v560, %v765
    %v767 = vpop.f32.mrb[0].mxu0
    %v768 = vadd.f32 %v564, %v767
    %769 = vmatprep.mubr.bf16.mxu0 0
    %770 = vmatmul.mubr.bf16.gmra.mrb[0].mxu0 %v532
    %v771 = vpop.f32.mrb[0].mxu0
    %v772 = vadd.f32 %v560, %v771
    %v773 = vpop.f32.mrb[0].mxu0
    %v774 = vadd.f32 %v564, %v773
    %v775 = vpop.f32.mrb[0].mxu0
    %v776 = vadd.f32 %v560, %v775
    %v777 = vpop.f32.mrb[0].mxu0
    %v778 = vadd.f32 %v564, %v777
    %779 = vmatprep.mubr.bf16.mxu0 0
    %780 = vmatmul.mubr.bf16.gmra.mrb[0].mxu0 %v533
    %v781 = vpop.f32.mrb[0].mxu0
    %v782 = vadd.f32 %v560, %v781
    %v783 = vpop.f32.mrb[0].mxu0
    %v784 = vadd.f32 %v564, %v783
    %v785 = vpop.f32.mrb[0].mxu0
    %v786 = vadd.f32 %v560, %v785
    %v787 = vpop.f32.mrb[0].mxu0
    %v788 = vadd.f32 %v564, %v787
    %789 = vmatprep.mubr.bf16.mxu0 0
    %790 = vmatmul.mubr.bf16.gmra.mrb[0].mxu0 %v534
    %v791 = vpop.f32.mrb[0].mxu0
    %v792 = vadd.f32 %v560, %v791
    %v793 = vpop.f32.mrb[0].mxu0
    %v794 = vadd.f32 %v564, %v793
    %v795 = vpop.f32.mrb[0].mxu0
    %v796 = vadd.f32 %v560, %v795
    %v797 = vpop.f32.mrb[0].mxu0
    %v798 = vadd.f32 %v564, %v797
    %799 = vmatprep.mubr.bf16.mxu0 0
    %800 = vmatmul.mubr.bf16.gmra.mrb[0].mxu0 %v535
    %v801 = vpop.f32.mrb[0].mxu0
    %v802 = vadd.f32 %v560, %v801
    %v803 = vpop.f32.mrb[0].mxu0
    %v804 = vadd.f32 %v564, %v803
    %v805 = vpop.f32.mrb[0].mxu0
    %v806 = vadd.f32 %v560, %v805
    %v807 = vpop.f32.mrb[0].mxu0
    %v808 = vadd.f32 %v564, %v807
    %809 = vmatprep.mubr.bf16.mxu0 0
    %810 = vmatmul.mubr.bf16.gmra.mrb[0].mxu0 %v536
    %v811 = vpop.f32.mrb[0].mxu0
    %v812 = vadd.f32 %v560, %v811
    %v813 = vpop.f32.mrb[0].mxu0
    %v814 = vadd.f32 %v564, %v813
    %v815 = vpop.f32.mrb[0].mxu0
    %v816 = vadd.f32 %v560, %v815
    %v817 = vpop.f32.mrb[0].mxu0
    %v818 = vadd.f32 %v564, %v817
    %819 = vmatprep.mubr.bf16.mxu0 0
    %820 = vmatmul.mubr.bf16.gmra.mrb[0].mxu0 %v537
    %v821 = vpop.f32.mrb[0].mxu0
    %v822 = vadd.f32 %v560, %v821
    %v823 = vpop.f32.mrb[0].mxu0
    %v824 = vadd.f32 %v564, %v823
    %v825 = vpop.f32.mrb[0].mxu0
    %v826 = vadd.f32 %v560, %v825
    %v827 = vpop.f32.mrb[0].mxu0
    %v828 = vadd.f32 %v564, %v827
    %829 = vmatprep.mubr.bf16.mxu0 0
    %830 = vmatmul.mubr.bf16.gmra.mrb[0].mxu0 %v538
    %v831 = vpop.f32.mrb[0].mxu0
    %v832 = vadd.f32 %v560, %v831
    %v833 = vpop.f32.mrb[0].mxu0
    %v834 = vadd.f32 %v564, %v833
    %v835 = vpop.f32.mrb[0].mxu0
    %v836 = vadd.f32 %v560, %v835
    %v837 = vpop.f32.mrb[0].mxu0
    %v838 = vadd.f32 %v564, %v837
    %839 = vdwg.mxu0
    %v840 = vmul.f32 %v682, 0.2
    %v841 = vmul.f32 %v684, 0.2
    %v842 = vmul.f32 %v686, 0.2
    %v843 = vmul.f32 %v688, 0.2
    %v844 = vmul.f32 %v692, 0.2
    %v845 = vmul.f32 %v694, 0.2
    %v846 = vmul.f32 %v696, 0.2
    %v847 = vmul.f32 %v698, 0.2
    %v848 = vmul.f32 %v702, 0.2
    %v849 = vmul.f32 %v704, 0.2
    %v850 = vmul.f32 %v706, 0.2
    %v851 = vmul.f32 %v708, 0.2
    %v852 = vmul.f32 %v712, 0.2
    %v853 = vmul.f32 %v714, 0.2
    %v854 = vmul.f32 %v716, 0.2
    %v855 = vmul.f32 %v718, 0.2
    %v856 = vmul.f32 %v722, 0.2
    %v857 = vmul.f32 %v724, 0.2
    %v858 = vmul.f32 %v726, 0.2
    %v859 = vmul.f32 %v728, 0.2
    %v860 = vmul.f32 %v732, 0.2
    %v861 = vmul.f32 %v734, 0.2
    %v862 = vmul.f32 %v736, 0.2
    %v863 = vmul.f32 %v738, 0.2
    %v864 = vmul.f32 %v742, 0.2
    %v865 = vmul.f32 %v744, 0.2
    %v866 = vmul.f32 %v746, 0.2
    %v867 = vmul.f32 %v748, 0.2
    %v868 = vmul.f32 %v752, 0.2
    %v869 = vmul.f32 %v754, 0.2
    %v870 = vmul.f32 %v756, 0.2
    %v871 = vmul.f32 %v758, 0.2
    %v872 = vmul.f32 %v762, 0.2
    %v873 = vmul.f32 %v764, 0.2
    %v874 = vmul.f32 %v766, 0.2
    %v875 = vmul.f32 %v768, 0.2
    %v876 = vmul.f32 %v772, 0.2
    %v877 = vmul.f32 %v774, 0.2
    %v878 = vmul.f32 %v776, 0.2
    %v879 = vmul.f32 %v778, 0.2
    %v880 = vmul.f32 %v782, 0.2
    %v881 = vmul.f32 %v784, 0.2
    %v882 = vmul.f32 %v786, 0.2
    %v883 = vmul.f32 %v788, 0.2
    %v884 = vmul.f32 %v792, 0.2
    %v885 = vmul.f32 %v794, 0.2
    %v886 = vmul.f32 %v796, 0.2
    %v887 = vmul.f32 %v798, 0.2
    %v888 = vmul.f32 %v802, 0.2
    %v889 = vmul.f32 %v804, 0.2
    %v890 = vmul.f32 %v806, 0.2
    %v891 = vmul.f32 %v808, 0.2
    %v892 = vmul.f32 %v812, 0.2
    %v893 = vmul.f32 %v814, 0.2
    %v894 = vmul.f32 %v816, 0.2
    %v895 = vmul.f32 %v818, 0.2
    %v896 = vmul.f32 %v822, 0.2
    %v897 = vmul.f32 %v824, 0.2
    %v898 = vmul.f32 %v826, 0.2
    %v899 = vmul.f32 %v828, 0.2
    %v900 = vmul.f32 %v832, 0.2
    %v901 = vmul.f32 %v834, 0.2
    %v902 = vmul.f32 %v836, 0.2
    %v903 = vmul.f32 %v838, 0.2
    %v904 = vmax.f32 %v682, %v840
    %v905 = vmax.f32 %v684, %v841
    %v906 = vmax.f32 %v686, %v842
    %v907 = vmax.f32 %v688, %v843
    %v908 = vmax.f32 %v692, %v844
    %v909 = vmax.f32 %v694, %v845
    %v910 = vmax.f32 %v696, %v846
    %v911 = vmax.f32 %v698, %v847
    %v912 = vmax.f32 %v702, %v848
    %v913 = vmax.f32 %v704, %v849
    %v914 = vmax.f32 %v706, %v850
    %v915 = vmax.f32 %v708, %v851
    %v916 = vmax.f32 %v712, %v852
    %v917 = vmax.f32 %v714, %v853
    %v918 = vmax.f32 %v716, %v854
    %v919 = vmax.f32 %v718, %v855
    %v920 = vmax.f32 %v722, %v856
    %v921 = vmax.f32 %v724, %v857
    %v922 = vmax.f32 %v726, %v858
    %v923 = vmax.f32 %v728, %v859
    %v924 = vmax.f32 %v732, %v860
    %v925 = vmax.f32 %v734, %v861
    %v926 = vmax.f32 %v736, %v862
    %v927 = vmax.f32 %v738, %v863
    %v928 = vmax.f32 %v742, %v864
    %v929 = vmax.f32 %v744, %v865
    %v930 = vmax.f32 %v746, %v866
    %v931 = vmax.f32 %v748, %v867
    %v932 = vmax.f32 %v752, %v868
    %v933 = vmax.f32 %v754, %v869
    %v934 = vmax.f32 %v756, %v870
    %v935 = vmax.f32 %v758, %v871
    %v936 = vmax.f32 %v762, %v872
    %v937 = vmax.f32 %v764, %v873
    %v938 = vmax.f32 %v766, %v874
    %v939 = vmax.f32 %v768, %v875
    %v940 = vmax.f32 %v772, %v876
    %v941 = vmax.f32 %v774, %v877
    %v942 = vmax.f32 %v776, %v878
    %v943 = vmax.f32 %v778, %v879
    %v944 = vmax.f32 %v782, %v880
    %v945 = vmax.f32 %v784, %v881
    %v946 = vmax.f32 %v786, %v882
    %v947 = vmax.f32 %v788, %v883
    %v948 = vmax.f32 %v792, %v884
    %v949 = vmax.f32 %v794, %v885
    %v950 = vmax.f32 %v796, %v886
    %v951 = vmax.f32 %v798, %v887
    %v952 = vmax.f32 %v802, %v888
    %v953 = vmax.f32 %v804, %v889
    %v954 = vmax.f32 %v806, %v890
    %v955 = vmax.f32 %v808, %v891
    %v956 = vmax.f32 %v812, %v892
    %v957 = vmax.f32 %v814, %v893
    %v958 = vmax.f32 %v816, %v894
    %v959 = vmax.f32 %v818, %v895
    %v960 = vmax.f32 %v822, %v896
    %v961 = vmax.f32 %v824, %v897
    %v962 = vmax.f32 %v826, %v898
    %v963 = vmax.f32 %v828, %v899
    %v964 = vmax.f32 %v832, %v900
    %v965 = vmax.f32 %v834, %v901
    %v966 = vmax.f32 %v836, %v902
    %v967 = vmax.f32 %v838, %v903
    %v968 = vpack.c.bf16 %v906, %v904
    %v969 = vpack.c.bf16 %v907, %v905
    %v970 = vpack.c.bf16 %v910, %v908
    %v971 = vpack.c.bf16 %v911, %v909
    %v972 = vpack.c.bf16 %v914, %v912
    %v973 = vpack.c.bf16 %v915, %v913
    %v974 = vpack.c.bf16 %v918, %v916
    %v975 = vpack.c.bf16 %v919, %v917
    %v976 = vpack.c.bf16 %v922, %v920
    %v977 = vpack.c.bf16 %v923, %v921
    %v978 = vpack.c.bf16 %v926, %v924
    %v979 = vpack.c.bf16 %v927, %v925
    %v980 = vpack.c.bf16 %v930, %v928
    %v981 = vpack.c.bf16 %v931, %v929
    %v982 = vpack.c.bf16 %v934, %v932
    %v983 = vpack.c.bf16 %v935, %v933
    %v984 = vpack.c.bf16 %v938, %v936
    %v985 = vpack.c.bf16 %v939, %v937
    %v986 = vpack.c.bf16 %v942, %v940
    %v987 = vpack.c.bf16 %v943, %v941
    %v988 = vpack.c.bf16 %v946, %v944
    %v989 = vpack.c.bf16 %v947, %v945
    %v990 = vpack.c.bf16 %v950, %v948
    %v991 = vpack.c.bf16 %v951, %v949
    %v992 = vpack.c.bf16 %v954, %v952
    %v993 = vpack.c.bf16 %v955, %v953
    %v994 = vpack.c.bf16 %v958, %v956
    %v995 = vpack.c.bf16 %v959, %v957
    %v996 = vpack.c.bf16 %v962, %v960
    %v997 = vpack.c.bf16 %v963, %v961
    %v998 = vpack.c.bf16 %v966, %v964
    %v999 = vpack.c.bf16 %v967, %v965
    %v1000 = vld [vmem:[#allocation11] sm:$0xff]
    %v1001 = vld [vmem:[#allocation11 + $0x8] sm:$0xff]
    %v1002 = vld [vmem:[#allocation11 + $0x10] sm:$0xff]
    %v1003 = vld [vmem:[#allocation11 + $0x18] sm:$0xff]
    %v1004 = vld [vmem:[#allocation11 + $0x20] sm:$0xff]
    %v1005 = vld [vmem:[#allocation11 + $0x28] sm:$0xff]
    %v1006 = vld [vmem:[#allocation11 + $0x30] sm:$0xff]
    %v1007 = vld [vmem:[#allocation11 + $0x38] sm:$0xff]
    %v1008 = vld [vmem:[#allocation11 + $0x40] sm:$0xff]
    %v1009 = vld [vmem:[#allocation11 + $0x48] sm:$0xff]
    %v1010 = vld [vmem:[#allocation11 + $0x50] sm:$0xff]
    %v1011 = vld [vmem:[#allocation11 + $0x58] sm:$0xff]
    %v1012 = vld [vmem:[#allocation11 + $0x60] sm:$0xff]
    %v1013 = vld [vmem:[#allocation11 + $0x68] sm:$0xff]
    %v1014 = vld [vmem:[#allocation11 + $0x70] sm:$0xff]
    %v1015 = vld [vmem:[#allocation11 + $0x78] sm:$0xff]
    %v1016 = vld [vmem:[#allocation11 + $0x80] sm:$0xff]
    %v1017 = vld [vmem:[#allocation11 + $0x88] sm:$0xff]
    %v1018 = vld [vmem:[#allocation11 + $0x90] sm:$0xff]
    %v1019 = vld [vmem:[#allocation11 + $0x98] sm:$0xff]
    %v1020 = vld [vmem:[#allocation11 + $0xa0] sm:$0xff]
    %v1021 = vld [vmem:[#allocation11 + $0xa8] sm:$0xff]
    %v1022 = vld [vmem:[#allocation11 + $0xb0] sm:$0xff]
    %v1023 = vld [vmem:[#allocation11 + $0xb8] sm:$0xff]
    %v1024 = vld [vmem:[#allocation11 + $0xc0] sm:$0xff]
    %v1025 = vld [vmem:[#allocation11 + $0xc8] sm:$0xff]
    %v1026 = vld [vmem:[#allocation11 + $0xd0] sm:$0xff]
    %v1027 = vld [vmem:[#allocation11 + $0xd8] sm:$0xff]
    %v1028 = vld [vmem:[#allocation11 + $0xe0] sm:$0xff]
    %v1029 = vld [vmem:[#allocation11 + $0xe8] sm:$0xff]
    %v1030 = vld [vmem:[#allocation11 + $0xf0] sm:$0xff]
    %v1031 = vld [vmem:[#allocation11 + $0xf8] sm:$0xff]
    %v1032 = vld [vmem:[#allocation11 + $0x100] sm:$0xff]
    %v1033 = vld [vmem:[#allocation11 + $0x108] sm:$0xff]
    %v1034 = vld [vmem:[#allocation11 + $0x110] sm:$0xff]
    %v1035 = vld [vmem:[#allocation11 + $0x118] sm:$0xff]
    %v1036 = vld [vmem:[#allocation11 + $0x120] sm:$0xff]
    %v1037 = vld [vmem:[#allocation11 + $0x128] sm:$0xff]
    %v1038 = vld [vmem:[#allocation11 + $0x130] sm:$0xff]
    %v1039 = vld [vmem:[#allocation11 + $0x138] sm:$0xff]
    %v1040 = vld [vmem:[#allocation11 + $0x140] sm:$0xff]
    %v1041 = vld [vmem:[#allocation11 + $0x148] sm:$0xff]
    %v1042 = vld [vmem:[#allocation11 + $0x150] sm:$0xff]
    %v1043 = vld [vmem:[#allocation11 + $0x158] sm:$0xff]
    %v1044 = vld [vmem:[#allocation11 + $0x160] sm:$0xff]
    %v1045 = vld [vmem:[#allocation11 + $0x168] sm:$0xff]
    %v1046 = vld [vmem:[#allocation11 + $0x170] sm:$0xff]
    %v1047 = vld [vmem:[#allocation11 + $0x178] sm:$0xff]
    %v1048 = vld [vmem:[#allocation11 + $0x180] sm:$0xff]
    %v1049 = vld [vmem:[#allocation11 + $0x188] sm:$0xff]
    %v1050 = vld [vmem:[#allocation11 + $0x190] sm:$0xff]
    %v1051 = vld [vmem:[#allocation11 + $0x198] sm:$0xff]
    %v1052 = vld [vmem:[#allocation11 + $0x1a0] sm:$0xff]
    %v1053 = vld [vmem:[#allocation11 + $0x1a8] sm:$0xff]
    %v1054 = vld [vmem:[#allocation11 + $0x1b0] sm:$0xff]
    %v1055 = vld [vmem:[#allocation11 + $0x1b8] sm:$0xff]
    %v1056 = vld [vmem:[#allocation11 + $0x1c0] sm:$0xff]
    %v1057 = vld [vmem:[#allocation11 + $0x1c8] sm:$0xff]
    %v1058 = vld [vmem:[#allocation11 + $0x1d0] sm:$0xff]
    %v1059 = vld [vmem:[#allocation11 + $0x1d8] sm:$0xff]
    %v1060 = vld [vmem:[#allocation11 + $0x1e0] sm:$0xff]
    %v1061 = vld [vmem:[#allocation11 + $0x1e8] sm:$0xff]
    %v1062 = vld [vmem:[#allocation11 + $0x1f0] sm:$0xff]
    %v1063 = vld [vmem:[#allocation11 + $0x1f8] sm:$0xff]
    %v1064 = vld [vmem:[#allocation13] sm:$0xf]
    %v1066 = vlaneseq
    %v1067 = vshrl.u32 %v1066, 7
    %v1068 = vsub.s32 0, %v1067
    %v1069 = vrot.slane %v1064, %v1068
    %v1070 = vlaneseq
    %v1071 = vshrl.u32 %v1070, 7
    %v1072 = vsub.s32 1, %v1071
    %v1073 = vrot.slane %v1064, %v1072
    %v1074 = vlaneseq
    %v1075 = vshrl.u32 %v1074, 7
    %v1076 = vsub.s32 2, %v1075
    %v1077 = vrot.slane %v1064, %v1076
    %v1078 = vlaneseq
    %v1079 = vshrl.u32 %v1078, 7
    %v1080 = vsub.s32 3, %v1079
    %v1081 = vrot.slane %v1064, %v1080
    %v1150 = vunpack.c.l.b16 %v1000
    %v1151 = vunpack.c.h.b16 %v1000
    %v1152 = vunpack.c.l.b16 %v1001
    %v1153 = vunpack.c.h.b16 %v1001
    %v1154 = vunpack.c.l.b16 %v1002
    %v1155 = vunpack.c.h.b16 %v1002
    %v1156 = vunpack.c.l.b16 %v1003
    %v1157 = vunpack.c.h.b16 %v1003
    %v1158 = vunpack.c.l.b16 %v1004
    %v1159 = vunpack.c.h.b16 %v1004
    %v1160 = vunpack.c.l.b16 %v1005
    %v1161 = vunpack.c.h.b16 %v1005
    %v1162 = vunpack.c.l.b16 %v1006
    %v1163 = vunpack.c.h.b16 %v1006
    %v1164 = vunpack.c.l.b16 %v1007
    %v1165 = vunpack.c.h.b16 %v1007
    %v1166 = vunpack.c.l.b16 %v1008
    %v1167 = vunpack.c.h.b16 %v1008
    %v1168 = vunpack.c.l.b16 %v1009
    %v1169 = vunpack.c.h.b16 %v1009
    %v1170 = vunpack.c.l.b16 %v1010
    %v1171 = vunpack.c.h.b16 %v1010
    %v1172 = vunpack.c.l.b16 %v1011
    %v1173 = vunpack.c.h.b16 %v1011
    %v1174 = vunpack.c.l.b16 %v1012
    %v1175 = vunpack.c.h.b16 %v1012
    %v1176 = vunpack.c.l.b16 %v1013
    %v1177 = vunpack.c.h.b16 %v1013
    %v1178 = vunpack.c.l.b16 %v1014
    %v1179 = vunpack.c.h.b16 %v1014
    %v1180 = vunpack.c.l.b16 %v1015
    %v1181 = vunpack.c.h.b16 %v1015
    %v1182 = vunpack.c.l.b16 %v1016
    %v1183 = vunpack.c.h.b16 %v1016
    %v1184 = vunpack.c.l.b16 %v1017
    %v1185 = vunpack.c.h.b16 %v1017
    %v1186 = vunpack.c.l.b16 %v1018
    %v1187 = vunpack.c.h.b16 %v1018
    %v1188 = vunpack.c.l.b16 %v1019
    %v1189 = vunpack.c.h.b16 %v1019
    %v1190 = vunpack.c.l.b16 %v1020
    %v1191 = vunpack.c.h.b16 %v1020
    %v1192 = vunpack.c.l.b16 %v1021
    %v1193 = vunpack.c.h.b16 %v1021
    %v1194 = vunpack.c.l.b16 %v1022
    %v1195 = vunpack.c.h.b16 %v1022
    %v1196 = vunpack.c.l.b16 %v1023
    %v1197 = vunpack.c.h.b16 %v1023
    %v1198 = vunpack.c.l.b16 %v1024
    %v1199 = vunpack.c.h.b16 %v1024
    %v1200 = vunpack.c.l.b16 %v1025
    %v1201 = vunpack.c.h.b16 %v1025
    %v1202 = vunpack.c.l.b16 %v1026
    %v1203 = vunpack.c.h.b16 %v1026
    %v1204 = vunpack.c.l.b16 %v1027
    %v1205 = vunpack.c.h.b16 %v1027
    %v1206 = vunpack.c.l.b16 %v1028
    %v1207 = vunpack.c.h.b16 %v1028
    %v1208 = vunpack.c.l.b16 %v1029
    %v1209 = vunpack.c.h.b16 %v1029
    %v1210 = vunpack.c.l.b16 %v1030
    %v1211 = vunpack.c.h.b16 %v1030
    %v1212 = vunpack.c.l.b16 %v1031
    %v1213 = vunpack.c.h.b16 %v1031
    %v1214 = vunpack.c.l.b16 %v1032
    %v1215 = vunpack.c.h.b16 %v1032
    %v1216 = vunpack.c.l.b16 %v1033
    %v1217 = vunpack.c.h.b16 %v1033
    %v1218 = vunpack.c.l.b16 %v1034
    %v1219 = vunpack.c.h.b16 %v1034
    %v1220 = vunpack.c.l.b16 %v1035
    %v1221 = vunpack.c.h.b16 %v1035
    %v1222 = vunpack.c.l.b16 %v1036
    %v1223 = vunpack.c.h.b16 %v1036
    %v1224 = vunpack.c.l.b16 %v1037
    %v1225 = vunpack.c.h.b16 %v1037
    %v1226 = vunpack.c.l.b16 %v1038
    %v1227 = vunpack.c.h.b16 %v1038
    %v1228 = vunpack.c.l.b16 %v1039
    %v1229 = vunpack.c.h.b16 %v1039
    %v1230 = vunpack.c.l.b16 %v1040
    %v1231 = vunpack.c.h.b16 %v1040
    %v1232 = vunpack.c.l.b16 %v1041
    %v1233 = vunpack.c.h.b16 %v1041
    %v1234 = vunpack.c.l.b16 %v1042
    %v1235 = vunpack.c.h.b16 %v1042
    %v1236 = vunpack.c.l.b16 %v1043
    %v1237 = vunpack.c.h.b16 %v1043
    %v1238 = vunpack.c.l.b16 %v1044
    %v1239 = vunpack.c.h.b16 %v1044
    %v1240 = vunpack.c.l.b16 %v1045
    %v1241 = vunpack.c.h.b16 %v1045
    %v1242 = vunpack.c.l.b16 %v1046
    %v1243 = vunpack.c.h.b16 %v1046
    %v1244 = vunpack.c.l.b16 %v1047
    %v1245 = vunpack.c.h.b16 %v1047
    %v1246 = vunpack.c.l.b16 %v1048
    %v1247 = vunpack.c.h.b16 %v1048
    %v1248 = vunpack.c.l.b16 %v1049
    %v1249 = vunpack.c.h.b16 %v1049
    %v1250 = vunpack.c.l.b16 %v1050
    %v1251 = vunpack.c.h.b16 %v1050
    %v1252 = vunpack.c.l.b16 %v1051
    %v1253 = vunpack.c.h.b16 %v1051
    %v1254 = vunpack.c.l.b16 %v1052
    %v1255 = vunpack.c.h.b16 %v1052
    %v1256 = vunpack.c.l.b16 %v1053
    %v1257 = vunpack.c.h.b16 %v1053
    %v1258 = vunpack.c.l.b16 %v1054
    %v1259 = vunpack.c.h.b16 %v1054
    %v1260 = vunpack.c.l.b16 %v1055
    %v1261 = vunpack.c.h.b16 %v1055
    %v1262 = vunpack.c.l.b16 %v1056
    %v1263 = vunpack.c.h.b16 %v1056
    %v1264 = vunpack.c.l.b16 %v1057
    %v1265 = vunpack.c.h.b16 %v1057
    %v1266 = vunpack.c.l.b16 %v1058
    %v1267 = vunpack.c.h.b16 %v1058
    %v1268 = vunpack.c.l.b16 %v1059
    %v1269 = vunpack.c.h.b16 %v1059
    %v1270 = vunpack.c.l.b16 %v1060
    %v1271 = vunpack.c.h.b16 %v1060
    %v1272 = vunpack.c.l.b16 %v1061
    %v1273 = vunpack.c.h.b16 %v1061
    %v1274 = vunpack.c.l.b16 %v1062
    %v1275 = vunpack.c.h.b16 %v1062
    %v1276 = vunpack.c.l.b16 %v1063
    %v1277 = vunpack.c.h.b16 %v1063
    %v1278 = vpack.c.b16 %v1154, %v1150
    %v1279 = vpack.c.b16 %v1155, %v1151
    %v1280 = vpack.c.b16 %v1156, %v1152
    %v1281 = vpack.c.b16 %v1157, %v1153
    %v1282 = vpack.c.b16 %v1162, %v1158
    %v1283 = vpack.c.b16 %v1163, %v1159
    %v1284 = vpack.c.b16 %v1164, %v1160
    %v1285 = vpack.c.b16 %v1165, %v1161
    %v1286 = vpack.c.b16 %v1170, %v1166
    %v1287 = vpack.c.b16 %v1171, %v1167
    %v1288 = vpack.c.b16 %v1172, %v1168
    %v1289 = vpack.c.b16 %v1173, %v1169
    %v1290 = vpack.c.b16 %v1178, %v1174
    %v1291 = vpack.c.b16 %v1179, %v1175
    %v1292 = vpack.c.b16 %v1180, %v1176
    %v1293 = vpack.c.b16 %v1181, %v1177
    %v1294 = vpack.c.b16 %v1186, %v1182
    %v1295 = vpack.c.b16 %v1187, %v1183
    %v1296 = vpack.c.b16 %v1188, %v1184
    %v1297 = vpack.c.b16 %v1189, %v1185
    %v1298 = vpack.c.b16 %v1194, %v1190
    %v1299 = vpack.c.b16 %v1195, %v1191
    %v1300 = vpack.c.b16 %v1196, %v1192
    %v1301 = vpack.c.b16 %v1197, %v1193
    %v1302 = vpack.c.b16 %v1202, %v1198
    %v1303 = vpack.c.b16 %v1203, %v1199
    %v1304 = vpack.c.b16 %v1204, %v1200
    %v1305 = vpack.c.b16 %v1205, %v1201
    %v1306 = vpack.c.b16 %v1210, %v1206
    %v1307 = vpack.c.b16 %v1211, %v1207
    %v1308 = vpack.c.b16 %v1212, %v1208
    %v1309 = vpack.c.b16 %v1213, %v1209
    %v1310 = vpack.c.b16 %v1218, %v1214
    %v1311 = vpack.c.b16 %v1219, %v1215
    %v1312 = vpack.c.b16 %v1220, %v1216
    %v1313 = vpack.c.b16 %v1221, %v1217
    %v1314 = vpack.c.b16 %v1226, %v1222
    %v1315 = vpack.c.b16 %v1227, %v1223
    %v1316 = vpack.c.b16 %v1228, %v1224
    %v1317 = vpack.c.b16 %v1229, %v1225
    %v1318 = vpack.c.b16 %v1234, %v1230
    %v1319 = vpack.c.b16 %v1235, %v1231
    %v1320 = vpack.c.b16 %v1236, %v1232
    %v1321 = vpack.c.b16 %v1237, %v1233
    %v1322 = vpack.c.b16 %v1242, %v1238
    %v1323 = vpack.c.b16 %v1243, %v1239
    %v1324 = vpack.c.b16 %v1244, %v1240
    %v1325 = vpack.c.b16 %v1245, %v1241
    %v1326 = vpack.c.b16 %v1250, %v1246
    %v1327 = vpack.c.b16 %v1251, %v1247
    %v1328 = vpack.c.b16 %v1252, %v1248
    %v1329 = vpack.c.b16 %v1253, %v1249
    %v1330 = vpack.c.b16 %v1258, %v1254
    %v1331 = vpack.c.b16 %v1259, %v1255
    %v1332 = vpack.c.b16 %v1260, %v1256
    %v1333 = vpack.c.b16 %v1261, %v1257
    %v1334 = vpack.c.b16 %v1266, %v1262
    %v1335 = vpack.c.b16 %v1267, %v1263
    %v1336 = vpack.c.b16 %v1268, %v1264
    %v1337 = vpack.c.b16 %v1269, %v1265
    %v1338 = vpack.c.b16 %v1274, %v1270
    %v1339 = vpack.c.b16 %v1275, %v1271
    %v1340 = vpack.c.b16 %v1276, %v1272
    %v1341 = vpack.c.b16 %v1277, %v1273
    %1406 = vmatprep.subr.bf16.mxu0 %v1279
    %1407 = vmatpush1.bf16.msra.mxu0 %v1278
    %1408 = vmatprep.subr.bf16.mxu0 %v1283
    %1409 = vmatpush1.bf16.msra.mxu0 %v1282
    %1410 = vmatprep.subr.bf16.mxu0 %v1287
    %1411 = vmatpush1.bf16.msra.mxu0 %v1286
    %1412 = vmatprep.subr.bf16.mxu0 %v1291
    %1413 = vmatpush1.bf16.msra.mxu0 %v1290
    %1414 = vmatprep.subr.bf16.mxu0 %v1295
    %1415 = vmatpush1.bf16.msra.mxu0 %v1294
    %1416 = vmatprep.subr.bf16.mxu0 %v1299
    %1417 = vmatpush1.bf16.msra.mxu0 %v1298
    %1418 = vmatprep.subr.bf16.mxu0 %v1303
    %1419 = vmatpush1.bf16.msra.mxu0 %v1302
    %1420 = vmatprep.subr.bf16.mxu0 %v1307
    %1421 = vmatpush1.bf16.msra.mxu0 %v1306
    %1422 = vmatprep.subr.bf16.mxu0 %v1311
    %1423 = vmatpush1.bf16.msra.mxu0 %v1310
    %1424 = vmatprep.subr.bf16.mxu0 %v1315
    %1425 = vmatpush1.bf16.msra.mxu0 %v1314
    %1426 = vmatprep.subr.bf16.mxu0 %v1319
    %1427 = vmatpush1.bf16.msra.mxu0 %v1318
    %1428 = vmatprep.subr.bf16.mxu0 %v1323
    %1429 = vmatpush1.bf16.msra.mxu0 %v1322
    %1430 = vmatprep.subr.bf16.mxu0 %v1327
    %1431 = vmatpush1.bf16.msra.mxu0 %v1326
    %1432 = vmatprep.subr.bf16.mxu0 %v1331
    %1433 = vmatpush1.bf16.msra.mxu0 %v1330
    %1434 = vmatprep.subr.bf16.mxu0 %v1335
    %1435 = vmatpush1.bf16.msra.mxu0 %v1334
    %1436 = vmatprep.subr.bf16.mxu0 %v1339
    %1437 = vmatpush1.bf16.msra.mxu0 %v1338
    %1438 = vmatprep.mubr.bf16.mxu0 %v969
    %1439 = vmatmul.mubr.bf16.gmra.mrb[0].mxu0 %v968
    %v1440 = vpop.f32.mrb[0].mxu0
    %v1441 = vadd.f32 %v1069, %v1440
    %v1442 = vpop.f32.mrb[0].mxu0
    %v1443 = vadd.f32 %v1073, %v1442
    %v1444 = vpop.f32.mrb[0].mxu0
    %v1445 = vadd.f32 %v1069, %v1444
    %v1446 = vpop.f32.mrb[0].mxu0
    %v1447 = vadd.f32 %v1073, %v1446
    %1448 = vmatprep.mubr.bf16.mxu0 %v971
    %1449 = vmatmul.mubr.bf16.gmra.mrb[0].mxu0 %v970
    %v1450 = vpop.f32.mrb[0].mxu0
    %v1451 = vadd.f32 %v1069, %v1450
    %v1452 = vpop.f32.mrb[0].mxu0
    %v1453 = vadd.f32 %v1073, %v1452
    %v1454 = vpop.f32.mrb[0].mxu0
    %v1455 = vadd.f32 %v1069, %v1454
    %v1456 = vpop.f32.mrb[0].mxu0
    %v1457 = vadd.f32 %v1073, %v1456
    %1458 = vmatprep.mubr.bf16.mxu0 %v973
    %1459 = vmatmul.mubr.bf16.gmra.mrb[0].mxu0 %v972
    %v1460 = vpop.f32.mrb[0].mxu0
    %v1461 = vadd.f32 %v1069, %v1460
    %v1462 = vpop.f32.mrb[0].mxu0
    %v1463 = vadd.f32 %v1073, %v1462
    %v1464 = vpop.f32.mrb[0].mxu0
    %v1465 = vadd.f32 %v1069, %v1464
    %v1466 = vpop.f32.mrb[0].mxu0
    %v1467 = vadd.f32 %v1073, %v1466
    %1468 = vmatprep.mubr.bf16.mxu0 %v975
    %1469 = vmatmul.mubr.bf16.gmra.mrb[0].mxu0 %v974
    %v1470 = vpop.f32.mrb[0].mxu0
    %v1471 = vadd.f32 %v1069, %v1470
    %v1472 = vpop.f32.mrb[0].mxu0
    %v1473 = vadd.f32 %v1073, %v1472
    %v1474 = vpop.f32.mrb[0].mxu0
    %v1475 = vadd.f32 %v1069, %v1474
    %v1476 = vpop.f32.mrb[0].mxu0
    %v1477 = vadd.f32 %v1073, %v1476
    %1478 = vmatprep.mubr.bf16.mxu0 %v977
    %1479 = vmatmul.mubr.bf16.gmra.mrb[0].mxu0 %v976
    %v1480 = vpop.f32.mrb[0].mxu0
    %v1481 = vadd.f32 %v1069, %v1480
    %v1482 = vpop.f32.mrb[0].mxu0
    %v1483 = vadd.f32 %v1073, %v1482
    %v1484 = vpop.f32.mrb[0].mxu0
    %v1485 = vadd.f32 %v1069, %v1484
    %v1486 = vpop.f32.mrb[0].mxu0
    %v1487 = vadd.f32 %v1073, %v1486
    %1488 = vmatprep.mubr.bf16.mxu0 %v979
    %1489 = vmatmul.mubr.bf16.gmra.mrb[0].mxu0 %v978
    %v1490 = vpop.f32.mrb[0].mxu0
    %v1491 = vadd.f32 %v1069, %v1490
    %v1492 = vpop.f32.mrb[0].mxu0
    %v1493 = vadd.f32 %v1073, %v1492
    %v1494 = vpop.f32.mrb[0].mxu0
    %v1495 = vadd.f32 %v1069, %v1494
    %v1496 = vpop.f32.mrb[0].mxu0
    %v1497 = vadd.f32 %v1073, %v1496
    %1498 = vmatprep.mubr.bf16.mxu0 %v981
    %1499 = vmatmul.mubr.bf16.gmra.mrb[0].mxu0 %v980
    %v1500 = vpop.f32.mrb[0].mxu0
    %v1501 = vadd.f32 %v1069, %v1500
    %v1502 = vpop.f32.mrb[0].mxu0
    %v1503 = vadd.f32 %v1073, %v1502
    %v1504 = vpop.f32.mrb[0].mxu0
    %v1505 = vadd.f32 %v1069, %v1504
    %v1506 = vpop.f32.mrb[0].mxu0
    %v1507 = vadd.f32 %v1073, %v1506
    %1508 = vmatprep.mubr.bf16.mxu0 %v983
    %1509 = vmatmul.mubr.bf16.gmra.mrb[0].mxu0 %v982
    %v1510 = vpop.f32.mrb[0].mxu0
    %v1511 = vadd.f32 %v1069, %v1510
    %v1512 = vpop.f32.mrb[0].mxu0
    %v1513 = vadd.f32 %v1073, %v1512
    %v1514 = vpop.f32.mrb[0].mxu0
    %v1515 = vadd.f32 %v1069, %v1514
    %v1516 = vpop.f32.mrb[0].mxu0
    %v1517 = vadd.f32 %v1073, %v1516
    %1518 = vmatprep.mubr.bf16.mxu0 %v985
    %1519 = vmatmul.mubr.bf16.gmra.mrb[0].mxu0 %v984
    %v1520 = vpop.f32.mrb[0].mxu0
    %v1521 = vadd.f32 %v1069, %v1520
    %v1522 = vpop.f32.mrb[0].mxu0
    %v1523 = vadd.f32 %v1073, %v1522
    %v1524 = vpop.f32.mrb[0].mxu0
    %v1525 = vadd.f32 %v1069, %v1524
    %v1526 = vpop.f32.mrb[0].mxu0
    %v1527 = vadd.f32 %v1073, %v1526
    %1528 = vmatprep.mubr.bf16.mxu0 %v987
    %1529 = vmatmul.mubr.bf16.gmra.mrb[0].mxu0 %v986
    %v1530 = vpop.f32.mrb[0].mxu0
    %v1531 = vadd.f32 %v1069, %v1530
    %v1532 = vpop.f32.mrb[0].mxu0
    %v1533 = vadd.f32 %v1073, %v1532
    %v1534 = vpop.f32.mrb[0].mxu0
    %v1535 = vadd.f32 %v1069, %v1534
    %v1536 = vpop.f32.mrb[0].mxu0
    %v1537 = vadd.f32 %v1073, %v1536
    %1538 = vmatprep.mubr.bf16.mxu0 %v989
    %1539 = vmatmul.mubr.bf16.gmra.mrb[0].mxu0 %v988
    %v1540 = vpop.f32.mrb[0].mxu0
    %v1541 = vadd.f32 %v1069, %v1540
    %v1542 = vpop.f32.mrb[0].mxu0
    %v1543 = vadd.f32 %v1073, %v1542
    %v1544 = vpop.f32.mrb[0].mxu0
    %v1545 = vadd.f32 %v1069, %v1544
    %v1546 = vpop.f32.mrb[0].mxu0
    %v1547 = vadd.f32 %v1073, %v1546
    %1548 = vmatprep.mubr.bf16.mxu0 %v991
    %1549 = vmatmul.mubr.bf16.gmra.mrb[0].mxu0 %v990
    %v1550 = vpop.f32.mrb[0].mxu0
    %v1551 = vadd.f32 %v1069, %v1550
    %v1552 = vpop.f32.mrb[0].mxu0
    %v1553 = vadd.f32 %v1073, %v1552
    %v1554 = vpop.f32.mrb[0].mxu0
    %v1555 = vadd.f32 %v1069, %v1554
    %v1556 = vpop.f32.mrb[0].mxu0
    %v1557 = vadd.f32 %v1073, %v1556
    %1558 = vmatprep.mubr.bf16.mxu0 %v993
    %1559 = vmatmul.mubr.bf16.gmra.mrb[0].mxu0 %v992
    %v1560 = vpop.f32.mrb[0].mxu0
    %v1561 = vadd.f32 %v1069, %v1560
    %v1562 = vpop.f32.mrb[0].mxu0
    %v1563 = vadd.f32 %v1073, %v1562
    %v1564 = vpop.f32.mrb[0].mxu0
    %v1565 = vadd.f32 %v1069, %v1564
    %v1566 = vpop.f32.mrb[0].mxu0
    %v1567 = vadd.f32 %v1073, %v1566
    %1568 = vmatprep.mubr.bf16.mxu0 %v995
    %1569 = vmatmul.mubr.bf16.gmra.mrb[0].mxu0 %v994
    %v1570 = vpop.f32.mrb[0].mxu0
    %v1571 = vadd.f32 %v1069, %v1570
    %v1572 = vpop.f32.mrb[0].mxu0
    %v1573 = vadd.f32 %v1073, %v1572
    %v1574 = vpop.f32.mrb[0].mxu0
    %v1575 = vadd.f32 %v1069, %v1574
    %v1576 = vpop.f32.mrb[0].mxu0
    %v1577 = vadd.f32 %v1073, %v1576
    %1578 = vmatprep.mubr.bf16.mxu0 %v997
    %1579 = vmatmul.mubr.bf16.gmra.mrb[0].mxu0 %v996
    %v1580 = vpop.f32.mrb[0].mxu0
    %v1581 = vadd.f32 %v1069, %v1580
    %v1582 = vpop.f32.mrb[0].mxu0
    %v1583 = vadd.f32 %v1073, %v1582
    %v1584 = vpop.f32.mrb[0].mxu0
    %v1585 = vadd.f32 %v1069, %v1584
    %v1586 = vpop.f32.mrb[0].mxu0
    %v1587 = vadd.f32 %v1073, %v1586
    %1588 = vmatprep.mubr.bf16.mxu0 %v999
    %1589 = vmatmul.mubr.bf16.gmra.mrb[0].mxu0 %v998
    %v1590 = vpop.f32.mrb[0].mxu0
    %v1591 = vadd.f32 %v1069, %v1590
    %v1592 = vpop.f32.mrb[0].mxu0
    %v1593 = vadd.f32 %v1073, %v1592
    %v1594 = vpop.f32.mrb[0].mxu0
    %v1595 = vadd.f32 %v1069, %v1594
    %v1596 = vpop.f32.mrb[0].mxu0
    %v1597 = vadd.f32 %v1073, %v1596
    %1598 = vdwg.mxu0
    %1599 = vmatprep.subr.bf16.mxu0 %v1281
    %1600 = vmatpush1.bf16.msra.mxu0 %v1280
    %1601 = vmatprep.subr.bf16.mxu0 %v1285
    %1602 = vmatpush1.bf16.msra.mxu0 %v1284
    %1603 = vmatprep.subr.bf16.mxu0 %v1289
    %1604 = vmatpush1.bf16.msra.mxu0 %v1288
    %1605 = vmatprep.subr.bf16.mxu0 %v1293
    %1606 = vmatpush1.bf16.msra.mxu0 %v1292
    %1607 = vmatprep.subr.bf16.mxu0 %v1297
    %1608 = vmatpush1.bf16.msra.mxu0 %v1296
    %1609 = vmatprep.subr.bf16.mxu0 %v1301
    %1610 = vmatpush1.bf16.msra.mxu0 %v1300
    %1611 = vmatprep.subr.bf16.mxu0 %v1305
    %1612 = vmatpush1.bf16.msra.mxu0 %v1304
    %1613 = vmatprep.subr.bf16.mxu0 %v1309
    %1614 = vmatpush1.bf16.msra.mxu0 %v1308
    %1615 = vmatprep.subr.bf16.mxu0 %v1313
    %1616 = vmatpush1.bf16.msra.mxu0 %v1312
    %1617 = vmatprep.subr.bf16.mxu0 %v1317
    %1618 = vmatpush1.bf16.msra.mxu0 %v1316
    %1619 = vmatprep.subr.bf16.mxu0 %v1321
    %1620 = vmatpush1.bf16.msra.mxu0 %v1320
    %1621 = vmatprep.subr.bf16.mxu0 %v1325
    %1622 = vmatpush1.bf16.msra.mxu0 %v1324
    %1623 = vmatprep.subr.bf16.mxu0 %v1329
    %1624 = vmatpush1.bf16.msra.mxu0 %v1328
    %1625 = vmatprep.subr.bf16.mxu0 %v1333
    %1626 = vmatpush1.bf16.msra.mxu0 %v1332
    %1627 = vmatprep.subr.bf16.mxu0 %v1337
    %1628 = vmatpush1.bf16.msra.mxu0 %v1336
    %1629 = vmatprep.subr.bf16.mxu0 %v1341
    %1630 = vmatpush1.bf16.msra.mxu0 %v1340
    %1631 = vmatprep.mubr.bf16.mxu0 %v969
    %1632 = vmatmul.mubr.bf16.gmra.mrb[0].mxu0 %v968
    %v1633 = vpop.f32.mrb[0].mxu0
    %v1634 = vadd.f32 %v1077, %v1633
    %v1635 = vpop.f32.mrb[0].mxu0
    %v1636 = vadd.f32 %v1081, %v1635
    %v1637 = vpop.f32.mrb[0].mxu0
    %v1638 = vadd.f32 %v1077, %v1637
    %v1639 = vpop.f32.mrb[0].mxu0
    %v1640 = vadd.f32 %v1081, %v1639
    %1641 = vmatprep.mubr.bf16.mxu0 %v971
    %1642 = vmatmul.mubr.bf16.gmra.mrb[0].mxu0 %v970
    %v1643 = vpop.f32.mrb[0].mxu0
    %v1644 = vadd.f32 %v1077, %v1643
    %v1645 = vpop.f32.mrb[0].mxu0
    %v1646 = vadd.f32 %v1081, %v1645
    %v1647 = vpop.f32.mrb[0].mxu0
    %v1648 = vadd.f32 %v1077, %v1647
    %v1649 = vpop.f32.mrb[0].mxu0
    %v1650 = vadd.f32 %v1081, %v1649
    %1651 = vmatprep.mubr.bf16.mxu0 %v973
    %1652 = vmatmul.mubr.bf16.gmra.mrb[0].mxu0 %v972
    %v1653 = vpop.f32.mrb[0].mxu0
    %v1654 = vadd.f32 %v1077, %v1653
    %v1655 = vpop.f32.mrb[0].mxu0
    %v1656 = vadd.f32 %v1081, %v1655
    %v1657 = vpop.f32.mrb[0].mxu0
    %v1658 = vadd.f32 %v1077, %v1657
    %v1659 = vpop.f32.mrb[0].mxu0
    %v1660 = vadd.f32 %v1081, %v1659
    %1661 = vmatprep.mubr.bf16.mxu0 %v975
    %1662 = vmatmul.mubr.bf16.gmra.mrb[0].mxu0 %v974
    %v1663 = vpop.f32.mrb[0].mxu0
    %v1664 = vadd.f32 %v1077, %v1663
    %v1665 = vpop.f32.mrb[0].mxu0
    %v1666 = vadd.f32 %v1081, %v1665
    %v1667 = vpop.f32.mrb[0].mxu0
    %v1668 = vadd.f32 %v1077, %v1667
    %v1669 = vpop.f32.mrb[0].mxu0
    %v1670 = vadd.f32 %v1081, %v1669
    %1671 = vmatprep.mubr.bf16.mxu0 %v977
    %1672 = vmatmul.mubr.bf16.gmra.mrb[0].mxu0 %v976
    %v1673 = vpop.f32.mrb[0].mxu0
    %v1674 = vadd.f32 %v1077, %v1673
    %v1675 = vpop.f32.mrb[0].mxu0
    %v1676 = vadd.f32 %v1081, %v1675
    %v1677 = vpop.f32.mrb[0].mxu0
    %v1678 = vadd.f32 %v1077, %v1677
    %v1679 = vpop.f32.mrb[0].mxu0
    %v1680 = vadd.f32 %v1081, %v1679
    %1681 = vmatprep.mubr.bf16.mxu0 %v979
    %1682 = vmatmul.mubr.bf16.gmra.mrb[0].mxu0 %v978
    %v1683 = vpop.f32.mrb[0].mxu0
    %v1684 = vadd.f32 %v1077, %v1683
    %v1685 = vpop.f32.mrb[0].mxu0
    %v1686 = vadd.f32 %v1081, %v1685
    %v1687 = vpop.f32.mrb[0].mxu0
    %v1688 = vadd.f32 %v1077, %v1687
    %v1689 = vpop.f32.mrb[0].mxu0
    %v1690 = vadd.f32 %v1081, %v1689
    %1691 = vmatprep.mubr.bf16.mxu0 %v981
    %1692 = vmatmul.mubr.bf16.gmra.mrb[0].mxu0 %v980
    %v1693 = vpop.f32.mrb[0].mxu0
    %v1694 = vadd.f32 %v1077, %v1693
    %v1695 = vpop.f32.mrb[0].mxu0
    %v1696 = vadd.f32 %v1081, %v1695
    %v1697 = vpop.f32.mrb[0].mxu0
    %v1698 = vadd.f32 %v1077, %v1697
    %v1699 = vpop.f32.mrb[0].mxu0
    %v1700 = vadd.f32 %v1081, %v1699
    %1701 = vmatprep.mubr.bf16.mxu0 %v983
    %1702 = vmatmul.mubr.bf16.gmra.mrb[0].mxu0 %v982
    %v1703 = vpop.f32.mrb[0].mxu0
    %v1704 = vadd.f32 %v1077, %v1703
    %v1705 = vpop.f32.mrb[0].mxu0
    %v1706 = vadd.f32 %v1081, %v1705
    %v1707 = vpop.f32.mrb[0].mxu0
    %v1708 = vadd.f32 %v1077, %v1707
    %v1709 = vpop.f32.mrb[0].mxu0
    %v1710 = vadd.f32 %v1081, %v1709
    %1711 = vmatprep.mubr.bf16.mxu0 %v985
    %1712 = vmatmul.mubr.bf16.gmra.mrb[0].mxu0 %v984
    %v1713 = vpop.f32.mrb[0].mxu0
    %v1714 = vadd.f32 %v1077, %v1713
    %v1715 = vpop.f32.mrb[0].mxu0
    %v1716 = vadd.f32 %v1081, %v1715
    %v1717 = vpop.f32.mrb[0].mxu0
    %v1718 = vadd.f32 %v1077, %v1717
    %v1719 = vpop.f32.mrb[0].mxu0
    %v1720 = vadd.f32 %v1081, %v1719
    %1721 = vmatprep.mubr.bf16.mxu0 %v987
    %1722 = vmatmul.mubr.bf16.gmra.mrb[0].mxu0 %v986
    %v1723 = vpop.f32.mrb[0].mxu0
    %v1724 = vadd.f32 %v1077, %v1723
    %v1725 = vpop.f32.mrb[0].mxu0
    %v1726 = vadd.f32 %v1081, %v1725
    %v1727 = vpop.f32.mrb[0].mxu0
    %v1728 = vadd.f32 %v1077, %v1727
    %v1729 = vpop.f32.mrb[0].mxu0
    %v1730 = vadd.f32 %v1081, %v1729
    %1731 = vmatprep.mubr.bf16.mxu0 %v989
    %1732 = vmatmul.mubr.bf16.gmra.mrb[0].mxu0 %v988
    %v1733 = vpop.f32.mrb[0].mxu0
    %v1734 = vadd.f32 %v1077, %v1733
    %v1735 = vpop.f32.mrb[0].mxu0
    %v1736 = vadd.f32 %v1081, %v1735
    %v1737 = vpop.f32.mrb[0].mxu0
    %v1738 = vadd.f32 %v1077, %v1737
    %v1739 = vpop.f32.mrb[0].mxu0
    %v1740 = vadd.f32 %v1081, %v1739
    %1741 = vmatprep.mubr.bf16.mxu0 %v991
    %1742 = vmatmul.mubr.bf16.gmra.mrb[0].mxu0 %v990
    %v1743 = vpop.f32.mrb[0].mxu0
    %v1744 = vadd.f32 %v1077, %v1743
    %v1745 = vpop.f32.mrb[0].mxu0
    %v1746 = vadd.f32 %v1081, %v1745
    %v1747 = vpop.f32.mrb[0].mxu0
    %v1748 = vadd.f32 %v1077, %v1747
    %v1749 = vpop.f32.mrb[0].mxu0
    %v1750 = vadd.f32 %v1081, %v1749
    %1751 = vmatprep.mubr.bf16.mxu0 %v993
    %1752 = vmatmul.mubr.bf16.gmra.mrb[0].mxu0 %v992
    %v1753 = vpop.f32.mrb[0].mxu0
    %v1754 = vadd.f32 %v1077, %v1753
    %v1755 = vpop.f32.mrb[0].mxu0
    %v1756 = vadd.f32 %v1081, %v1755
    %v1757 = vpop.f32.mrb[0].mxu0
    %v1758 = vadd.f32 %v1077, %v1757
    %v1759 = vpop.f32.mrb[0].mxu0
    %v1760 = vadd.f32 %v1081, %v1759
    %1761 = vmatprep.mubr.bf16.mxu0 %v995
    %1762 = vmatmul.mubr.bf16.gmra.mrb[0].mxu0 %v994
    %v1763 = vpop.f32.mrb[0].mxu0
    %v1764 = vadd.f32 %v1077, %v1763
    %v1765 = vpop.f32.mrb[0].mxu0
    %v1766 = vadd.f32 %v1081, %v1765
    %v1767 = vpop.f32.mrb[0].mxu0
    %v1768 = vadd.f32 %v1077, %v1767
    %v1769 = vpop.f32.mrb[0].mxu0
    %v1770 = vadd.f32 %v1081, %v1769
    %1771 = vmatprep.mubr.bf16.mxu0 %v997
    %1772 = vmatmul.mubr.bf16.gmra.mrb[0].mxu0 %v996
    %v1773 = vpop.f32.mrb[0].mxu0
    %v1774 = vadd.f32 %v1077, %v1773
    %v1775 = vpop.f32.mrb[0].mxu0
    %v1776 = vadd.f32 %v1081, %v1775
    %v1777 = vpop.f32.mrb[0].mxu0
    %v1778 = vadd.f32 %v1077, %v1777
    %v1779 = vpop.f32.mrb[0].mxu0
    %v1780 = vadd.f32 %v1081, %v1779
    %1781 = vmatprep.mubr.bf16.mxu0 %v999
    %1782 = vmatmul.mubr.bf16.gmra.mrb[0].mxu0 %v998
    %v1783 = vpop.f32.mrb[0].mxu0
    %v1784 = vadd.f32 %v1077, %v1783
    %v1785 = vpop.f32.mrb[0].mxu0
    %v1786 = vadd.f32 %v1081, %v1785
    %v1787 = vpop.f32.mrb[0].mxu0
    %v1788 = vadd.f32 %v1077, %v1787
    %v1789 = vpop.f32.mrb[0].mxu0
    %v1790 = vadd.f32 %v1081, %v1789
    %1791 = vdwg.mxu0
    %v1792 = vmul.f32 %v1441, 0.2
    %v1793 = vmul.f32 %v1443, 0.2
    %v1794 = vmul.f32 %v1634, 0.2
    %v1795 = vmul.f32 %v1636, 0.2
    %v1796 = vmul.f32 %v1445, 0.2
    %v1797 = vmul.f32 %v1447, 0.2
    %v1798 = vmul.f32 %v1638, 0.2
    %v1799 = vmul.f32 %v1640, 0.2
    %v1800 = vmul.f32 %v1451, 0.2
    %v1801 = vmul.f32 %v1453, 0.2
    %v1802 = vmul.f32 %v1644, 0.2
    %v1803 = vmul.f32 %v1646, 0.2
    %v1804 = vmul.f32 %v1455, 0.2
    %v1805 = vmul.f32 %v1457, 0.2
    %v1806 = vmul.f32 %v1648, 0.2
    %v1807 = vmul.f32 %v1650, 0.2
    %v1808 = vmul.f32 %v1461, 0.2
    %v1809 = vmul.f32 %v1463, 0.2
    %v1810 = vmul.f32 %v1654, 0.2
    %v1811 = vmul.f32 %v1656, 0.2
    %v1812 = vmul.f32 %v1465, 0.2
    %v1813 = vmul.f32 %v1467, 0.2
    %v1814 = vmul.f32 %v1658, 0.2
    %v1815 = vmul.f32 %v1660, 0.2
    %v1816 = vmul.f32 %v1471, 0.2
    %v1817 = vmul.f32 %v1473, 0.2
    %v1818 = vmul.f32 %v1664, 0.2
    %v1819 = vmul.f32 %v1666, 0.2
    %v1820 = vmul.f32 %v1475, 0.2
    %v1821 = vmul.f32 %v1477, 0.2
    %v1822 = vmul.f32 %v1668, 0.2
    %v1823 = vmul.f32 %v1670, 0.2
    %v1824 = vmul.f32 %v1481, 0.2
    %v1825 = vmul.f32 %v1483, 0.2
    %v1826 = vmul.f32 %v1674, 0.2
    %v1827 = vmul.f32 %v1676, 0.2
    %v1828 = vmul.f32 %v1485, 0.2
    %v1829 = vmul.f32 %v1487, 0.2
    %v1830 = vmul.f32 %v1678, 0.2
    %v1831 = vmul.f32 %v1680, 0.2
    %v1832 = vmul.f32 %v1491, 0.2
    %v1833 = vmul.f32 %v1493, 0.2
    %v1834 = vmul.f32 %v1684, 0.2
    %v1835 = vmul.f32 %v1686, 0.2
    %v1836 = vmul.f32 %v1495, 0.2
    %v1837 = vmul.f32 %v1497, 0.2
    %v1838 = vmul.f32 %v1688, 0.2
    %v1839 = vmul.f32 %v1690, 0.2
    %v1840 = vmul.f32 %v1501, 0.2
    %v1841 = vmul.f32 %v1503, 0.2
    %v1842 = vmul.f32 %v1694, 0.2
    %v1843 = vmul.f32 %v1696, 0.2
    %v1844 = vmul.f32 %v1505, 0.2
    %v1845 = vmul.f32 %v1507, 0.2
    %v1846 = vmul.f32 %v1698, 0.2
    %v1847 = vmul.f32 %v1700, 0.2
    %v1848 = vmul.f32 %v1511, 0.2
    %v1849 = vmul.f32 %v1513, 0.2
    %v1850 = vmul.f32 %v1704, 0.2
    %v1851 = vmul.f32 %v1706, 0.2
    %v1852 = vmul.f32 %v1515, 0.2
    %v1853 = vmul.f32 %v1517, 0.2
    %v1854 = vmul.f32 %v1708, 0.2
    %v1855 = vmul.f32 %v1710, 0.2
    %v1856 = vmul.f32 %v1521, 0.2
    %v1857 = vmul.f32 %v1523, 0.2
    %v1858 = vmul.f32 %v1714, 0.2
    %v1859 = vmul.f32 %v1716, 0.2
    %v1860 = vmul.f32 %v1525, 0.2
    %v1861 = vmul.f32 %v1527, 0.2
    %v1862 = vmul.f32 %v1718, 0.2
    %v1863 = vmul.f32 %v1720, 0.2
    %v1864 = vmul.f32 %v1531, 0.2
    %v1865 = vmul.f32 %v1533, 0.2
    %v1866 = vmul.f32 %v1724, 0.2
    %v1867 = vmul.f32 %v1726, 0.2
    %v1868 = vmul.f32 %v1535, 0.2
    %v1869 = vmul.f32 %v1537, 0.2
    %v1870 = vmul.f32 %v1728, 0.2
    %v1871 = vmul.f32 %v1730, 0.2
    %v1872 = vmul.f32 %v1541, 0.2
    %v1873 = vmul.f32 %v1543, 0.2
    %v1874 = vmul.f32 %v1734, 0.2
    %v1875 = vmul.f32 %v1736, 0.2
    %v1876 = vmul.f32 %v1545, 0.2
    %v1877 = vmul.f32 %v1547, 0.2
    %v1878 = vmul.f32 %v1738, 0.2
    %v1879 = vmul.f32 %v1740, 0.2
    %v1880 = vmul.f32 %v1551, 0.2
    %v1881 = vmul.f32 %v1553, 0.2
    %v1882 = vmul.f32 %v1744, 0.2
    %v1883 = vmul.f32 %v1746, 0.2
    %v1884 = vmul.f32 %v1555, 0.2
    %v1885 = vmul.f32 %v1557, 0.2
    %v1886 = vmul.f32 %v1748, 0.2
    %v1887 = vmul.f32 %v1750, 0.2
    %v1888 = vmul.f32 %v1561, 0.2
    %v1889 = vmul.f32 %v1563, 0.2
    %v1890 = vmul.f32 %v1754, 0.2
    %v1891 = vmul.f32 %v1756, 0.2
    %v1892 = vmul.f32 %v1565, 0.2
    %v1893 = vmul.f32 %v1567, 0.2
    %v1894 = vmul.f32 %v1758, 0.2
    %v1895 = vmul.f32 %v1760, 0.2
    %v1896 = vmul.f32 %v1571, 0.2
    %v1897 = vmul.f32 %v1573, 0.2
    %v1898 = vmul.f32 %v1764, 0.2
    %v1899 = vmul.f32 %v1766, 0.2
    %v1900 = vmul.f32 %v1575, 0.2
    %v1901 = vmul.f32 %v1577, 0.2
    %v1902 = vmul.f32 %v1768, 0.2
    %v1903 = vmul.f32 %v1770, 0.2
    %v1904 = vmul.f32 %v1581, 0.2
    %v1905 = vmul.f32 %v1583, 0.2
    %v1906 = vmul.f32 %v1774, 0.2
    %v1907 = vmul.f32 %v1776, 0.2
    %v1908 = vmul.f32 %v1585, 0.2
    %v1909 = vmul.f32 %v1587, 0.2
    %v1910 = vmul.f32 %v1778, 0.2
    %v1911 = vmul.f32 %v1780, 0.2
    %v1912 = vmul.f32 %v1591, 0.2
    %v1913 = vmul.f32 %v1593, 0.2
    %v1914 = vmul.f32 %v1784, 0.2
    %v1915 = vmul.f32 %v1786, 0.2
    %v1916 = vmul.f32 %v1595, 0.2
    %v1917 = vmul.f32 %v1597, 0.2
    %v1918 = vmul.f32 %v1788, 0.2
    %v1919 = vmul.f32 %v1790, 0.2
    %v1920 = vmax.f32 %v1441, %v1792
    %v1921 = vmax.f32 %v1443, %v1793
    %v1922 = vmax.f32 %v1634, %v1794
    %v1923 = vmax.f32 %v1636, %v1795
    %v1924 = vmax.f32 %v1445, %v1796
    %v1925 = vmax.f32 %v1447, %v1797
    %v1926 = vmax.f32 %v1638, %v1798
    %v1927 = vmax.f32 %v1640, %v1799
    %v1928 = vmax.f32 %v1451, %v1800
    %v1929 = vmax.f32 %v1453, %v1801
    %v1930 = vmax.f32 %v1644, %v1802
    %v1931 = vmax.f32 %v1646, %v1803
    %v1932 = vmax.f32 %v1455, %v1804
    %v1933 = vmax.f32 %v1457, %v1805
    %v1934 = vmax.f32 %v1648, %v1806
    %v1935 = vmax.f32 %v1650, %v1807
    %v1936 = vmax.f32 %v1461, %v1808
    %v1937 = vmax.f32 %v1463, %v1809
    %v1938 = vmax.f32 %v1654, %v1810
    %v1939 = vmax.f32 %v1656, %v1811
    %v1940 = vmax.f32 %v1465, %v1812
    %v1941 = vmax.f32 %v1467, %v1813
    %v1942 = vmax.f32 %v1658, %v1814
    %v1943 = vmax.f32 %v1660, %v1815
    %v1944 = vmax.f32 %v1471, %v1816
    %v1945 = vmax.f32 %v1473, %v1817
    %v1946 = vmax.f32 %v1664, %v1818
    %v1947 = vmax.f32 %v1666, %v1819
    %v1948 = vmax.f32 %v1475, %v1820
    %v1949 = vmax.f32 %v1477, %v1821
    %v1950 = vmax.f32 %v1668, %v1822
    %v1951 = vmax.f32 %v1670, %v1823
    %v1952 = vmax.f32 %v1481, %v1824
    %v1953 = vmax.f32 %v1483, %v1825
    %v1954 = vmax.f32 %v1674, %v1826
    %v1955 = vmax.f32 %v1676, %v1827
    %v1956 = vmax.f32 %v1485, %v1828
    %v1957 = vmax.f32 %v1487, %v1829
    %v1958 = vmax.f32 %v1678, %v1830
    %v1959 = vmax.f32 %v1680, %v1831
    %v1960 = vmax.f32 %v1491, %v1832
    %v1961 = vmax.f32 %v1493, %v1833
    %v1962 = vmax.f32 %v1684, %v1834
    %v1963 = vmax.f32 %v1686, %v1835
    %v1964 = vmax.f32 %v1495, %v1836
    %v1965 = vmax.f32 %v1497, %v1837
    %v1966 = vmax.f32 %v1688, %v1838
    %v1967 = vmax.f32 %v1690, %v1839
    %v1968 = vmax.f32 %v1501, %v1840
    %v1969 = vmax.f32 %v1503, %v1841
    %v1970 = vmax.f32 %v1694, %v1842
    %v1971 = vmax.f32 %v1696, %v1843
    %v1972 = vmax.f32 %v1505, %v1844
    %v1973 = vmax.f32 %v1507, %v1845
    %v1974 = vmax.f32 %v1698, %v1846
    %v1975 = vmax.f32 %v1700, %v1847
    %v1976 = vmax.f32 %v1511, %v1848
    %v1977 = vmax.f32 %v1513, %v1849
    %v1978 = vmax.f32 %v1704, %v1850
    %v1979 = vmax.f32 %v1706, %v1851
    %v1980 = vmax.f32 %v1515, %v1852
    %v1981 = vmax.f32 %v1517, %v1853
    %v1982 = vmax.f32 %v1708, %v1854
    %v1983 = vmax.f32 %v1710, %v1855
    %v1984 = vmax.f32 %v1521, %v1856
    %v1985 = vmax.f32 %v1523, %v1857
    %v1986 = vmax.f32 %v1714, %v1858
    %v1987 = vmax.f32 %v1716, %v1859
    %v1988 = vmax.f32 %v1525, %v1860
    %v1989 = vmax.f32 %v1527, %v1861
    %v1990 = vmax.f32 %v1718, %v1862
    %v1991 = vmax.f32 %v1720, %v1863
    %v1992 = vmax.f32 %v1531, %v1864
    %v1993 = vmax.f32 %v1533, %v1865
    %v1994 = vmax.f32 %v1724, %v1866
    %v1995 = vmax.f32 %v1726, %v1867
    %v1996 = vmax.f32 %v1535, %v1868
    %v1997 = vmax.f32 %v1537, %v1869
    %v1998 = vmax.f32 %v1728, %v1870
    %v1999 = vmax.f32 %v1730, %v1871
    %v2000 = vmax.f32 %v1541, %v1872
    %v2001 = vmax.f32 %v1543, %v1873
    %v2002 = vmax.f32 %v1734, %v1874
    %v2003 = vmax.f32 %v1736, %v1875
    %v2004 = vmax.f32 %v1545, %v1876
    %v2005 = vmax.f32 %v1547, %v1877
    %v2006 = vmax.f32 %v1738, %v1878
    %v2007 = vmax.f32 %v1740, %v1879
    %v2008 = vmax.f32 %v1551, %v1880
    %v2009 = vmax.f32 %v1553, %v1881
    %v2010 = vmax.f32 %v1744, %v1882
    %v2011 = vmax.f32 %v1746, %v1883
    %v2012 = vmax.f32 %v1555, %v1884
    %v2013 = vmax.f32 %v1557, %v1885
    %v2014 = vmax.f32 %v1748, %v1886
    %v2015 = vmax.f32 %v1750, %v1887
    %v2016 = vmax.f32 %v1561, %v1888
    %v2017 = vmax.f32 %v1563, %v1889
    %v2018 = vmax.f32 %v1754, %v1890
    %v2019 = vmax.f32 %v1756, %v1891
    %v2020 = vmax.f32 %v1565, %v1892
    %v2021 = vmax.f32 %v1567, %v1893
    %v2022 = vmax.f32 %v1758, %v1894
    %v2023 = vmax.f32 %v1760, %v1895
    %v2024 = vmax.f32 %v1571, %v1896
    %v2025 = vmax.f32 %v1573, %v1897
    %v2026 = vmax.f32 %v1764, %v1898
    %v2027 = vmax.f32 %v1766, %v1899
    %v2028 = vmax.f32 %v1575, %v1900
    %v2029 = vmax.f32 %v1577, %v1901
    %v2030 = vmax.f32 %v1768, %v1902
    %v2031 = vmax.f32 %v1770, %v1903
    %v2032 = vmax.f32 %v1581, %v1904
    %v2033 = vmax.f32 %v1583, %v1905
    %v2034 = vmax.f32 %v1774, %v1906
    %v2035 = vmax.f32 %v1776, %v1907
    %v2036 = vmax.f32 %v1585, %v1908
    %v2037 = vmax.f32 %v1587, %v1909
    %v2038 = vmax.f32 %v1778, %v1910
    %v2039 = vmax.f32 %v1780, %v1911
    %v2040 = vmax.f32 %v1591, %v1912
    %v2041 = vmax.f32 %v1593, %v1913
    %v2042 = vmax.f32 %v1784, %v1914
    %v2043 = vmax.f32 %v1786, %v1915
    %v2044 = vmax.f32 %v1595, %v1916
    %v2045 = vmax.f32 %v1597, %v1917
    %v2046 = vmax.f32 %v1788, %v1918
    %v2047 = vmax.f32 %v1790, %v1919
    %v2048 = vpack.c.bf16 %v1924, %v1920
    %v2049 = vpack.c.bf16 %v1925, %v1921
    %v2050 = vpack.c.bf16 %v1926, %v1922
    %v2051 = vpack.c.bf16 %v1927, %v1923
    %v2052 = vpack.c.bf16 %v1932, %v1928
    %v2053 = vpack.c.bf16 %v1933, %v1929
    %v2054 = vpack.c.bf16 %v1934, %v1930
    %v2055 = vpack.c.bf16 %v1935, %v1931
    %v2056 = vpack.c.bf16 %v1940, %v1936
    %v2057 = vpack.c.bf16 %v1941, %v1937
    %v2058 = vpack.c.bf16 %v1942, %v1938
    %v2059 = vpack.c.bf16 %v1943, %v1939
    %v2060 = vpack.c.bf16 %v1948, %v1944
    %v2061 = vpack.c.bf16 %v1949, %v1945
    %v2062 = vpack.c.bf16 %v1950, %v1946
    %v2063 = vpack.c.bf16 %v1951, %v1947
    %v2064 = vpack.c.bf16 %v1956, %v1952
    %v2065 = vpack.c.bf16 %v1957, %v1953
    %v2066 = vpack.c.bf16 %v1958, %v1954
    %v2067 = vpack.c.bf16 %v1959, %v1955
    %v2068 = vpack.c.bf16 %v1964, %v1960
    %v2069 = vpack.c.bf16 %v1965, %v1961
    %v2070 = vpack.c.bf16 %v1966, %v1962
    %v2071 = vpack.c.bf16 %v1967, %v1963
    %v2072 = vpack.c.bf16 %v1972, %v1968
    %v2073 = vpack.c.bf16 %v1973, %v1969
    %v2074 = vpack.c.bf16 %v1974, %v1970
    %v2075 = vpack.c.bf16 %v1975, %v1971
    %v2076 = vpack.c.bf16 %v1980, %v1976
    %v2077 = vpack.c.bf16 %v1981, %v1977
    %v2078 = vpack.c.bf16 %v1982, %v1978
    %v2079 = vpack.c.bf16 %v1983, %v1979
    %v2080 = vpack.c.bf16 %v1988, %v1984
    %v2081 = vpack.c.bf16 %v1989, %v1985
    %v2082 = vpack.c.bf16 %v1990, %v1986
    %v2083 = vpack.c.bf16 %v1991, %v1987
    %v2084 = vpack.c.bf16 %v1996, %v1992
    %v2085 = vpack.c.bf16 %v1997, %v1993
    %v2086 = vpack.c.bf16 %v1998, %v1994
    %v2087 = vpack.c.bf16 %v1999, %v1995
    %v2088 = vpack.c.bf16 %v2004, %v2000
    %v2089 = vpack.c.bf16 %v2005, %v2001
    %v2090 = vpack.c.bf16 %v2006, %v2002
    %v2091 = vpack.c.bf16 %v2007, %v2003
    %v2092 = vpack.c.bf16 %v2012, %v2008
    %v2093 = vpack.c.bf16 %v2013, %v2009
    %v2094 = vpack.c.bf16 %v2014, %v2010
    %v2095 = vpack.c.bf16 %v2015, %v2011
    %v2096 = vpack.c.bf16 %v2020, %v2016
    %v2097 = vpack.c.bf16 %v2021, %v2017
    %v2098 = vpack.c.bf16 %v2022, %v2018
    %v2099 = vpack.c.bf16 %v2023, %v2019
    %v2100 = vpack.c.bf16 %v2028, %v2024
    %v2101 = vpack.c.bf16 %v2029, %v2025
    %v2102 = vpack.c.bf16 %v2030, %v2026
    %v2103 = vpack.c.bf16 %v2031, %v2027
    %v2104 = vpack.c.bf16 %v2036, %v2032
    %v2105 = vpack.c.bf16 %v2037, %v2033
    %v2106 = vpack.c.bf16 %v2038, %v2034
    %v2107 = vpack.c.bf16 %v2039, %v2035
    %v2108 = vpack.c.bf16 %v2044, %v2040
    %v2109 = vpack.c.bf16 %v2045, %v2041
    %v2110 = vpack.c.bf16 %v2046, %v2042
    %v2111 = vpack.c.bf16 %v2047, %v2043
    %v2112 = vld [vmem:[#allocation14] sm:$0xff]
    %v2113 = vld [vmem:[#allocation14 + $0x8] sm:$0xff]
    %v2114 = vld [vmem:[#allocation14 + $0x10] sm:$0xff]
    %v2115 = vld [vmem:[#allocation14 + $0x18] sm:$0xff]
    %v2116 = vld [vmem:[#allocation14 + $0x20] sm:$0xff]
    %v2117 = vld [vmem:[#allocation14 + $0x28] sm:$0xff]
    %v2118 = vld [vmem:[#allocation14 + $0x30] sm:$0xff]
    %v2119 = vld [vmem:[#allocation14 + $0x38] sm:$0xff]
    %v2120 = vld [vmem:[#allocation14 + $0x40] sm:$0xff]
    %v2121 = vld [vmem:[#allocation14 + $0x48] sm:$0xff]
    %v2122 = vld [vmem:[#allocation14 + $0x50] sm:$0xff]
    %v2123 = vld [vmem:[#allocation14 + $0x58] sm:$0xff]
    %v2124 = vld [vmem:[#allocation14 + $0x60] sm:$0xff]
    %v2125 = vld [vmem:[#allocation14 + $0x68] sm:$0xff]
    %v2126 = vld [vmem:[#allocation14 + $0x70] sm:$0xff]
    %v2127 = vld [vmem:[#allocation14 + $0x78] sm:$0xff]
    %v2128 = vld [vmem:[#allocation14 + $0x80] sm:$0xff]
    %v2129 = vld [vmem:[#allocation14 + $0x88] sm:$0xff]
    %v2130 = vld [vmem:[#allocation14 + $0x90] sm:$0xff]
    %v2131 = vld [vmem:[#allocation14 + $0x98] sm:$0xff]
    %v2132 = vld [vmem:[#allocation14 + $0xa0] sm:$0xff]
    %v2133 = vld [vmem:[#allocation14 + $0xa8] sm:$0xff]
    %v2134 = vld [vmem:[#allocation14 + $0xb0] sm:$0xff]
    %v2135 = vld [vmem:[#allocation14 + $0xb8] sm:$0xff]
    %v2136 = vld [vmem:[#allocation14 + $0xc0] sm:$0xff]
    %v2137 = vld [vmem:[#allocation14 + $0xc8] sm:$0xff]
    %v2138 = vld [vmem:[#allocation14 + $0xd0] sm:$0xff]
    %v2139 = vld [vmem:[#allocation14 + $0xd8] sm:$0xff]
    %v2140 = vld [vmem:[#allocation14 + $0xe0] sm:$0xff]
    %v2141 = vld [vmem:[#allocation14 + $0xe8] sm:$0xff]
    %v2142 = vld [vmem:[#allocation14 + $0xf0] sm:$0xff]
    %v2143 = vld [vmem:[#allocation14 + $0xf8] sm:$0xff]
    %v2144 = vld [vmem:[#allocation14 + $0x100] sm:$0xff]
    %v2145 = vld [vmem:[#allocation14 + $0x108] sm:$0xff]
    %v2146 = vld [vmem:[#allocation14 + $0x110] sm:$0xff]
    %v2147 = vld [vmem:[#allocation14 + $0x118] sm:$0xff]
    %v2148 = vld [vmem:[#allocation14 + $0x120] sm:$0xff]
    %v2149 = vld [vmem:[#allocation14 + $0x128] sm:$0xff]
    %v2150 = vld [vmem:[#allocation14 + $0x130] sm:$0xff]
    %v2151 = vld [vmem:[#allocation14 + $0x138] sm:$0xff]
    %v2152 = vld [vmem:[#allocation14 + $0x140] sm:$0xff]
    %v2153 = vld [vmem:[#allocation14 + $0x148] sm:$0xff]
    %v2154 = vld [vmem:[#allocation14 + $0x150] sm:$0xff]
    %v2155 = vld [vmem:[#allocation14 + $0x158] sm:$0xff]
    %v2156 = vld [vmem:[#allocation14 + $0x160] sm:$0xff]
    %v2157 = vld [vmem:[#allocation14 + $0x168] sm:$0xff]
    %v2158 = vld [vmem:[#allocation14 + $0x170] sm:$0xff]
    %v2159 = vld [vmem:[#allocation14 + $0x178] sm:$0xff]
    %v2160 = vld [vmem:[#allocation14 + $0x180] sm:$0xff]
    %v2161 = vld [vmem:[#allocation14 + $0x188] sm:$0xff]
    %v2162 = vld [vmem:[#allocation14 + $0x190] sm:$0xff]
    %v2163 = vld [vmem:[#allocation14 + $0x198] sm:$0xff]
    %v2164 = vld [vmem:[#allocation14 + $0x1a0] sm:$0xff]
    %v2165 = vld [vmem:[#allocation14 + $0x1a8] sm:$0xff]
    %v2166 = vld [vmem:[#allocation14 + $0x1b0] sm:$0xff]
    %v2167 = vld [vmem:[#allocation14 + $0x1b8] sm:$0xff]
    %v2168 = vld [vmem:[#allocation14 + $0x1c0] sm:$0xff]
    %v2169 = vld [vmem:[#allocation14 + $0x1c8] sm:$0xff]
    %v2170 = vld [vmem:[#allocation14 + $0x1d0] sm:$0xff]
    %v2171 = vld [vmem:[#allocation14 + $0x1d8] sm:$0xff]
    %v2172 = vld [vmem:[#allocation14 + $0x1e0] sm:$0xff]
    %v2173 = vld [vmem:[#allocation14 + $0x1e8] sm:$0xff]
    %v2174 = vld [vmem:[#allocation14 + $0x1f0] sm:$0xff]
    %v2175 = vld [vmem:[#allocation14 + $0x1f8] sm:$0xff]
    %v2176 = vld [vmem:[#allocation14 + $0x200] sm:$0xff]
    %v2177 = vld [vmem:[#allocation14 + $0x208] sm:$0xff]
    %v2178 = vld [vmem:[#allocation14 + $0x210] sm:$0xff]
    %v2179 = vld [vmem:[#allocation14 + $0x218] sm:$0xff]
    %v2180 = vld [vmem:[#allocation14 + $0x220] sm:$0xff]
    %v2181 = vld [vmem:[#allocation14 + $0x228] sm:$0xff]
    %v2182 = vld [vmem:[#allocation14 + $0x230] sm:$0xff]
    %v2183 = vld [vmem:[#allocation14 + $0x238] sm:$0xff]
    %v2184 = vld [vmem:[#allocation14 + $0x240] sm:$0xff]
    %v2185 = vld [vmem:[#allocation14 + $0x248] sm:$0xff]
    %v2186 = vld [vmem:[#allocation14 + $0x250] sm:$0xff]
    %v2187 = vld [vmem:[#allocation14 + $0x258] sm:$0xff]
    %v2188 = vld [vmem:[#allocation14 + $0x260] sm:$0xff]
    %v2189 = vld [vmem:[#allocation14 + $0x268] sm:$0xff]
    %v2190 = vld [vmem:[#allocation14 + $0x270] sm:$0xff]
    %v2191 = vld [vmem:[#allocation14 + $0x278] sm:$0xff]
    %v2192 = vld [vmem:[#allocation14 + $0x280] sm:$0xff]
    %v2193 = vld [vmem:[#allocation14 + $0x288] sm:$0xff]
    %v2194 = vld [vmem:[#allocation14 + $0x290] sm:$0xff]
    %v2195 = vld [vmem:[#allocation14 + $0x298] sm:$0xff]
    %v2196 = vld [vmem:[#allocation14 + $0x2a0] sm:$0xff]
    %v2197 = vld [vmem:[#allocation14 + $0x2a8] sm:$0xff]
    %v2198 = vld [vmem:[#allocation14 + $0x2b0] sm:$0xff]
    %v2199 = vld [vmem:[#allocation14 + $0x2b8] sm:$0xff]
    %v2200 = vld [vmem:[#allocation14 + $0x2c0] sm:$0xff]
    %v2201 = vld [vmem:[#allocation14 + $0x2c8] sm:$0xff]
    %v2202 = vld [vmem:[#allocation14 + $0x2d0] sm:$0xff]
    %v2203 = vld [vmem:[#allocation14 + $0x2d8] sm:$0xff]
    %v2204 = vld [vmem:[#allocation14 + $0x2e0] sm:$0xff]
    %v2205 = vld [vmem:[#allocation14 + $0x2e8] sm:$0xff]
    %v2206 = vld [vmem:[#allocation14 + $0x2f0] sm:$0xff]
    %v2207 = vld [vmem:[#allocation14 + $0x2f8] sm:$0xff]
    %v2208 = vld [vmem:[#allocation14 + $0x300] sm:$0xff]
    %v2209 = vld [vmem:[#allocation14 + $0x308] sm:$0xff]
    %v2210 = vld [vmem:[#allocation14 + $0x310] sm:$0xff]
    %v2211 = vld [vmem:[#allocation14 + $0x318] sm:$0xff]
    %v2212 = vld [vmem:[#allocation14 + $0x320] sm:$0xff]
    %v2213 = vld [vmem:[#allocation14 + $0x328] sm:$0xff]
    %v2214 = vld [vmem:[#allocation14 + $0x330] sm:$0xff]
    %v2215 = vld [vmem:[#allocation14 + $0x338] sm:$0xff]
    %v2216 = vld [vmem:[#allocation14 + $0x340] sm:$0xff]
    %v2217 = vld [vmem:[#allocation14 + $0x348] sm:$0xff]
    %v2218 = vld [vmem:[#allocation14 + $0x350] sm:$0xff]
    %v2219 = vld [vmem:[#allocation14 + $0x358] sm:$0xff]
    %v2220 = vld [vmem:[#allocation14 + $0x360] sm:$0xff]
    %v2221 = vld [vmem:[#allocation14 + $0x368] sm:$0xff]
    %v2222 = vld [vmem:[#allocation14 + $0x370] sm:$0xff]
    %v2223 = vld [vmem:[#allocation14 + $0x378] sm:$0xff]
    %v2224 = vld [vmem:[#allocation14 + $0x380] sm:$0xff]
    %v2225 = vld [vmem:[#allocation14 + $0x388] sm:$0xff]
    %v2226 = vld [vmem:[#allocation14 + $0x390] sm:$0xff]
    %v2227 = vld [vmem:[#allocation14 + $0x398] sm:$0xff]
    %v2228 = vld [vmem:[#allocation14 + $0x3a0] sm:$0xff]
    %v2229 = vld [vmem:[#allocation14 + $0x3a8] sm:$0xff]
    %v2230 = vld [vmem:[#allocation14 + $0x3b0] sm:$0xff]
    %v2231 = vld [vmem:[#allocation14 + $0x3b8] sm:$0xff]
    %v2232 = vld [vmem:[#allocation14 + $0x3c0] sm:$0xff]
    %v2233 = vld [vmem:[#allocation14 + $0x3c8] sm:$0xff]
    %v2234 = vld [vmem:[#allocation14 + $0x3d0] sm:$0xff]
    %v2235 = vld [vmem:[#allocation14 + $0x3d8] sm:$0xff]
    %v2236 = vld [vmem:[#allocation14 + $0x3e0] sm:$0xff]
    %v2237 = vld [vmem:[#allocation14 + $0x3e8] sm:$0xff]
    %v2238 = vld [vmem:[#allocation14 + $0x3f0] sm:$0xff]
    %v2239 = vld [vmem:[#allocation14 + $0x3f8] sm:$0xff]
    %v2240 = vld [vmem:[#allocation14 + $0x400] sm:$0xff]
    %v2241 = vld [vmem:[#allocation14 + $0x408] sm:$0xff]
    %v2242 = vld [vmem:[#allocation14 + $0x410] sm:$0xff]
    %v2243 = vld [vmem:[#allocation14 + $0x418] sm:$0xff]
    %v2244 = vld [vmem:[#allocation14 + $0x420] sm:$0xff]
    %v2245 = vld [vmem:[#allocation14 + $0x428] sm:$0xff]
    %v2246 = vld [vmem:[#allocation14 + $0x430] sm:$0xff]
    %v2247 = vld [vmem:[#allocation14 + $0x438] sm:$0xff]
    %v2248 = vld [vmem:[#allocation14 + $0x440] sm:$0xff]
    %v2249 = vld [vmem:[#allocation14 + $0x448] sm:$0xff]
    %v2250 = vld [vmem:[#allocation14 + $0x450] sm:$0xff]
    %v2251 = vld [vmem:[#allocation14 + $0x458] sm:$0xff]
    %v2252 = vld [vmem:[#allocation14 + $0x460] sm:$0xff]
    %v2253 = vld [vmem:[#allocation14 + $0x468] sm:$0xff]
    %v2254 = vld [vmem:[#allocation14 + $0x470] sm:$0xff]
    %v2255 = vld [vmem:[#allocation14 + $0x478] sm:$0xff]
    %v2256 = vld [vmem:[#allocation14 + $0x480] sm:$0xff]
    %v2257 = vld [vmem:[#allocation14 + $0x488] sm:$0xff]
    %v2258 = vld [vmem:[#allocation14 + $0x490] sm:$0xff]
    %v2259 = vld [vmem:[#allocation14 + $0x498] sm:$0xff]
    %v2260 = vld [vmem:[#allocation14 + $0x4a0] sm:$0xff]
    %v2261 = vld [vmem:[#allocation14 + $0x4a8] sm:$0xff]
    %v2262 = vld [vmem:[#allocation14 + $0x4b0] sm:$0xff]
    %v2263 = vld [vmem:[#allocation14 + $0x4b8] sm:$0xff]
    %v2264 = vld [vmem:[#allocation14 + $0x4c0] sm:$0xff]
    %v2265 = vld [vmem:[#allocation14 + $0x4c8] sm:$0xff]
    %v2266 = vld [vmem:[#allocation14 + $0x4d0] sm:$0xff]
    %v2267 = vld [vmem:[#allocation14 + $0x4d8] sm:$0xff]
    %v2268 = vld [vmem:[#allocation14 + $0x4e0] sm:$0xff]
    %v2269 = vld [vmem:[#allocation14 + $0x4e8] sm:$0xff]
    %v2270 = vld [vmem:[#allocation14 + $0x4f0] sm:$0xff]
    %v2271 = vld [vmem:[#allocation14 + $0x4f8] sm:$0xff]
    %v2272 = vld [vmem:[#allocation14 + $0x500] sm:$0xff]
    %v2273 = vld [vmem:[#allocation14 + $0x508] sm:$0xff]
    %v2274 = vld [vmem:[#allocation14 + $0x510] sm:$0xff]
    %v2275 = vld [vmem:[#allocation14 + $0x518] sm:$0xff]
    %v2276 = vld [vmem:[#allocation14 + $0x520] sm:$0xff]
    %v2277 = vld [vmem:[#allocation14 + $0x528] sm:$0xff]
    %v2278 = vld [vmem:[#allocation14 + $0x530] sm:$0xff]
    %v2279 = vld [vmem:[#allocation14 + $0x538] sm:$0xff]
    %v2280 = vld [vmem:[#allocation14 + $0x540] sm:$0xff]
    %v2281 = vld [vmem:[#allocation14 + $0x548] sm:$0xff]
    %v2282 = vld [vmem:[#allocation14 + $0x550] sm:$0xff]
    %v2283 = vld [vmem:[#allocation14 + $0x558] sm:$0xff]
    %v2284 = vld [vmem:[#allocation14 + $0x560] sm:$0xff]
    %v2285 = vld [vmem:[#allocation14 + $0x568] sm:$0xff]
    %v2286 = vld [vmem:[#allocation14 + $0x570] sm:$0xff]
    %v2287 = vld [vmem:[#allocation14 + $0x578] sm:$0xff]
    %v2288 = vld [vmem:[#allocation14 + $0x580] sm:$0xff]
    %v2289 = vld [vmem:[#allocation14 + $0x588] sm:$0xff]
    %v2290 = vld [vmem:[#allocation14 + $0x590] sm:$0xff]
    %v2291 = vld [vmem:[#allocation14 + $0x598] sm:$0xff]
    %v2292 = vld [vmem:[#allocation14 + $0x5a0] sm:$0xff]
    %v2293 = vld [vmem:[#allocation14 + $0x5a8] sm:$0xff]
    %v2294 = vld [vmem:[#allocation14 + $0x5b0] sm:$0xff]
    %v2295 = vld [vmem:[#allocation14 + $0x5b8] sm:$0xff]
    %v2296 = vld [vmem:[#allocation14 + $0x5c0] sm:$0xff]
    %v2297 = vld [vmem:[#allocation14 + $0x5c8] sm:$0xff]
    %v2298 = vld [vmem:[#allocation14 + $0x5d0] sm:$0xff]
    %v2299 = vld [vmem:[#allocation14 + $0x5d8] sm:$0xff]
    %v2300 = vld [vmem:[#allocation14 + $0x5e0] sm:$0xff]
    %v2301 = vld [vmem:[#allocation14 + $0x5e8] sm:$0xff]
    %v2302 = vld [vmem:[#allocation14 + $0x5f0] sm:$0xff]
    %v2303 = vld [vmem:[#allocation14 + $0x5f8] sm:$0xff]
    %v2304 = vld [vmem:[#allocation14 + $0x600] sm:$0xff]
    %v2305 = vld [vmem:[#allocation14 + $0x608] sm:$0xff]
    %v2306 = vld [vmem:[#allocation14 + $0x610] sm:$0xff]
    %v2307 = vld [vmem:[#allocation14 + $0x618] sm:$0xff]
    %v2308 = vld [vmem:[#allocation14 + $0x620] sm:$0xff]
    %v2309 = vld [vmem:[#allocation14 + $0x628] sm:$0xff]
    %v2310 = vld [vmem:[#allocation14 + $0x630] sm:$0xff]
    %v2311 = vld [vmem:[#allocation14 + $0x638] sm:$0xff]
    %v2312 = vld [vmem:[#allocation14 + $0x640] sm:$0xff]
    %v2313 = vld [vmem:[#allocation14 + $0x648] sm:$0xff]
    %v2314 = vld [vmem:[#allocation14 + $0x650] sm:$0xff]
    %v2315 = vld [vmem:[#allocation14 + $0x658] sm:$0xff]
    %v2316 = vld [vmem:[#allocation14 + $0x660] sm:$0xff]
    %v2317 = vld [vmem:[#allocation14 + $0x668] sm:$0xff]
    %v2318 = vld [vmem:[#allocation14 + $0x670] sm:$0xff]
    %v2319 = vld [vmem:[#allocation14 + $0x678] sm:$0xff]
    %v2320 = vld [vmem:[#allocation14 + $0x680] sm:$0xff]
    %v2321 = vld [vmem:[#allocation14 + $0x688] sm:$0xff]
    %v2322 = vld [vmem:[#allocation14 + $0x690] sm:$0xff]
    %v2323 = vld [vmem:[#allocation14 + $0x698] sm:$0xff]
    %v2324 = vld [vmem:[#allocation14 + $0x6a0] sm:$0xff]
    %v2325 = vld [vmem:[#allocation14 + $0x6a8] sm:$0xff]
    %v2326 = vld [vmem:[#allocation14 + $0x6b0] sm:$0xff]
    %v2327 = vld [vmem:[#allocation14 + $0x6b8] sm:$0xff]
    %v2328 = vld [vmem:[#allocation14 + $0x6c0] sm:$0xff]
    %v2329 = vld [vmem:[#allocation14 + $0x6c8] sm:$0xff]
    %v2330 = vld [vmem:[#allocation14 + $0x6d0] sm:$0xff]
    %v2331 = vld [vmem:[#allocation14 + $0x6d8] sm:$0xff]
    %v2332 = vld [vmem:[#allocation14 + $0x6e0] sm:$0xff]
    %v2333 = vld [vmem:[#allocation14 + $0x6e8] sm:$0xff]
    %v2334 = vld [vmem:[#allocation14 + $0x6f0] sm:$0xff]
    %v2335 = vld [vmem:[#allocation14 + $0x6f8] sm:$0xff]
    %v2336 = vld [vmem:[#allocation14 + $0x700] sm:$0xff]
    %v2337 = vld [vmem:[#allocation14 + $0x708] sm:$0xff]
    %v2338 = vld [vmem:[#allocation14 + $0x710] sm:$0xff]
    %v2339 = vld [vmem:[#allocation14 + $0x718] sm:$0xff]
    %v2340 = vld [vmem:[#allocation14 + $0x720] sm:$0xff]
    %v2341 = vld [vmem:[#allocation14 + $0x728] sm:$0xff]
    %v2342 = vld [vmem:[#allocation14 + $0x730] sm:$0xff]
    %v2343 = vld [vmem:[#allocation14 + $0x738] sm:$0xff]
    %v2344 = vld [vmem:[#allocation14 + $0x740] sm:$0xff]
    %v2345 = vld [vmem:[#allocation14 + $0x748] sm:$0xff]
    %v2346 = vld [vmem:[#allocation14 + $0x750] sm:$0xff]
    %v2347 = vld [vmem:[#allocation14 + $0x758] sm:$0xff]
    %v2348 = vld [vmem:[#allocation14 + $0x760] sm:$0xff]
    %v2349 = vld [vmem:[#allocation14 + $0x768] sm:$0xff]
    %v2350 = vld [vmem:[#allocation14 + $0x770] sm:$0xff]
    %v2351 = vld [vmem:[#allocation14 + $0x778] sm:$0xff]
    %v2352 = vld [vmem:[#allocation14 + $0x780] sm:$0xff]
    %v2353 = vld [vmem:[#allocation14 + $0x788] sm:$0xff]
    %v2354 = vld [vmem:[#allocation14 + $0x790] sm:$0xff]
    %v2355 = vld [vmem:[#allocation14 + $0x798] sm:$0xff]
    %v2356 = vld [vmem:[#allocation14 + $0x7a0] sm:$0xff]
    %v2357 = vld [vmem:[#allocation14 + $0x7a8] sm:$0xff]
    %v2358 = vld [vmem:[#allocation14 + $0x7b0] sm:$0xff]
    %v2359 = vld [vmem:[#allocation14 + $0x7b8] sm:$0xff]
    %v2360 = vld [vmem:[#allocation14 + $0x7c0] sm:$0xff]
    %v2361 = vld [vmem:[#allocation14 + $0x7c8] sm:$0xff]
    %v2362 = vld [vmem:[#allocation14 + $0x7d0] sm:$0xff]
    %v2363 = vld [vmem:[#allocation14 + $0x7d8] sm:$0xff]
    %v2364 = vld [vmem:[#allocation14 + $0x7e0] sm:$0xff]
    %v2365 = vld [vmem:[#allocation14 + $0x7e8] sm:$0xff]
    %v2366 = vld [vmem:[#allocation14 + $0x7f0] sm:$0xff]
    %v2367 = vld [vmem:[#allocation14 + $0x7f8] sm:$0xff]
    %v2368 = vld [vmem:[#allocation16] sm:$0xff]
    %v2370 = vlaneseq
    %v2371 = vshrl.u32 %v2370, 7
    %v2372 = vsub.s32 0, %v2371
    %v2373 = vrot.slane %v2368, %v2372
    %v2374 = vlaneseq
    %v2375 = vshrl.u32 %v2374, 7
    %v2376 = vsub.s32 1, %v2375
    %v2377 = vrot.slane %v2368, %v2376
    %v2378 = vlaneseq
    %v2379 = vshrl.u32 %v2378, 7
    %v2380 = vsub.s32 2, %v2379
    %v2381 = vrot.slane %v2368, %v2380
    %v2382 = vlaneseq
    %v2383 = vshrl.u32 %v2382, 7
    %v2384 = vsub.s32 3, %v2383
    %v2385 = vrot.slane %v2368, %v2384
    %v2386 = vlaneseq
    %v2387 = vshrl.u32 %v2386, 7
    %v2388 = vsub.s32 4, %v2387
    %v2389 = vrot.slane %v2368, %v2388
    %v2390 = vlaneseq
    %v2391 = vshrl.u32 %v2390, 7
    %v2392 = vsub.s32 5, %v2391
    %v2393 = vrot.slane %v2368, %v2392
    %v2394 = vlaneseq
    %v2395 = vshrl.u32 %v2394, 7
    %v2396 = vsub.s32 6, %v2395
    %v2397 = vrot.slane %v2368, %v2396
    %v2398 = vlaneseq
    %v2399 = vshrl.u32 %v2398, 7
    %v2400 = vsub.s32 7, %v2399
    %v2401 = vrot.slane %v2368, %v2400
    %v2666 = vunpack.c.l.b16 %v2112
    %v2667 = vunpack.c.h.b16 %v2112
    %v2668 = vunpack.c.l.b16 %v2113
    %v2669 = vunpack.c.h.b16 %v2113
    %v2670 = vunpack.c.l.b16 %v2114
    %v2671 = vunpack.c.h.b16 %v2114
    %v2672 = vunpack.c.l.b16 %v2115
    %v2673 = vunpack.c.h.b16 %v2115
    %v2674 = vunpack.c.l.b16 %v2116
    %v2675 = vunpack.c.h.b16 %v2116
    %v2676 = vunpack.c.l.b16 %v2117
    %v2677 = vunpack.c.h.b16 %v2117
    %v2678 = vunpack.c.l.b16 %v2118
    %v2679 = vunpack.c.h.b16 %v2118
    %v2680 = vunpack.c.l.b16 %v2119
    %v2681 = vunpack.c.h.b16 %v2119
    %v2682 = vunpack.c.l.b16 %v2120
    %v2683 = vunpack.c.h.b16 %v2120
    %v2684 = vunpack.c.l.b16 %v2121
    %v2685 = vunpack.c.h.b16 %v2121
    %v2686 = vunpack.c.l.b16 %v2122
    %v2687 = vunpack.c.h.b16 %v2122
    %v2688 = vunpack.c.l.b16 %v2123
    %v2689 = vunpack.c.h.b16 %v2123
    %v2690 = vunpack.c.l.b16 %v2124
    %v2691 = vunpack.c.h.b16 %v2124
    %v2692 = vunpack.c.l.b16 %v2125
    %v2693 = vunpack.c.h.b16 %v2125
    %v2694 = vunpack.c.l.b16 %v2126
    %v2695 = vunpack.c.h.b16 %v2126
    %v2696 = vunpack.c.l.b16 %v2127
    %v2697 = vunpack.c.h.b16 %v2127
    %v2698 = vunpack.c.l.b16 %v2128
    %v2699 = vunpack.c.h.b16 %v2128
    %v2700 = vunpack.c.l.b16 %v2129
    %v2701 = vunpack.c.h.b16 %v2129
    %v2702 = vunpack.c.l.b16 %v2130
    %v2703 = vunpack.c.h.b16 %v2130
    %v2704 = vunpack.c.l.b16 %v2131
    %v2705 = vunpack.c.h.b16 %v2131
    %v2706 = vunpack.c.l.b16 %v2132
    %v2707 = vunpack.c.h.b16 %v2132
    %v2708 = vunpack.c.l.b16 %v2133
    %v2709 = vunpack.c.h.b16 %v2133
    %v2710 = vunpack.c.l.b16 %v2134
    %v2711 = vunpack.c.h.b16 %v2134
    %v2712 = vunpack.c.l.b16 %v2135
    %v2713 = vunpack.c.h.b16 %v2135
    %v2714 = vunpack.c.l.b16 %v2136
    %v2715 = vunpack.c.h.b16 %v2136
    %v2716 = vunpack.c.l.b16 %v2137
    %v2717 = vunpack.c.h.b16 %v2137
    %v2718 = vunpack.c.l.b16 %v2138
    %v2719 = vunpack.c.h.b16 %v2138
    %v2720 = vunpack.c.l.b16 %v2139
    %v2721 = vunpack.c.h.b16 %v2139
    %v2722 = vunpack.c.l.b16 %v2140
    %v2723 = vunpack.c.h.b16 %v2140
    %v2724 = vunpack.c.l.b16 %v2141
    %v2725 = vunpack.c.h.b16 %v2141
    %v2726 = vunpack.c.l.b16 %v2142
    %v2727 = vunpack.c.h.b16 %v2142
    %v2728 = vunpack.c.l.b16 %v2143
    %v2729 = vunpack.c.h.b16 %v2143
    %v2730 = vunpack.c.l.b16 %v2144
    %v2731 = vunpack.c.h.b16 %v2144
    %v2732 = vunpack.c.l.b16 %v2145
    %v2733 = vunpack.c.h.b16 %v2145
    %v2734 = vunpack.c.l.b16 %v2146
    %v2735 = vunpack.c.h.b16 %v2146
    %v2736 = vunpack.c.l.b16 %v2147
    %v2737 = vunpack.c.h.b16 %v2147
    %v2738 = vunpack.c.l.b16 %v2148
    %v2739 = vunpack.c.h.b16 %v2148
    %v2740 = vunpack.c.l.b16 %v2149
    %v2741 = vunpack.c.h.b16 %v2149
    %v2742 = vunpack.c.l.b16 %v2150
    %v2743 = vunpack.c.h.b16 %v2150
    %v2744 = vunpack.c.l.b16 %v2151
    %v2745 = vunpack.c.h.b16 %v2151
    %v2746 = vunpack.c.l.b16 %v2152
    %v2747 = vunpack.c.h.b16 %v2152
    %v2748 = vunpack.c.l.b16 %v2153
    %v2749 = vunpack.c.h.b16 %v2153
    %v2750 = vunpack.c.l.b16 %v2154
    %v2751 = vunpack.c.h.b16 %v2154
    %v2752 = vunpack.c.l.b16 %v2155
    %v2753 = vunpack.c.h.b16 %v2155
    %v2754 = vunpack.c.l.b16 %v2156
    %v2755 = vunpack.c.h.b16 %v2156
    %v2756 = vunpack.c.l.b16 %v2157
    %v2757 = vunpack.c.h.b16 %v2157
    %v2758 = vunpack.c.l.b16 %v2158
    %v2759 = vunpack.c.h.b16 %v2158
    %v2760 = vunpack.c.l.b16 %v2159
    %v2761 = vunpack.c.h.b16 %v2159
    %v2762 = vunpack.c.l.b16 %v2160
    %v2763 = vunpack.c.h.b16 %v2160
    %v2764 = vunpack.c.l.b16 %v2161
    %v2765 = vunpack.c.h.b16 %v2161
    %v2766 = vunpack.c.l.b16 %v2162
    %v2767 = vunpack.c.h.b16 %v2162
    %v2768 = vunpack.c.l.b16 %v2163
    %v2769 = vunpack.c.h.b16 %v2163
    %v2770 = vunpack.c.l.b16 %v2164
    %v2771 = vunpack.c.h.b16 %v2164
    %v2772 = vunpack.c.l.b16 %v2165
    %v2773 = vunpack.c.h.b16 %v2165
    %v2774 = vunpack.c.l.b16 %v2166
    %v2775 = vunpack.c.h.b16 %v2166
    %v2776 = vunpack.c.l.b16 %v2167
    %v2777 = vunpack.c.h.b16 %v2167
    %v2778 = vunpack.c.l.b16 %v2168
    %v2779 = vunpack.c.h.b16 %v2168
    %v2780 = vunpack.c.l.b16 %v2169
    %v2781 = vunpack.c.h.b16 %v2169
    %v2782 = vunpack.c.l.b16 %v2170
    %v2783 = vunpack.c.h.b16 %v2170
    %v2784 = vunpack.c.l.b16 %v2171
    %v2785 = vunpack.c.h.b16 %v2171
    %v2786 = vunpack.c.l.b16 %v2172
    %v2787 = vunpack.c.h.b16 %v2172
    %v2788 = vunpack.c.l.b16 %v2173
    %v2789 = vunpack.c.h.b16 %v2173
    %v2790 = vunpack.c.l.b16 %v2174
    %v2791 = vunpack.c.h.b16 %v2174
    %v2792 = vunpack.c.l.b16 %v2175
    %v2793 = vunpack.c.h.b16 %v2175
    %v2794 = vunpack.c.l.b16 %v2176
    %v2795 = vunpack.c.h.b16 %v2176
    %v2796 = vunpack.c.l.b16 %v2177
    %v2797 = vunpack.c.h.b16 %v2177
    %v2798 = vunpack.c.l.b16 %v2178
    %v2799 = vunpack.c.h.b16 %v2178
    %v2800 = vunpack.c.l.b16 %v2179
    %v2801 = vunpack.c.h.b16 %v2179
    %v2802 = vunpack.c.l.b16 %v2180
    %v2803 = vunpack.c.h.b16 %v2180
    %v2804 = vunpack.c.l.b16 %v2181
    %v2805 = vunpack.c.h.b16 %v2181
    %v2806 = vunpack.c.l.b16 %v2182
    %v2807 = vunpack.c.h.b16 %v2182
    %v2808 = vunpack.c.l.b16 %v2183
    %v2809 = vunpack.c.h.b16 %v2183
    %v2810 = vunpack.c.l.b16 %v2184
    %v2811 = vunpack.c.h.b16 %v2184
    %v2812 = vunpack.c.l.b16 %v2185
    %v2813 = vunpack.c.h.b16 %v2185
    %v2814 = vunpack.c.l.b16 %v2186
    %v2815 = vunpack.c.h.b16 %v2186
    %v2816 = vunpack.c.l.b16 %v2187
    %v2817 = vunpack.c.h.b16 %v2187
    %v2818 = vunpack.c.l.b16 %v2188
    %v2819 = vunpack.c.h.b16 %v2188
    %v2820 = vunpack.c.l.b16 %v2189
    %v2821 = vunpack.c.h.b16 %v2189
    %v2822 = vunpack.c.l.b16 %v2190
    %v2823 = vunpack.c.h.b16 %v2190
    %v2824 = vunpack.c.l.b16 %v2191
    %v2825 = vunpack.c.h.b16 %v2191
    %v2826 = vunpack.c.l.b16 %v2192
    %v2827 = vunpack.c.h.b16 %v2192
    %v2828 = vunpack.c.l.b16 %v2193
    %v2829 = vunpack.c.h.b16 %v2193
    %v2830 = vunpack.c.l.b16 %v2194
    %v2831 = vunpack.c.h.b16 %v2194
    %v2832 = vunpack.c.l.b16 %v2195
    %v2833 = vunpack.c.h.b16 %v2195
    %v2834 = vunpack.c.l.b16 %v2196
    %v2835 = vunpack.c.h.b16 %v2196
    %v2836 = vunpack.c.l.b16 %v2197
    %v2837 = vunpack.c.h.b16 %v2197
    %v2838 = vunpack.c.l.b16 %v2198
    %v2839 = vunpack.c.h.b16 %v2198
    %v2840 = vunpack.c.l.b16 %v2199
    %v2841 = vunpack.c.h.b16 %v2199
    %v2842 = vunpack.c.l.b16 %v2200
    %v2843 = vunpack.c.h.b16 %v2200
    %v2844 = vunpack.c.l.b16 %v2201
    %v2845 = vunpack.c.h.b16 %v2201
    %v2846 = vunpack.c.l.b16 %v2202
    %v2847 = vunpack.c.h.b16 %v2202
    %v2848 = vunpack.c.l.b16 %v2203
    %v2849 = vunpack.c.h.b16 %v2203
    %v2850 = vunpack.c.l.b16 %v2204
    %v2851 = vunpack.c.h.b16 %v2204
    %v2852 = vunpack.c.l.b16 %v2205
    %v2853 = vunpack.c.h.b16 %v2205
    %v2854 = vunpack.c.l.b16 %v2206
    %v2855 = vunpack.c.h.b16 %v2206
    %v2856 = vunpack.c.l.b16 %v2207
    %v2857 = vunpack.c.h.b16 %v2207
    %v2858 = vunpack.c.l.b16 %v2208
    %v2859 = vunpack.c.h.b16 %v2208
    %v2860 = vunpack.c.l.b16 %v2209
    %v2861 = vunpack.c.h.b16 %v2209
    %v2862 = vunpack.c.l.b16 %v2210
    %v2863 = vunpack.c.h.b16 %v2210
    %v2864 = vunpack.c.l.b16 %v2211
    %v2865 = vunpack.c.h.b16 %v2211
    %v2866 = vunpack.c.l.b16 %v2212
    %v2867 = vunpack.c.h.b16 %v2212
    %v2868 = vunpack.c.l.b16 %v2213
    %v2869 = vunpack.c.h.b16 %v2213
    %v2870 = vunpack.c.l.b16 %v2214
    %v2871 = vunpack.c.h.b16 %v2214
    %v2872 = vunpack.c.l.b16 %v2215
    %v2873 = vunpack.c.h.b16 %v2215
    %v2874 = vunpack.c.l.b16 %v2216
    %v2875 = vunpack.c.h.b16 %v2216
    %v2876 = vunpack.c.l.b16 %v2217
    %v2877 = vunpack.c.h.b16 %v2217
    %v2878 = vunpack.c.l.b16 %v2218
    %v2879 = vunpack.c.h.b16 %v2218
    %v2880 = vunpack.c.l.b16 %v2219
    %v2881 = vunpack.c.h.b16 %v2219
    %v2882 = vunpack.c.l.b16 %v2220
    %v2883 = vunpack.c.h.b16 %v2220
    %v2884 = vunpack.c.l.b16 %v2221
    %v2885 = vunpack.c.h.b16 %v2221
    %v2886 = vunpack.c.l.b16 %v2222
    %v2887 = vunpack.c.h.b16 %v2222
    %v2888 = vunpack.c.l.b16 %v2223
    %v2889 = vunpack.c.h.b16 %v2223
    %v2890 = vunpack.c.l.b16 %v2224
    %v2891 = vunpack.c.h.b16 %v2224
    %v2892 = vunpack.c.l.b16 %v2225
    %v2893 = vunpack.c.h.b16 %v2225
    %v2894 = vunpack.c.l.b16 %v2226
    %v2895 = vunpack.c.h.b16 %v2226
    %v2896 = vunpack.c.l.b16 %v2227
    %v2897 = vunpack.c.h.b16 %v2227
    %v2898 = vunpack.c.l.b16 %v2228
    %v2899 = vunpack.c.h.b16 %v2228
    %v2900 = vunpack.c.l.b16 %v2229
    %v2901 = vunpack.c.h.b16 %v2229
    %v2902 = vunpack.c.l.b16 %v2230
    %v2903 = vunpack.c.h.b16 %v2230
    %v2904 = vunpack.c.l.b16 %v2231
    %v2905 = vunpack.c.h.b16 %v2231
    %v2906 = vunpack.c.l.b16 %v2232
    %v2907 = vunpack.c.h.b16 %v2232
    %v2908 = vunpack.c.l.b16 %v2233
    %v2909 = vunpack.c.h.b16 %v2233
    %v2910 = vunpack.c.l.b16 %v2234
    %v2911 = vunpack.c.h.b16 %v2234
    %v2912 = vunpack.c.l.b16 %v2235
    %v2913 = vunpack.c.h.b16 %v2235
    %v2914 = vunpack.c.l.b16 %v2236
    %v2915 = vunpack.c.h.b16 %v2236
    %v2916 = vunpack.c.l.b16 %v2237
    %v2917 = vunpack.c.h.b16 %v2237
    %v2918 = vunpack.c.l.b16 %v2238
    %v2919 = vunpack.c.h.b16 %v2238
    %v2920 = vunpack.c.l.b16 %v2239
    %v2921 = vunpack.c.h.b16 %v2239
    %v2922 = vunpack.c.l.b16 %v2240
    %v2923 = vunpack.c.h.b16 %v2240
    %v2924 = vunpack.c.l.b16 %v2241
    %v2925 = vunpack.c.h.b16 %v2241
    %v2926 = vunpack.c.l.b16 %v2242
    %v2927 = vunpack.c.h.b16 %v2242
    %v2928 = vunpack.c.l.b16 %v2243
    %v2929 = vunpack.c.h.b16 %v2243
    %v2930 = vunpack.c.l.b16 %v2244
    %v2931 = vunpack.c.h.b16 %v2244
    %v2932 = vunpack.c.l.b16 %v2245
    %v2933 = vunpack.c.h.b16 %v2245
    %v2934 = vunpack.c.l.b16 %v2246
    %v2935 = vunpack.c.h.b16 %v2246
    %v2936 = vunpack.c.l.b16 %v2247
    %v2937 = vunpack.c.h.b16 %v2247
    %v2938 = vunpack.c.l.b16 %v2248
    %v2939 = vunpack.c.h.b16 %v2248
    %v2940 = vunpack.c.l.b16 %v2249
    %v2941 = vunpack.c.h.b16 %v2249
    %v2942 = vunpack.c.l.b16 %v2250
    %v2943 = vunpack.c.h.b16 %v2250
    %v2944 = vunpack.c.l.b16 %v2251
    %v2945 = vunpack.c.h.b16 %v2251
    %v2946 = vunpack.c.l.b16 %v2252
    %v2947 = vunpack.c.h.b16 %v2252
    %v2948 = vunpack.c.l.b16 %v2253
    %v2949 = vunpack.c.h.b16 %v2253
    %v2950 = vunpack.c.l.b16 %v2254
    %v2951 = vunpack.c.h.b16 %v2254
    %v2952 = vunpack.c.l.b16 %v2255
    %v2953 = vunpack.c.h.b16 %v2255
    %v2954 = vunpack.c.l.b16 %v2256
    %v2955 = vunpack.c.h.b16 %v2256
    %v2956 = vunpack.c.l.b16 %v2257
    %v2957 = vunpack.c.h.b16 %v2257
    %v2958 = vunpack.c.l.b16 %v2258
    %v2959 = vunpack.c.h.b16 %v2258
    %v2960 = vunpack.c.l.b16 %v2259
    %v2961 = vunpack.c.h.b16 %v2259
    %v2962 = vunpack.c.l.b16 %v2260
    %v2963 = vunpack.c.h.b16 %v2260
    %v2964 = vunpack.c.l.b16 %v2261
    %v2965 = vunpack.c.h.b16 %v2261
    %v2966 = vunpack.c.l.b16 %v2262
    %v2967 = vunpack.c.h.b16 %v2262
    %v2968 = vunpack.c.l.b16 %v2263
    %v2969 = vunpack.c.h.b16 %v2263
    %v2970 = vunpack.c.l.b16 %v2264
    %v2971 = vunpack.c.h.b16 %v2264
    %v2972 = vunpack.c.l.b16 %v2265
    %v2973 = vunpack.c.h.b16 %v2265
    %v2974 = vunpack.c.l.b16 %v2266
    %v2975 = vunpack.c.h.b16 %v2266
    %v2976 = vunpack.c.l.b16 %v2267
    %v2977 = vunpack.c.h.b16 %v2267
    %v2978 = vunpack.c.l.b16 %v2268
    %v2979 = vunpack.c.h.b16 %v2268
    %v2980 = vunpack.c.l.b16 %v2269
    %v2981 = vunpack.c.h.b16 %v2269
    %v2982 = vunpack.c.l.b16 %v2270
    %v2983 = vunpack.c.h.b16 %v2270
    %v2984 = vunpack.c.l.b16 %v2271
    %v2985 = vunpack.c.h.b16 %v2271
    %v2986 = vunpack.c.l.b16 %v2272
    %v2987 = vunpack.c.h.b16 %v2272
    %v2988 = vunpack.c.l.b16 %v2273
    %v2989 = vunpack.c.h.b16 %v2273
    %v2990 = vunpack.c.l.b16 %v2274
    %v2991 = vunpack.c.h.b16 %v2274
    %v2992 = vunpack.c.l.b16 %v2275
    %v2993 = vunpack.c.h.b16 %v2275
    %v2994 = vunpack.c.l.b16 %v2276
    %v2995 = vunpack.c.h.b16 %v2276
    %v2996 = vunpack.c.l.b16 %v2277
    %v2997 = vunpack.c.h.b16 %v2277
    %v2998 = vunpack.c.l.b16 %v2278
    %v2999 = vunpack.c.h.b16 %v2278
    %v3000 = vunpack.c.l.b16 %v2279
    %v3001 = vunpack.c.h.b16 %v2279
    %v3002 = vunpack.c.l.b16 %v2280
    %v3003 = vunpack.c.h.b16 %v2280
    %v3004 = vunpack.c.l.b16 %v2281
    %v3005 = vunpack.c.h.b16 %v2281
    %v3006 = vunpack.c.l.b16 %v2282
    %v3007 = vunpack.c.h.b16 %v2282
    %v3008 = vunpack.c.l.b16 %v2283
    %v3009 = vunpack.c.h.b16 %v2283
    %v3010 = vunpack.c.l.b16 %v2284
    %v3011 = vunpack.c.h.b16 %v2284
    %v3012 = vunpack.c.l.b16 %v2285
    %v3013 = vunpack.c.h.b16 %v2285
    %v3014 = vunpack.c.l.b16 %v2286
    %v3015 = vunpack.c.h.b16 %v2286
    %v3016 = vunpack.c.l.b16 %v2287
    %v3017 = vunpack.c.h.b16 %v2287
    %v3018 = vunpack.c.l.b16 %v2288
    %v3019 = vunpack.c.h.b16 %v2288
    %v3020 = vunpack.c.l.b16 %v2289
    %v3021 = vunpack.c.h.b16 %v2289
    %v3022 = vunpack.c.l.b16 %v2290
    %v3023 = vunpack.c.h.b16 %v2290
    %v3024 = vunpack.c.l.b16 %v2291
    %v3025 = vunpack.c.h.b16 %v2291
    %v3026 = vunpack.c.l.b16 %v2292
    %v3027 = vunpack.c.h.b16 %v2292
    %v3028 = vunpack.c.l.b16 %v2293
    %v3029 = vunpack.c.h.b16 %v2293
    %v3030 = vunpack.c.l.b16 %v2294
    %v3031 = vunpack.c.h.b16 %v2294
    %v3032 = vunpack.c.l.b16 %v2295
    %v3033 = vunpack.c.h.b16 %v2295
    %v3034 = vunpack.c.l.b16 %v2296
    %v3035 = vunpack.c.h.b16 %v2296
    %v3036 = vunpack.c.l.b16 %v2297
    %v3037 = vunpack.c.h.b16 %v2297
    %v3038 = vunpack.c.l.b16 %v2298
    %v3039 = vunpack.c.h.b16 %v2298
    %v3040 = vunpack.c.l.b16 %v2299
    %v3041 = vunpack.c.h.b16 %v2299
    %v3042 = vunpack.c.l.b16 %v2300
    %v3043 = vunpack.c.h.b16 %v2300
    %v3044 = vunpack.c.l.b16 %v2301
    %v3045 = vunpack.c.h.b16 %v2301
    %v3046 = vunpack.c.l.b16 %v2302
    %v3047 = vunpack.c.h.b16 %v2302
    %v3048 = vunpack.c.l.b16 %v2303
    %v3049 = vunpack.c.h.b16 %v2303
    %v3050 = vunpack.c.l.b16 %v2304
    %v3051 = vunpack.c.h.b16 %v2304
    %v3052 = vunpack.c.l.b16 %v2305
    %v3053 = vunpack.c.h.b16 %v2305
    %v3054 = vunpack.c.l.b16 %v2306
    %v3055 = vunpack.c.h.b16 %v2306
    %v3056 = vunpack.c.l.b16 %v2307
    %v3057 = vunpack.c.h.b16 %v2307
    %v3058 = vunpack.c.l.b16 %v2308
    %v3059 = vunpack.c.h.b16 %v2308
    %v3060 = vunpack.c.l.b16 %v2309
    %v3061 = vunpack.c.h.b16 %v2309
    %v3062 = vunpack.c.l.b16 %v2310
    %v3063 = vunpack.c.h.b16 %v2310
    %v3064 = vunpack.c.l.b16 %v2311
    %v3065 = vunpack.c.h.b16 %v2311
    %v3066 = vunpack.c.l.b16 %v2312
    %v3067 = vunpack.c.h.b16 %v2312
    %v3068 = vunpack.c.l.b16 %v2313
    %v3069 = vunpack.c.h.b16 %v2313
    %v3070 = vunpack.c.l.b16 %v2314
    %v3071 = vunpack.c.h.b16 %v2314
    %v3072 = vunpack.c.l.b16 %v2315
    %v3073 = vunpack.c.h.b16 %v2315
    %v3074 = vunpack.c.l.b16 %v2316
    %v3075 = vunpack.c.h.b16 %v2316
    %v3076 = vunpack.c.l.b16 %v2317
    %v3077 = vunpack.c.h.b16 %v2317
    %v3078 = vunpack.c.l.b16 %v2318
    %v3079 = vunpack.c.h.b16 %v2318
    %v3080 = vunpack.c.l.b16 %v2319
    %v3081 = vunpack.c.h.b16 %v2319
    %v3082 = vunpack.c.l.b16 %v2320
    %v3083 = vunpack.c.h.b16 %v2320
    %v3084 = vunpack.c.l.b16 %v2321
    %v3085 = vunpack.c.h.b16 %v2321
    %v3086 = vunpack.c.l.b16 %v2322
    %v3087 = vunpack.c.h.b16 %v2322
    %v3088 = vunpack.c.l.b16 %v2323
    %v3089 = vunpack.c.h.b16 %v2323
    %v3090 = vunpack.c.l.b16 %v2324
    %v3091 = vunpack.c.h.b16 %v2324
    %v3092 = vunpack.c.l.b16 %v2325
    %v3093 = vunpack.c.h.b16 %v2325
    %v3094 = vunpack.c.l.b16 %v2326
    %v3095 = vunpack.c.h.b16 %v2326
    %v3096 = vunpack.c.l.b16 %v2327
    %v3097 = vunpack.c.h.b16 %v2327
    %v3098 = vunpack.c.l.b16 %v2328
    %v3099 = vunpack.c.h.b16 %v2328
    %v3100 = vunpack.c.l.b16 %v2329
    %v3101 = vunpack.c.h.b16 %v2329
    %v3102 = vunpack.c.l.b16 %v2330
    %v3103 = vunpack.c.h.b16 %v2330
    %v3104 = vunpack.c.l.b16 %v2331
    %v3105 = vunpack.c.h.b16 %v2331
    %v3106 = vunpack.c.l.b16 %v2332
    %v3107 = vunpack.c.h.b16 %v2332
    %v3108 = vunpack.c.l.b16 %v2333
    %v3109 = vunpack.c.h.b16 %v2333
    %v3110 = vunpack.c.l.b16 %v2334
    %v3111 = vunpack.c.h.b16 %v2334
    %v3112 = vunpack.c.l.b16 %v2335
    %v3113 = vunpack.c.h.b16 %v2335
    %v3114 = vunpack.c.l.b16 %v2336
    %v3115 = vunpack.c.h.b16 %v2336
    %v3116 = vunpack.c.l.b16 %v2337
    %v3117 = vunpack.c.h.b16 %v2337
    %v3118 = vunpack.c.l.b16 %v2338
    %v3119 = vunpack.c.h.b16 %v2338
    %v3120 = vunpack.c.l.b16 %v2339
    %v3121 = vunpack.c.h.b16 %v2339
    %v3122 = vunpack.c.l.b16 %v2340
    %v3123 = vunpack.c.h.b16 %v2340
    %v3124 = vunpack.c.l.b16 %v2341
    %v3125 = vunpack.c.h.b16 %v2341
    %v3126 = vunpack.c.l.b16 %v2342
    %v3127 = vunpack.c.h.b16 %v2342
    %v3128 = vunpack.c.l.b16 %v2343
    %v3129 = vunpack.c.h.b16 %v2343
    %v3130 = vunpack.c.l.b16 %v2344
    %v3131 = vunpack.c.h.b16 %v2344
    %v3132 = vunpack.c.l.b16 %v2345
    %v3133 = vunpack.c.h.b16 %v2345
    %v3134 = vunpack.c.l.b16 %v2346
    %v3135 = vunpack.c.h.b16 %v2346
    %v3136 = vunpack.c.l.b16 %v2347
    %v3137 = vunpack.c.h.b16 %v2347
    %v3138 = vunpack.c.l.b16 %v2348
    %v3139 = vunpack.c.h.b16 %v2348
    %v3140 = vunpack.c.l.b16 %v2349
    %v3141 = vunpack.c.h.b16 %v2349
    %v3142 = vunpack.c.l.b16 %v2350
    %v3143 = vunpack.c.h.b16 %v2350
    %v3144 = vunpack.c.l.b16 %v2351
    %v3145 = vunpack.c.h.b16 %v2351
    %v3146 = vunpack.c.l.b16 %v2352
    %v3147 = vunpack.c.h.b16 %v2352
    %v3148 = vunpack.c.l.b16 %v2353
    %v3149 = vunpack.c.h.b16 %v2353
    %v3150 = vunpack.c.l.b16 %v2354
    %v3151 = vunpack.c.h.b16 %v2354
    %v3152 = vunpack.c.l.b16 %v2355
    %v3153 = vunpack.c.h.b16 %v2355
    %v3154 = vunpack.c.l.b16 %v2356
    %v3155 = vunpack.c.h.b16 %v2356
    %v3156 = vunpack.c.l.b16 %v2357
    %v3157 = vunpack.c.h.b16 %v2357
    %v3158 = vunpack.c.l.b16 %v2358
    %v3159 = vunpack.c.h.b16 %v2358
    %v3160 = vunpack.c.l.b16 %v2359
    %v3161 = vunpack.c.h.b16 %v2359
    %v3162 = vunpack.c.l.b16 %v2360
    %v3163 = vunpack.c.h.b16 %v2360
    %v3164 = vunpack.c.l.b16 %v2361
    %v3165 = vunpack.c.h.b16 %v2361
    %v3166 = vunpack.c.l.b16 %v2362
    %v3167 = vunpack.c.h.b16 %v2362
    %v3168 = vunpack.c.l.b16 %v2363
    %v3169 = vunpack.c.h.b16 %v2363
    %v3170 = vunpack.c.l.b16 %v2364
    %v3171 = vunpack.c.h.b16 %v2364
    %v3172 = vunpack.c.l.b16 %v2365
    %v3173 = vunpack.c.h.b16 %v2365
    %v3174 = vunpack.c.l.b16 %v2366
    %v3175 = vunpack.c.h.b16 %v2366
    %v3176 = vunpack.c.l.b16 %v2367
    %v3177 = vunpack.c.h.b16 %v2367
    %v3178 = vpack.c.b16 %v2674, %v2666
    %v3179 = vpack.c.b16 %v2675, %v2667
    %v3180 = vpack.c.b16 %v2676, %v2668
    %v3181 = vpack.c.b16 %v2677, %v2669
    %v3182 = vpack.c.b16 %v2678, %v2670
    %v3183 = vpack.c.b16 %v2679, %v2671
    %v3184 = vpack.c.b16 %v2680, %v2672
    %v3185 = vpack.c.b16 %v2681, %v2673
    %v3186 = vpack.c.b16 %v2690, %v2682
    %v3187 = vpack.c.b16 %v2691, %v2683
    %v3188 = vpack.c.b16 %v2692, %v2684
    %v3189 = vpack.c.b16 %v2693, %v2685
    %v3190 = vpack.c.b16 %v2694, %v2686
    %v3191 = vpack.c.b16 %v2695, %v2687
    %v3192 = vpack.c.b16 %v2696, %v2688
    %v3193 = vpack.c.b16 %v2697, %v2689
    %v3194 = vpack.c.b16 %v2706, %v2698
    %v3195 = vpack.c.b16 %v2707, %v2699
    %v3196 = vpack.c.b16 %v2708, %v2700
    %v3197 = vpack.c.b16 %v2709, %v2701
    %v3198 = vpack.c.b16 %v2710, %v2702
    %v3199 = vpack.c.b16 %v2711, %v2703
    %v3200 = vpack.c.b16 %v2712, %v2704
    %v3201 = vpack.c.b16 %v2713, %v2705
    %v3202 = vpack.c.b16 %v2722, %v2714
    %v3203 = vpack.c.b16 %v2723, %v2715
    %v3204 = vpack.c.b16 %v2724, %v2716
    %v3205 = vpack.c.b16 %v2725, %v2717
    %v3206 = vpack.c.b16 %v2726, %v2718
    %v3207 = vpack.c.b16 %v2727, %v2719
    %v3208 = vpack.c.b16 %v2728, %v2720
    %v3209 = vpack.c.b16 %v2729, %v2721
    %v3210 = vpack.c.b16 %v2738, %v2730
    %v3211 = vpack.c.b16 %v2739, %v2731
    %v3212 = vpack.c.b16 %v2740, %v2732
    %v3213 = vpack.c.b16 %v2741, %v2733
    %v3214 = vpack.c.b16 %v2742, %v2734
    %v3215 = vpack.c.b16 %v2743, %v2735
    %v3216 = vpack.c.b16 %v2744, %v2736
    %v3217 = vpack.c.b16 %v2745, %v2737
    %v3218 = vpack.c.b16 %v2754, %v2746
    %v3219 = vpack.c.b16 %v2755, %v2747
    %v3220 = vpack.c.b16 %v2756, %v2748
    %v3221 = vpack.c.b16 %v2757, %v2749
    %v3222 = vpack.c.b16 %v2758, %v2750
    %v3223 = vpack.c.b16 %v2759, %v2751
    %v3224 = vpack.c.b16 %v2760, %v2752
    %v3225 = vpack.c.b16 %v2761, %v2753
    %v3226 = vpack.c.b16 %v2770, %v2762
    %v3227 = vpack.c.b16 %v2771, %v2763
    %v3228 = vpack.c.b16 %v2772, %v2764
    %v3229 = vpack.c.b16 %v2773, %v2765
    %v3230 = vpack.c.b16 %v2774, %v2766
    %v3231 = vpack.c.b16 %v2775, %v2767
    %v3232 = vpack.c.b16 %v2776, %v2768
    %v3233 = vpack.c.b16 %v2777, %v2769
    %v3234 = vpack.c.b16 %v2786, %v2778
    %v3235 = vpack.c.b16 %v2787, %v2779
    %v3236 = vpack.c.b16 %v2788, %v2780
    %v3237 = vpack.c.b16 %v2789, %v2781
    %v3238 = vpack.c.b16 %v2790, %v2782
    %v3239 = vpack.c.b16 %v2791, %v2783
    %v3240 = vpack.c.b16 %v2792, %v2784
    %v3241 = vpack.c.b16 %v2793, %v2785
    %v3242 = vpack.c.b16 %v2802, %v2794
    %v3243 = vpack.c.b16 %v2803, %v2795
    %v3244 = vpack.c.b16 %v2804, %v2796
    %v3245 = vpack.c.b16 %v2805, %v2797
    %v3246 = vpack.c.b16 %v2806, %v2798
    %v3247 = vpack.c.b16 %v2807, %v2799
    %v3248 = vpack.c.b16 %v2808, %v2800
    %v3249 = vpack.c.b16 %v2809, %v2801
    %v3250 = vpack.c.b16 %v2818, %v2810
    %v3251 = vpack.c.b16 %v2819, %v2811
    %v3252 = vpack.c.b16 %v2820, %v2812
    %v3253 = vpack.c.b16 %v2821, %v2813
    %v3254 = vpack.c.b16 %v2822, %v2814
    %v3255 = vpack.c.b16 %v2823, %v2815
    %v3256 = vpack.c.b16 %v2824, %v2816
    %v3257 = vpack.c.b16 %v2825, %v2817
    %v3258 = vpack.c.b16 %v2834, %v2826
    %v3259 = vpack.c.b16 %v2835, %v2827
    %v3260 = vpack.c.b16 %v2836, %v2828
    %v3261 = vpack.c.b16 %v2837, %v2829
    %v3262 = vpack.c.b16 %v2838, %v2830
    %v3263 = vpack.c.b16 %v2839, %v2831
    %v3264 = vpack.c.b16 %v2840, %v2832
    %v3265 = vpack.c.b16 %v2841, %v2833
    %v3266 = vpack.c.b16 %v2850, %v2842
    %v3267 = vpack.c.b16 %v2851, %v2843
    %v3268 = vpack.c.b16 %v2852, %v2844
    %v3269 = vpack.c.b16 %v2853, %v2845
    %v3270 = vpack.c.b16 %v2854, %v2846
    %v3271 = vpack.c.b16 %v2855, %v2847
    %v3272 = vpack.c.b16 %v2856, %v2848
    %v3273 = vpack.c.b16 %v2857, %v2849
    %v3274 = vpack.c.b16 %v2866, %v2858
    %v3275 = vpack.c.b16 %v2867, %v2859
    %v3276 = vpack.c.b16 %v2868, %v2860
    %v3277 = vpack.c.b16 %v2869, %v2861
    %v3278 = vpack.c.b16 %v2870, %v2862
    %v3279 = vpack.c.b16 %v2871, %v2863
    %v3280 = vpack.c.b16 %v2872, %v2864
    %v3281 = vpack.c.b16 %v2873, %v2865
    %v3282 = vpack.c.b16 %v2882, %v2874
    %v3283 = vpack.c.b16 %v2883, %v2875
    %v3284 = vpack.c.b16 %v2884, %v2876
    %v3285 = vpack.c.b16 %v2885, %v2877
    %v3286 = vpack.c.b16 %v2886, %v2878
    %v3287 = vpack.c.b16 %v2887, %v2879
    %v3288 = vpack.c.b16 %v2888, %v2880
    %v3289 = vpack.c.b16 %v2889, %v2881
    %v3290 = vpack.c.b16 %v2898, %v2890
    %v3291 = vpack.c.b16 %v2899, %v2891
    %v3292 = vpack.c.b16 %v2900, %v2892
    %v3293 = vpack.c.b16 %v2901, %v2893
    %v3294 = vpack.c.b16 %v2902, %v2894
    %v3295 = vpack.c.b16 %v2903, %v2895
    %v3296 = vpack.c.b16 %v2904, %v2896
    %v3297 = vpack.c.b16 %v2905, %v2897
    %v3298 = vpack.c.b16 %v2914, %v2906
    %v3299 = vpack.c.b16 %v2915, %v2907
    %v3300 = vpack.c.b16 %v2916, %v2908
    %v3301 = vpack.c.b16 %v2917, %v2909
    %v3302 = vpack.c.b16 %v2918, %v2910
    %v3303 = vpack.c.b16 %v2919, %v2911
    %v3304 = vpack.c.b16 %v2920, %v2912
    %v3305 = vpack.c.b16 %v2921, %v2913
    %v3306 = vpack.c.b16 %v2930, %v2922
    %v3307 = vpack.c.b16 %v2931, %v2923
    %v3308 = vpack.c.b16 %v2932, %v2924
    %v3309 = vpack.c.b16 %v2933, %v2925
    %v3310 = vpack.c.b16 %v2934, %v2926
    %v3311 = vpack.c.b16 %v2935, %v2927
    %v3312 = vpack.c.b16 %v2936, %v2928
    %v3313 = vpack.c.b16 %v2937, %v2929
    %v3314 = vpack.c.b16 %v2946, %v2938
    %v3315 = vpack.c.b16 %v2947, %v2939
    %v3316 = vpack.c.b16 %v2948, %v2940
    %v3317 = vpack.c.b16 %v2949, %v2941
    %v3318 = vpack.c.b16 %v2950, %v2942
    %v3319 = vpack.c.b16 %v2951, %v2943
    %v3320 = vpack.c.b16 %v2952, %v2944
    %v3321 = vpack.c.b16 %v2953, %v2945
    %v3322 = vpack.c.b16 %v2962, %v2954
    %v3323 = vpack.c.b16 %v2963, %v2955
    %v3324 = vpack.c.b16 %v2964, %v2956
    %v3325 = vpack.c.b16 %v2965, %v2957
    %v3326 = vpack.c.b16 %v2966, %v2958
    %v3327 = vpack.c.b16 %v2967, %v2959
    %v3328 = vpack.c.b16 %v2968, %v2960
    %v3329 = vpack.c.b16 %v2969, %v2961
    %v3330 = vpack.c.b16 %v2978, %v2970
    %v3331 = vpack.c.b16 %v2979, %v2971
    %v3332 = vpack.c.b16 %v2980, %v2972
    %v3333 = vpack.c.b16 %v2981, %v2973
    %v3334 = vpack.c.b16 %v2982, %v2974
    %v3335 = vpack.c.b16 %v2983, %v2975
    %v3336 = vpack.c.b16 %v2984, %v2976
    %v3337 = vpack.c.b16 %v2985, %v2977
    %v3338 = vpack.c.b16 %v2994, %v2986
    %v3339 = vpack.c.b16 %v2995, %v2987
    %v3340 = vpack.c.b16 %v2996, %v2988
    %v3341 = vpack.c.b16 %v2997, %v2989
    %v3342 = vpack.c.b16 %v2998, %v2990
    %v3343 = vpack.c.b16 %v2999, %v2991
    %v3344 = vpack.c.b16 %v3000, %v2992
    %v3345 = vpack.c.b16 %v3001, %v2993
    %v3346 = vpack.c.b16 %v3010, %v3002
    %v3347 = vpack.c.b16 %v3011, %v3003
    %v3348 = vpack.c.b16 %v3012, %v3004
    %v3349 = vpack.c.b16 %v3013, %v3005
    %v3350 = vpack.c.b16 %v3014, %v3006
    %v3351 = vpack.c.b16 %v3015, %v3007
    %v3352 = vpack.c.b16 %v3016, %v3008
    %v3353 = vpack.c.b16 %v3017, %v3009
    %v3354 = vpack.c.b16 %v3026, %v3018
    %v3355 = vpack.c.b16 %v3027, %v3019
    %v3356 = vpack.c.b16 %v3028, %v3020
    %v3357 = vpack.c.b16 %v3029, %v3021
    %v3358 = vpack.c.b16 %v3030, %v3022
    %v3359 = vpack.c.b16 %v3031, %v3023
    %v3360 = vpack.c.b16 %v3032, %v3024
    %v3361 = vpack.c.b16 %v3033, %v3025
    %v3362 = vpack.c.b16 %v3042, %v3034
    %v3363 = vpack.c.b16 %v3043, %v3035
    %v3364 = vpack.c.b16 %v3044, %v3036
    %v3365 = vpack.c.b16 %v3045, %v3037
    %v3366 = vpack.c.b16 %v3046, %v3038
    %v3367 = vpack.c.b16 %v3047, %v3039
    %v3368 = vpack.c.b16 %v3048, %v3040
    %v3369 = vpack.c.b16 %v3049, %v3041
    %v3370 = vpack.c.b16 %v3058, %v3050
    %v3371 = vpack.c.b16 %v3059, %v3051
    %v3372 = vpack.c.b16 %v3060, %v3052
    %v3373 = vpack.c.b16 %v3061, %v3053
    %v3374 = vpack.c.b16 %v3062, %v3054
    %v3375 = vpack.c.b16 %v3063, %v3055
    %v3376 = vpack.c.b16 %v3064, %v3056
    %v3377 = vpack.c.b16 %v3065, %v3057
    %v3378 = vpack.c.b16 %v3074, %v3066
    %v3379 = vpack.c.b16 %v3075, %v3067
    %v3380 = vpack.c.b16 %v3076, %v3068
    %v3381 = vpack.c.b16 %v3077, %v3069
    %v3382 = vpack.c.b16 %v3078, %v3070
    %v3383 = vpack.c.b16 %v3079, %v3071
    %v3384 = vpack.c.b16 %v3080, %v3072
    %v3385 = vpack.c.b16 %v3081, %v3073
    %v3386 = vpack.c.b16 %v3090, %v3082
    %v3387 = vpack.c.b16 %v3091, %v3083
    %v3388 = vpack.c.b16 %v3092, %v3084
    %v3389 = vpack.c.b16 %v3093, %v3085
    %v3390 = vpack.c.b16 %v3094, %v3086
    %v3391 = vpack.c.b16 %v3095, %v3087
    %v3392 = vpack.c.b16 %v3096, %v3088
    %v3393 = vpack.c.b16 %v3097, %v3089
    %v3394 = vpack.c.b16 %v3106, %v3098
    %v3395 = vpack.c.b16 %v3107, %v3099
    %v3396 = vpack.c.b16 %v3108, %v3100
    %v3397 = vpack.c.b16 %v3109, %v3101
    %v3398 = vpack.c.b16 %v3110, %v3102
    %v3399 = vpack.c.b16 %v3111, %v3103
    %v3400 = vpack.c.b16 %v3112, %v3104
    %v3401 = vpack.c.b16 %v3113, %v3105
    %v3402 = vpack.c.b16 %v3122, %v3114
    %v3403 = vpack.c.b16 %v3123, %v3115
    %v3404 = vpack.c.b16 %v3124, %v3116
    %v3405 = vpack.c.b16 %v3125, %v3117
    %v3406 = vpack.c.b16 %v3126, %v3118
    %v3407 = vpack.c.b16 %v3127, %v3119
    %v3408 = vpack.c.b16 %v3128, %v3120
    %v3409 = vpack.c.b16 %v3129, %v3121
    %v3410 = vpack.c.b16 %v3138, %v3130
    %v3411 = vpack.c.b16 %v3139, %v3131
    %v3412 = vpack.c.b16 %v3140, %v3132
    %v3413 = vpack.c.b16 %v3141, %v3133
    %v3414 = vpack.c.b16 %v3142, %v3134
    %v3415 = vpack.c.b16 %v3143, %v3135
    %v3416 = vpack.c.b16 %v3144, %v3136
    %v3417 = vpack.c.b16 %v3145, %v3137
    %v3418 = vpack.c.b16 %v3154, %v3146
    %v3419 = vpack.c.b16 %v3155, %v3147
    %v3420 = vpack.c.b16 %v3156, %v3148
    %v3421 = vpack.c.b16 %v3157, %v3149
    %v3422 = vpack.c.b16 %v3158, %v3150
    %v3423 = vpack.c.b16 %v3159, %v3151
    %v3424 = vpack.c.b16 %v3160, %v3152
    %v3425 = vpack.c.b16 %v3161, %v3153
    %v3426 = vpack.c.b16 %v3170, %v3162
    %v3427 = vpack.c.b16 %v3171, %v3163
    %v3428 = vpack.c.b16 %v3172, %v3164
    %v3429 = vpack.c.b16 %v3173, %v3165
    %v3430 = vpack.c.b16 %v3174, %v3166
    %v3431 = vpack.c.b16 %v3175, %v3167
    %v3432 = vpack.c.b16 %v3176, %v3168
    %v3433 = vpack.c.b16 %v3177, %v3169
    %3690 = vmatprep.subr.bf16.mxu0 %v3179
    %3691 = vmatpush1.bf16.msra.mxu0 %v3178
    %3692 = vmatprep.subr.bf16.mxu0 %v3187
    %3693 = vmatpush1.bf16.msra.mxu0 %v3186
    %3694 = vmatprep.subr.bf16.mxu0 %v3195
    %3695 = vmatpush1.bf16.msra.mxu0 %v3194
    %3696 = vmatprep.subr.bf16.mxu0 %v3203
    %3697 = vmatpush1.bf16.msra.mxu0 %v3202
    %3698 = vmatprep.subr.bf16.mxu0 %v3211
    %3699 = vmatpush1.bf16.msra.mxu0 %v3210
    %3700 = vmatprep.subr.bf16.mxu0 %v3219
    %3701 = vmatpush1.bf16.msra.mxu0 %v3218
    %3702 = vmatprep.subr.bf16.mxu0 %v3227
    %3703 = vmatpush1.bf16.msra.mxu0 %v3226
    %3704 = vmatprep.subr.bf16.mxu0 %v3235
    %3705 = vmatpush1.bf16.msra.mxu0 %v3234
    %3706 = vmatprep.subr.bf16.mxu0 %v3243
    %3707 = vmatpush1.bf16.msra.mxu0 %v3242
    %3708 = vmatprep.subr.bf16.mxu0 %v3251
    %3709 = vmatpush1.bf16.msra.mxu0 %v3250
    %3710 = vmatprep.subr.bf16.mxu0 %v3259
    %3711 = vmatpush1.bf16.msra.mxu0 %v3258
    %3712 = vmatprep.subr.bf16.mxu0 %v3267
    %3713 = vmatpush1.bf16.msra.mxu0 %v3266
    %3714 = vmatprep.subr.bf16.mxu0 %v3275
    %3715 = vmatpush1.bf16.msra.mxu0 %v3274
    %3716 = vmatprep.subr.bf16.mxu0 %v3283
    %3717 = vmatpush1.bf16.msra.mxu0 %v3282
    %3718 = vmatprep.subr.bf16.mxu0 %v3291
    %3719 = vmatpush1.bf16.msra.mxu0 %v3290
    %3720 = vmatprep.subr.bf16.mxu0 %v3299
    %3721 = vmatpush1.bf16.msra.mxu0 %v3298
    %3722 = vmatprep.mubr.bf16.mxu0 %v2049
    %3723 = vmatmul.mubr.bf16.gmra.mrb[0].mxu0 %v2048
    %v3724 = vpop.f32.mrb[0].mxu0
    %v3725 = vadd.f32 %v2373, %v3724
    %v3726 = vpop.f32.mrb[0].mxu0
    %v3727 = vadd.f32 %v2377, %v3726
    %v3728 = vpop.f32.mrb[0].mxu0
    %v3729 = vadd.f32 %v2373, %v3728
    %v3730 = vpop.f32.mrb[0].mxu0
    %v3731 = vadd.f32 %v2377, %v3730
    %3732 = vmatprep.mubr.bf16.mxu0 %v2053
    %3733 = vmatmul.mubr.bf16.gmra.mrb[0].mxu0 %v2052
    %v3734 = vpop.f32.mrb[0].mxu0
    %v3735 = vadd.f32 %v2373, %v3734
    %v3736 = vpop.f32.mrb[0].mxu0
    %v3737 = vadd.f32 %v2377, %v3736
    %v3738 = vpop.f32.mrb[0].mxu0
    %v3739 = vadd.f32 %v2373, %v3738
    %v3740 = vpop.f32.mrb[0].mxu0
    %v3741 = vadd.f32 %v2377, %v3740
    %3742 = vmatprep.mubr.bf16.mxu0 %v2057
    %3743 = vmatmul.mubr.bf16.gmra.mrb[0].mxu0 %v2056
    %v3744 = vpop.f32.mrb[0].mxu0
    %v3745 = vadd.f32 %v2373, %v3744
    %v3746 = vpop.f32.mrb[0].mxu0
    %v3747 = vadd.f32 %v2377, %v3746
    %v3748 = vpop.f32.mrb[0].mxu0
    %v3749 = vadd.f32 %v2373, %v3748
    %v3750 = vpop.f32.mrb[0].mxu0
    %v3751 = vadd.f32 %v2377, %v3750
    %3752 = vmatprep.mubr.bf16.mxu0 %v2061
    %3753 = vmatmul.mubr.bf16.gmra.mrb[0].mxu0 %v2060
    %v3754 = vpop.f32.mrb[0].mxu0
    %v3755 = vadd.f32 %v2373, %v3754
    %v3756 = vpop.f32.mrb[0].mxu0
    %v3757 = vadd.f32 %v2377, %v3756
    %v3758 = vpop.f32.mrb[0].mxu0
    %v3759 = vadd.f32 %v2373, %v3758
    %v3760 = vpop.f32.mrb[0].mxu0
    %v3761 = vadd.f32 %v2377, %v3760
    %3762 = vmatprep.mubr.bf16.mxu0 %v2065
    %3763 = vmatmul.mubr.bf16.gmra.mrb[0].mxu0 %v2064
    %v3764 = vpop.f32.mrb[0].mxu0
    %v3765 = vadd.f32 %v2373, %v3764
    %v3766 = vpop.f32.mrb[0].mxu0
    %v3767 = vadd.f32 %v2377, %v3766
    %v3768 = vpop.f32.mrb[0].mxu0
    %v3769 = vadd.f32 %v2373, %v3768
    %v3770 = vpop.f32.mrb[0].mxu0
    %v3771 = vadd.f32 %v2377, %v3770
    %3772 = vmatprep.mubr.bf16.mxu0 %v2069
    %3773 = vmatmul.mubr.bf16.gmra.mrb[0].mxu0 %v2068
    %v3774 = vpop.f32.mrb[0].mxu0
    %v3775 = vadd.f32 %v2373, %v3774
    %v3776 = vpop.f32.mrb[0].mxu0
    %v3777 = vadd.f32 %v2377, %v3776
    %v3778 = vpop.f32.mrb[0].mxu0
    %v3779 = vadd.f32 %v2373, %v3778
    %v3780 = vpop.f32.mrb[0].mxu0
    %v3781 = vadd.f32 %v2377, %v3780
    %3782 = vmatprep.mubr.bf16.mxu0 %v2073
    %3783 = vmatmul.mubr.bf16.gmra.mrb[0].mxu0 %v2072
    %v3784 = vpop.f32.mrb[0].mxu0
    %v3785 = vadd.f32 %v2373, %v3784
    %v3786 = vpop.f32.mrb[0].mxu0
    %v3787 = vadd.f32 %v2377, %v3786
    %v3788 = vpop.f32.mrb[0].mxu0
    %v3789 = vadd.f32 %v2373, %v3788
    %v3790 = vpop.f32.mrb[0].mxu0
    %v3791 = vadd.f32 %v2377, %v3790
    %3792 = vmatprep.mubr.bf16.mxu0 %v2077
    %3793 = vmatmul.mubr.bf16.gmra.mrb[0].mxu0 %v2076
    %v3794 = vpop.f32.mrb[0].mxu0
    %v3795 = vadd.f32 %v2373, %v3794
    %v3796 = vpop.f32.mrb[0].mxu0
    %v3797 = vadd.f32 %v2377, %v3796
    %v3798 = vpop.f32.mrb[0].mxu0
    %v3799 = vadd.f32 %v2373, %v3798
    %v3800 = vpop.f32.mrb[0].mxu0
    %v3801 = vadd.f32 %v2377, %v3800
    %3802 = vmatprep.mubr.bf16.mxu0 %v2081
    %3803 = vmatmul.mubr.bf16.gmra.mrb[0].mxu0 %v2080
    %v3804 = vpop.f32.mrb[0].mxu0
    %v3805 = vadd.f32 %v2373, %v3804
    %v3806 = vpop.f32.mrb[0].mxu0
    %v3807 = vadd.f32 %v2377, %v3806
    %v3808 = vpop.f32.mrb[0].mxu0
    %v3809 = vadd.f32 %v2373, %v3808
    %v3810 = vpop.f32.mrb[0].mxu0
    %v3811 = vadd.f32 %v2377, %v3810
    %3812 = vmatprep.mubr.bf16.mxu0 %v2085
    %3813 = vmatmul.mubr.bf16.gmra.mrb[0].mxu0 %v2084
    %v3814 = vpop.f32.mrb[0].mxu0
    %v3815 = vadd.f32 %v2373, %v3814
    %v3816 = vpop.f32.mrb[0].mxu0
    %v3817 = vadd.f32 %v2377, %v3816
    %v3818 = vpop.f32.mrb[0].mxu0
    %v3819 = vadd.f32 %v2373, %v3818
    %v3820 = vpop.f32.mrb[0].mxu0
    %v3821 = vadd.f32 %v2377, %v3820
    %3822 = vmatprep.mubr.bf16.mxu0 %v2089
    %3823 = vmatmul.mubr.bf16.gmra.mrb[0].mxu0 %v2088
    %v3824 = vpop.f32.mrb[0].mxu0
    %v3825 = vadd.f32 %v2373, %v3824
    %v3826 = vpop.f32.mrb[0].mxu0
    %v3827 = vadd.f32 %v2377, %v3826
    %v3828 = vpop.f32.mrb[0].mxu0
    %v3829 = vadd.f32 %v2373, %v3828
    %v3830 = vpop.f32.mrb[0].mxu0
    %v3831 = vadd.f32 %v2377, %v3830
    %3832 = vmatprep.mubr.bf16.mxu0 %v2093
    %3833 = vmatmul.mubr.bf16.gmra.mrb[0].mxu0 %v2092
    %v3834 = vpop.f32.mrb[0].mxu0
    %v3835 = vadd.f32 %v2373, %v3834
    %v3836 = vpop.f32.mrb[0].mxu0
    %v3837 = vadd.f32 %v2377, %v3836
    %v3838 = vpop.f32.mrb[0].mxu0
    %v3839 = vadd.f32 %v2373, %v3838
    %v3840 = vpop.f32.mrb[0].mxu0
    %v3841 = vadd.f32 %v2377, %v3840
    %3842 = vmatprep.mubr.bf16.mxu0 %v2097
    %3843 = vmatmul.mubr.bf16.gmra.mrb[0].mxu0 %v2096
    %v3844 = vpop.f32.mrb[0].mxu0
    %v3845 = vadd.f32 %v2373, %v3844
    %v3846 = vpop.f32.mrb[0].mxu0
    %v3847 = vadd.f32 %v2377, %v3846
    %v3848 = vpop.f32.mrb[0].mxu0
    %v3849 = vadd.f32 %v2373, %v3848
    %v3850 = vpop.f32.mrb[0].mxu0
    %v3851 = vadd.f32 %v2377, %v3850
    %3852 = vmatprep.mubr.bf16.mxu0 %v2101
    %3853 = vmatmul.mubr.bf16.gmra.mrb[0].mxu0 %v2100
    %v3854 = vpop.f32.mrb[0].mxu0
    %v3855 = vadd.f32 %v2373, %v3854
    %v3856 = vpop.f32.mrb[0].mxu0
    %v3857 = vadd.f32 %v2377, %v3856
    %v3858 = vpop.f32.mrb[0].mxu0
    %v3859 = vadd.f32 %v2373, %v3858
    %v3860 = vpop.f32.mrb[0].mxu0
    %v3861 = vadd.f32 %v2377, %v3860
    %3862 = vmatprep.mubr.bf16.mxu0 %v2105
    %3863 = vmatmul.mubr.bf16.gmra.mrb[0].mxu0 %v2104
    %v3864 = vpop.f32.mrb[0].mxu0
    %v3865 = vadd.f32 %v2373, %v3864
    %v3866 = vpop.f32.mrb[0].mxu0
    %v3867 = vadd.f32 %v2377, %v3866
    %v3868 = vpop.f32.mrb[0].mxu0
    %v3869 = vadd.f32 %v2373, %v3868
    %v3870 = vpop.f32.mrb[0].mxu0
    %v3871 = vadd.f32 %v2377, %v3870
    %3872 = vmatprep.mubr.bf16.mxu0 %v2109
    %3873 = vmatmul.mubr.bf16.gmra.mrb[0].mxu0 %v2108
    %v3874 = vpop.f32.mrb[0].mxu0
    %v3875 = vadd.f32 %v2373, %v3874
    %v3876 = vpop.f32.mrb[0].mxu0
    %v3877 = vadd.f32 %v2377, %v3876
    %v3878 = vpop.f32.mrb[0].mxu0
    %v3879 = vadd.f32 %v2373, %v3878
    %v3880 = vpop.f32.mrb[0].mxu0
    %v3881 = vadd.f32 %v2377, %v3880
    %3882 = vdwg.mxu0
    %3883 = vmatprep.subr.bf16.mxu0 %v3307
    %3884 = vmatpush1.bf16.msra.mxu0 %v3306
    %3885 = vmatprep.subr.bf16.mxu0 %v3315
    %3886 = vmatpush1.bf16.msra.mxu0 %v3314
    %3887 = vmatprep.subr.bf16.mxu0 %v3323
    %3888 = vmatpush1.bf16.msra.mxu0 %v3322
    %3889 = vmatprep.subr.bf16.mxu0 %v3331
    %3890 = vmatpush1.bf16.msra.mxu0 %v3330
    %3891 = vmatprep.subr.bf16.mxu0 %v3339
    %3892 = vmatpush1.bf16.msra.mxu0 %v3338
    %3893 = vmatprep.subr.bf16.mxu0 %v3347
    %3894 = vmatpush1.bf16.msra.mxu0 %v3346
    %3895 = vmatprep.subr.bf16.mxu0 %v3355
    %3896 = vmatpush1.bf16.msra.mxu0 %v3354
    %3897 = vmatprep.subr.bf16.mxu0 %v3363
    %3898 = vmatpush1.bf16.msra.mxu0 %v3362
    %3899 = vmatprep.subr.bf16.mxu0 %v3371
    %3900 = vmatpush1.bf16.msra.mxu0 %v3370
    %3901 = vmatprep.subr.bf16.mxu0 %v3379
    %3902 = vmatpush1.bf16.msra.mxu0 %v3378
    %3903 = vmatprep.subr.bf16.mxu0 %v3387
    %3904 = vmatpush1.bf16.msra.mxu0 %v3386
    %3905 = vmatprep.subr.bf16.mxu0 %v3395
    %3906 = vmatpush1.bf16.msra.mxu0 %v3394
    %3907 = vmatprep.subr.bf16.mxu0 %v3403
    %3908 = vmatpush1.bf16.msra.mxu0 %v3402
    %3909 = vmatprep.subr.bf16.mxu0 %v3411
    %3910 = vmatpush1.bf16.msra.mxu0 %v3410
    %3911 = vmatprep.subr.bf16.mxu0 %v3419
    %3912 = vmatpush1.bf16.msra.mxu0 %v3418
    %3913 = vmatprep.subr.bf16.mxu0 %v3427
    %3914 = vmatpush1.bf16.msra.mxu0 %v3426
    %3915 = vmatprep.mubr.bf16.mxu0 %v2051
    %3916 = vmatmul.mubr.bf16.gmra.mrb[0].mxu0 %v2050
    %v3917 = vpop.f32.mrb[0].mxu0
    %v3918 = vadd.f32 %v3725, %v3917
    %v3919 = vpop.f32.mrb[0].mxu0
    %v3920 = vadd.f32 %v3727, %v3919
    %v3921 = vpop.f32.mrb[0].mxu0
    %v3922 = vadd.f32 %v3729, %v3921
    %v3923 = vpop.f32.mrb[0].mxu0
    %v3924 = vadd.f32 %v3731, %v3923
    %3925 = vmatprep.mubr.bf16.mxu0 %v2055
    %3926 = vmatmul.mubr.bf16.gmra.mrb[0].mxu0 %v2054
    %v3927 = vpop.f32.mrb[0].mxu0
    %v3928 = vadd.f32 %v3735, %v3927
    %v3929 = vpop.f32.mrb[0].mxu0
    %v3930 = vadd.f32 %v3737, %v3929
    %v3931 = vpop.f32.mrb[0].mxu0
    %v3932 = vadd.f32 %v3739, %v3931
    %v3933 = vpop.f32.mrb[0].mxu0
    %v3934 = vadd.f32 %v3741, %v3933
    %3935 = vmatprep.mubr.bf16.mxu0 %v2059
    %3936 = vmatmul.mubr.bf16.gmra.mrb[0].mxu0 %v2058
    %v3937 = vpop.f32.mrb[0].mxu0
    %v3938 = vadd.f32 %v3745, %v3937
    %v3939 = vpop.f32.mrb[0].mxu0
    %v3940 = vadd.f32 %v3747, %v3939
    %v3941 = vpop.f32.mrb[0].mxu0
    %v3942 = vadd.f32 %v3749, %v3941
    %v3943 = vpop.f32.mrb[0].mxu0
    %v3944 = vadd.f32 %v3751, %v3943
    %3945 = vmatprep.mubr.bf16.mxu0 %v2063
    %3946 = vmatmul.mubr.bf16.gmra.mrb[0].mxu0 %v2062
    %v3947 = vpop.f32.mrb[0].mxu0
    %v3948 = vadd.f32 %v3755, %v3947
    %v3949 = vpop.f32.mrb[0].mxu0
    %v3950 = vadd.f32 %v3757, %v3949
    %v3951 = vpop.f32.mrb[0].mxu0
    %v3952 = vadd.f32 %v3759, %v3951
    %v3953 = vpop.f32.mrb[0].mxu0
    %v3954 = vadd.f32 %v3761, %v3953
    %3955 = vmatprep.mubr.bf16.mxu0 %v2067
    %3956 = vmatmul.mubr.bf16.gmra.mrb[0].mxu0 %v2066
    %v3957 = vpop.f32.mrb[0].mxu0
    %v3958 = vadd.f32 %v3765, %v3957
    %v3959 = vpop.f32.mrb[0].mxu0
    %v3960 = vadd.f32 %v3767, %v3959
    %v3961 = vpop.f32.mrb[0].mxu0
    %v3962 = vadd.f32 %v3769, %v3961
    %v3963 = vpop.f32.mrb[0].mxu0
    %v3964 = vadd.f32 %v3771, %v3963
    %3965 = vmatprep.mubr.bf16.mxu0 %v2071
    %3966 = vmatmul.mubr.bf16.gmra.mrb[0].mxu0 %v2070
    %v3967 = vpop.f32.mrb[0].mxu0
    %v3968 = vadd.f32 %v3775, %v3967
    %v3969 = vpop.f32.mrb[0].mxu0
    %v3970 = vadd.f32 %v3777, %v3969
    %v3971 = vpop.f32.mrb[0].mxu0
    %v3972 = vadd.f32 %v3779, %v3971
    %v3973 = vpop.f32.mrb[0].mxu0
    %v3974 = vadd.f32 %v3781, %v3973
    %3975 = vmatprep.mubr.bf16.mxu0 %v2075
    %3976 = vmatmul.mubr.bf16.gmra.mrb[0].mxu0 %v2074
    %v3977 = vpop.f32.mrb[0].mxu0
    %v3978 = vadd.f32 %v3785, %v3977
    %v3979 = vpop.f32.mrb[0].mxu0
    %v3980 = vadd.f32 %v3787, %v3979
    %v3981 = vpop.f32.mrb[0].mxu0
    %v3982 = vadd.f32 %v3789, %v3981
    %v3983 = vpop.f32.mrb[0].mxu0
    %v3984 = vadd.f32 %v3791, %v3983
    %3985 = vmatprep.mubr.bf16.mxu0 %v2079
    %3986 = vmatmul.mubr.bf16.gmra.mrb[0].mxu0 %v2078
    %v3987 = vpop.f32.mrb[0].mxu0
    %v3988 = vadd.f32 %v3795, %v3987
    %v3989 = vpop.f32.mrb[0].mxu0
    %v3990 = vadd.f32 %v3797, %v3989
    %v3991 = vpop.f32.mrb[0].mxu0
    %v3992 = vadd.f32 %v3799, %v3991
    %v3993 = vpop.f32.mrb[0].mxu0
    %v3994 = vadd.f32 %v3801, %v3993
    %3995 = vmatprep.mubr.bf16.mxu0 %v2083
    %3996 = vmatmul.mubr.bf16.gmra.mrb[0].mxu0 %v2082
    %v3997 = vpop.f32.mrb[0].mxu0
    %v3998 = vadd.f32 %v3805, %v3997
    %v3999 = vpop.f32.mrb[0].mxu0
    %v4000 = vadd.f32 %v3807, %v3999
    %v4001 = vpop.f32.mrb[0].mxu0
    %v4002 = vadd.f32 %v3809, %v4001
    %v4003 = vpop.f32.mrb[0].mxu0
    %v4004 = vadd.f32 %v3811, %v4003
    %4005 = vmatprep.mubr.bf16.mxu0 %v2087
    %4006 = vmatmul.mubr.bf16.gmra.mrb[0].mxu0 %v2086
    %v4007 = vpop.f32.mrb[0].mxu0
    %v4008 = vadd.f32 %v3815, %v4007
    %v4009 = vpop.f32.mrb[0].mxu0
    %v4010 = vadd.f32 %v3817, %v4009
    %v4011 = vpop.f32.mrb[0].mxu0
    %v4012 = vadd.f32 %v3819, %v4011
    %v4013 = vpop.f32.mrb[0].mxu0
    %v4014 = vadd.f32 %v3821, %v4013
    %4015 = vmatprep.mubr.bf16.mxu0 %v2091
    %4016 = vmatmul.mubr.bf16.gmra.mrb[0].mxu0 %v2090
    %v4017 = vpop.f32.mrb[0].mxu0
    %v4018 = vadd.f32 %v3825, %v4017
    %v4019 = vpop.f32.mrb[0].mxu0
    %v4020 = vadd.f32 %v3827, %v4019
    %v4021 = vpop.f32.mrb[0].mxu0
    %v4022 = vadd.f32 %v3829, %v4021
    %v4023 = vpop.f32.mrb[0].mxu0
    %v4024 = vadd.f32 %v3831, %v4023
    %4025 = vmatprep.mubr.bf16.mxu0 %v2095
    %4026 = vmatmul.mubr.bf16.gmra.mrb[0].mxu0 %v2094
    %v4027 = vpop.f32.mrb[0].mxu0
    %v4028 = vadd.f32 %v3835, %v4027
    %v4029 = vpop.f32.mrb[0].mxu0
    %v4030 = vadd.f32 %v3837, %v4029
    %v4031 = vpop.f32.mrb[0].mxu0
    %v4032 = vadd.f32 %v3839, %v4031
    %v4033 = vpop.f32.mrb[0].mxu0
    %v4034 = vadd.f32 %v3841, %v4033
    %4035 = vmatprep.mubr.bf16.mxu0 %v2099
    %4036 = vmatmul.mubr.bf16.gmra.mrb[0].mxu0 %v2098
    %v4037 = vpop.f32.mrb[0].mxu0
    %v4038 = vadd.f32 %v3845, %v4037
    %v4039 = vpop.f32.mrb[0].mxu0
    %v4040 = vadd.f32 %v3847, %v4039
    %v4041 = vpop.f32.mrb[0].mxu0
    %v4042 = vadd.f32 %v3849, %v4041
    %v4043 = vpop.f32.mrb[0].mxu0
    %v4044 = vadd.f32 %v3851, %v4043
    %4045 = vmatprep.mubr.bf16.mxu0 %v2103
    %4046 = vmatmul.mubr.bf16.gmra.mrb[0].mxu0 %v2102
    %v4047 = vpop.f32.mrb[0].mxu0
    %v4048 = vadd.f32 %v3855, %v4047
    %v4049 = vpop.f32.mrb[0].mxu0
    %v4050 = vadd.f32 %v3857, %v4049
    %v4051 = vpop.f32.mrb[0].mxu0
    %v4052 = vadd.f32 %v3859, %v4051
    %v4053 = vpop.f32.mrb[0].mxu0
    %v4054 = vadd.f32 %v3861, %v4053
    %4055 = vmatprep.mubr.bf16.mxu0 %v2107
    %4056 = vmatmul.mubr.bf16.gmra.mrb[0].mxu0 %v2106
    %v4057 = vpop.f32.mrb[0].mxu0
    %v4058 = vadd.f32 %v3865, %v4057
    %v4059 = vpop.f32.mrb[0].mxu0
    %v4060 = vadd.f32 %v3867, %v4059
    %v4061 = vpop.f32.mrb[0].mxu0
    %v4062 = vadd.f32 %v3869, %v4061
    %v4063 = vpop.f32.mrb[0].mxu0
    %v4064 = vadd.f32 %v3871, %v4063
    %4065 = vmatprep.mubr.bf16.mxu0 %v2111
    %4066 = vmatmul.mubr.bf16.gmra.mrb[0].mxu0 %v2110
    %v4067 = vpop.f32.mrb[0].mxu0
    %v4068 = vadd.f32 %v3875, %v4067
    %v4069 = vpop.f32.mrb[0].mxu0
    %v4070 = vadd.f32 %v3877, %v4069
    %v4071 = vpop.f32.mrb[0].mxu0
    %v4072 = vadd.f32 %v3879, %v4071
    %v4073 = vpop.f32.mrb[0].mxu0
    %v4074 = vadd.f32 %v3881, %v4073
    %4075 = vdwg.mxu0
    %4076 = vmatprep.subr.bf16.mxu0 %v3181
    %4077 = vmatpush1.bf16.msra.mxu0 %v3180
    %4078 = vmatprep.subr.bf16.mxu0 %v3189
    %4079 = vmatpush1.bf16.msra.mxu0 %v3188
    %4080 = vmatprep.subr.bf16.mxu0 %v3197
    %4081 = vmatpush1.bf16.msra.mxu0 %v3196
    %4082 = vmatprep.subr.bf16.mxu0 %v3205
    %4083 = vmatpush1.bf16.msra.mxu0 %v3204
    %4084 = vmatprep.subr.bf16.mxu0 %v3213
    %4085 = vmatpush1.bf16.msra.mxu0 %v3212
    %4086 = vmatprep.subr.bf16.mxu0 %v3221
    %4087 = vmatpush1.bf16.msra.mxu0 %v3220
    %4088 = vmatprep.subr.bf16.mxu0 %v3229
    %4089 = vmatpush1.bf16.msra.mxu0 %v3228
    %4090 = vmatprep.subr.bf16.mxu0 %v3237
    %4091 = vmatpush1.bf16.msra.mxu0 %v3236
    %4092 = vmatprep.subr.bf16.mxu0 %v3245
    %4093 = vmatpush1.bf16.msra.mxu0 %v3244
    %4094 = vmatprep.subr.bf16.mxu0 %v3253
    %4095 = vmatpush1.bf16.msra.mxu0 %v3252
    %4096 = vmatprep.subr.bf16.mxu0 %v3261
    %4097 = vmatpush1.bf16.msra.mxu0 %v3260
    %4098 = vmatprep.subr.bf16.mxu0 %v3269
    %4099 = vmatpush1.bf16.msra.mxu0 %v3268
    %4100 = vmatprep.subr.bf16.mxu0 %v3277
    %4101 = vmatpush1.bf16.msra.mxu0 %v3276
    %4102 = vmatprep.subr.bf16.mxu0 %v3285
    %4103 = vmatpush1.bf16.msra.mxu0 %v3284
    %4104 = vmatprep.subr.bf16.mxu0 %v3293
    %4105 = vmatpush1.bf16.msra.mxu0 %v3292
    %4106 = vmatprep.subr.bf16.mxu0 %v3301
    %4107 = vmatpush1.bf16.msra.mxu0 %v3300
    %4108 = vmatprep.mubr.bf16.mxu0 %v2049
    %4109 = vmatmul.mubr.bf16.gmra.mrb[0].mxu0 %v2048
    %v4110 = vpop.f32.mrb[0].mxu0
    %v4111 = vadd.f32 %v2381, %v4110
    %v4112 = vpop.f32.mrb[0].mxu0
    %v4113 = vadd.f32 %v2385, %v4112
    %v4114 = vpop.f32.mrb[0].mxu0
    %v4115 = vadd.f32 %v2381, %v4114
    %v4116 = vpop.f32.mrb[0].mxu0
    %v4117 = vadd.f32 %v2385, %v4116
    %4118 = vmatprep.mubr.bf16.mxu0 %v2053
    %4119 = vmatmul.mubr.bf16.gmra.mrb[0].mxu0 %v2052
    %v4120 = vpop.f32.mrb[0].mxu0
    %v4121 = vadd.f32 %v2381, %v4120
    %v4122 = vpop.f32.mrb[0].mxu0
    %v4123 = vadd.f32 %v2385, %v4122
    %v4124 = vpop.f32.mrb[0].mxu0
    %v4125 = vadd.f32 %v2381, %v4124
    %v4126 = vpop.f32.mrb[0].mxu0
    %v4127 = vadd.f32 %v2385, %v4126
    %4128 = vmatprep.mubr.bf16.mxu0 %v2057
    %4129 = vmatmul.mubr.bf16.gmra.mrb[0].mxu0 %v2056
    %v4130 = vpop.f32.mrb[0].mxu0
    %v4131 = vadd.f32 %v2381, %v4130
    %v4132 = vpop.f32.mrb[0].mxu0
    %v4133 = vadd.f32 %v2385, %v4132
    %v4134 = vpop.f32.mrb[0].mxu0
    %v4135 = vadd.f32 %v2381, %v4134
    %v4136 = vpop.f32.mrb[0].mxu0
    %v4137 = vadd.f32 %v2385, %v4136
    %4138 = vmatprep.mubr.bf16.mxu0 %v2061
    %4139 = vmatmul.mubr.bf16.gmra.mrb[0].mxu0 %v2060
    %v4140 = vpop.f32.mrb[0].mxu0
    %v4141 = vadd.f32 %v2381, %v4140
    %v4142 = vpop.f32.mrb[0].mxu0
    %v4143 = vadd.f32 %v2385, %v4142
    %v4144 = vpop.f32.mrb[0].mxu0
    %v4145 = vadd.f32 %v2381, %v4144
    %v4146 = vpop.f32.mrb[0].mxu0
    %v4147 = vadd.f32 %v2385, %v4146
    %4148 = vmatprep.mubr.bf16.mxu0 %v2065
    %4149 = vmatmul.mubr.bf16.gmra.mrb[0].mxu0 %v2064
    %v4150 = vpop.f32.mrb[0].mxu0
    %v4151 = vadd.f32 %v2381, %v4150
    %v4152 = vpop.f32.mrb[0].mxu0
    %v4153 = vadd.f32 %v2385, %v4152
    %v4154 = vpop.f32.mrb[0].mxu0
    %v4155 = vadd.f32 %v2381, %v4154
    %v4156 = vpop.f32.mrb[0].mxu0
    %v4157 = vadd.f32 %v2385, %v4156
    %4158 = vmatprep.mubr.bf16.mxu0 %v2069
    %4159 = vmatmul.mubr.bf16.gmra.mrb[0].mxu0 %v2068
    %v4160 = vpop.f32.mrb[0].mxu0
    %v4161 = vadd.f32 %v2381, %v4160
    %v4162 = vpop.f32.mrb[0].mxu0
    %v4163 = vadd.f32 %v2385, %v4162
    %v4164 = vpop.f32.mrb[0].mxu0
    %v4165 = vadd.f32 %v2381, %v4164
    %v4166 = vpop.f32.mrb[0].mxu0
    %v4167 = vadd.f32 %v2385, %v4166
    %4168 = vmatprep.mubr.bf16.mxu0 %v2073
    %4169 = vmatmul.mubr.bf16.gmra.mrb[0].mxu0 %v2072
    %v4170 = vpop.f32.mrb[0].mxu0
    %v4171 = vadd.f32 %v2381, %v4170
    %v4172 = vpop.f32.mrb[0].mxu0
    %v4173 = vadd.f32 %v2385, %v4172
    %v4174 = vpop.f32.mrb[0].mxu0
    %v4175 = vadd.f32 %v2381, %v4174
    %v4176 = vpop.f32.mrb[0].mxu0
    %v4177 = vadd.f32 %v2385, %v4176
    %4178 = vmatprep.mubr.bf16.mxu0 %v2077
    %4179 = vmatmul.mubr.bf16.gmra.mrb[0].mxu0 %v2076
    %v4180 = vpop.f32.mrb[0].mxu0
    %v4181 = vadd.f32 %v2381, %v4180
    %v4182 = vpop.f32.mrb[0].mxu0
    %v4183 = vadd.f32 %v2385, %v4182
    %v4184 = vpop.f32.mrb[0].mxu0
    %v4185 = vadd.f32 %v2381, %v4184
    %v4186 = vpop.f32.mrb[0].mxu0
    %v4187 = vadd.f32 %v2385, %v4186
    %4188 = vmatprep.mubr.bf16.mxu0 %v2081
    %4189 = vmatmul.mubr.bf16.gmra.mrb[0].mxu0 %v2080
    %v4190 = vpop.f32.mrb[0].mxu0
    %v4191 = vadd.f32 %v2381, %v4190
    %v4192 = vpop.f32.mrb[0].mxu0
    %v4193 = vadd.f32 %v2385, %v4192
    %v4194 = vpop.f32.mrb[0].mxu0
    %v4195 = vadd.f32 %v2381, %v4194
    %v4196 = vpop.f32.mrb[0].mxu0
    %v4197 = vadd.f32 %v2385, %v4196
    %4198 = vmatprep.mubr.bf16.mxu0 %v2085
    %4199 = vmatmul.mubr.bf16.gmra.mrb[0].mxu0 %v2084
    %v4200 = vpop.f32.mrb[0].mxu0
    %v4201 = vadd.f32 %v2381, %v4200
    %v4202 = vpop.f32.mrb[0].mxu0
    %v4203 = vadd.f32 %v2385, %v4202
    %v4204 = vpop.f32.mrb[0].mxu0
    %v4205 = vadd.f32 %v2381, %v4204
    %v4206 = vpop.f32.mrb[0].mxu0
    %v4207 = vadd.f32 %v2385, %v4206
    %4208 = vmatprep.mubr.bf16.mxu0 %v2089
    %4209 = vmatmul.mubr.bf16.gmra.mrb[0].mxu0 %v2088
    %v4210 = vpop.f32.mrb[0].mxu0
    %v4211 = vadd.f32 %v2381, %v4210
    %v4212 = vpop.f32.mrb[0].mxu0
    %v4213 = vadd.f32 %v2385, %v4212
    %v4214 = vpop.f32.mrb[0].mxu0
    %v4215 = vadd.f32 %v2381, %v4214
    %v4216 = vpop.f32.mrb[0].mxu0
    %v4217 = vadd.f32 %v2385, %v4216
    %4218 = vmatprep.mubr.bf16.mxu0 %v2093
    %4219 = vmatmul.mubr.bf16.gmra.mrb[0].mxu0 %v2092
    %v4220 = vpop.f32.mrb[0].mxu0
    %v4221 = vadd.f32 %v2381, %v4220
    %v4222 = vpop.f32.mrb[0].mxu0
    %v4223 = vadd.f32 %v2385, %v4222
    %v4224 = vpop.f32.mrb[0].mxu0
    %v4225 = vadd.f32 %v2381, %v4224
    %v4226 = vpop.f32.mrb[0].mxu0
    %v4227 = vadd.f32 %v2385, %v4226
    %4228 = vmatprep.mubr.bf16.mxu0 %v2097
    %4229 = vmatmul.mubr.bf16.gmra.mrb[0].mxu0 %v2096
    %v4230 = vpop.f32.mrb[0].mxu0
    %v4231 = vadd.f32 %v2381, %v4230
    %v4232 = vpop.f32.mrb[0].mxu0
    %v4233 = vadd.f32 %v2385, %v4232
    %v4234 = vpop.f32.mrb[0].mxu0
    %v4235 = vadd.f32 %v2381, %v4234
    %v4236 = vpop.f32.mrb[0].mxu0
    %v4237 = vadd.f32 %v2385, %v4236
    %4238 = vmatprep.mubr.bf16.mxu0 %v2101
    %4239 = vmatmul.mubr.bf16.gmra.mrb[0].mxu0 %v2100
    %v4240 = vpop.f32.mrb[0].mxu0
    %v4241 = vadd.f32 %v2381, %v4240
    %v4242 = vpop.f32.mrb[0].mxu0
    %v4243 = vadd.f32 %v2385, %v4242
    %v4244 = vpop.f32.mrb[0].mxu0
    %v4245 = vadd.f32 %v2381, %v4244
    %v4246 = vpop.f32.mrb[0].mxu0
    %v4247 = vadd.f32 %v2385, %v4246
    %4248 = vmatprep.mubr.bf16.mxu0 %v2105
    %4249 = vmatmul.mubr.bf16.gmra.mrb[0].mxu0 %v2104
    %v4250 = vpop.f32.mrb[0].mxu0
    %v4251 = vadd.f32 %v2381, %v4250
    %v4252 = vpop.f32.mrb[0].mxu0
    %v4253 = vadd.f32 %v2385, %v4252
    %v4254 = vpop.f32.mrb[0].mxu0
    %v4255 = vadd.f32 %v2381, %v4254
    %v4256 = vpop.f32.mrb[0].mxu0
    %v4257 = vadd.f32 %v2385, %v4256
    %4258 = vmatprep.mubr.bf16.mxu0 %v2109
    %4259 = vmatmul.mubr.bf16.gmra.mrb[0].mxu0 %v2108
    %v4260 = vpop.f32.mrb[0].mxu0
    %v4261 = vadd.f32 %v2381, %v4260
    %v4262 = vpop.f32.mrb[0].mxu0
    %v4263 = vadd.f32 %v2385, %v4262
    %v4264 = vpop.f32.mrb[0].mxu0
    %v4265 = vadd.f32 %v2381, %v4264
    %v4266 = vpop.f32.mrb[0].mxu0
    %v4267 = vadd.f32 %v2385, %v4266
    %4268 = vdwg.mxu0
    %4269 = vmatprep.subr.bf16.mxu0 %v3309
    %4270 = vmatpush1.bf16.msra.mxu0 %v3308
    %4271 = vmatprep.subr.bf16.mxu0 %v3317
    %4272 = vmatpush1.bf16.msra.mxu0 %v3316
    %4273 = vmatprep.subr.bf16.mxu0 %v3325
    %4274 = vmatpush1.bf16.msra.mxu0 %v3324
    %4275 = vmatprep.subr.bf16.mxu0 %v3333
    %4276 = vmatpush1.bf16.msra.mxu0 %v3332
    %4277 = vmatprep.subr.bf16.mxu0 %v3341
    %4278 = vmatpush1.bf16.msra.mxu0 %v3340
    %4279 = vmatprep.subr.bf16.mxu0 %v3349
    %4280 = vmatpush1.bf16.msra.mxu0 %v3348
    %4281 = vmatprep.subr.bf16.mxu0 %v3357
    %4282 = vmatpush1.bf16.msra.mxu0 %v3356
    %4283 = vmatprep.subr.bf16.mxu0 %v3365
    %4284 = vmatpush1.bf16.msra.mxu0 %v3364
    %4285 = vmatprep.subr.bf16.mxu0 %v3373
    %4286 = vmatpush1.bf16.msra.mxu0 %v3372
    %4287 = vmatprep.subr.bf16.mxu0 %v3381
    %4288 = vmatpush1.bf16.msra.mxu0 %v3380
    %4289 = vmatprep.subr.bf16.mxu0 %v3389
    %4290 = vmatpush1.bf16.msra.mxu0 %v3388
    %4291 = vmatprep.subr.bf16.mxu0 %v3397
    %4292 = vmatpush1.bf16.msra.mxu0 %v3396
    %4293 = vmatprep.subr.bf16.mxu0 %v3405
    %4294 = vmatpush1.bf16.msra.mxu0 %v3404
    %4295 = vmatprep.subr.bf16.mxu0 %v3413
    %4296 = vmatpush1.bf16.msra.mxu0 %v3412
    %4297 = vmatprep.subr.bf16.mxu0 %v3421
    %4298 = vmatpush1.bf16.msra.mxu0 %v3420
    %4299 = vmatprep.subr.bf16.mxu0 %v3429
    %4300 = vmatpush1.bf16.msra.mxu0 %v3428
    %4301 = vmatprep.mubr.bf16.mxu0 %v2051
    %4302 = vmatmul.mubr.bf16.gmra.mrb[0].mxu0 %v2050
    %v4303 = vpop.f32.mrb[0].mxu0
    %v4304 = vadd.f32 %v4111, %v4303
    %v4305 = vpop.f32.mrb[0].mxu0
    %v4306 = vadd.f32 %v4113, %v4305
    %v4307 = vpop.f32.mrb[0].mxu0
    %v4308 = vadd.f32 %v4115, %v4307
    %v4309 = vpop.f32.mrb[0].mxu0
    %v4310 = vadd.f32 %v4117, %v4309
    %4311 = vmatprep.mubr.bf16.mxu0 %v2055
    %4312 = vmatmul.mubr.bf16.gmra.mrb[0].mxu0 %v2054
    %v4313 = vpop.f32.mrb[0].mxu0
    %v4314 = vadd.f32 %v4121, %v4313
    %v4315 = vpop.f32.mrb[0].mxu0
    %v4316 = vadd.f32 %v4123, %v4315
    %v4317 = vpop.f32.mrb[0].mxu0
    %v4318 = vadd.f32 %v4125, %v4317
    %v4319 = vpop.f32.mrb[0].mxu0
    %v4320 = vadd.f32 %v4127, %v4319
    %4321 = vmatprep.mubr.bf16.mxu0 %v2059
    %4322 = vmatmul.mubr.bf16.gmra.mrb[0].mxu0 %v2058
    %v4323 = vpop.f32.mrb[0].mxu0
    %v4324 = vadd.f32 %v4131, %v4323
    %v4325 = vpop.f32.mrb[0].mxu0
    %v4326 = vadd.f32 %v4133, %v4325
    %v4327 = vpop.f32.mrb[0].mxu0
    %v4328 = vadd.f32 %v4135, %v4327
    %v4329 = vpop.f32.mrb[0].mxu0
    %v4330 = vadd.f32 %v4137, %v4329
    %4331 = vmatprep.mubr.bf16.mxu0 %v2063
    %4332 = vmatmul.mubr.bf16.gmra.mrb[0].mxu0 %v2062
    %v4333 = vpop.f32.mrb[0].mxu0
    %v4334 = vadd.f32 %v4141, %v4333
    %v4335 = vpop.f32.mrb[0].mxu0
    %v4336 = vadd.f32 %v4143, %v4335
    %v4337 = vpop.f32.mrb[0].mxu0
    %v4338 = vadd.f32 %v4145, %v4337
    %v4339 = vpop.f32.mrb[0].mxu0
    %v4340 = vadd.f32 %v4147, %v4339
    %4341 = vmatprep.mubr.bf16.mxu0 %v2067
    %4342 = vmatmul.mubr.bf16.gmra.mrb[0].mxu0 %v2066
    %v4343 = vpop.f32.mrb[0].mxu0
    %v4344 = vadd.f32 %v4151, %v4343
    %v4345 = vpop.f32.mrb[0].mxu0
    %v4346 = vadd.f32 %v4153, %v4345
    %v4347 = vpop.f32.mrb[0].mxu0
    %v4348 = vadd.f32 %v4155, %v4347
    %v4349 = vpop.f32.mrb[0].mxu0
    %v4350 = vadd.f32 %v4157, %v4349
    %4351 = vmatprep.mubr.bf16.mxu0 %v2071
    %4352 = vmatmul.mubr.bf16.gmra.mrb[0].mxu0 %v2070
    %v4353 = vpop.f32.mrb[0].mxu0
    %v4354 = vadd.f32 %v4161, %v4353
    %v4355 = vpop.f32.mrb[0].mxu0
    %v4356 = vadd.f32 %v4163, %v4355
    %v4357 = vpop.f32.mrb[0].mxu0
    %v4358 = vadd.f32 %v4165, %v4357
    %v4359 = vpop.f32.mrb[0].mxu0
    %v4360 = vadd.f32 %v4167, %v4359
    %4361 = vmatprep.mubr.bf16.mxu0 %v2075
    %4362 = vmatmul.mubr.bf16.gmra.mrb[0].mxu0 %v2074
    %v4363 = vpop.f32.mrb[0].mxu0
    %v4364 = vadd.f32 %v4171, %v4363
    %v4365 = vpop.f32.mrb[0].mxu0
    %v4366 = vadd.f32 %v4173, %v4365
    %v4367 = vpop.f32.mrb[0].mxu0
    %v4368 = vadd.f32 %v4175, %v4367
    %v4369 = vpop.f32.mrb[0].mxu0
    %v4370 = vadd.f32 %v4177, %v4369
    %4371 = vmatprep.mubr.bf16.mxu0 %v2079
    %4372 = vmatmul.mubr.bf16.gmra.mrb[0].mxu0 %v2078
    %v4373 = vpop.f32.mrb[0].mxu0
    %v4374 = vadd.f32 %v4181, %v4373
    %v4375 = vpop.f32.mrb[0].mxu0
    %v4376 = vadd.f32 %v4183, %v4375
    %v4377 = vpop.f32.mrb[0].mxu0
    %v4378 = vadd.f32 %v4185, %v4377
    %v4379 = vpop.f32.mrb[0].mxu0
    %v4380 = vadd.f32 %v4187, %v4379
    %4381 = vmatprep.mubr.bf16.mxu0 %v2083
    %4382 = vmatmul.mubr.bf16.gmra.mrb[0].mxu0 %v2082
    %v4383 = vpop.f32.mrb[0].mxu0
    %v4384 = vadd.f32 %v4191, %v4383
    %v4385 = vpop.f32.mrb[0].mxu0
    %v4386 = vadd.f32 %v4193, %v4385
    %v4387 = vpop.f32.mrb[0].mxu0
    %v4388 = vadd.f32 %v4195, %v4387
    %v4389 = vpop.f32.mrb[0].mxu0
    %v4390 = vadd.f32 %v4197, %v4389
    %4391 = vmatprep.mubr.bf16.mxu0 %v2087
    %4392 = vmatmul.mubr.bf16.gmra.mrb[0].mxu0 %v2086
    %v4393 = vpop.f32.mrb[0].mxu0
    %v4394 = vadd.f32 %v4201, %v4393
    %v4395 = vpop.f32.mrb[0].mxu0
    %v4396 = vadd.f32 %v4203, %v4395
    %v4397 = vpop.f32.mrb[0].mxu0
    %v4398 = vadd.f32 %v4205, %v4397
    %v4399 = vpop.f32.mrb[0].mxu0
    %v4400 = vadd.f32 %v4207, %v4399
    %4401 = vmatprep.mubr.bf16.mxu0 %v2091
    %4402 = vmatmul.mubr.bf16.gmra.mrb[0].mxu0 %v2090
    %v4403 = vpop.f32.mrb[0].mxu0
    %v4404 = vadd.f32 %v4211, %v4403
    %v4405 = vpop.f32.mrb[0].mxu0
    %v4406 = vadd.f32 %v4213, %v4405
    %v4407 = vpop.f32.mrb[0].mxu0
    %v4408 = vadd.f32 %v4215, %v4407
    %v4409 = vpop.f32.mrb[0].mxu0
    %v4410 = vadd.f32 %v4217, %v4409
    %4411 = vmatprep.mubr.bf16.mxu0 %v2095
    %4412 = vmatmul.mubr.bf16.gmra.mrb[0].mxu0 %v2094
    %v4413 = vpop.f32.mrb[0].mxu0
    %v4414 = vadd.f32 %v4221, %v4413
    %v4415 = vpop.f32.mrb[0].mxu0
    %v4416 = vadd.f32 %v4223, %v4415
    %v4417 = vpop.f32.mrb[0].mxu0
    %v4418 = vadd.f32 %v4225, %v4417
    %v4419 = vpop.f32.mrb[0].mxu0
    %v4420 = vadd.f32 %v4227, %v4419
    %4421 = vmatprep.mubr.bf16.mxu0 %v2099
    %4422 = vmatmul.mubr.bf16.gmra.mrb[0].mxu0 %v2098
    %v4423 = vpop.f32.mrb[0].mxu0
    %v4424 = vadd.f32 %v4231, %v4423
    %v4425 = vpop.f32.mrb[0].mxu0
    %v4426 = vadd.f32 %v4233, %v4425
    %v4427 = vpop.f32.mrb[0].mxu0
    %v4428 = vadd.f32 %v4235, %v4427
    %v4429 = vpop.f32.mrb[0].mxu0
    %v4430 = vadd.f32 %v4237, %v4429
    %4431 = vmatprep.mubr.bf16.mxu0 %v2103
    %4432 = vmatmul.mubr.bf16.gmra.mrb[0].mxu0 %v2102
    %v4433 = vpop.f32.mrb[0].mxu0
    %v4434 = vadd.f32 %v4241, %v4433
    %v4435 = vpop.f32.mrb[0].mxu0
    %v4436 = vadd.f32 %v4243, %v4435
    %v4437 = vpop.f32.mrb[0].mxu0
    %v4438 = vadd.f32 %v4245, %v4437
    %v4439 = vpop.f32.mrb[0].mxu0
    %v4440 = vadd.f32 %v4247, %v4439
    %4441 = vmatprep.mubr.bf16.mxu0 %v2107
    %4442 = vmatmul.mubr.bf16.gmra.mrb[0].mxu0 %v2106
    %v4443 = vpop.f32.mrb[0].mxu0
    %v4444 = vadd.f32 %v4251, %v4443
    %v4445 = vpop.f32.mrb[0].mxu0
    %v4446 = vadd.f32 %v4253, %v4445
    %v4447 = vpop.f32.mrb[0].mxu0
    %v4448 = vadd.f32 %v4255, %v4447
    %v4449 = vpop.f32.mrb[0].mxu0
    %v4450 = vadd.f32 %v4257, %v4449
    %4451 = vmatprep.mubr.bf16.mxu0 %v2111
    %4452 = vmatmul.mubr.bf16.gmra.mrb[0].mxu0 %v2110
    %v4453 = vpop.f32.mrb[0].mxu0
    %v4454 = vadd.f32 %v4261, %v4453
    %v4455 = vpop.f32.mrb[0].mxu0
    %v4456 = vadd.f32 %v4263, %v4455
    %v4457 = vpop.f32.mrb[0].mxu0
    %v4458 = vadd.f32 %v4265, %v4457
    %v4459 = vpop.f32.mrb[0].mxu0
    %v4460 = vadd.f32 %v4267, %v4459
    %4461 = vdwg.mxu0
    %4462 = vmatprep.subr.bf16.mxu0 %v3183
    %4463 = vmatpush1.bf16.msra.mxu0 %v3182
    %4464 = vmatprep.subr.bf16.mxu0 %v3191
    %4465 = vmatpush1.bf16.msra.mxu0 %v3190
    %4466 = vmatprep.subr.bf16.mxu0 %v3199
    %4467 = vmatpush1.bf16.msra.mxu0 %v3198
    %4468 = vmatprep.subr.bf16.mxu0 %v3207
    %4469 = vmatpush1.bf16.msra.mxu0 %v3206
    %4470 = vmatprep.subr.bf16.mxu0 %v3215
    %4471 = vmatpush1.bf16.msra.mxu0 %v3214
    %4472 = vmatprep.subr.bf16.mxu0 %v3223
    %4473 = vmatpush1.bf16.msra.mxu0 %v3222
    %4474 = vmatprep.subr.bf16.mxu0 %v3231
    %4475 = vmatpush1.bf16.msra.mxu0 %v3230
    %4476 = vmatprep.subr.bf16.mxu0 %v3239
    %4477 = vmatpush1.bf16.msra.mxu0 %v3238
    %4478 = vmatprep.subr.bf16.mxu0 %v3247
    %4479 = vmatpush1.bf16.msra.mxu0 %v3246
    %4480 = vmatprep.subr.bf16.mxu0 %v3255
    %4481 = vmatpush1.bf16.msra.mxu0 %v3254
    %4482 = vmatprep.subr.bf16.mxu0 %v3263
    %4483 = vmatpush1.bf16.msra.mxu0 %v3262
    %4484 = vmatprep.subr.bf16.mxu0 %v3271
    %4485 = vmatpush1.bf16.msra.mxu0 %v3270
    %4486 = vmatprep.subr.bf16.mxu0 %v3279
    %4487 = vmatpush1.bf16.msra.mxu0 %v3278
    %4488 = vmatprep.subr.bf16.mxu0 %v3287
    %4489 = vmatpush1.bf16.msra.mxu0 %v3286
    %4490 = vmatprep.subr.bf16.mxu0 %v3295
    %4491 = vmatpush1.bf16.msra.mxu0 %v3294
    %4492 = vmatprep.subr.bf16.mxu0 %v3303
    %4493 = vmatpush1.bf16.msra.mxu0 %v3302
    %4494 = vmatprep.mubr.bf16.mxu0 %v2049
    %4495 = vmatmul.mubr.bf16.gmra.mrb[0].mxu0 %v2048
    %v4496 = vpop.f32.mrb[0].mxu0
    %v4497 = vadd.f32 %v2389, %v4496
    %v4498 = vpop.f32.mrb[0].mxu0
    %v4499 = vadd.f32 %v2393, %v4498
    %v4500 = vpop.f32.mrb[0].mxu0
    %v4501 = vadd.f32 %v2389, %v4500
    %v4502 = vpop.f32.mrb[0].mxu0
    %v4503 = vadd.f32 %v2393, %v4502
    %4504 = vmatprep.mubr.bf16.mxu0 %v2053
    %4505 = vmatmul.mubr.bf16.gmra.mrb[0].mxu0 %v2052
    %v4506 = vpop.f32.mrb[0].mxu0
    %v4507 = vadd.f32 %v2389, %v4506
    %v4508 = vpop.f32.mrb[0].mxu0
    %v4509 = vadd.f32 %v2393, %v4508
    %v4510 = vpop.f32.mrb[0].mxu0
    %v4511 = vadd.f32 %v2389, %v4510
    %v4512 = vpop.f32.mrb[0].mxu0
    %v4513 = vadd.f32 %v2393, %v4512
    %4514 = vmatprep.mubr.bf16.mxu0 %v2057
    %4515 = vmatmul.mubr.bf16.gmra.mrb[0].mxu0 %v2056
    %v4516 = vpop.f32.mrb[0].mxu0
    %v4517 = vadd.f32 %v2389, %v4516
    %v4518 = vpop.f32.mrb[0].mxu0
    %v4519 = vadd.f32 %v2393, %v4518
    %v4520 = vpop.f32.mrb[0].mxu0
    %v4521 = vadd.f32 %v2389, %v4520
    %v4522 = vpop.f32.mrb[0].mxu0
    %v4523 = vadd.f32 %v2393, %v4522
    %4524 = vmatprep.mubr.bf16.mxu0 %v2061
    %4525 = vmatmul.mubr.bf16.gmra.mrb[0].mxu0 %v2060
    %v4526 = vpop.f32.mrb[0].mxu0
    %v4527 = vadd.f32 %v2389, %v4526
    %v4528 = vpop.f32.mrb[0].mxu0
    %v4529 = vadd.f32 %v2393, %v4528
    %v4530 = vpop.f32.mrb[0].mxu0
    %v4531 = vadd.f32 %v2389, %v4530
    %v4532 = vpop.f32.mrb[0].mxu0
    %v4533 = vadd.f32 %v2393, %v4532
    %4534 = vmatprep.mubr.bf16.mxu0 %v2065
    %4535 = vmatmul.mubr.bf16.gmra.mrb[0].mxu0 %v2064
    %v4536 = vpop.f32.mrb[0].mxu0
    %v4537 = vadd.f32 %v2389, %v4536
    %v4538 = vpop.f32.mrb[0].mxu0
    %v4539 = vadd.f32 %v2393, %v4538
    %v4540 = vpop.f32.mrb[0].mxu0
    %v4541 = vadd.f32 %v2389, %v4540
    %v4542 = vpop.f32.mrb[0].mxu0
    %v4543 = vadd.f32 %v2393, %v4542
    %4544 = vmatprep.mubr.bf16.mxu0 %v2069
    %4545 = vmatmul.mubr.bf16.gmra.mrb[0].mxu0 %v2068
    %v4546 = vpop.f32.mrb[0].mxu0
    %v4547 = vadd.f32 %v2389, %v4546
    %v4548 = vpop.f32.mrb[0].mxu0
    %v4549 = vadd.f32 %v2393, %v4548
    %v4550 = vpop.f32.mrb[0].mxu0
    %v4551 = vadd.f32 %v2389, %v4550
    %v4552 = vpop.f32.mrb[0].mxu0
    %v4553 = vadd.f32 %v2393, %v4552
    %4554 = vmatprep.mubr.bf16.mxu0 %v2073
    %4555 = vmatmul.mubr.bf16.gmra.mrb[0].mxu0 %v2072
    %v4556 = vpop.f32.mrb[0].mxu0
    %v4557 = vadd.f32 %v2389, %v4556
    %v4558 = vpop.f32.mrb[0].mxu0
    %v4559 = vadd.f32 %v2393, %v4558
    %v4560 = vpop.f32.mrb[0].mxu0
    %v4561 = vadd.f32 %v2389, %v4560
    %v4562 = vpop.f32.mrb[0].mxu0
    %v4563 = vadd.f32 %v2393, %v4562
    %4564 = vmatprep.mubr.bf16.mxu0 %v2077
    %4565 = vmatmul.mubr.bf16.gmra.mrb[0].mxu0 %v2076
    %v4566 = vpop.f32.mrb[0].mxu0
    %v4567 = vadd.f32 %v2389, %v4566
    %v4568 = vpop.f32.mrb[0].mxu0
    %v4569 = vadd.f32 %v2393, %v4568
    %v4570 = vpop.f32.mrb[0].mxu0
    %v4571 = vadd.f32 %v2389, %v4570
    %v4572 = vpop.f32.mrb[0].mxu0
    %v4573 = vadd.f32 %v2393, %v4572
    %4574 = vmatprep.mubr.bf16.mxu0 %v2081
    %4575 = vmatmul.mubr.bf16.gmra.mrb[0].mxu0 %v2080
    %v4576 = vpop.f32.mrb[0].mxu0
    %v4577 = vadd.f32 %v2389, %v4576
    %v4578 = vpop.f32.mrb[0].mxu0
    %v4579 = vadd.f32 %v2393, %v4578
    %v4580 = vpop.f32.mrb[0].mxu0
    %v4581 = vadd.f32 %v2389, %v4580
    %v4582 = vpop.f32.mrb[0].mxu0
    %v4583 = vadd.f32 %v2393, %v4582
    %4584 = vmatprep.mubr.bf16.mxu0 %v2085
    %4585 = vmatmul.mubr.bf16.gmra.mrb[0].mxu0 %v2084
    %v4586 = vpop.f32.mrb[0].mxu0
    %v4587 = vadd.f32 %v2389, %v4586
    %v4588 = vpop.f32.mrb[0].mxu0
    %v4589 = vadd.f32 %v2393, %v4588
    %v4590 = vpop.f32.mrb[0].mxu0
    %v4591 = vadd.f32 %v2389, %v4590
    %v4592 = vpop.f32.mrb[0].mxu0
    %v4593 = vadd.f32 %v2393, %v4592
    %4594 = vmatprep.mubr.bf16.mxu0 %v2089
    %4595 = vmatmul.mubr.bf16.gmra.mrb[0].mxu0 %v2088
    %v4596 = vpop.f32.mrb[0].mxu0
    %v4597 = vadd.f32 %v2389, %v4596
    %v4598 = vpop.f32.mrb[0].mxu0
    %v4599 = vadd.f32 %v2393, %v4598
    %v4600 = vpop.f32.mrb[0].mxu0
    %v4601 = vadd.f32 %v2389, %v4600
    %v4602 = vpop.f32.mrb[0].mxu0
    %v4603 = vadd.f32 %v2393, %v4602
    %4604 = vmatprep.mubr.bf16.mxu0 %v2093
    %4605 = vmatmul.mubr.bf16.gmra.mrb[0].mxu0 %v2092
    %v4606 = vpop.f32.mrb[0].mxu0
    %v4607 = vadd.f32 %v2389, %v4606
    %v4608 = vpop.f32.mrb[0].mxu0
    %v4609 = vadd.f32 %v2393, %v4608
    %v4610 = vpop.f32.mrb[0].mxu0
    %v4611 = vadd.f32 %v2389, %v4610
    %v4612 = vpop.f32.mrb[0].mxu0
    %v4613 = vadd.f32 %v2393, %v4612
    %4614 = vmatprep.mubr.bf16.mxu0 %v2097
    %4615 = vmatmul.mubr.bf16.gmra.mrb[0].mxu0 %v2096
    %v4616 = vpop.f32.mrb[0].mxu0
    %v4617 = vadd.f32 %v2389, %v4616
    %v4618 = vpop.f32.mrb[0].mxu0
    %v4619 = vadd.f32 %v2393, %v4618
    %v4620 = vpop.f32.mrb[0].mxu0
    %v4621 = vadd.f32 %v2389, %v4620
    %v4622 = vpop.f32.mrb[0].mxu0
    %v4623 = vadd.f32 %v2393, %v4622
    %4624 = vmatprep.mubr.bf16.mxu0 %v2101
    %4625 = vmatmul.mubr.bf16.gmra.mrb[0].mxu0 %v2100
    %v4626 = vpop.f32.mrb[0].mxu0
    %v4627 = vadd.f32 %v2389, %v4626
    %v4628 = vpop.f32.mrb[0].mxu0
    %v4629 = vadd.f32 %v2393, %v4628
    %v4630 = vpop.f32.mrb[0].mxu0
    %v4631 = vadd.f32 %v2389, %v4630
    %v4632 = vpop.f32.mrb[0].mxu0
    %v4633 = vadd.f32 %v2393, %v4632
    %4634 = vmatprep.mubr.bf16.mxu0 %v2105
    %4635 = vmatmul.mubr.bf16.gmra.mrb[0].mxu0 %v2104
    %v4636 = vpop.f32.mrb[0].mxu0
    %v4637 = vadd.f32 %v2389, %v4636
    %v4638 = vpop.f32.mrb[0].mxu0
    %v4639 = vadd.f32 %v2393, %v4638
    %v4640 = vpop.f32.mrb[0].mxu0
    %v4641 = vadd.f32 %v2389, %v4640
    %v4642 = vpop.f32.mrb[0].mxu0
    %v4643 = vadd.f32 %v2393, %v4642
    %4644 = vmatprep.mubr.bf16.mxu0 %v2109
    %4645 = vmatmul.mubr.bf16.gmra.mrb[0].mxu0 %v2108
    %v4646 = vpop.f32.mrb[0].mxu0
    %v4647 = vadd.f32 %v2389, %v4646
    %v4648 = vpop.f32.mrb[0].mxu0
    %v4649 = vadd.f32 %v2393, %v4648
    %v4650 = vpop.f32.mrb[0].mxu0
    %v4651 = vadd.f32 %v2389, %v4650
    %v4652 = vpop.f32.mrb[0].mxu0
    %v4653 = vadd.f32 %v2393, %v4652
    %4654 = vdwg.mxu0
    %4655 = vmatprep.subr.bf16.mxu0 %v3311
    %4656 = vmatpush1.bf16.msra.mxu0 %v3310
    %4657 = vmatprep.subr.bf16.mxu0 %v3319
    %4658 = vmatpush1.bf16.msra.mxu0 %v3318
    %4659 = vmatprep.subr.bf16.mxu0 %v3327
    %4660 = vmatpush1.bf16.msra.mxu0 %v3326
    %4661 = vmatprep.subr.bf16.mxu0 %v3335
    %4662 = vmatpush1.bf16.msra.mxu0 %v3334
    %4663 = vmatprep.subr.bf16.mxu0 %v3343
    %4664 = vmatpush1.bf16.msra.mxu0 %v3342
    %4665 = vmatprep.subr.bf16.mxu0 %v3351
    %4666 = vmatpush1.bf16.msra.mxu0 %v3350
    %4667 = vmatprep.subr.bf16.mxu0 %v3359
    %4668 = vmatpush1.bf16.msra.mxu0 %v3358
    %4669 = vmatprep.subr.bf16.mxu0 %v3367
    %4670 = vmatpush1.bf16.msra.mxu0 %v3366
    %4671 = vmatprep.subr.bf16.mxu0 %v3375
    %4672 = vmatpush1.bf16.msra.mxu0 %v3374
    %4673 = vmatprep.subr.bf16.mxu0 %v3383
    %4674 = vmatpush1.bf16.msra.mxu0 %v3382
    %4675 = vmatprep.subr.bf16.mxu0 %v3391
    %4676 = vmatpush1.bf16.msra.mxu0 %v3390
    %4677 = vmatprep.subr.bf16.mxu0 %v3399
    %4678 = vmatpush1.bf16.msra.mxu0 %v3398
    %4679 = vmatprep.subr.bf16.mxu0 %v3407
    %4680 = vmatpush1.bf16.msra.mxu0 %v3406
    %4681 = vmatprep.subr.bf16.mxu0 %v3415
    %4682 = vmatpush1.bf16.msra.mxu0 %v3414
    %4683 = vmatprep.subr.bf16.mxu0 %v3423
    %4684 = vmatpush1.bf16.msra.mxu0 %v3422
    %4685 = vmatprep.subr.bf16.mxu0 %v3431
    %4686 = vmatpush1.bf16.msra.mxu0 %v3430
    %4687 = vmatprep.mubr.bf16.mxu0 %v2051
    %4688 = vmatmul.mubr.bf16.gmra.mrb[0].mxu0 %v2050
    %v4689 = vpop.f32.mrb[0].mxu0
    %v4690 = vadd.f32 %v4497, %v4689
    %v4691 = vpop.f32.mrb[0].mxu0
    %v4692 = vadd.f32 %v4499, %v4691
    %v4693 = vpop.f32.mrb[0].mxu0
    %v4694 = vadd.f32 %v4501, %v4693
    %v4695 = vpop.f32.mrb[0].mxu0
    %v4696 = vadd.f32 %v4503, %v4695
    %4697 = vmatprep.mubr.bf16.mxu0 %v2055
    %4698 = vmatmul.mubr.bf16.gmra.mrb[0].mxu0 %v2054
    %v4699 = vpop.f32.mrb[0].mxu0
    %v4700 = vadd.f32 %v4507, %v4699
    %v4701 = vpop.f32.mrb[0].mxu0
    %v4702 = vadd.f32 %v4509, %v4701
    %v4703 = vpop.f32.mrb[0].mxu0
    %v4704 = vadd.f32 %v4511, %v4703
    %v4705 = vpop.f32.mrb[0].mxu0
    %v4706 = vadd.f32 %v4513, %v4705
    %4707 = vmatprep.mubr.bf16.mxu0 %v2059
    %4708 = vmatmul.mubr.bf16.gmra.mrb[0].mxu0 %v2058
    %v4709 = vpop.f32.mrb[0].mxu0
    %v4710 = vadd.f32 %v4517, %v4709
    %v4711 = vpop.f32.mrb[0].mxu0
    %v4712 = vadd.f32 %v4519, %v4711
    %v4713 = vpop.f32.mrb[0].mxu0
    %v4714 = vadd.f32 %v4521, %v4713
    %v4715 = vpop.f32.mrb[0].mxu0
    %v4716 = vadd.f32 %v4523, %v4715
    %4717 = vmatprep.mubr.bf16.mxu0 %v2063
    %4718 = vmatmul.mubr.bf16.gmra.mrb[0].mxu0 %v2062
    %v4719 = vpop.f32.mrb[0].mxu0
    %v4720 = vadd.f32 %v4527, %v4719
    %v4721 = vpop.f32.mrb[0].mxu0
    %v4722 = vadd.f32 %v4529, %v4721
    %v4723 = vpop.f32.mrb[0].mxu0
    %v4724 = vadd.f32 %v4531, %v4723
    %v4725 = vpop.f32.mrb[0].mxu0
    %v4726 = vadd.f32 %v4533, %v4725
    %4727 = vmatprep.mubr.bf16.mxu0 %v2067
    %4728 = vmatmul.mubr.bf16.gmra.mrb[0].mxu0 %v2066
    %v4729 = vpop.f32.mrb[0].mxu0
    %v4730 = vadd.f32 %v4537, %v4729
    %v4731 = vpop.f32.mrb[0].mxu0
    %v4732 = vadd.f32 %v4539, %v4731
    %v4733 = vpop.f32.mrb[0].mxu0
    %v4734 = vadd.f32 %v4541, %v4733
    %v4735 = vpop.f32.mrb[0].mxu0
    %v4736 = vadd.f32 %v4543, %v4735
    %4737 = vmatprep.mubr.bf16.mxu0 %v2071
    %4738 = vmatmul.mubr.bf16.gmra.mrb[0].mxu0 %v2070
    %v4739 = vpop.f32.mrb[0].mxu0
    %v4740 = vadd.f32 %v4547, %v4739
    %v4741 = vpop.f32.mrb[0].mxu0
    %v4742 = vadd.f32 %v4549, %v4741
    %v4743 = vpop.f32.mrb[0].mxu0
    %v4744 = vadd.f32 %v4551, %v4743
    %v4745 = vpop.f32.mrb[0].mxu0
    %v4746 = vadd.f32 %v4553, %v4745
    %4747 = vmatprep.mubr.bf16.mxu0 %v2075
    %4748 = vmatmul.mubr.bf16.gmra.mrb[0].mxu0 %v2074
    %v4749 = vpop.f32.mrb[0].mxu0
    %v4750 = vadd.f32 %v4557, %v4749
    %v4751 = vpop.f32.mrb[0].mxu0
    %v4752 = vadd.f32 %v4559, %v4751
    %v4753 = vpop.f32.mrb[0].mxu0
    %v4754 = vadd.f32 %v4561, %v4753
    %v4755 = vpop.f32.mrb[0].mxu0
    %v4756 = vadd.f32 %v4563, %v4755
    %4757 = vmatprep.mubr.bf16.mxu0 %v2079
    %4758 = vmatmul.mubr.bf16.gmra.mrb[0].mxu0 %v2078
    %v4759 = vpop.f32.mrb[0].mxu0
    %v4760 = vadd.f32 %v4567, %v4759
    %v4761 = vpop.f32.mrb[0].mxu0
    %v4762 = vadd.f32 %v4569, %v4761
    %v4763 = vpop.f32.mrb[0].mxu0
    %v4764 = vadd.f32 %v4571, %v4763
    %v4765 = vpop.f32.mrb[0].mxu0
    %v4766 = vadd.f32 %v4573, %v4765
    %4767 = vmatprep.mubr.bf16.mxu0 %v2083
    %4768 = vmatmul.mubr.bf16.gmra.mrb[0].mxu0 %v2082
    %v4769 = vpop.f32.mrb[0].mxu0
    %v4770 = vadd.f32 %v4577, %v4769
    %v4771 = vpop.f32.mrb[0].mxu0
    %v4772 = vadd.f32 %v4579, %v4771
    %v4773 = vpop.f32.mrb[0].mxu0
    %v4774 = vadd.f32 %v4581, %v4773
    %v4775 = vpop.f32.mrb[0].mxu0
    %v4776 = vadd.f32 %v4583, %v4775
    %4777 = vmatprep.mubr.bf16.mxu0 %v2087
    %4778 = vmatmul.mubr.bf16.gmra.mrb[0].mxu0 %v2086
    %v4779 = vpop.f32.mrb[0].mxu0
    %v4780 = vadd.f32 %v4587, %v4779
    %v4781 = vpop.f32.mrb[0].mxu0
    %v4782 = vadd.f32 %v4589, %v4781
    %v4783 = vpop.f32.mrb[0].mxu0
    %v4784 = vadd.f32 %v4591, %v4783
    %v4785 = vpop.f32.mrb[0].mxu0
    %v4786 = vadd.f32 %v4593, %v4785
    %4787 = vmatprep.mubr.bf16.mxu0 %v2091
    %4788 = vmatmul.mubr.bf16.gmra.mrb[0].mxu0 %v2090
    %v4789 = vpop.f32.mrb[0].mxu0
    %v4790 = vadd.f32 %v4597, %v4789
    %v4791 = vpop.f32.mrb[0].mxu0
    %v4792 = vadd.f32 %v4599, %v4791
    %v4793 = vpop.f32.mrb[0].mxu0
    %v4794 = vadd.f32 %v4601, %v4793
    %v4795 = vpop.f32.mrb[0].mxu0
    %v4796 = vadd.f32 %v4603, %v4795
    %4797 = vmatprep.mubr.bf16.mxu0 %v2095
    %4798 = vmatmul.mubr.bf16.gmra.mrb[0].mxu0 %v2094
    %v4799 = vpop.f32.mrb[0].mxu0
    %v4800 = vadd.f32 %v4607, %v4799
    %v4801 = vpop.f32.mrb[0].mxu0
    %v4802 = vadd.f32 %v4609, %v4801
    %v4803 = vpop.f32.mrb[0].mxu0
    %v4804 = vadd.f32 %v4611, %v4803
    %v4805 = vpop.f32.mrb[0].mxu0
    %v4806 = vadd.f32 %v4613, %v4805
    %4807 = vmatprep.mubr.bf16.mxu0 %v2099
    %4808 = vmatmul.mubr.bf16.gmra.mrb[0].mxu0 %v2098
    %v4809 = vpop.f32.mrb[0].mxu0
    %v4810 = vadd.f32 %v4617, %v4809
    %v4811 = vpop.f32.mrb[0].mxu0
    %v4812 = vadd.f32 %v4619, %v4811
    %v4813 = vpop.f32.mrb[0].mxu0
    %v4814 = vadd.f32 %v4621, %v4813
    %v4815 = vpop.f32.mrb[0].mxu0
    %v4816 = vadd.f32 %v4623, %v4815
    %4817 = vmatprep.mubr.bf16.mxu0 %v2103
    %4818 = vmatmul.mubr.bf16.gmra.mrb[0].mxu0 %v2102
    %v4819 = vpop.f32.mrb[0].mxu0
    %v4820 = vadd.f32 %v4627, %v4819
    %v4821 = vpop.f32.mrb[0].mxu0
    %v4822 = vadd.f32 %v4629, %v4821
    %v4823 = vpop.f32.mrb[0].mxu0
    %v4824 = vadd.f32 %v4631, %v4823
    %v4825 = vpop.f32.mrb[0].mxu0
    %v4826 = vadd.f32 %v4633, %v4825
    %4827 = vmatprep.mubr.bf16.mxu0 %v2107
    %4828 = vmatmul.mubr.bf16.gmra.mrb[0].mxu0 %v2106
    %v4829 = vpop.f32.mrb[0].mxu0
    %v4830 = vadd.f32 %v4637, %v4829
    %v4831 = vpop.f32.mrb[0].mxu0
    %v4832 = vadd.f32 %v4639, %v4831
    %v4833 = vpop.f32.mrb[0].mxu0
    %v4834 = vadd.f32 %v4641, %v4833
    %v4835 = vpop.f32.mrb[0].mxu0
    %v4836 = vadd.f32 %v4643, %v4835
    %4837 = vmatprep.mubr.bf16.mxu0 %v2111
    %4838 = vmatmul.mubr.bf16.gmra.mrb[0].mxu0 %v2110
    %v4839 = vpop.f32.mrb[0].mxu0
    %v4840 = vadd.f32 %v4647, %v4839
    %v4841 = vpop.f32.mrb[0].mxu0
    %v4842 = vadd.f32 %v4649, %v4841
    %v4843 = vpop.f32.mrb[0].mxu0
    %v4844 = vadd.f32 %v4651, %v4843
    %v4845 = vpop.f32.mrb[0].mxu0
    %v4846 = vadd.f32 %v4653, %v4845
    %4847 = vdwg.mxu0
    %4848 = vmatprep.subr.bf16.mxu0 %v3185
    %4849 = vmatpush1.bf16.msra.mxu0 %v3184
    %4850 = vmatprep.subr.bf16.mxu0 %v3193
    %4851 = vmatpush1.bf16.msra.mxu0 %v3192
    %4852 = vmatprep.subr.bf16.mxu0 %v3201
    %4853 = vmatpush1.bf16.msra.mxu0 %v3200
    %4854 = vmatprep.subr.bf16.mxu0 %v3209
    %4855 = vmatpush1.bf16.msra.mxu0 %v3208
    %4856 = vmatprep.subr.bf16.mxu0 %v3217
    %4857 = vmatpush1.bf16.msra.mxu0 %v3216
    %4858 = vmatprep.subr.bf16.mxu0 %v3225
    %4859 = vmatpush1.bf16.msra.mxu0 %v3224
    %4860 = vmatprep.subr.bf16.mxu0 %v3233
    %4861 = vmatpush1.bf16.msra.mxu0 %v3232
    %4862 = vmatprep.subr.bf16.mxu0 %v3241
    %4863 = vmatpush1.bf16.msra.mxu0 %v3240
    %4864 = vmatprep.subr.bf16.mxu0 %v3249
    %4865 = vmatpush1.bf16.msra.mxu0 %v3248
    %4866 = vmatprep.subr.bf16.mxu0 %v3257
    %4867 = vmatpush1.bf16.msra.mxu0 %v3256
    %4868 = vmatprep.subr.bf16.mxu0 %v3265
    %4869 = vmatpush1.bf16.msra.mxu0 %v3264
    %4870 = vmatprep.subr.bf16.mxu0 %v3273
    %4871 = vmatpush1.bf16.msra.mxu0 %v3272
    %4872 = vmatprep.subr.bf16.mxu0 %v3281
    %4873 = vmatpush1.bf16.msra.mxu0 %v3280
    %4874 = vmatprep.subr.bf16.mxu0 %v3289
    %4875 = vmatpush1.bf16.msra.mxu0 %v3288
    %4876 = vmatprep.subr.bf16.mxu0 %v3297
    %4877 = vmatpush1.bf16.msra.mxu0 %v3296
    %4878 = vmatprep.subr.bf16.mxu0 %v3305
    %4879 = vmatpush1.bf16.msra.mxu0 %v3304
    %4880 = vmatprep.mubr.bf16.mxu0 %v2049
    %4881 = vmatmul.mubr.bf16.gmra.mrb[0].mxu0 %v2048
    %v4882 = vpop.f32.mrb[0].mxu0
    %v4883 = vadd.f32 %v2397, %v4882
    %v4884 = vpop.f32.mrb[0].mxu0
    %v4885 = vadd.f32 %v2401, %v4884
    %v4886 = vpop.f32.mrb[0].mxu0
    %v4887 = vadd.f32 %v2397, %v4886
    %v4888 = vpop.f32.mrb[0].mxu0
    %v4889 = vadd.f32 %v2401, %v4888
    %4890 = vmatprep.mubr.bf16.mxu0 %v2053
    %4891 = vmatmul.mubr.bf16.gmra.mrb[0].mxu0 %v2052
    %v4892 = vpop.f32.mrb[0].mxu0
    %v4893 = vadd.f32 %v2397, %v4892
    %v4894 = vpop.f32.mrb[0].mxu0
    %v4895 = vadd.f32 %v2401, %v4894
    %v4896 = vpop.f32.mrb[0].mxu0
    %v4897 = vadd.f32 %v2397, %v4896
    %v4898 = vpop.f32.mrb[0].mxu0
    %v4899 = vadd.f32 %v2401, %v4898
    %4900 = vmatprep.mubr.bf16.mxu0 %v2057
    %4901 = vmatmul.mubr.bf16.gmra.mrb[0].mxu0 %v2056
    %v4902 = vpop.f32.mrb[0].mxu0
    %v4903 = vadd.f32 %v2397, %v4902
    %v4904 = vpop.f32.mrb[0].mxu0
    %v4905 = vadd.f32 %v2401, %v4904
    %v4906 = vpop.f32.mrb[0].mxu0
    %v4907 = vadd.f32 %v2397, %v4906
    %v4908 = vpop.f32.mrb[0].mxu0
    %v4909 = vadd.f32 %v2401, %v4908
    %4910 = vmatprep.mubr.bf16.mxu0 %v2061
    %4911 = vmatmul.mubr.bf16.gmra.mrb[0].mxu0 %v2060
    %v4912 = vpop.f32.mrb[0].mxu0
    %v4913 = vadd.f32 %v2397, %v4912
    %v4914 = vpop.f32.mrb[0].mxu0
    %v4915 = vadd.f32 %v2401, %v4914
    %v4916 = vpop.f32.mrb[0].mxu0
    %v4917 = vadd.f32 %v2397, %v4916
    %v4918 = vpop.f32.mrb[0].mxu0
    %v4919 = vadd.f32 %v2401, %v4918
    %4920 = vmatprep.mubr.bf16.mxu0 %v2065
    %4921 = vmatmul.mubr.bf16.gmra.mrb[0].mxu0 %v2064
    %v4922 = vpop.f32.mrb[0].mxu0
    %v4923 = vadd.f32 %v2397, %v4922
    %v4924 = vpop.f32.mrb[0].mxu0
    %v4925 = vadd.f32 %v2401, %v4924
    %v4926 = vpop.f32.mrb[0].mxu0
    %v4927 = vadd.f32 %v2397, %v4926
    %v4928 = vpop.f32.mrb[0].mxu0
    %v4929 = vadd.f32 %v2401, %v4928
    %4930 = vmatprep.mubr.bf16.mxu0 %v2069
    %4931 = vmatmul.mubr.bf16.gmra.mrb[0].mxu0 %v2068
    %v4932 = vpop.f32.mrb[0].mxu0
    %v4933 = vadd.f32 %v2397, %v4932
    %v4934 = vpop.f32.mrb[0].mxu0
    %v4935 = vadd.f32 %v2401, %v4934
    %v4936 = vpop.f32.mrb[0].mxu0
    %v4937 = vadd.f32 %v2397, %v4936
    %v4938 = vpop.f32.mrb[0].mxu0
    %v4939 = vadd.f32 %v2401, %v4938
    %4940 = vmatprep.mubr.bf16.mxu0 %v2073
    %4941 = vmatmul.mubr.bf16.gmra.mrb[0].mxu0 %v2072
    %v4942 = vpop.f32.mrb[0].mxu0
    %v4943 = vadd.f32 %v2397, %v4942
    %v4944 = vpop.f32.mrb[0].mxu0
    %v4945 = vadd.f32 %v2401, %v4944
    %v4946 = vpop.f32.mrb[0].mxu0
    %v4947 = vadd.f32 %v2397, %v4946
    %v4948 = vpop.f32.mrb[0].mxu0
    %v4949 = vadd.f32 %v2401, %v4948
    %4950 = vmatprep.mubr.bf16.mxu0 %v2077
    %4951 = vmatmul.mubr.bf16.gmra.mrb[0].mxu0 %v2076
    %v4952 = vpop.f32.mrb[0].mxu0
    %v4953 = vadd.f32 %v2397, %v4952
    %v4954 = vpop.f32.mrb[0].mxu0
    %v4955 = vadd.f32 %v2401, %v4954
    %v4956 = vpop.f32.mrb[0].mxu0
    %v4957 = vadd.f32 %v2397, %v4956
    %v4958 = vpop.f32.mrb[0].mxu0
    %v4959 = vadd.f32 %v2401, %v4958
    %4960 = vmatprep.mubr.bf16.mxu0 %v2081
    %4961 = vmatmul.mubr.bf16.gmra.mrb[0].mxu0 %v2080
    %v4962 = vpop.f32.mrb[0].mxu0
    %v4963 = vadd.f32 %v2397, %v4962
    %v4964 = vpop.f32.mrb[0].mxu0
    %v4965 = vadd.f32 %v2401, %v4964
    %v4966 = vpop.f32.mrb[0].mxu0
    %v4967 = vadd.f32 %v2397, %v4966
    %v4968 = vpop.f32.mrb[0].mxu0
    %v4969 = vadd.f32 %v2401, %v4968
    %4970 = vmatprep.mubr.bf16.mxu0 %v2085
    %4971 = vmatmul.mubr.bf16.gmra.mrb[0].mxu0 %v2084
    %v4972 = vpop.f32.mrb[0].mxu0
    %v4973 = vadd.f32 %v2397, %v4972
    %v4974 = vpop.f32.mrb[0].mxu0
    %v4975 = vadd.f32 %v2401, %v4974
    %v4976 = vpop.f32.mrb[0].mxu0
    %v4977 = vadd.f32 %v2397, %v4976
    %v4978 = vpop.f32.mrb[0].mxu0
    %v4979 = vadd.f32 %v2401, %v4978
    %4980 = vmatprep.mubr.bf16.mxu0 %v2089
    %4981 = vmatmul.mubr.bf16.gmra.mrb[0].mxu0 %v2088
    %v4982 = vpop.f32.mrb[0].mxu0
    %v4983 = vadd.f32 %v2397, %v4982
    %v4984 = vpop.f32.mrb[0].mxu0
    %v4985 = vadd.f32 %v2401, %v4984
    %v4986 = vpop.f32.mrb[0].mxu0
    %v4987 = vadd.f32 %v2397, %v4986
    %v4988 = vpop.f32.mrb[0].mxu0
    %v4989 = vadd.f32 %v2401, %v4988
    %4990 = vmatprep.mubr.bf16.mxu0 %v2093
    %4991 = vmatmul.mubr.bf16.gmra.mrb[0].mxu0 %v2092
    %v4992 = vpop.f32.mrb[0].mxu0
    %v4993 = vadd.f32 %v2397, %v4992
    %v4994 = vpop.f32.mrb[0].mxu0
    %v4995 = vadd.f32 %v2401, %v4994
    %v4996 = vpop.f32.mrb[0].mxu0
    %v4997 = vadd.f32 %v2397, %v4996
    %v4998 = vpop.f32.mrb[0].mxu0
    %v4999 = vadd.f32 %v2401, %v4998
    %5000 = vmatprep.mubr.bf16.mxu0 %v2097
    %5001 = vmatmul.mubr.bf16.gmra.mrb[0].mxu0 %v2096
    %v5002 = vpop.f32.mrb[0].mxu0
    %v5003 = vadd.f32 %v2397, %v5002
    %v5004 = vpop.f32.mrb[0].mxu0
    %v5005 = vadd.f32 %v2401, %v5004
    %v5006 = vpop.f32.mrb[0].mxu0
    %v5007 = vadd.f32 %v2397, %v5006
    %v5008 = vpop.f32.mrb[0].mxu0
    %v5009 = vadd.f32 %v2401, %v5008
    %5010 = vmatprep.mubr.bf16.mxu0 %v2101
    %5011 = vmatmul.mubr.bf16.gmra.mrb[0].mxu0 %v2100
    %v5012 = vpop.f32.mrb[0].mxu0
    %v5013 = vadd.f32 %v2397, %v5012
    %v5014 = vpop.f32.mrb[0].mxu0
    %v5015 = vadd.f32 %v2401, %v5014
    %v5016 = vpop.f32.mrb[0].mxu0
    %v5017 = vadd.f32 %v2397, %v5016
    %v5018 = vpop.f32.mrb[0].mxu0
    %v5019 = vadd.f32 %v2401, %v5018
    %5020 = vmatprep.mubr.bf16.mxu0 %v2105
    %5021 = vmatmul.mubr.bf16.gmra.mrb[0].mxu0 %v2104
    %v5022 = vpop.f32.mrb[0].mxu0
    %v5023 = vadd.f32 %v2397, %v5022
    %v5024 = vpop.f32.mrb[0].mxu0
    %v5025 = vadd.f32 %v2401, %v5024
    %v5026 = vpop.f32.mrb[0].mxu0
    %v5027 = vadd.f32 %v2397, %v5026
    %v5028 = vpop.f32.mrb[0].mxu0
    %v5029 = vadd.f32 %v2401, %v5028
    %5030 = vmatprep.mubr.bf16.mxu0 %v2109
    %5031 = vmatmul.mubr.bf16.gmra.mrb[0].mxu0 %v2108
    %v5032 = vpop.f32.mrb[0].mxu0
    %v5033 = vadd.f32 %v2397, %v5032
    %v5034 = vpop.f32.mrb[0].mxu0
    %v5035 = vadd.f32 %v2401, %v5034
    %v5036 = vpop.f32.mrb[0].mxu0
    %v5037 = vadd.f32 %v2397, %v5036
    %v5038 = vpop.f32.mrb[0].mxu0
    %v5039 = vadd.f32 %v2401, %v5038
    %5040 = vdwg.mxu0
    %5041 = vmatprep.subr.bf16.mxu0 %v3313
    %5042 = vmatpush1.bf16.msra.mxu0 %v3312
    %5043 = vmatprep.subr.bf16.mxu0 %v3321
    %5044 = vmatpush1.bf16.msra.mxu0 %v3320
    %5045 = vmatprep.subr.bf16.mxu0 %v3329
    %5046 = vmatpush1.bf16.msra.mxu0 %v3328
    %5047 = vmatprep.subr.bf16.mxu0 %v3337
    %5048 = vmatpush1.bf16.msra.mxu0 %v3336
    %5049 = vmatprep.subr.bf16.mxu0 %v3345
    %5050 = vmatpush1.bf16.msra.mxu0 %v3344
    %5051 = vmatprep.subr.bf16.mxu0 %v3353
    %5052 = vmatpush1.bf16.msra.mxu0 %v3352
    %5053 = vmatprep.subr.bf16.mxu0 %v3361
    %5054 = vmatpush1.bf16.msra.mxu0 %v3360
    %5055 = vmatprep.subr.bf16.mxu0 %v3369
    %5056 = vmatpush1.bf16.msra.mxu0 %v3368
    %5057 = vmatprep.subr.bf16.mxu0 %v3377
    %5058 = vmatpush1.bf16.msra.mxu0 %v3376
    %5059 = vmatprep.subr.bf16.mxu0 %v3385
    %5060 = vmatpush1.bf16.msra.mxu0 %v3384
    %5061 = vmatprep.subr.bf16.mxu0 %v3393
    %5062 = vmatpush1.bf16.msra.mxu0 %v3392
    %5063 = vmatprep.subr.bf16.mxu0 %v3401
    %5064 = vmatpush1.bf16.msra.mxu0 %v3400
    %5065 = vmatprep.subr.bf16.mxu0 %v3409
    %5066 = vmatpush1.bf16.msra.mxu0 %v3408
    %5067 = vmatprep.subr.bf16.mxu0 %v3417
    %5068 = vmatpush1.bf16.msra.mxu0 %v3416
    %5069 = vmatprep.subr.bf16.mxu0 %v3425
    %5070 = vmatpush1.bf16.msra.mxu0 %v3424
    %5071 = vmatprep.subr.bf16.mxu0 %v3433
    %5072 = vmatpush1.bf16.msra.mxu0 %v3432
    %5073 = vmatprep.mubr.bf16.mxu0 %v2051
    %5074 = vmatmul.mubr.bf16.gmra.mrb[0].mxu0 %v2050
    %v5075 = vpop.f32.mrb[0].mxu0
    %v5076 = vadd.f32 %v4883, %v5075
    %v5077 = vpop.f32.mrb[0].mxu0
    %v5078 = vadd.f32 %v4885, %v5077
    %v5079 = vpop.f32.mrb[0].mxu0
    %v5080 = vadd.f32 %v4887, %v5079
    %v5081 = vpop.f32.mrb[0].mxu0
    %v5082 = vadd.f32 %v4889, %v5081
    %5083 = vmatprep.mubr.bf16.mxu0 %v2055
    %5084 = vmatmul.mubr.bf16.gmra.mrb[0].mxu0 %v2054
    %v5085 = vpop.f32.mrb[0].mxu0
    %v5086 = vadd.f32 %v4893, %v5085
    %v5087 = vpop.f32.mrb[0].mxu0
    %v5088 = vadd.f32 %v4895, %v5087
    %v5089 = vpop.f32.mrb[0].mxu0
    %v5090 = vadd.f32 %v4897, %v5089
    %v5091 = vpop.f32.mrb[0].mxu0
    %v5092 = vadd.f32 %v4899, %v5091
    %5093 = vmatprep.mubr.bf16.mxu0 %v2059
    %5094 = vmatmul.mubr.bf16.gmra.mrb[0].mxu0 %v2058
    %v5095 = vpop.f32.mrb[0].mxu0
    %v5096 = vadd.f32 %v4903, %v5095
    %v5097 = vpop.f32.mrb[0].mxu0
    %v5098 = vadd.f32 %v4905, %v5097
    %v5099 = vpop.f32.mrb[0].mxu0
    %v5100 = vadd.f32 %v4907, %v5099
    %v5101 = vpop.f32.mrb[0].mxu0
    %v5102 = vadd.f32 %v4909, %v5101
    %5103 = vmatprep.mubr.bf16.mxu0 %v2063
    %5104 = vmatmul.mubr.bf16.gmra.mrb[0].mxu0 %v2062
    %v5105 = vpop.f32.mrb[0].mxu0
    %v5106 = vadd.f32 %v4913, %v5105
    %v5107 = vpop.f32.mrb[0].mxu0
    %v5108 = vadd.f32 %v4915, %v5107
    %v5109 = vpop.f32.mrb[0].mxu0
    %v5110 = vadd.f32 %v4917, %v5109
    %v5111 = vpop.f32.mrb[0].mxu0
    %v5112 = vadd.f32 %v4919, %v5111
    %5113 = vmatprep.mubr.bf16.mxu0 %v2067
    %5114 = vmatmul.mubr.bf16.gmra.mrb[0].mxu0 %v2066
    %v5115 = vpop.f32.mrb[0].mxu0
    %v5116 = vadd.f32 %v4923, %v5115
    %v5117 = vpop.f32.mrb[0].mxu0
    %v5118 = vadd.f32 %v4925, %v5117
    %v5119 = vpop.f32.mrb[0].mxu0
    %v5120 = vadd.f32 %v4927, %v5119
    %v5121 = vpop.f32.mrb[0].mxu0
    %v5122 = vadd.f32 %v4929, %v5121
    %5123 = vmatprep.mubr.bf16.mxu0 %v2071
    %5124 = vmatmul.mubr.bf16.gmra.mrb[0].mxu0 %v2070
    %v5125 = vpop.f32.mrb[0].mxu0
    %v5126 = vadd.f32 %v4933, %v5125
    %v5127 = vpop.f32.mrb[0].mxu0
    %v5128 = vadd.f32 %v4935, %v5127
    %v5129 = vpop.f32.mrb[0].mxu0
    %v5130 = vadd.f32 %v4937, %v5129
    %v5131 = vpop.f32.mrb[0].mxu0
    %v5132 = vadd.f32 %v4939, %v5131
    %5133 = vmatprep.mubr.bf16.mxu0 %v2075
    %5134 = vmatmul.mubr.bf16.gmra.mrb[0].mxu0 %v2074
    %v5135 = vpop.f32.mrb[0].mxu0
    %v5136 = vadd.f32 %v4943, %v5135
    %v5137 = vpop.f32.mrb[0].mxu0
    %v5138 = vadd.f32 %v4945, %v5137
    %v5139 = vpop.f32.mrb[0].mxu0
    %v5140 = vadd.f32 %v4947, %v5139
    %v5141 = vpop.f32.mrb[0].mxu0
    %v5142 = vadd.f32 %v4949, %v5141
    %5143 = vmatprep.mubr.bf16.mxu0 %v2079
    %5144 = vmatmul.mubr.bf16.gmra.mrb[0].mxu0 %v2078
    %v5145 = vpop.f32.mrb[0].mxu0
    %v5146 = vadd.f32 %v4953, %v5145
    %v5147 = vpop.f32.mrb[0].mxu0
    %v5148 = vadd.f32 %v4955, %v5147
    %v5149 = vpop.f32.mrb[0].mxu0
    %v5150 = vadd.f32 %v4957, %v5149
    %v5151 = vpop.f32.mrb[0].mxu0
    %v5152 = vadd.f32 %v4959, %v5151
    %5153 = vmatprep.mubr.bf16.mxu0 %v2083
    %5154 = vmatmul.mubr.bf16.gmra.mrb[0].mxu0 %v2082
    %v5155 = vpop.f32.mrb[0].mxu0
    %v5156 = vadd.f32 %v4963, %v5155
    %v5157 = vpop.f32.mrb[0].mxu0
    %v5158 = vadd.f32 %v4965, %v5157
    %v5159 = vpop.f32.mrb[0].mxu0
    %v5160 = vadd.f32 %v4967, %v5159
    %v5161 = vpop.f32.mrb[0].mxu0
    %v5162 = vadd.f32 %v4969, %v5161
    %5163 = vmatprep.mubr.bf16.mxu0 %v2087
    %5164 = vmatmul.mubr.bf16.gmra.mrb[0].mxu0 %v2086
    %v5165 = vpop.f32.mrb[0].mxu0
    %v5166 = vadd.f32 %v4973, %v5165
    %v5167 = vpop.f32.mrb[0].mxu0
    %v5168 = vadd.f32 %v4975, %v5167
    %v5169 = vpop.f32.mrb[0].mxu0
    %v5170 = vadd.f32 %v4977, %v5169
    %v5171 = vpop.f32.mrb[0].mxu0
    %v5172 = vadd.f32 %v4979, %v5171
    %5173 = vmatprep.mubr.bf16.mxu0 %v2091
    %5174 = vmatmul.mubr.bf16.gmra.mrb[0].mxu0 %v2090
    %v5175 = vpop.f32.mrb[0].mxu0
    %v5176 = vadd.f32 %v4983, %v5175
    %v5177 = vpop.f32.mrb[0].mxu0
    %v5178 = vadd.f32 %v4985, %v5177
    %v5179 = vpop.f32.mrb[0].mxu0
    %v5180 = vadd.f32 %v4987, %v5179
    %v5181 = vpop.f32.mrb[0].mxu0
    %v5182 = vadd.f32 %v4989, %v5181
    %5183 = vmatprep.mubr.bf16.mxu0 %v2095
    %5184 = vmatmul.mubr.bf16.gmra.mrb[0].mxu0 %v2094
    %v5185 = vpop.f32.mrb[0].mxu0
    %v5186 = vadd.f32 %v4993, %v5185
    %v5187 = vpop.f32.mrb[0].mxu0
    %v5188 = vadd.f32 %v4995, %v5187
    %v5189 = vpop.f32.mrb[0].mxu0
    %v5190 = vadd.f32 %v4997, %v5189
    %v5191 = vpop.f32.mrb[0].mxu0
    %v5192 = vadd.f32 %v4999, %v5191
    %5193 = vmatprep.mubr.bf16.mxu0 %v2099
    %5194 = vmatmul.mubr.bf16.gmra.mrb[0].mxu0 %v2098
    %v5195 = vpop.f32.mrb[0].mxu0
    %v5196 = vadd.f32 %v5003, %v5195
    %v5197 = vpop.f32.mrb[0].mxu0
    %v5198 = vadd.f32 %v5005, %v5197
    %v5199 = vpop.f32.mrb[0].mxu0
    %v5200 = vadd.f32 %v5007, %v5199
    %v5201 = vpop.f32.mrb[0].mxu0
    %v5202 = vadd.f32 %v5009, %v5201
    %5203 = vmatprep.mubr.bf16.mxu0 %v2103
    %5204 = vmatmul.mubr.bf16.gmra.mrb[0].mxu0 %v2102
    %v5205 = vpop.f32.mrb[0].mxu0
    %v5206 = vadd.f32 %v5013, %v5205
    %v5207 = vpop.f32.mrb[0].mxu0
    %v5208 = vadd.f32 %v5015, %v5207
    %v5209 = vpop.f32.mrb[0].mxu0
    %v5210 = vadd.f32 %v5017, %v5209
    %v5211 = vpop.f32.mrb[0].mxu0
    %v5212 = vadd.f32 %v5019, %v5211
    %5213 = vmatprep.mubr.bf16.mxu0 %v2107
    %5214 = vmatmul.mubr.bf16.gmra.mrb[0].mxu0 %v2106
    %v5215 = vpop.f32.mrb[0].mxu0
    %v5216 = vadd.f32 %v5023, %v5215
    %v5217 = vpop.f32.mrb[0].mxu0
    %v5218 = vadd.f32 %v5025, %v5217
    %v5219 = vpop.f32.mrb[0].mxu0
    %v5220 = vadd.f32 %v5027, %v5219
    %v5221 = vpop.f32.mrb[0].mxu0
    %v5222 = vadd.f32 %v5029, %v5221
    %5223 = vmatprep.mubr.bf16.mxu0 %v2111
    %5224 = vmatmul.mubr.bf16.gmra.mrb[0].mxu0 %v2110
    %v5225 = vpop.f32.mrb[0].mxu0
    %v5226 = vadd.f32 %v5033, %v5225
    %v5227 = vpop.f32.mrb[0].mxu0
    %v5228 = vadd.f32 %v5035, %v5227
    %v5229 = vpop.f32.mrb[0].mxu0
    %v5230 = vadd.f32 %v5037, %v5229
    %v5231 = vpop.f32.mrb[0].mxu0
    %v5232 = vadd.f32 %v5039, %v5231
    %5233 = vdwg.mxu0
    %v5234 = vmul.f32 %v3918, 0.2
    %v5235 = vmul.f32 %v3920, 0.2
    %v5236 = vmul.f32 %v4304, 0.2
    %v5237 = vmul.f32 %v4306, 0.2
    %v5238 = vmul.f32 %v4690, 0.2
    %v5239 = vmul.f32 %v4692, 0.2
    %v5240 = vmul.f32 %v5076, 0.2
    %v5241 = vmul.f32 %v5078, 0.2
    %v5242 = vmul.f32 %v3922, 0.2
    %v5243 = vmul.f32 %v3924, 0.2
    %v5244 = vmul.f32 %v4308, 0.2
    %v5245 = vmul.f32 %v4310, 0.2
    %v5246 = vmul.f32 %v4694, 0.2
    %v5247 = vmul.f32 %v4696, 0.2
    %v5248 = vmul.f32 %v5080, 0.2
    %v5249 = vmul.f32 %v5082, 0.2
    %v5250 = vmul.f32 %v3928, 0.2
    %v5251 = vmul.f32 %v3930, 0.2
    %v5252 = vmul.f32 %v4314, 0.2
    %v5253 = vmul.f32 %v4316, 0.2
    %v5254 = vmul.f32 %v4700, 0.2
    %v5255 = vmul.f32 %v4702, 0.2
    %v5256 = vmul.f32 %v5086, 0.2
    %v5257 = vmul.f32 %v5088, 0.2
    %v5258 = vmul.f32 %v3932, 0.2
    %v5259 = vmul.f32 %v3934, 0.2
    %v5260 = vmul.f32 %v4318, 0.2
    %v5261 = vmul.f32 %v4320, 0.2
    %v5262 = vmul.f32 %v4704, 0.2
    %v5263 = vmul.f32 %v4706, 0.2
    %v5264 = vmul.f32 %v5090, 0.2
    %v5265 = vmul.f32 %v5092, 0.2
    %v5266 = vmul.f32 %v3938, 0.2
    %v5267 = vmul.f32 %v3940, 0.2
    %v5268 = vmul.f32 %v4324, 0.2
    %v5269 = vmul.f32 %v4326, 0.2
    %v5270 = vmul.f32 %v4710, 0.2
    %v5271 = vmul.f32 %v4712, 0.2
    %v5272 = vmul.f32 %v5096, 0.2
    %v5273 = vmul.f32 %v5098, 0.2
    %v5274 = vmul.f32 %v3942, 0.2
    %v5275 = vmul.f32 %v3944, 0.2
    %v5276 = vmul.f32 %v4328, 0.2
    %v5277 = vmul.f32 %v4330, 0.2
    %v5278 = vmul.f32 %v4714, 0.2
    %v5279 = vmul.f32 %v4716, 0.2
    %v5280 = vmul.f32 %v5100, 0.2
    %v5281 = vmul.f32 %v5102, 0.2
    %v5282 = vmul.f32 %v3948, 0.2
    %v5283 = vmul.f32 %v3950, 0.2
    %v5284 = vmul.f32 %v4334, 0.2
    %v5285 = vmul.f32 %v4336, 0.2
    %v5286 = vmul.f32 %v4720, 0.2
    %v5287 = vmul.f32 %v4722, 0.2
    %v5288 = vmul.f32 %v5106, 0.2
    %v5289 = vmul.f32 %v5108, 0.2
    %v5290 = vmul.f32 %v3952, 0.2
    %v5291 = vmul.f32 %v3954, 0.2
    %v5292 = vmul.f32 %v4338, 0.2
    %v5293 = vmul.f32 %v4340, 0.2
    %v5294 = vmul.f32 %v4724, 0.2
    %v5295 = vmul.f32 %v4726, 0.2
    %v5296 = vmul.f32 %v5110, 0.2
    %v5297 = vmul.f32 %v5112, 0.2
    %v5298 = vmul.f32 %v3958, 0.2
    %v5299 = vmul.f32 %v3960, 0.2
    %v5300 = vmul.f32 %v4344, 0.2
    %v5301 = vmul.f32 %v4346, 0.2
    %v5302 = vmul.f32 %v4730, 0.2
    %v5303 = vmul.f32 %v4732, 0.2
    %v5304 = vmul.f32 %v5116, 0.2
    %v5305 = vmul.f32 %v5118, 0.2
    %v5306 = vmul.f32 %v3962, 0.2
    %v5307 = vmul.f32 %v3964, 0.2
    %v5308 = vmul.f32 %v4348, 0.2
    %v5309 = vmul.f32 %v4350, 0.2
    %v5310 = vmul.f32 %v4734, 0.2
    %v5311 = vmul.f32 %v4736, 0.2
    %v5312 = vmul.f32 %v5120, 0.2
    %v5313 = vmul.f32 %v5122, 0.2
    %v5314 = vmul.f32 %v3968, 0.2
    %v5315 = vmul.f32 %v3970, 0.2
    %v5316 = vmul.f32 %v4354, 0.2
    %v5317 = vmul.f32 %v4356, 0.2
    %v5318 = vmul.f32 %v4740, 0.2
    %v5319 = vmul.f32 %v4742, 0.2
    %v5320 = vmul.f32 %v5126, 0.2
    %v5321 = vmul.f32 %v5128, 0.2
    %v5322 = vmul.f32 %v3972, 0.2
    %v5323 = vmul.f32 %v3974, 0.2
    %v5324 = vmul.f32 %v4358, 0.2
    %v5325 = vmul.f32 %v4360, 0.2
    %v5326 = vmul.f32 %v4744, 0.2
    %v5327 = vmul.f32 %v4746, 0.2
    %v5328 = vmul.f32 %v5130, 0.2
    %v5329 = vmul.f32 %v5132, 0.2
    %v5330 = vmul.f32 %v3978, 0.2
    %v5331 = vmul.f32 %v3980, 0.2
    %v5332 = vmul.f32 %v4364, 0.2
    %v5333 = vmul.f32 %v4366, 0.2
    %v5334 = vmul.f32 %v4750, 0.2
    %v5335 = vmul.f32 %v4752, 0.2
    %v5336 = vmul.f32 %v5136, 0.2
    %v5337 = vmul.f32 %v5138, 0.2
    %v5338 = vmul.f32 %v3982, 0.2
    %v5339 = vmul.f32 %v3984, 0.2
    %v5340 = vmul.f32 %v4368, 0.2
    %v5341 = vmul.f32 %v4370, 0.2
    %v5342 = vmul.f32 %v4754, 0.2
    %v5343 = vmul.f32 %v4756, 0.2
    %v5344 = vmul.f32 %v5140, 0.2
    %v5345 = vmul.f32 %v5142, 0.2
    %v5346 = vmul.f32 %v3988, 0.2
    %v5347 = vmul.f32 %v3990, 0.2
    %v5348 = vmul.f32 %v4374, 0.2
    %v5349 = vmul.f32 %v4376, 0.2
    %v5350 = vmul.f32 %v4760, 0.2
    %v5351 = vmul.f32 %v4762, 0.2
    %v5352 = vmul.f32 %v5146, 0.2
    %v5353 = vmul.f32 %v5148, 0.2
    %v5354 = vmul.f32 %v3992, 0.2
    %v5355 = vmul.f32 %v3994, 0.2
    %v5356 = vmul.f32 %v4378, 0.2
    %v5357 = vmul.f32 %v4380, 0.2
    %v5358 = vmul.f32 %v4764, 0.2
    %v5359 = vmul.f32 %v4766, 0.2
    %v5360 = vmul.f32 %v5150, 0.2
    %v5361 = vmul.f32 %v5152, 0.2
    %v5362 = vmul.f32 %v3998, 0.2
    %v5363 = vmul.f32 %v4000, 0.2
    %v5364 = vmul.f32 %v4384, 0.2
    %v5365 = vmul.f32 %v4386, 0.2
    %v5366 = vmul.f32 %v4770, 0.2
    %v5367 = vmul.f32 %v4772, 0.2
    %v5368 = vmul.f32 %v5156, 0.2
    %v5369 = vmul.f32 %v5158, 0.2
    %v5370 = vmul.f32 %v4002, 0.2
    %v5371 = vmul.f32 %v4004, 0.2
    %v5372 = vmul.f32 %v4388, 0.2
    %v5373 = vmul.f32 %v4390, 0.2
    %v5374 = vmul.f32 %v4774, 0.2
    %v5375 = vmul.f32 %v4776, 0.2
    %v5376 = vmul.f32 %v5160, 0.2
    %v5377 = vmul.f32 %v5162, 0.2
    %v5378 = vmul.f32 %v4008, 0.2
    %v5379 = vmul.f32 %v4010, 0.2
    %v5380 = vmul.f32 %v4394, 0.2
    %v5381 = vmul.f32 %v4396, 0.2
    %v5382 = vmul.f32 %v4780, 0.2
    %v5383 = vmul.f32 %v4782, 0.2
    %v5384 = vmul.f32 %v5166, 0.2
    %v5385 = vmul.f32 %v5168, 0.2
    %v5386 = vmul.f32 %v4012, 0.2
    %v5387 = vmul.f32 %v4014, 0.2
    %v5388 = vmul.f32 %v4398, 0.2
    %v5389 = vmul.f32 %v4400, 0.2
    %v5390 = vmul.f32 %v4784, 0.2
    %v5391 = vmul.f32 %v4786, 0.2
    %v5392 = vmul.f32 %v5170, 0.2
    %v5393 = vmul.f32 %v5172, 0.2
    %v5394 = vmul.f32 %v4018, 0.2
    %v5395 = vmul.f32 %v4020, 0.2
    %v5396 = vmul.f32 %v4404, 0.2
    %v5397 = vmul.f32 %v4406, 0.2
    %v5398 = vmul.f32 %v4790, 0.2
    %v5399 = vmul.f32 %v4792, 0.2
    %v5400 = vmul.f32 %v5176, 0.2
    %v5401 = vmul.f32 %v5178, 0.2
    %v5402 = vmul.f32 %v4022, 0.2
    %v5403 = vmul.f32 %v4024, 0.2
    %v5404 = vmul.f32 %v4408, 0.2
    %v5405 = vmul.f32 %v4410, 0.2
    %v5406 = vmul.f32 %v4794, 0.2
    %v5407 = vmul.f32 %v4796, 0.2
    %v5408 = vmul.f32 %v5180, 0.2
    %v5409 = vmul.f32 %v5182, 0.2
    %v5410 = vmul.f32 %v4028, 0.2
    %v5411 = vmul.f32 %v4030, 0.2
    %v5412 = vmul.f32 %v4414, 0.2
    %v5413 = vmul.f32 %v4416, 0.2
    %v5414 = vmul.f32 %v4800, 0.2
    %v5415 = vmul.f32 %v4802, 0.2
    %v5416 = vmul.f32 %v5186, 0.2
    %v5417 = vmul.f32 %v5188, 0.2
    %v5418 = vmul.f32 %v4032, 0.2
    %v5419 = vmul.f32 %v4034, 0.2
    %v5420 = vmul.f32 %v4418, 0.2
    %v5421 = vmul.f32 %v4420, 0.2
    %v5422 = vmul.f32 %v4804, 0.2
    %v5423 = vmul.f32 %v4806, 0.2
    %v5424 = vmul.f32 %v5190, 0.2
    %v5425 = vmul.f32 %v5192, 0.2
    %v5426 = vmul.f32 %v4038, 0.2
    %v5427 = vmul.f32 %v4040, 0.2
    %v5428 = vmul.f32 %v4424, 0.2
    %v5429 = vmul.f32 %v4426, 0.2
    %v5430 = vmul.f32 %v4810, 0.2
    %v5431 = vmul.f32 %v4812, 0.2
    %v5432 = vmul.f32 %v5196, 0.2
    %v5433 = vmul.f32 %v5198, 0.2
    %v5434 = vmul.f32 %v4042, 0.2
    %v5435 = vmul.f32 %v4044, 0.2
    %v5436 = vmul.f32 %v4428, 0.2
    %v5437 = vmul.f32 %v4430, 0.2
    %v5438 = vmul.f32 %v4814, 0.2
    %v5439 = vmul.f32 %v4816, 0.2
    %v5440 = vmul.f32 %v5200, 0.2
    %v5441 = vmul.f32 %v5202, 0.2
    %v5442 = vmul.f32 %v4048, 0.2
    %v5443 = vmul.f32 %v4050, 0.2
    %v5444 = vmul.f32 %v4434, 0.2
    %v5445 = vmul.f32 %v4436, 0.2
    %v5446 = vmul.f32 %v4820, 0.2
    %v5447 = vmul.f32 %v4822, 0.2
    %v5448 = vmul.f32 %v5206, 0.2
    %v5449 = vmul.f32 %v5208, 0.2
    %v5450 = vmul.f32 %v4052, 0.2
    %v5451 = vmul.f32 %v4054, 0.2
    %v5452 = vmul.f32 %v4438, 0.2
    %v5453 = vmul.f32 %v4440, 0.2
    %v5454 = vmul.f32 %v4824, 0.2
    %v5455 = vmul.f32 %v4826, 0.2
    %v5456 = vmul.f32 %v5210, 0.2
    %v5457 = vmul.f32 %v5212, 0.2
    %v5458 = vmul.f32 %v4058, 0.2
    %v5459 = vmul.f32 %v4060, 0.2
    %v5460 = vmul.f32 %v4444, 0.2
    %v5461 = vmul.f32 %v4446, 0.2
    %v5462 = vmul.f32 %v4830, 0.2
    %v5463 = vmul.f32 %v4832, 0.2
    %v5464 = vmul.f32 %v5216, 0.2
    %v5465 = vmul.f32 %v5218, 0.2
    %v5466 = vmul.f32 %v4062, 0.2
    %v5467 = vmul.f32 %v4064, 0.2
    %v5468 = vmul.f32 %v4448, 0.2
    %v5469 = vmul.f32 %v4450, 0.2
    %v5470 = vmul.f32 %v4834, 0.2
    %v5471 = vmul.f32 %v4836, 0.2
    %v5472 = vmul.f32 %v5220, 0.2
    %v5473 = vmul.f32 %v5222, 0.2
    %v5474 = vmul.f32 %v4068, 0.2
    %v5475 = vmul.f32 %v4070, 0.2
    %v5476 = vmul.f32 %v4454, 0.2
    %v5477 = vmul.f32 %v4456, 0.2
    %v5478 = vmul.f32 %v4840, 0.2
    %v5479 = vmul.f32 %v4842, 0.2
    %v5480 = vmul.f32 %v5226, 0.2
    %v5481 = vmul.f32 %v5228, 0.2
    %v5482 = vmul.f32 %v4072, 0.2
    %v5483 = vmul.f32 %v4074, 0.2
    %v5484 = vmul.f32 %v4458, 0.2
    %v5485 = vmul.f32 %v4460, 0.2
    %v5486 = vmul.f32 %v4844, 0.2
    %v5487 = vmul.f32 %v4846, 0.2
    %v5488 = vmul.f32 %v5230, 0.2
    %v5489 = vmul.f32 %v5232, 0.2
    %v5490 = vmax.f32 %v3918, %v5234
    %v5491 = vmax.f32 %v3920, %v5235
    %v5492 = vmax.f32 %v4304, %v5236
    %v5493 = vmax.f32 %v4306, %v5237
    %v5494 = vmax.f32 %v4690, %v5238
    %v5495 = vmax.f32 %v4692, %v5239
    %v5496 = vmax.f32 %v5076, %v5240
    %v5497 = vmax.f32 %v5078, %v5241
    %v5498 = vmax.f32 %v3922, %v5242
    %v5499 = vmax.f32 %v3924, %v5243
    %v5500 = vmax.f32 %v4308, %v5244
    %v5501 = vmax.f32 %v4310, %v5245
    %v5502 = vmax.f32 %v4694, %v5246
    %v5503 = vmax.f32 %v4696, %v5247
    %v5504 = vmax.f32 %v5080, %v5248
    %v5505 = vmax.f32 %v5082, %v5249
    %v5506 = vmax.f32 %v3928, %v5250
    %v5507 = vmax.f32 %v3930, %v5251
    %v5508 = vmax.f32 %v4314, %v5252
    %v5509 = vmax.f32 %v4316, %v5253
    %v5510 = vmax.f32 %v4700, %v5254
    %v5511 = vmax.f32 %v4702, %v5255
    %v5512 = vmax.f32 %v5086, %v5256
    %v5513 = vmax.f32 %v5088, %v5257
    %v5514 = vmax.f32 %v3932, %v5258
    %v5515 = vmax.f32 %v3934, %v5259
    %v5516 = vmax.f32 %v4318, %v5260
    %v5517 = vmax.f32 %v4320, %v5261
    %v5518 = vmax.f32 %v4704, %v5262
    %v5519 = vmax.f32 %v4706, %v5263
    %v5520 = vmax.f32 %v5090, %v5264
    %v5521 = vmax.f32 %v5092, %v5265
    %v5522 = vmax.f32 %v3938, %v5266
    %v5523 = vmax.f32 %v3940, %v5267
    %v5524 = vmax.f32 %v4324, %v5268
    %v5525 = vmax.f32 %v4326, %v5269
    %v5526 = vmax.f32 %v4710, %v5270
    %v5527 = vmax.f32 %v4712, %v5271
    %v5528 = vmax.f32 %v5096, %v5272
    %v5529 = vmax.f32 %v5098, %v5273
    %v5530 = vmax.f32 %v3942, %v5274
    %v5531 = vmax.f32 %v3944, %v5275
    %v5532 = vmax.f32 %v4328, %v5276
    %v5533 = vmax.f32 %v4330, %v5277
    %v5534 = vmax.f32 %v4714, %v5278
    %v5535 = vmax.f32 %v4716, %v5279
    %v5536 = vmax.f32 %v5100, %v5280
    %v5537 = vmax.f32 %v5102, %v5281
    %v5538 = vmax.f32 %v3948, %v5282
    %v5539 = vmax.f32 %v3950, %v5283
    %v5540 = vmax.f32 %v4334, %v5284
    %v5541 = vmax.f32 %v4336, %v5285
    %v5542 = vmax.f32 %v4720, %v5286
    %v5543 = vmax.f32 %v4722, %v5287
    %v5544 = vmax.f32 %v5106, %v5288
    %v5545 = vmax.f32 %v5108, %v5289
    %v5546 = vmax.f32 %v3952, %v5290
    %v5547 = vmax.f32 %v3954, %v5291
    %v5548 = vmax.f32 %v4338, %v5292
    %v5549 = vmax.f32 %v4340, %v5293
    %v5550 = vmax.f32 %v4724, %v5294
    %v5551 = vmax.f32 %v4726, %v5295
    %v5552 = vmax.f32 %v5110, %v5296
    %v5553 = vmax.f32 %v5112, %v5297
    %v5554 = vmax.f32 %v3958, %v5298
    %v5555 = vmax.f32 %v3960, %v5299
    %v5556 = vmax.f32 %v4344, %v5300
    %v5557 = vmax.f32 %v4346, %v5301
    %v5558 = vmax.f32 %v4730, %v5302
    %v5559 = vmax.f32 %v4732, %v5303
    %v5560 = vmax.f32 %v5116, %v5304
    %v5561 = vmax.f32 %v5118, %v5305
    %v5562 = vmax.f32 %v3962, %v5306
    %v5563 = vmax.f32 %v3964, %v5307
    %v5564 = vmax.f32 %v4348, %v5308
    %v5565 = vmax.f32 %v4350, %v5309
    %v5566 = vmax.f32 %v4734, %v5310
    %v5567 = vmax.f32 %v4736, %v5311
    %v5568 = vmax.f32 %v5120, %v5312
    %v5569 = vmax.f32 %v5122, %v5313
    %v5570 = vmax.f32 %v3968, %v5314
    %v5571 = vmax.f32 %v3970, %v5315
    %v5572 = vmax.f32 %v4354, %v5316
    %v5573 = vmax.f32 %v4356, %v5317
    %v5574 = vmax.f32 %v4740, %v5318
    %v5575 = vmax.f32 %v4742, %v5319
    %v5576 = vmax.f32 %v5126, %v5320
    %v5577 = vmax.f32 %v5128, %v5321
    %v5578 = vmax.f32 %v3972, %v5322
    %v5579 = vmax.f32 %v3974, %v5323
    %v5580 = vmax.f32 %v4358, %v5324
    %v5581 = vmax.f32 %v4360, %v5325
    %v5582 = vmax.f32 %v4744, %v5326
    %v5583 = vmax.f32 %v4746, %v5327
    %v5584 = vmax.f32 %v5130, %v5328
    %v5585 = vmax.f32 %v5132, %v5329
    %v5586 = vmax.f32 %v3978, %v5330
    %v5587 = vmax.f32 %v3980, %v5331
    %v5588 = vmax.f32 %v4364, %v5332
    %v5589 = vmax.f32 %v4366, %v5333
    %v5590 = vmax.f32 %v4750, %v5334
    %v5591 = vmax.f32 %v4752, %v5335
    %v5592 = vmax.f32 %v5136, %v5336
    %v5593 = vmax.f32 %v5138, %v5337
    %v5594 = vmax.f32 %v3982, %v5338
    %v5595 = vmax.f32 %v3984, %v5339
    %v5596 = vmax.f32 %v4368, %v5340
    %v5597 = vmax.f32 %v4370, %v5341
    %v5598 = vmax.f32 %v4754, %v5342
    %v5599 = vmax.f32 %v4756, %v5343
    %v5600 = vmax.f32 %v5140, %v5344
    %v5601 = vmax.f32 %v5142, %v5345
    %v5602 = vmax.f32 %v3988, %v5346
    %v5603 = vmax.f32 %v3990, %v5347
    %v5604 = vmax.f32 %v4374, %v5348
    %v5605 = vmax.f32 %v4376, %v5349
    %v5606 = vmax.f32 %v4760, %v5350
    %v5607 = vmax.f32 %v4762, %v5351
    %v5608 = vmax.f32 %v5146, %v5352
    %v5609 = vmax.f32 %v5148, %v5353
    %v5610 = vmax.f32 %v3992, %v5354
    %v5611 = vmax.f32 %v3994, %v5355
    %v5612 = vmax.f32 %v4378, %v5356
    %v5613 = vmax.f32 %v4380, %v5357
    %v5614 = vmax.f32 %v4764, %v5358
    %v5615 = vmax.f32 %v4766, %v5359
    %v5616 = vmax.f32 %v5150, %v5360
    %v5617 = vmax.f32 %v5152, %v5361
    %v5618 = vmax.f32 %v3998, %v5362
    %v5619 = vmax.f32 %v4000, %v5363
    %v5620 = vmax.f32 %v4384, %v5364
    %v5621 = vmax.f32 %v4386, %v5365
    %v5622 = vmax.f32 %v4770, %v5366
    %v5623 = vmax.f32 %v4772, %v5367
    %v5624 = vmax.f32 %v5156, %v5368
    %v5625 = vmax.f32 %v5158, %v5369
    %v5626 = vmax.f32 %v4002, %v5370
    %v5627 = vmax.f32 %v4004, %v5371
    %v5628 = vmax.f32 %v4388, %v5372
    %v5629 = vmax.f32 %v4390, %v5373
    %v5630 = vmax.f32 %v4774, %v5374
    %v5631 = vmax.f32 %v4776, %v5375
    %v5632 = vmax.f32 %v5160, %v5376
    %v5633 = vmax.f32 %v5162, %v5377
    %v5634 = vmax.f32 %v4008, %v5378
    %v5635 = vmax.f32 %v4010, %v5379
    %v5636 = vmax.f32 %v4394, %v5380
    %v5637 = vmax.f32 %v4396, %v5381
    %v5638 = vmax.f32 %v4780, %v5382
    %v5639 = vmax.f32 %v4782, %v5383
    %v5640 = vmax.f32 %v5166, %v5384
    %v5641 = vmax.f32 %v5168, %v5385
    %v5642 = vmax.f32 %v4012, %v5386
    %v5643 = vmax.f32 %v4014, %v5387
    %v5644 = vmax.f32 %v4398, %v5388
    %v5645 = vmax.f32 %v4400, %v5389
    %v5646 = vmax.f32 %v4784, %v5390
    %v5647 = vmax.f32 %v4786, %v5391
    %v5648 = vmax.f32 %v5170, %v5392
    %v5649 = vmax.f32 %v5172, %v5393
    %v5650 = vmax.f32 %v4018, %v5394
    %v5651 = vmax.f32 %v4020, %v5395
    %v5652 = vmax.f32 %v4404, %v5396
    %v5653 = vmax.f32 %v4406, %v5397
    %v5654 = vmax.f32 %v4790, %v5398
    %v5655 = vmax.f32 %v4792, %v5399
    %v5656 = vmax.f32 %v5176, %v5400
    %v5657 = vmax.f32 %v5178, %v5401
    %v5658 = vmax.f32 %v4022, %v5402
    %v5659 = vmax.f32 %v4024, %v5403
    %v5660 = vmax.f32 %v4408, %v5404
    %v5661 = vmax.f32 %v4410, %v5405
    %v5662 = vmax.f32 %v4794, %v5406
    %v5663 = vmax.f32 %v4796, %v5407
    %v5664 = vmax.f32 %v5180, %v5408
    %v5665 = vmax.f32 %v5182, %v5409
    %v5666 = vmax.f32 %v4028, %v5410
    %v5667 = vmax.f32 %v4030, %v5411
    %v5668 = vmax.f32 %v4414, %v5412
    %v5669 = vmax.f32 %v4416, %v5413
    %v5670 = vmax.f32 %v4800, %v5414
    %v5671 = vmax.f32 %v4802, %v5415
    %v5672 = vmax.f32 %v5186, %v5416
    %v5673 = vmax.f32 %v5188, %v5417
    %v5674 = vmax.f32 %v4032, %v5418
    %v5675 = vmax.f32 %v4034, %v5419
    %v5676 = vmax.f32 %v4418, %v5420
    %v5677 = vmax.f32 %v4420, %v5421
    %v5678 = vmax.f32 %v4804, %v5422
    %v5679 = vmax.f32 %v4806, %v5423
    %v5680 = vmax.f32 %v5190, %v5424
    %v5681 = vmax.f32 %v5192, %v5425
    %v5682 = vmax.f32 %v4038, %v5426
    %v5683 = vmax.f32 %v4040, %v5427
    %v5684 = vmax.f32 %v4424, %v5428
    %v5685 = vmax.f32 %v4426, %v5429
    %v5686 = vmax.f32 %v4810, %v5430
    %v5687 = vmax.f32 %v4812, %v5431
    %v5688 = vmax.f32 %v5196, %v5432
    %v5689 = vmax.f32 %v5198, %v5433
    %v5690 = vmax.f32 %v4042, %v5434
    %v5691 = vmax.f32 %v4044, %v5435
    %v5692 = vmax.f32 %v4428, %v5436
    %v5693 = vmax.f32 %v4430, %v5437
    %v5694 = vmax.f32 %v4814, %v5438
    %v5695 = vmax.f32 %v4816, %v5439
    %v5696 = vmax.f32 %v5200, %v5440
    %v5697 = vmax.f32 %v5202, %v5441
    %v5698 = vmax.f32 %v4048, %v5442
    %v5699 = vmax.f32 %v4050, %v5443
    %v5700 = vmax.f32 %v4434, %v5444
    %v5701 = vmax.f32 %v4436, %v5445
    %v5702 = vmax.f32 %v4820, %v5446
    %v5703 = vmax.f32 %v4822, %v5447
    %v5704 = vmax.f32 %v5206, %v5448
    %v5705 = vmax.f32 %v5208, %v5449
    %v5706 = vmax.f32 %v4052, %v5450
    %v5707 = vmax.f32 %v4054, %v5451
    %v5708 = vmax.f32 %v4438, %v5452
    %v5709 = vmax.f32 %v4440, %v5453
    %v5710 = vmax.f32 %v4824, %v5454
    %v5711 = vmax.f32 %v4826, %v5455
    %v5712 = vmax.f32 %v5210, %v5456
    %v5713 = vmax.f32 %v5212, %v5457
    %v5714 = vmax.f32 %v4058, %v5458
    %v5715 = vmax.f32 %v4060, %v5459
    %v5716 = vmax.f32 %v4444, %v5460
    %v5717 = vmax.f32 %v4446, %v5461
    %v5718 = vmax.f32 %v4830, %v5462
    %v5719 = vmax.f32 %v4832, %v5463
    %v5720 = vmax.f32 %v5216, %v5464
    %v5721 = vmax.f32 %v5218, %v5465
    %v5722 = vmax.f32 %v4062, %v5466
    %v5723 = vmax.f32 %v4064, %v5467
    %v5724 = vmax.f32 %v4448, %v5468
    %v5725 = vmax.f32 %v4450, %v5469
    %v5726 = vmax.f32 %v4834, %v5470
    %v5727 = vmax.f32 %v4836, %v5471
    %v5728 = vmax.f32 %v5220, %v5472
    %v5729 = vmax.f32 %v5222, %v5473
    %v5730 = vmax.f32 %v4068, %v5474
    %v5731 = vmax.f32 %v4070, %v5475
    %v5732 = vmax.f32 %v4454, %v5476
    %v5733 = vmax.f32 %v4456, %v5477
    %v5734 = vmax.f32 %v4840, %v5478
    %v5735 = vmax.f32 %v4842, %v5479
    %v5736 = vmax.f32 %v5226, %v5480
    %v5737 = vmax.f32 %v5228, %v5481
    %v5738 = vmax.f32 %v4072, %v5482
    %v5739 = vmax.f32 %v4074, %v5483
    %v5740 = vmax.f32 %v4458, %v5484
    %v5741 = vmax.f32 %v4460, %v5485
    %v5742 = vmax.f32 %v4844, %v5486
    %v5743 = vmax.f32 %v4846, %v5487
    %v5744 = vmax.f32 %v5230, %v5488
    %v5745 = vmax.f32 %v5232, %v5489
    %v5746 = vpack.c.bf16 %v5498, %v5490
    %v5747 = vpack.c.bf16 %v5499, %v5491
    %v5748 = vpack.c.bf16 %v5500, %v5492
    %v5749 = vpack.c.bf16 %v5501, %v5493
    %v5750 = vpack.c.bf16 %v5502, %v5494
    %v5751 = vpack.c.bf16 %v5503, %v5495
    %v5752 = vpack.c.bf16 %v5504, %v5496
    %v5753 = vpack.c.bf16 %v5505, %v5497
    %v5754 = vpack.c.bf16 %v5514, %v5506
    %v5755 = vpack.c.bf16 %v5515, %v5507
    %v5756 = vpack.c.bf16 %v5516, %v5508
    %v5757 = vpack.c.bf16 %v5517, %v5509
    %v5758 = vpack.c.bf16 %v5518, %v5510
    %v5759 = vpack.c.bf16 %v5519, %v5511
    %v5760 = vpack.c.bf16 %v5520, %v5512
    %v5761 = vpack.c.bf16 %v5521, %v5513
    %v5762 = vpack.c.bf16 %v5530, %v5522
    %v5763 = vpack.c.bf16 %v5531, %v5523
    %v5764 = vpack.c.bf16 %v5532, %v5524
    %v5765 = vpack.c.bf16 %v5533, %v5525
    %v5766 = vpack.c.bf16 %v5534, %v5526
    %v5767 = vpack.c.bf16 %v5535, %v5527
    %v5768 = vpack.c.bf16 %v5536, %v5528
    %v5769 = vpack.c.bf16 %v5537, %v5529
    %v5770 = vpack.c.bf16 %v5546, %v5538
    %v5771 = vpack.c.bf16 %v5547, %v5539
    %v5772 = vpack.c.bf16 %v5548, %v5540
    %v5773 = vpack.c.bf16 %v5549, %v5541
    %v5774 = vpack.c.bf16 %v5550, %v5542
    %v5775 = vpack.c.bf16 %v5551, %v5543
    %v5776 = vpack.c.bf16 %v5552, %v5544
    %v5777 = vpack.c.bf16 %v5553, %v5545
    %v5778 = vpack.c.bf16 %v5562, %v5554
    %v5779 = vpack.c.bf16 %v5563, %v5555
    %v5780 = vpack.c.bf16 %v5564, %v5556
    %v5781 = vpack.c.bf16 %v5565, %v5557
    %v5782 = vpack.c.bf16 %v5566, %v5558
    %v5783 = vpack.c.bf16 %v5567, %v5559
    %v5784 = vpack.c.bf16 %v5568, %v5560
    %v5785 = vpack.c.bf16 %v5569, %v5561
    %v5786 = vpack.c.bf16 %v5578, %v5570
    %v5787 = vpack.c.bf16 %v5579, %v5571
    %v5788 = vpack.c.bf16 %v5580, %v5572
    %v5789 = vpack.c.bf16 %v5581, %v5573
    %v5790 = vpack.c.bf16 %v5582, %v5574
    %v5791 = vpack.c.bf16 %v5583, %v5575
    %v5792 = vpack.c.bf16 %v5584, %v5576
    %v5793 = vpack.c.bf16 %v5585, %v5577
    %v5794 = vpack.c.bf16 %v5594, %v5586
    %v5795 = vpack.c.bf16 %v5595, %v5587
    %v5796 = vpack.c.bf16 %v5596, %v5588
    %v5797 = vpack.c.bf16 %v5597, %v5589
    %v5798 = vpack.c.bf16 %v5598, %v5590
    %v5799 = vpack.c.bf16 %v5599, %v5591
    %v5800 = vpack.c.bf16 %v5600, %v5592
    %v5801 = vpack.c.bf16 %v5601, %v5593
    %v5802 = vpack.c.bf16 %v5610, %v5602
    %v5803 = vpack.c.bf16 %v5611, %v5603
    %v5804 = vpack.c.bf16 %v5612, %v5604
    %v5805 = vpack.c.bf16 %v5613, %v5605
    %v5806 = vpack.c.bf16 %v5614, %v5606
    %v5807 = vpack.c.bf16 %v5615, %v5607
    %v5808 = vpack.c.bf16 %v5616, %v5608
    %v5809 = vpack.c.bf16 %v5617, %v5609
    %v5810 = vpack.c.bf16 %v5626, %v5618
    %v5811 = vpack.c.bf16 %v5627, %v5619
    %v5812 = vpack.c.bf16 %v5628, %v5620
    %v5813 = vpack.c.bf16 %v5629, %v5621
    %v5814 = vpack.c.bf16 %v5630, %v5622
    %v5815 = vpack.c.bf16 %v5631, %v5623
    %v5816 = vpack.c.bf16 %v5632, %v5624
    %v5817 = vpack.c.bf16 %v5633, %v5625
    %v5818 = vpack.c.bf16 %v5642, %v5634
    %v5819 = vpack.c.bf16 %v5643, %v5635
    %v5820 = vpack.c.bf16 %v5644, %v5636
    %v5821 = vpack.c.bf16 %v5645, %v5637
    %v5822 = vpack.c.bf16 %v5646, %v5638
    %v5823 = vpack.c.bf16 %v5647, %v5639
    %v5824 = vpack.c.bf16 %v5648, %v5640
    %v5825 = vpack.c.bf16 %v5649, %v5641
    %v5826 = vpack.c.bf16 %v5658, %v5650
    %v5827 = vpack.c.bf16 %v5659, %v5651
    %v5828 = vpack.c.bf16 %v5660, %v5652
    %v5829 = vpack.c.bf16 %v5661, %v5653
    %v5830 = vpack.c.bf16 %v5662, %v5654
    %v5831 = vpack.c.bf16 %v5663, %v5655
    %v5832 = vpack.c.bf16 %v5664, %v5656
    %v5833 = vpack.c.bf16 %v5665, %v5657
    %v5834 = vpack.c.bf16 %v5674, %v5666
    %v5835 = vpack.c.bf16 %v5675, %v5667
    %v5836 = vpack.c.bf16 %v5676, %v5668
    %v5837 = vpack.c.bf16 %v5677, %v5669
    %v5838 = vpack.c.bf16 %v5678, %v5670
    %v5839 = vpack.c.bf16 %v5679, %v5671
    %v5840 = vpack.c.bf16 %v5680, %v5672
    %v5841 = vpack.c.bf16 %v5681, %v5673
    %v5842 = vpack.c.bf16 %v5690, %v5682
    %v5843 = vpack.c.bf16 %v5691, %v5683
    %v5844 = vpack.c.bf16 %v5692, %v5684
    %v5845 = vpack.c.bf16 %v5693, %v5685
    %v5846 = vpack.c.bf16 %v5694, %v5686
    %v5847 = vpack.c.bf16 %v5695, %v5687
    %v5848 = vpack.c.bf16 %v5696, %v5688
    %v5849 = vpack.c.bf16 %v5697, %v5689
    %v5850 = vpack.c.bf16 %v5706, %v5698
    %v5851 = vpack.c.bf16 %v5707, %v5699
    %v5852 = vpack.c.bf16 %v5708, %v5700
    %v5853 = vpack.c.bf16 %v5709, %v5701
    %v5854 = vpack.c.bf16 %v5710, %v5702
    %v5855 = vpack.c.bf16 %v5711, %v5703
    %v5856 = vpack.c.bf16 %v5712, %v5704
    %v5857 = vpack.c.bf16 %v5713, %v5705
    %v5858 = vpack.c.bf16 %v5722, %v5714
    %v5859 = vpack.c.bf16 %v5723, %v5715
    %v5860 = vpack.c.bf16 %v5724, %v5716
    %v5861 = vpack.c.bf16 %v5725, %v5717
    %v5862 = vpack.c.bf16 %v5726, %v5718
    %v5863 = vpack.c.bf16 %v5727, %v5719
    %v5864 = vpack.c.bf16 %v5728, %v5720
    %v5865 = vpack.c.bf16 %v5729, %v5721
    %v5866 = vpack.c.bf16 %v5738, %v5730
    %v5867 = vpack.c.bf16 %v5739, %v5731
    %v5868 = vpack.c.bf16 %v5740, %v5732
    %v5869 = vpack.c.bf16 %v5741, %v5733
    %v5870 = vpack.c.bf16 %v5742, %v5734
    %v5871 = vpack.c.bf16 %v5743, %v5735
    %v5872 = vpack.c.bf16 %v5744, %v5736
    %v5873 = vpack.c.bf16 %v5745, %v5737
    %v5874 = vld [vmem:[#allocation17] sm:$0xff]
    %v5875 = vld [vmem:[#allocation17 + $0x8] sm:$0xff]
    %v5876 = vld [vmem:[#allocation17 + $0x10] sm:$0xff]
    %v5877 = vld [vmem:[#allocation17 + $0x18] sm:$0xf]
    %v5878 = vld [vmem:[#allocation17 + $0x1c] sm:$0xff]
    %v5879 = vld [vmem:[#allocation17 + $0x24] sm:$0xff]
    %v5880 = vld [vmem:[#allocation17 + $0x2c] sm:$0xff]
    %v5881 = vld [vmem:[#allocation17 + $0x34] sm:$0xf]
    %v5882 = vld [vmem:[#allocation17 + $0x38] sm:$0xff]
    %v5883 = vld [vmem:[#allocation17 + $0x40] sm:$0xff]
    %v5884 = vld [vmem:[#allocation17 + $0x48] sm:$0xff]
    %v5885 = vld [vmem:[#allocation17 + $0x50] sm:$0xf]
    %v5886 = vld [vmem:[#allocation17 + $0x54] sm:$0xff]
    %v5887 = vld [vmem:[#allocation17 + $0x5c] sm:$0xff]
    %v5888 = vld [vmem:[#allocation17 + $0x64] sm:$0xff]
    %v5889 = vld [vmem:[#allocation17 + $0x6c] sm:$0xf]
    %v5890 = vld [vmem:[#allocation17 + $0x70] sm:$0xff]
    %v5891 = vld [vmem:[#allocation17 + $0x78] sm:$0xff]
    %v5892 = vld [vmem:[#allocation17 + $0x80] sm:$0xff]
    %v5893 = vld [vmem:[#allocation17 + $0x88] sm:$0xf]
    %v5894 = vld [vmem:[#allocation17 + $0x8c] sm:$0xff]
    %v5895 = vld [vmem:[#allocation17 + $0x94] sm:$0xff]
    %v5896 = vld [vmem:[#allocation17 + $0x9c] sm:$0xff]
    %v5897 = vld [vmem:[#allocation17 + $0xa4] sm:$0xf]
    %v5898 = vld [vmem:[#allocation17 + $0xa8] sm:$0xff]
    %v5899 = vld [vmem:[#allocation17 + $0xb0] sm:$0xff]
    %v5900 = vld [vmem:[#allocation17 + $0xb8] sm:$0xff]
    %v5901 = vld [vmem:[#allocation17 + $0xc0] sm:$0xf]
    %v5902 = vld [vmem:[#allocation17 + $0xc4] sm:$0xff]
    %v5903 = vld [vmem:[#allocation17 + $0xcc] sm:$0xff]
    %v5904 = vld [vmem:[#allocation17 + $0xd4] sm:$0xff]
    %v5905 = vld [vmem:[#allocation17 + $0xdc] sm:$0xf]
    %v5906 = vld [vmem:[#allocation17 + $0xe0] sm:$0xff]
    %v5907 = vld [vmem:[#allocation17 + $0xe8] sm:$0xff]
    %v5908 = vld [vmem:[#allocation17 + $0xf0] sm:$0xff]
    %v5909 = vld [vmem:[#allocation17 + $0xf8] sm:$0xf]
    %v5910 = vld [vmem:[#allocation17 + $0xfc] sm:$0xff]
    %v5911 = vld [vmem:[#allocation17 + $0x104] sm:$0xff]
    %v5912 = vld [vmem:[#allocation17 + $0x10c] sm:$0xff]
    %v5913 = vld [vmem:[#allocation17 + $0x114] sm:$0xf]
    %v5914 = vld [vmem:[#allocation17 + $0x118] sm:$0xff]
    %v5915 = vld [vmem:[#allocation17 + $0x120] sm:$0xff]
    %v5916 = vld [vmem:[#allocation17 + $0x128] sm:$0xff]
    %v5917 = vld [vmem:[#allocation17 + $0x130] sm:$0xf]
    %v5918 = vld [vmem:[#allocation17 + $0x134] sm:$0xff]
    %v5919 = vld [vmem:[#allocation17 + $0x13c] sm:$0xff]
    %v5920 = vld [vmem:[#allocation17 + $0x144] sm:$0xff]
    %v5921 = vld [vmem:[#allocation17 + $0x14c] sm:$0xf]
    %v5922 = vld [vmem:[#allocation17 + $0x150] sm:$0xff]
    %v5923 = vld [vmem:[#allocation17 + $0x158] sm:$0xff]
    %v5924 = vld [vmem:[#allocation17 + $0x160] sm:$0xff]
    %v5925 = vld [vmem:[#allocation17 + $0x168] sm:$0xf]
    %v5926 = vld [vmem:[#allocation17 + $0x16c] sm:$0xff]
    %v5927 = vld [vmem:[#allocation17 + $0x174] sm:$0xff]
    %v5928 = vld [vmem:[#allocation17 + $0x17c] sm:$0xff]
    %v5929 = vld [vmem:[#allocation17 + $0x184] sm:$0xf]
    %v5930 = vld [vmem:[#allocation17 + $0x188] sm:$0xff]
    %v5931 = vld [vmem:[#allocation17 + $0x190] sm:$0xff]
    %v5932 = vld [vmem:[#allocation17 + $0x198] sm:$0xff]
    %v5933 = vld [vmem:[#allocation17 + $0x1a0] sm:$0xf]
    %v5934 = vld [vmem:[#allocation17 + $0x1a4] sm:$0xff]
    %v5935 = vld [vmem:[#allocation17 + $0x1ac] sm:$0xff]
    %v5936 = vld [vmem:[#allocation17 + $0x1b4] sm:$0xff]
    %v5937 = vld [vmem:[#allocation17 + $0x1bc] sm:$0xf]
    %v5938 = vld [vmem:[#allocation17 + $0x1c0] sm:$0xff]
    %v5939 = vld [vmem:[#allocation17 + $0x1c8] sm:$0xff]
    %v5940 = vld [vmem:[#allocation17 + $0x1d0] sm:$0xff]
    %v5941 = vld [vmem:[#allocation17 + $0x1d8] sm:$0xf]
    %v5942 = vld [vmem:[#allocation17 + $0x1dc] sm:$0xff]
    %v5943 = vld [vmem:[#allocation17 + $0x1e4] sm:$0xff]
    %v5944 = vld [vmem:[#allocation17 + $0x1ec] sm:$0xff]
    %v5945 = vld [vmem:[#allocation17 + $0x1f4] sm:$0xf]
    %v5946 = vld [vmem:[#allocation17 + $0x1f8] sm:$0xff]
    %v5947 = vld [vmem:[#allocation17 + $0x200] sm:$0xff]
    %v5948 = vld [vmem:[#allocation17 + $0x208] sm:$0xff]
    %v5949 = vld [vmem:[#allocation17 + $0x210] sm:$0xf]
    %v5950 = vld [vmem:[#allocation17 + $0x214] sm:$0xff]
    %v5951 = vld [vmem:[#allocation17 + $0x21c] sm:$0xff]
    %v5952 = vld [vmem:[#allocation17 + $0x224] sm:$0xff]
    %v5953 = vld [vmem:[#allocation17 + $0x22c] sm:$0xf]
    %v5954 = vld [vmem:[#allocation17 + $0x230] sm:$0xff]
    %v5955 = vld [vmem:[#allocation17 + $0x238] sm:$0xff]
    %v5956 = vld [vmem:[#allocation17 + $0x240] sm:$0xff]
    %v5957 = vld [vmem:[#allocation17 + $0x248] sm:$0xf]
    %v5958 = vld [vmem:[#allocation17 + $0x24c] sm:$0xff]
    %v5959 = vld [vmem:[#allocation17 + $0x254] sm:$0xff]
    %v5960 = vld [vmem:[#allocation17 + $0x25c] sm:$0xff]
    %v5961 = vld [vmem:[#allocation17 + $0x264] sm:$0xf]
    %v5962 = vld [vmem:[#allocation17 + $0x268] sm:$0xff]
    %v5963 = vld [vmem:[#allocation17 + $0x270] sm:$0xff]
    %v5964 = vld [vmem:[#allocation17 + $0x278] sm:$0xff]
    %v5965 = vld [vmem:[#allocation17 + $0x280] sm:$0xf]
    %v5966 = vld [vmem:[#allocation17 + $0x284] sm:$0xff]
    %v5967 = vld [vmem:[#allocation17 + $0x28c] sm:$0xff]
    %v5968 = vld [vmem:[#allocation17 + $0x294] sm:$0xff]
    %v5969 = vld [vmem:[#allocation17 + $0x29c] sm:$0xf]
    %v5970 = vld [vmem:[#allocation17 + $0x2a0] sm:$0xff]
    %v5971 = vld [vmem:[#allocation17 + $0x2a8] sm:$0xff]
    %v5972 = vld [vmem:[#allocation17 + $0x2b0] sm:$0xff]
    %v5973 = vld [vmem:[#allocation17 + $0x2b8] sm:$0xf]
    %v5974 = vld [vmem:[#allocation17 + $0x2bc] sm:$0xff]
    %v5975 = vld [vmem:[#allocation17 + $0x2c4] sm:$0xff]
    %v5976 = vld [vmem:[#allocation17 + $0x2cc] sm:$0xff]
    %v5977 = vld [vmem:[#allocation17 + $0x2d4] sm:$0xf]
    %v5978 = vld [vmem:[#allocation17 + $0x2d8] sm:$0xff]
    %v5979 = vld [vmem:[#allocation17 + $0x2e0] sm:$0xff]
    %v5980 = vld [vmem:[#allocation17 + $0x2e8] sm:$0xff]
    %v5981 = vld [vmem:[#allocation17 + $0x2f0] sm:$0xf]
    %v5982 = vld [vmem:[#allocation17 + $0x2f4] sm:$0xff]
    %v5983 = vld [vmem:[#allocation17 + $0x2fc] sm:$0xff]
    %v5984 = vld [vmem:[#allocation17 + $0x304] sm:$0xff]
    %v5985 = vld [vmem:[#allocation17 + $0x30c] sm:$0xf]
    %v5986 = vld [vmem:[#allocation17 + $0x310] sm:$0xff]
    %v5987 = vld [vmem:[#allocation17 + $0x318] sm:$0xff]
    %v5988 = vld [vmem:[#allocation17 + $0x320] sm:$0xff]
    %v5989 = vld [vmem:[#allocation17 + $0x328] sm:$0xf]
    %v5990 = vld [vmem:[#allocation17 + $0x32c] sm:$0xff]
    %v5991 = vld [vmem:[#allocation17 + $0x334] sm:$0xff]
    %v5992 = vld [vmem:[#allocation17 + $0x33c] sm:$0xff]
    %v5993 = vld [vmem:[#allocation17 + $0x344] sm:$0xf]
    %v5994 = vld [vmem:[#allocation17 + $0x348] sm:$0xff]
    %v5995 = vld [vmem:[#allocation17 + $0x350] sm:$0xff]
    %v5996 = vld [vmem:[#allocation17 + $0x358] sm:$0xff]
    %v5997 = vld [vmem:[#allocation17 + $0x360] sm:$0xf]
    %v5998 = vld [vmem:[#allocation17 + $0x364] sm:$0xff]
    %v5999 = vld [vmem:[#allocation17 + $0x36c] sm:$0xff]
    %v6000 = vld [vmem:[#allocation17 + $0x374] sm:$0xff]
    %v6001 = vld [vmem:[#allocation17 + $0x37c] sm:$0xf]
    %v6002 = vld [vmem:[#allocation17 + $0x380] sm:$0xff]
    %v6003 = vld [vmem:[#allocation17 + $0x388] sm:$0xff]
    %v6004 = vld [vmem:[#allocation17 + $0x390] sm:$0xff]
    %v6005 = vld [vmem:[#allocation17 + $0x398] sm:$0xf]
    %v6006 = vld [vmem:[#allocation17 + $0x39c] sm:$0xff]
    %v6007 = vld [vmem:[#allocation17 + $0x3a4] sm:$0xff]
    %v6008 = vld [vmem:[#allocation17 + $0x3ac] sm:$0xff]
    %v6009 = vld [vmem:[#allocation17 + $0x3b4] sm:$0xf]
    %v6010 = vld [vmem:[#allocation17 + $0x3b8] sm:$0xff]
    %v6011 = vld [vmem:[#allocation17 + $0x3c0] sm:$0xff]
    %v6012 = vld [vmem:[#allocation17 + $0x3c8] sm:$0xff]
    %v6013 = vld [vmem:[#allocation17 + $0x3d0] sm:$0xf]
    %v6014 = vld [vmem:[#allocation17 + $0x3d4] sm:$0xff]
    %v6015 = vld [vmem:[#allocation17 + $0x3dc] sm:$0xff]
    %v6016 = vld [vmem:[#allocation17 + $0x3e4] sm:$0xff]
    %v6017 = vld [vmem:[#allocation17 + $0x3ec] sm:$0xf]
    %v6018 = vld [vmem:[#allocation17 + $0x3f0] sm:$0xff]
    %v6019 = vld [vmem:[#allocation17 + $0x3f8] sm:$0xff]
    %v6020 = vld [vmem:[#allocation17 + $0x400] sm:$0xff]
    %v6021 = vld [vmem:[#allocation17 + $0x408] sm:$0xf]
    %v6022 = vld [vmem:[#allocation17 + $0x40c] sm:$0xff]
    %v6023 = vld [vmem:[#allocation17 + $0x414] sm:$0xff]
    %v6024 = vld [vmem:[#allocation17 + $0x41c] sm:$0xff]
    %v6025 = vld [vmem:[#allocation17 + $0x424] sm:$0xf]
    %v6026 = vld [vmem:[#allocation17 + $0x428] sm:$0xff]
    %v6027 = vld [vmem:[#allocation17 + $0x430] sm:$0xff]
    %v6028 = vld [vmem:[#allocation17 + $0x438] sm:$0xff]
    %v6029 = vld [vmem:[#allocation17 + $0x440] sm:$0xf]
    %v6030 = vld [vmem:[#allocation17 + $0x444] sm:$0xff]
    %v6031 = vld [vmem:[#allocation17 + $0x44c] sm:$0xff]
    %v6032 = vld [vmem:[#allocation17 + $0x454] sm:$0xff]
    %v6033 = vld [vmem:[#allocation17 + $0x45c] sm:$0xf]
    %v6034 = vld [vmem:[#allocation17 + $0x460] sm:$0xff]
    %v6035 = vld [vmem:[#allocation17 + $0x468] sm:$0xff]
    %v6036 = vld [vmem:[#allocation17 + $0x470] sm:$0xff]
    %v6037 = vld [vmem:[#allocation17 + $0x478] sm:$0xf]
    %v6038 = vld [vmem:[#allocation17 + $0x47c] sm:$0xff]
    %v6039 = vld [vmem:[#allocation17 + $0x484] sm:$0xff]
    %v6040 = vld [vmem:[#allocation17 + $0x48c] sm:$0xff]
    %v6041 = vld [vmem:[#allocation17 + $0x494] sm:$0xf]
    %v6042 = vld [vmem:[#allocation17 + $0x498] sm:$0xff]
    %v6043 = vld [vmem:[#allocation17 + $0x4a0] sm:$0xff]
    %v6044 = vld [vmem:[#allocation17 + $0x4a8] sm:$0xff]
    %v6045 = vld [vmem:[#allocation17 + $0x4b0] sm:$0xf]
    %v6046 = vld [vmem:[#allocation17 + $0x4b4] sm:$0xff]
    %v6047 = vld [vmem:[#allocation17 + $0x4bc] sm:$0xff]
    %v6048 = vld [vmem:[#allocation17 + $0x4c4] sm:$0xff]
    %v6049 = vld [vmem:[#allocation17 + $0x4cc] sm:$0xf]
    %v6050 = vld [vmem:[#allocation17 + $0x4d0] sm:$0xff]
    %v6051 = vld [vmem:[#allocation17 + $0x4d8] sm:$0xff]
    %v6052 = vld [vmem:[#allocation17 + $0x4e0] sm:$0xff]
    %v6053 = vld [vmem:[#allocation17 + $0x4e8] sm:$0xf]
    %v6054 = vld [vmem:[#allocation17 + $0x4ec] sm:$0xff]
    %v6055 = vld [vmem:[#allocation17 + $0x4f4] sm:$0xff]
    %v6056 = vld [vmem:[#allocation17 + $0x4fc] sm:$0xff]
    %v6057 = vld [vmem:[#allocation17 + $0x504] sm:$0xf]
    %v6058 = vld [vmem:[#allocation17 + $0x508] sm:$0xff]
    %v6059 = vld [vmem:[#allocation17 + $0x510] sm:$0xff]
    %v6060 = vld [vmem:[#allocation17 + $0x518] sm:$0xff]
    %v6061 = vld [vmem:[#allocation17 + $0x520] sm:$0xf]
    %v6062 = vld [vmem:[#allocation17 + $0x524] sm:$0xff]
    %v6063 = vld [vmem:[#allocation17 + $0x52c] sm:$0xff]
    %v6064 = vld [vmem:[#allocation17 + $0x534] sm:$0xff]
    %v6065 = vld [vmem:[#allocation17 + $0x53c] sm:$0xf]
    %v6066 = vld [vmem:[#allocation17 + $0x540] sm:$0xff]
    %v6067 = vld [vmem:[#allocation17 + $0x548] sm:$0xff]
    %v6068 = vld [vmem:[#allocation17 + $0x550] sm:$0xff]
    %v6069 = vld [vmem:[#allocation17 + $0x558] sm:$0xf]
    %v6070 = vld [vmem:[#allocation17 + $0x55c] sm:$0xff]
    %v6071 = vld [vmem:[#allocation17 + $0x564] sm:$0xff]
    %v6072 = vld [vmem:[#allocation17 + $0x56c] sm:$0xff]
    %v6073 = vld [vmem:[#allocation17 + $0x574] sm:$0xf]
    %v6074 = vld [vmem:[#allocation17 + $0x578] sm:$0xff]
    %v6075 = vld [vmem:[#allocation17 + $0x580] sm:$0xff]
    %v6076 = vld [vmem:[#allocation17 + $0x588] sm:$0xff]
    %v6077 = vld [vmem:[#allocation17 + $0x590] sm:$0xf]
    %v6078 = vld [vmem:[#allocation17 + $0x594] sm:$0xff]
    %v6079 = vld [vmem:[#allocation17 + $0x59c] sm:$0xff]
    %v6080 = vld [vmem:[#allocation17 + $0x5a4] sm:$0xff]
    %v6081 = vld [vmem:[#allocation17 + $0x5ac] sm:$0xf]
    %v6082 = vld [vmem:[#allocation17 + $0x5b0] sm:$0xff]
    %v6083 = vld [vmem:[#allocation17 + $0x5b8] sm:$0xff]
    %v6084 = vld [vmem:[#allocation17 + $0x5c0] sm:$0xff]
    %v6085 = vld [vmem:[#allocation17 + $0x5c8] sm:$0xf]
    %v6086 = vld [vmem:[#allocation17 + $0x5cc] sm:$0xff]
    %v6087 = vld [vmem:[#allocation17 + $0x5d4] sm:$0xff]
    %v6088 = vld [vmem:[#allocation17 + $0x5dc] sm:$0xff]
    %v6089 = vld [vmem:[#allocation17 + $0x5e4] sm:$0xf]
    %v6090 = vld [vmem:[#allocation17 + $0x5e8] sm:$0xff]
    %v6091 = vld [vmem:[#allocation17 + $0x5f0] sm:$0xff]
    %v6092 = vld [vmem:[#allocation17 + $0x5f8] sm:$0xff]
    %v6093 = vld [vmem:[#allocation17 + $0x600] sm:$0xf]
    %v6094 = vld [vmem:[#allocation17 + $0x604] sm:$0xff]
    %v6095 = vld [vmem:[#allocation17 + $0x60c] sm:$0xff]
    %v6096 = vld [vmem:[#allocation17 + $0x614] sm:$0xff]
    %v6097 = vld [vmem:[#allocation17 + $0x61c] sm:$0xf]
    %v6098 = vld [vmem:[#allocation17 + $0x620] sm:$0xff]
    %v6099 = vld [vmem:[#allocation17 + $0x628] sm:$0xff]
    %v6100 = vld [vmem:[#allocation17 + $0x630] sm:$0xff]
    %v6101 = vld [vmem:[#allocation17 + $0x638] sm:$0xf]
    %v6102 = vld [vmem:[#allocation17 + $0x63c] sm:$0xff]
    %v6103 = vld [vmem:[#allocation17 + $0x644] sm:$0xff]
    %v6104 = vld [vmem:[#allocation17 + $0x64c] sm:$0xff]
    %v6105 = vld [vmem:[#allocation17 + $0x654] sm:$0xf]
    %v6106 = vld [vmem:[#allocation17 + $0x658] sm:$0xff]
    %v6107 = vld [vmem:[#allocation17 + $0x660] sm:$0xff]
    %v6108 = vld [vmem:[#allocation17 + $0x668] sm:$0xff]
    %v6109 = vld [vmem:[#allocation17 + $0x670] sm:$0xf]
    %v6110 = vld [vmem:[#allocation17 + $0x674] sm:$0xff]
    %v6111 = vld [vmem:[#allocation17 + $0x67c] sm:$0xff]
    %v6112 = vld [vmem:[#allocation17 + $0x684] sm:$0xff]
    %v6113 = vld [vmem:[#allocation17 + $0x68c] sm:$0xf]
    %v6114 = vld [vmem:[#allocation17 + $0x690] sm:$0xff]
    %v6115 = vld [vmem:[#allocation17 + $0x698] sm:$0xff]
    %v6116 = vld [vmem:[#allocation17 + $0x6a0] sm:$0xff]
    %v6117 = vld [vmem:[#allocation17 + $0x6a8] sm:$0xf]
    %v6118 = vld [vmem:[#allocation17 + $0x6ac] sm:$0xff]
    %v6119 = vld [vmem:[#allocation17 + $0x6b4] sm:$0xff]
    %v6120 = vld [vmem:[#allocation17 + $0x6bc] sm:$0xff]
    %v6121 = vld [vmem:[#allocation17 + $0x6c4] sm:$0xf]
    %v6122 = vld [vmem:[#allocation17 + $0x6c8] sm:$0xff]
    %v6123 = vld [vmem:[#allocation17 + $0x6d0] sm:$0xff]
    %v6124 = vld [vmem:[#allocation17 + $0x6d8] sm:$0xff]
    %v6125 = vld [vmem:[#allocation17 + $0x6e0] sm:$0xf]
    %v6126 = vld [vmem:[#allocation17 + $0x6e4] sm:$0xff]
    %v6127 = vld [vmem:[#allocation17 + $0x6ec] sm:$0xff]
    %v6128 = vld [vmem:[#allocation17 + $0x6f4] sm:$0xff]
    %v6129 = vld [vmem:[#allocation17 + $0x6fc] sm:$0xf]
    %v6130 = vld [vmem:[#allocation17 + $0x700] sm:$0xff]
    %v6131 = vld [vmem:[#allocation17 + $0x708] sm:$0xff]
    %v6132 = vld [vmem:[#allocation17 + $0x710] sm:$0xff]
    %v6133 = vld [vmem:[#allocation17 + $0x718] sm:$0xf]
    %v6134 = vld [vmem:[#allocation17 + $0x71c] sm:$0xff]
    %v6135 = vld [vmem:[#allocation17 + $0x724] sm:$0xff]
    %v6136 = vld [vmem:[#allocation17 + $0x72c] sm:$0xff]
    %v6137 = vld [vmem:[#allocation17 + $0x734] sm:$0xf]
    %v6138 = vld [vmem:[#allocation17 + $0x738] sm:$0xff]
    %v6139 = vld [vmem:[#allocation17 + $0x740] sm:$0xff]
    %v6140 = vld [vmem:[#allocation17 + $0x748] sm:$0xff]
    %v6141 = vld [vmem:[#allocation17 + $0x750] sm:$0xf]
    %v6142 = vld [vmem:[#allocation17 + $0x754] sm:$0xff]
    %v6143 = vld [vmem:[#allocation17 + $0x75c] sm:$0xff]
    %v6144 = vld [vmem:[#allocation17 + $0x764] sm:$0xff]
    %v6145 = vld [vmem:[#allocation17 + $0x76c] sm:$0xf]
    %v6146 = vld [vmem:[#allocation17 + $0x770] sm:$0xff]
    %v6147 = vld [vmem:[#allocation17 + $0x778] sm:$0xff]
    %v6148 = vld [vmem:[#allocation17 + $0x780] sm:$0xff]
    %v6149 = vld [vmem:[#allocation17 + $0x788] sm:$0xf]
    %v6150 = vld [vmem:[#allocation17 + $0x78c] sm:$0xff]
    %v6151 = vld [vmem:[#allocation17 + $0x794] sm:$0xff]
    %v6152 = vld [vmem:[#allocation17 + $0x79c] sm:$0xff]
    %v6153 = vld [vmem:[#allocation17 + $0x7a4] sm:$0xf]
    %v6154 = vld [vmem:[#allocation17 + $0x7a8] sm:$0xff]
    %v6155 = vld [vmem:[#allocation17 + $0x7b0] sm:$0xff]
    %v6156 = vld [vmem:[#allocation17 + $0x7b8] sm:$0xff]
    %v6157 = vld [vmem:[#allocation17 + $0x7c0] sm:$0xf]
    %v6158 = vld [vmem:[#allocation17 + $0x7c4] sm:$0xff]
    %v6159 = vld [vmem:[#allocation17 + $0x7cc] sm:$0xff]
    %v6160 = vld [vmem:[#allocation17 + $0x7d4] sm:$0xff]
    %v6161 = vld [vmem:[#allocation17 + $0x7dc] sm:$0xf]
    %v6162 = vld [vmem:[#allocation17 + $0x7e0] sm:$0xff]
    %v6163 = vld [vmem:[#allocation17 + $0x7e8] sm:$0xff]
    %v6164 = vld [vmem:[#allocation17 + $0x7f0] sm:$0xff]
    %v6165 = vld [vmem:[#allocation17 + $0x7f8] sm:$0xf]
    %v6166 = vld [vmem:[#allocation17 + $0x7fc] sm:$0xff]
    %v6167 = vld [vmem:[#allocation17 + $0x804] sm:$0xff]
    %v6168 = vld [vmem:[#allocation17 + $0x80c] sm:$0xff]
    %v6169 = vld [vmem:[#allocation17 + $0x814] sm:$0xf]
    %v6170 = vld [vmem:[#allocation17 + $0x818] sm:$0xff]
    %v6171 = vld [vmem:[#allocation17 + $0x820] sm:$0xff]
    %v6172 = vld [vmem:[#allocation17 + $0x828] sm:$0xff]
    %v6173 = vld [vmem:[#allocation17 + $0x830] sm:$0xf]
    %v6174 = vld [vmem:[#allocation17 + $0x834] sm:$0xff]
    %v6175 = vld [vmem:[#allocation17 + $0x83c] sm:$0xff]
    %v6176 = vld [vmem:[#allocation17 + $0x844] sm:$0xff]
    %v6177 = vld [vmem:[#allocation17 + $0x84c] sm:$0xf]
    %v6178 = vld [vmem:[#allocation17 + $0x850] sm:$0xff]
    %v6179 = vld [vmem:[#allocation17 + $0x858] sm:$0xff]
    %v6180 = vld [vmem:[#allocation17 + $0x860] sm:$0xff]
    %v6181 = vld [vmem:[#allocation17 + $0x868] sm:$0xf]
    %v6182 = vld [vmem:[#allocation17 + $0x86c] sm:$0xff]
    %v6183 = vld [vmem:[#allocation17 + $0x874] sm:$0xff]
    %v6184 = vld [vmem:[#allocation17 + $0x87c] sm:$0xff]
    %v6185 = vld [vmem:[#allocation17 + $0x884] sm:$0xf]
    %v6186 = vld [vmem:[#allocation17 + $0x888] sm:$0xff]
    %v6187 = vld [vmem:[#allocation17 + $0x890] sm:$0xff]
    %v6188 = vld [vmem:[#allocation17 + $0x898] sm:$0xff]
    %v6189 = vld [vmem:[#allocation17 + $0x8a0] sm:$0xf]
    %v6190 = vld [vmem:[#allocation17 + $0x8a4] sm:$0xff]
    %v6191 = vld [vmem:[#allocation17 + $0x8ac] sm:$0xff]
    %v6192 = vld [vmem:[#allocation17 + $0x8b4] sm:$0xff]
    %v6193 = vld [vmem:[#allocation17 + $0x8bc] sm:$0xf]
    %v6194 = vld [vmem:[#allocation17 + $0x8c0] sm:$0xff]
    %v6195 = vld [vmem:[#allocation17 + $0x8c8] sm:$0xff]
    %v6196 = vld [vmem:[#allocation17 + $0x8d0] sm:$0xff]
    %v6197 = vld [vmem:[#allocation17 + $0x8d8] sm:$0xf]
    %v6198 = vld [vmem:[#allocation17 + $0x8dc] sm:$0xff]
    %v6199 = vld [vmem:[#allocation17 + $0x8e4] sm:$0xff]
    %v6200 = vld [vmem:[#allocation17 + $0x8ec] sm:$0xff]
    %v6201 = vld [vmem:[#allocation17 + $0x8f4] sm:$0xf]
    %v6202 = vld [vmem:[#allocation17 + $0x8f8] sm:$0xff]
    %v6203 = vld [vmem:[#allocation17 + $0x900] sm:$0xff]
    %v6204 = vld [vmem:[#allocation17 + $0x908] sm:$0xff]
    %v6205 = vld [vmem:[#allocation17 + $0x910] sm:$0xf]
    %v6206 = vld [vmem:[#allocation17 + $0x914] sm:$0xff]
    %v6207 = vld [vmem:[#allocation17 + $0x91c] sm:$0xff]
    %v6208 = vld [vmem:[#allocation17 + $0x924] sm:$0xff]
    %v6209 = vld [vmem:[#allocation17 + $0x92c] sm:$0xf]
    %v6210 = vld [vmem:[#allocation17 + $0x930] sm:$0xff]
    %v6211 = vld [vmem:[#allocation17 + $0x938] sm:$0xff]
    %v6212 = vld [vmem:[#allocation17 + $0x940] sm:$0xff]
    %v6213 = vld [vmem:[#allocation17 + $0x948] sm:$0xf]
    %v6214 = vld [vmem:[#allocation17 + $0x94c] sm:$0xff]
    %v6215 = vld [vmem:[#allocation17 + $0x954] sm:$0xff]
    %v6216 = vld [vmem:[#allocation17 + $0x95c] sm:$0xff]
    %v6217 = vld [vmem:[#allocation17 + $0x964] sm:$0xf]
    %v6218 = vld [vmem:[#allocation17 + $0x968] sm:$0xff]
    %v6219 = vld [vmem:[#allocation17 + $0x970] sm:$0xff]
    %v6220 = vld [vmem:[#allocation17 + $0x978] sm:$0xff]
    %v6221 = vld [vmem:[#allocation17 + $0x980] sm:$0xf]
    %v6222 = vld [vmem:[#allocation17 + $0x984] sm:$0xff]
    %v6223 = vld [vmem:[#allocation17 + $0x98c] sm:$0xff]
    %v6224 = vld [vmem:[#allocation17 + $0x994] sm:$0xff]
    %v6225 = vld [vmem:[#allocation17 + $0x99c] sm:$0xf]
    %v6226 = vld [vmem:[#allocation17 + $0x9a0] sm:$0xff]
    %v6227 = vld [vmem:[#allocation17 + $0x9a8] sm:$0xff]
    %v6228 = vld [vmem:[#allocation17 + $0x9b0] sm:$0xff]
    %v6229 = vld [vmem:[#allocation17 + $0x9b8] sm:$0xf]
    %v6230 = vld [vmem:[#allocation17 + $0x9bc] sm:$0xff]
    %v6231 = vld [vmem:[#allocation17 + $0x9c4] sm:$0xff]
    %v6232 = vld [vmem:[#allocation17 + $0x9cc] sm:$0xff]
    %v6233 = vld [vmem:[#allocation17 + $0x9d4] sm:$0xf]
    %v6234 = vld [vmem:[#allocation17 + $0x9d8] sm:$0xff]
    %v6235 = vld [vmem:[#allocation17 + $0x9e0] sm:$0xff]
    %v6236 = vld [vmem:[#allocation17 + $0x9e8] sm:$0xff]
    %v6237 = vld [vmem:[#allocation17 + $0x9f0] sm:$0xf]
    %v6238 = vld [vmem:[#allocation17 + $0x9f4] sm:$0xff]
    %v6239 = vld [vmem:[#allocation17 + $0x9fc] sm:$0xff]
    %v6240 = vld [vmem:[#allocation17 + $0xa04] sm:$0xff]
    %v6241 = vld [vmem:[#allocation17 + $0xa0c] sm:$0xf]
    %v6242 = vld [vmem:[#allocation17 + $0xa10] sm:$0xff]
    %v6243 = vld [vmem:[#allocation17 + $0xa18] sm:$0xff]
    %v6244 = vld [vmem:[#allocation17 + $0xa20] sm:$0xff]
    %v6245 = vld [vmem:[#allocation17 + $0xa28] sm:$0xf]
    %v6246 = vld [vmem:[#allocation17 + $0xa2c] sm:$0xff]
    %v6247 = vld [vmem:[#allocation17 + $0xa34] sm:$0xff]
    %v6248 = vld [vmem:[#allocation17 + $0xa3c] sm:$0xff]
    %v6249 = vld [vmem:[#allocation17 + $0xa44] sm:$0xf]
    %v6250 = vld [vmem:[#allocation17 + $0xa48] sm:$0xff]
    %v6251 = vld [vmem:[#allocation17 + $0xa50] sm:$0xff]
    %v6252 = vld [vmem:[#allocation17 + $0xa58] sm:$0xff]
    %v6253 = vld [vmem:[#allocation17 + $0xa60] sm:$0xf]
    %v6254 = vld [vmem:[#allocation17 + $0xa64] sm:$0xff]
    %v6255 = vld [vmem:[#allocation17 + $0xa6c] sm:$0xff]
    %v6256 = vld [vmem:[#allocation17 + $0xa74] sm:$0xff]
    %v6257 = vld [vmem:[#allocation17 + $0xa7c] sm:$0xf]
    %v6258 = vld [vmem:[#allocation17 + $0xa80] sm:$0xff]
    %v6259 = vld [vmem:[#allocation17 + $0xa88] sm:$0xff]
    %v6260 = vld [vmem:[#allocation17 + $0xa90] sm:$0xff]
    %v6261 = vld [vmem:[#allocation17 + $0xa98] sm:$0xf]
    %v6262 = vld [vmem:[#allocation17 + $0xa9c] sm:$0xff]
    %v6263 = vld [vmem:[#allocation17 + $0xaa4] sm:$0xff]
    %v6264 = vld [vmem:[#allocation17 + $0xaac] sm:$0xff]
    %v6265 = vld [vmem:[#allocation17 + $0xab4] sm:$0xf]
    %v6266 = vld [vmem:[#allocation17 + $0xab8] sm:$0xff]
    %v6267 = vld [vmem:[#allocation17 + $0xac0] sm:$0xff]
    %v6268 = vld [vmem:[#allocation17 + $0xac8] sm:$0xff]
    %v6269 = vld [vmem:[#allocation17 + $0xad0] sm:$0xf]
    %v6270 = vld [vmem:[#allocation17 + $0xad4] sm:$0xff]
    %v6271 = vld [vmem:[#allocation17 + $0xadc] sm:$0xff]
    %v6272 = vld [vmem:[#allocation17 + $0xae4] sm:$0xff]
    %v6273 = vld [vmem:[#allocation17 + $0xaec] sm:$0xf]
    %v6274 = vld [vmem:[#allocation17 + $0xaf0] sm:$0xff]
    %v6275 = vld [vmem:[#allocation17 + $0xaf8] sm:$0xff]
    %v6276 = vld [vmem:[#allocation17 + $0xb00] sm:$0xff]
    %v6277 = vld [vmem:[#allocation17 + $0xb08] sm:$0xf]
    %v6278 = vld [vmem:[#allocation17 + $0xb0c] sm:$0xff]
    %v6279 = vld [vmem:[#allocation17 + $0xb14] sm:$0xff]
    %v6280 = vld [vmem:[#allocation17 + $0xb1c] sm:$0xff]
    %v6281 = vld [vmem:[#allocation17 + $0xb24] sm:$0xf]
    %v6282 = vld [vmem:[#allocation17 + $0xb28] sm:$0xff]
    %v6283 = vld [vmem:[#allocation17 + $0xb30] sm:$0xff]
    %v6284 = vld [vmem:[#allocation17 + $0xb38] sm:$0xff]
    %v6285 = vld [vmem:[#allocation17 + $0xb40] sm:$0xf]
    %v6286 = vld [vmem:[#allocation17 + $0xb44] sm:$0xff]
    %v6287 = vld [vmem:[#allocation17 + $0xb4c] sm:$0xff]
    %v6288 = vld [vmem:[#allocation17 + $0xb54] sm:$0xff]
    %v6289 = vld [vmem:[#allocation17 + $0xb5c] sm:$0xf]
    %v6290 = vld [vmem:[#allocation17 + $0xb60] sm:$0xff]
    %v6291 = vld [vmem:[#allocation17 + $0xb68] sm:$0xff]
    %v6292 = vld [vmem:[#allocation17 + $0xb70] sm:$0xff]
    %v6293 = vld [vmem:[#allocation17 + $0xb78] sm:$0xf]
    %v6294 = vld [vmem:[#allocation17 + $0xb7c] sm:$0xff]
    %v6295 = vld [vmem:[#allocation17 + $0xb84] sm:$0xff]
    %v6296 = vld [vmem:[#allocation17 + $0xb8c] sm:$0xff]
    %v6297 = vld [vmem:[#allocation17 + $0xb94] sm:$0xf]
    %v6298 = vld [vmem:[#allocation17 + $0xb98] sm:$0xff]
    %v6299 = vld [vmem:[#allocation17 + $0xba0] sm:$0xff]
    %v6300 = vld [vmem:[#allocation17 + $0xba8] sm:$0xff]
    %v6301 = vld [vmem:[#allocation17 + $0xbb0] sm:$0xf]
    %v6302 = vld [vmem:[#allocation17 + $0xbb4] sm:$0xff]
    %v6303 = vld [vmem:[#allocation17 + $0xbbc] sm:$0xff]
    %v6304 = vld [vmem:[#allocation17 + $0xbc4] sm:$0xff]
    %v6305 = vld [vmem:[#allocation17 + $0xbcc] sm:$0xf]
    %v6306 = vld [vmem:[#allocation17 + $0xbd0] sm:$0xff]
    %v6307 = vld [vmem:[#allocation17 + $0xbd8] sm:$0xff]
    %v6308 = vld [vmem:[#allocation17 + $0xbe0] sm:$0xff]
    %v6309 = vld [vmem:[#allocation17 + $0xbe8] sm:$0xf]
    %v6310 = vld [vmem:[#allocation17 + $0xbec] sm:$0xff]
    %v6311 = vld [vmem:[#allocation17 + $0xbf4] sm:$0xff]
    %v6312 = vld [vmem:[#allocation17 + $0xbfc] sm:$0xff]
    %v6313 = vld [vmem:[#allocation17 + $0xc04] sm:$0xf]
    %v6314 = vld [vmem:[#allocation17 + $0xc08] sm:$0xff]
    %v6315 = vld [vmem:[#allocation17 + $0xc10] sm:$0xff]
    %v6316 = vld [vmem:[#allocation17 + $0xc18] sm:$0xff]
    %v6317 = vld [vmem:[#allocation17 + $0xc20] sm:$0xf]
    %v6318 = vld [vmem:[#allocation17 + $0xc24] sm:$0xff]
    %v6319 = vld [vmem:[#allocation17 + $0xc2c] sm:$0xff]
    %v6320 = vld [vmem:[#allocation17 + $0xc34] sm:$0xff]
    %v6321 = vld [vmem:[#allocation17 + $0xc3c] sm:$0xf]
    %v6322 = vld [vmem:[#allocation17 + $0xc40] sm:$0xff]
    %v6323 = vld [vmem:[#allocation17 + $0xc48] sm:$0xff]
    %v6324 = vld [vmem:[#allocation17 + $0xc50] sm:$0xff]
    %v6325 = vld [vmem:[#allocation17 + $0xc58] sm:$0xf]
    %v6326 = vld [vmem:[#allocation17 + $0xc5c] sm:$0xff]
    %v6327 = vld [vmem:[#allocation17 + $0xc64] sm:$0xff]
    %v6328 = vld [vmem:[#allocation17 + $0xc6c] sm:$0xff]
    %v6329 = vld [vmem:[#allocation17 + $0xc74] sm:$0xf]
    %v6330 = vld [vmem:[#allocation17 + $0xc78] sm:$0xff]
    %v6331 = vld [vmem:[#allocation17 + $0xc80] sm:$0xff]
    %v6332 = vld [vmem:[#allocation17 + $0xc88] sm:$0xff]
    %v6333 = vld [vmem:[#allocation17 + $0xc90] sm:$0xf]
    %v6334 = vld [vmem:[#allocation17 + $0xc94] sm:$0xff]
    %v6335 = vld [vmem:[#allocation17 + $0xc9c] sm:$0xff]
    %v6336 = vld [vmem:[#allocation17 + $0xca4] sm:$0xff]
    %v6337 = vld [vmem:[#allocation17 + $0xcac] sm:$0xf]
    %v6338 = vld [vmem:[#allocation17 + $0xcb0] sm:$0xff]
    %v6339 = vld [vmem:[#allocation17 + $0xcb8] sm:$0xff]
    %v6340 = vld [vmem:[#allocation17 + $0xcc0] sm:$0xff]
    %v6341 = vld [vmem:[#allocation17 + $0xcc8] sm:$0xf]
    %v6342 = vld [vmem:[#allocation17 + $0xccc] sm:$0xff]
    %v6343 = vld [vmem:[#allocation17 + $0xcd4] sm:$0xff]
    %v6344 = vld [vmem:[#allocation17 + $0xcdc] sm:$0xff]
    %v6345 = vld [vmem:[#allocation17 + $0xce4] sm:$0xf]
    %v6346 = vld [vmem:[#allocation17 + $0xce8] sm:$0xff]
    %v6347 = vld [vmem:[#allocation17 + $0xcf0] sm:$0xff]
    %v6348 = vld [vmem:[#allocation17 + $0xcf8] sm:$0xff]
    %v6349 = vld [vmem:[#allocation17 + $0xd00] sm:$0xf]
    %v6350 = vld [vmem:[#allocation17 + $0xd04] sm:$0xff]
    %v6351 = vld [vmem:[#allocation17 + $0xd0c] sm:$0xff]
    %v6352 = vld [vmem:[#allocation17 + $0xd14] sm:$0xff]
    %v6353 = vld [vmem:[#allocation17 + $0xd1c] sm:$0xf]
    %v6354 = vld [vmem:[#allocation17 + $0xd20] sm:$0xff]
    %v6355 = vld [vmem:[#allocation17 + $0xd28] sm:$0xff]
    %v6356 = vld [vmem:[#allocation17 + $0xd30] sm:$0xff]
    %v6357 = vld [vmem:[#allocation17 + $0xd38] sm:$0xf]
    %v6358 = vld [vmem:[#allocation17 + $0xd3c] sm:$0xff]
    %v6359 = vld [vmem:[#allocation17 + $0xd44] sm:$0xff]
    %v6360 = vld [vmem:[#allocation17 + $0xd4c] sm:$0xff]
    %v6361 = vld [vmem:[#allocation17 + $0xd54] sm:$0xf]
    %v6362 = vld [vmem:[#allocation17 + $0xd58] sm:$0xff]
    %v6363 = vld [vmem:[#allocation17 + $0xd60] sm:$0xff]
    %v6364 = vld [vmem:[#allocation17 + $0xd68] sm:$0xff]
    %v6365 = vld [vmem:[#allocation17 + $0xd70] sm:$0xf]
    %v6366 = vld [vmem:[#allocation17 + $0xd74] sm:$0xff]
    %v6367 = vld [vmem:[#allocation17 + $0xd7c] sm:$0xff]
    %v6368 = vld [vmem:[#allocation17 + $0xd84] sm:$0xff]
    %v6369 = vld [vmem:[#allocation17 + $0xd8c] sm:$0xf]
    %v6370 = vld [vmem:[#allocation17 + $0xd90] sm:$0xff]
    %v6371 = vld [vmem:[#allocation17 + $0xd98] sm:$0xff]
    %v6372 = vld [vmem:[#allocation17 + $0xda0] sm:$0xff]
    %v6373 = vld [vmem:[#allocation17 + $0xda8] sm:$0xf]
    %v6374 = vld [vmem:[#allocation17 + $0xdac] sm:$0xff]
    %v6375 = vld [vmem:[#allocation17 + $0xdb4] sm:$0xff]
    %v6376 = vld [vmem:[#allocation17 + $0xdbc] sm:$0xff]
    %v6377 = vld [vmem:[#allocation17 + $0xdc4] sm:$0xf]
    %v6378 = vld [vmem:[#allocation17 + $0xdc8] sm:$0xff]
    %v6379 = vld [vmem:[#allocation17 + $0xdd0] sm:$0xff]
    %v6380 = vld [vmem:[#allocation17 + $0xdd8] sm:$0xff]
    %v6381 = vld [vmem:[#allocation17 + $0xde0] sm:$0xf]
    %v6382 = vld [vmem:[#allocation17 + $0xde4] sm:$0xff]
    %v6383 = vld [vmem:[#allocation17 + $0xdec] sm:$0xff]
    %v6384 = vld [vmem:[#allocation17 + $0xdf4] sm:$0xff]
    %v6385 = vld [vmem:[#allocation17 + $0xdfc] sm:$0xf]
    %v6386 = vld [vmem:[#allocation19] sm:$0xff]
    %v6388 = vlaneseq
    %v6389 = vshrl.u32 %v6388, 7
    %v6390 = vsub.s32 0, %v6389
    %v6391 = vrot.slane %v6386, %v6390
    %v6392 = vlaneseq
    %v6393 = vshrl.u32 %v6392, 7
    %v6394 = vsub.s32 1, %v6393
    %v6395 = vrot.slane %v6386, %v6394
    %v6396 = vlaneseq
    %v6397 = vshrl.u32 %v6396, 7
    %v6398 = vsub.s32 2, %v6397
    %v6399 = vrot.slane %v6386, %v6398
    %v6400 = vlaneseq
    %v6401 = vshrl.u32 %v6400, 7
    %v6402 = vsub.s32 3, %v6401
    %v6403 = vrot.slane %v6386, %v6402
    %v6404 = vlaneseq
    %v6405 = vshrl.u32 %v6404, 7
    %v6406 = vsub.s32 4, %v6405
    %v6407 = vrot.slane %v6386, %v6406
    %v6408 = vlaneseq
    %v6409 = vshrl.u32 %v6408, 7
    %v6410 = vsub.s32 5, %v6409
    %v6411 = vrot.slane %v6386, %v6410
    %v6412 = vlaneseq
    %v6413 = vshrl.u32 %v6412, 7
    %v6414 = vsub.s32 6, %v6413
    %v6415 = vrot.slane %v6386, %v6414
    %v6935 = vunpack.c.l.b16 %v5874
    %v6936 = vunpack.c.h.b16 %v5874
    %v6937 = vunpack.c.l.b16 %v5875
    %v6938 = vunpack.c.h.b16 %v5875
    %v6939 = vunpack.c.l.b16 %v5876
    %v6940 = vunpack.c.h.b16 %v5876
    %v6941 = vunpack.c.l.b16 %v5877
    %v6942 = vunpack.c.l.b16 %v5878
    %v6943 = vunpack.c.h.b16 %v5878
    %v6944 = vunpack.c.l.b16 %v5879
    %v6945 = vunpack.c.h.b16 %v5879
    %v6946 = vunpack.c.l.b16 %v5880
    %v6947 = vunpack.c.h.b16 %v5880
    %v6948 = vunpack.c.l.b16 %v5881
    %v6949 = vunpack.c.l.b16 %v5882
    %v6950 = vunpack.c.h.b16 %v5882
    %v6951 = vunpack.c.l.b16 %v5883
    %v6952 = vunpack.c.h.b16 %v5883
    %v6953 = vunpack.c.l.b16 %v5884
    %v6954 = vunpack.c.h.b16 %v5884
    %v6955 = vunpack.c.l.b16 %v5885
    %v6956 = vunpack.c.l.b16 %v5886
    %v6957 = vunpack.c.h.b16 %v5886
    %v6958 = vunpack.c.l.b16 %v5887
    %v6959 = vunpack.c.h.b16 %v5887
    %v6960 = vunpack.c.l.b16 %v5888
    %v6961 = vunpack.c.h.b16 %v5888
    %v6962 = vunpack.c.l.b16 %v5889
    %v6963 = vunpack.c.l.b16 %v5890
    %v6964 = vunpack.c.h.b16 %v5890
    %v6965 = vunpack.c.l.b16 %v5891
    %v6966 = vunpack.c.h.b16 %v5891
    %v6967 = vunpack.c.l.b16 %v5892
    %v6968 = vunpack.c.h.b16 %v5892
    %v6969 = vunpack.c.l.b16 %v5893
    %v6970 = vunpack.c.l.b16 %v5894
    %v6971 = vunpack.c.h.b16 %v5894
    %v6972 = vunpack.c.l.b16 %v5895
    %v6973 = vunpack.c.h.b16 %v5895
    %v6974 = vunpack.c.l.b16 %v5896
    %v6975 = vunpack.c.h.b16 %v5896
    %v6976 = vunpack.c.l.b16 %v5897
    %v6977 = vunpack.c.l.b16 %v5898
    %v6978 = vunpack.c.h.b16 %v5898
    %v6979 = vunpack.c.l.b16 %v5899
    %v6980 = vunpack.c.h.b16 %v5899
    %v6981 = vunpack.c.l.b16 %v5900
    %v6982 = vunpack.c.h.b16 %v5900
    %v6983 = vunpack.c.l.b16 %v5901
    %v6984 = vunpack.c.l.b16 %v5902
    %v6985 = vunpack.c.h.b16 %v5902
    %v6986 = vunpack.c.l.b16 %v5903
    %v6987 = vunpack.c.h.b16 %v5903
    %v6988 = vunpack.c.l.b16 %v5904
    %v6989 = vunpack.c.h.b16 %v5904
    %v6990 = vunpack.c.l.b16 %v5905
    %v6991 = vunpack.c.l.b16 %v5906
    %v6992 = vunpack.c.h.b16 %v5906
    %v6993 = vunpack.c.l.b16 %v5907
    %v6994 = vunpack.c.h.b16 %v5907
    %v6995 = vunpack.c.l.b16 %v5908
    %v6996 = vunpack.c.h.b16 %v5908
    %v6997 = vunpack.c.l.b16 %v5909
    %v6998 = vunpack.c.l.b16 %v5910
    %v6999 = vunpack.c.h.b16 %v5910
    %v7000 = vunpack.c.l.b16 %v5911
    %v7001 = vunpack.c.h.b16 %v5911
    %v7002 = vunpack.c.l.b16 %v5912
    %v7003 = vunpack.c.h.b16 %v5912
    %v7004 = vunpack.c.l.b16 %v5913
    %v7005 = vunpack.c.l.b16 %v5914
    %v7006 = vunpack.c.h.b16 %v5914
    %v7007 = vunpack.c.l.b16 %v5915
    %v7008 = vunpack.c.h.b16 %v5915
    %v7009 = vunpack.c.l.b16 %v5916
    %v7010 = vunpack.c.h.b16 %v5916
    %v7011 = vunpack.c.l.b16 %v5917
    %v7012 = vunpack.c.l.b16 %v5918
    %v7013 = vunpack.c.h.b16 %v5918
    %v7014 = vunpack.c.l.b16 %v5919
    %v7015 = vunpack.c.h.b16 %v5919
    %v7016 = vunpack.c.l.b16 %v5920
    %v7017 = vunpack.c.h.b16 %v5920
    %v7018 = vunpack.c.l.b16 %v5921
    %v7019 = vunpack.c.l.b16 %v5922
    %v7020 = vunpack.c.h.b16 %v5922
    %v7021 = vunpack.c.l.b16 %v5923
    %v7022 = vunpack.c.h.b16 %v5923
    %v7023 = vunpack.c.l.b16 %v5924
    %v7024 = vunpack.c.h.b16 %v5924
    %v7025 = vunpack.c.l.b16 %v5925
    %v7026 = vunpack.c.l.b16 %v5926
    %v7027 = vunpack.c.h.b16 %v5926
    %v7028 = vunpack.c.l.b16 %v5927
    %v7029 = vunpack.c.h.b16 %v5927
    %v7030 = vunpack.c.l.b16 %v5928
    %v7031 = vunpack.c.h.b16 %v5928
    %v7032 = vunpack.c.l.b16 %v5929
    %v7033 = vunpack.c.l.b16 %v5930
    %v7034 = vunpack.c.h.b16 %v5930
    %v7035 = vunpack.c.l.b16 %v5931
    %v7036 = vunpack.c.h.b16 %v5931
    %v7037 = vunpack.c.l.b16 %v5932
    %v7038 = vunpack.c.h.b16 %v5932
    %v7039 = vunpack.c.l.b16 %v5933
    %v7040 = vunpack.c.l.b16 %v5934
    %v7041 = vunpack.c.h.b16 %v5934
    %v7042 = vunpack.c.l.b16 %v5935
    %v7043 = vunpack.c.h.b16 %v5935
    %v7044 = vunpack.c.l.b16 %v5936
    %v7045 = vunpack.c.h.b16 %v5936
    %v7046 = vunpack.c.l.b16 %v5937
    %v7047 = vunpack.c.l.b16 %v5938
    %v7048 = vunpack.c.h.b16 %v5938
    %v7049 = vunpack.c.l.b16 %v5939
    %v7050 = vunpack.c.h.b16 %v5939
    %v7051 = vunpack.c.l.b16 %v5940
    %v7052 = vunpack.c.h.b16 %v5940
    %v7053 = vunpack.c.l.b16 %v5941
    %v7054 = vunpack.c.l.b16 %v5942
    %v7055 = vunpack.c.h.b16 %v5942
    %v7056 = vunpack.c.l.b16 %v5943
    %v7057 = vunpack.c.h.b16 %v5943
    %v7058 = vunpack.c.l.b16 %v5944
    %v7059 = vunpack.c.h.b16 %v5944
    %v7060 = vunpack.c.l.b16 %v5945
    %v7061 = vunpack.c.l.b16 %v5946
    %v7062 = vunpack.c.h.b16 %v5946
    %v7063 = vunpack.c.l.b16 %v5947
    %v7064 = vunpack.c.h.b16 %v5947
    %v7065 = vunpack.c.l.b16 %v5948
    %v7066 = vunpack.c.h.b16 %v5948
    %v7067 = vunpack.c.l.b16 %v5949
    %v7068 = vunpack.c.l.b16 %v5950
    %v7069 = vunpack.c.h.b16 %v5950
    %v7070 = vunpack.c.l.b16 %v5951
    %v7071 = vunpack.c.h.b16 %v5951
    %v7072 = vunpack.c.l.b16 %v5952
    %v7073 = vunpack.c.h.b16 %v5952
    %v7074 = vunpack.c.l.b16 %v5953
    %v7075 = vunpack.c.l.b16 %v5954
    %v7076 = vunpack.c.h.b16 %v5954
    %v7077 = vunpack.c.l.b16 %v5955
    %v7078 = vunpack.c.h.b16 %v5955
    %v7079 = vunpack.c.l.b16 %v5956
    %v7080 = vunpack.c.h.b16 %v5956
    %v7081 = vunpack.c.l.b16 %v5957
    %v7082 = vunpack.c.l.b16 %v5958
    %v7083 = vunpack.c.h.b16 %v5958
    %v7084 = vunpack.c.l.b16 %v5959
    %v7085 = vunpack.c.h.b16 %v5959
    %v7086 = vunpack.c.l.b16 %v5960
    %v7087 = vunpack.c.h.b16 %v5960
    %v7088 = vunpack.c.l.b16 %v5961
    %v7089 = vunpack.c.l.b16 %v5962
    %v7090 = vunpack.c.h.b16 %v5962
    %v7091 = vunpack.c.l.b16 %v5963
    %v7092 = vunpack.c.h.b16 %v5963
    %v7093 = vunpack.c.l.b16 %v5964
    %v7094 = vunpack.c.h.b16 %v5964
    %v7095 = vunpack.c.l.b16 %v5965
    %v7096 = vunpack.c.l.b16 %v5966
    %v7097 = vunpack.c.h.b16 %v5966
    %v7098 = vunpack.c.l.b16 %v5967
    %v7099 = vunpack.c.h.b16 %v5967
    %v7100 = vunpack.c.l.b16 %v5968
    %v7101 = vunpack.c.h.b16 %v5968
    %v7102 = vunpack.c.l.b16 %v5969
    %v7103 = vunpack.c.l.b16 %v5970
    %v7104 = vunpack.c.h.b16 %v5970
    %v7105 = vunpack.c.l.b16 %v5971
    %v7106 = vunpack.c.h.b16 %v5971
    %v7107 = vunpack.c.l.b16 %v5972
    %v7108 = vunpack.c.h.b16 %v5972
    %v7109 = vunpack.c.l.b16 %v5973
    %v7110 = vunpack.c.l.b16 %v5974
    %v7111 = vunpack.c.h.b16 %v5974
    %v7112 = vunpack.c.l.b16 %v5975
    %v7113 = vunpack.c.h.b16 %v5975
    %v7114 = vunpack.c.l.b16 %v5976
    %v7115 = vunpack.c.h.b16 %v5976
    %v7116 = vunpack.c.l.b16 %v5977
    %v7117 = vunpack.c.l.b16 %v5978
    %v7118 = vunpack.c.h.b16 %v5978
    %v7119 = vunpack.c.l.b16 %v5979
    %v7120 = vunpack.c.h.b16 %v5979
    %v7121 = vunpack.c.l.b16 %v5980
    %v7122 = vunpack.c.h.b16 %v5980
    %v7123 = vunpack.c.l.b16 %v5981
    %v7124 = vunpack.c.l.b16 %v5982
    %v7125 = vunpack.c.h.b16 %v5982
    %v7126 = vunpack.c.l.b16 %v5983
    %v7127 = vunpack.c.h.b16 %v5983
    %v7128 = vunpack.c.l.b16 %v5984
    %v7129 = vunpack.c.h.b16 %v5984
    %v7130 = vunpack.c.l.b16 %v5985
    %v7131 = vunpack.c.l.b16 %v5986
    %v7132 = vunpack.c.h.b16 %v5986
    %v7133 = vunpack.c.l.b16 %v5987
    %v7134 = vunpack.c.h.b16 %v5987
    %v7135 = vunpack.c.l.b16 %v5988
    %v7136 = vunpack.c.h.b16 %v5988
    %v7137 = vunpack.c.l.b16 %v5989
    %v7138 = vunpack.c.l.b16 %v5990
    %v7139 = vunpack.c.h.b16 %v5990
    %v7140 = vunpack.c.l.b16 %v5991
    %v7141 = vunpack.c.h.b16 %v5991
    %v7142 = vunpack.c.l.b16 %v5992
    %v7143 = vunpack.c.h.b16 %v5992
    %v7144 = vunpack.c.l.b16 %v5993
    %v7145 = vunpack.c.l.b16 %v5994
    %v7146 = vunpack.c.h.b16 %v5994
    %v7147 = vunpack.c.l.b16 %v5995
    %v7148 = vunpack.c.h.b16 %v5995
    %v7149 = vunpack.c.l.b16 %v5996
    %v7150 = vunpack.c.h.b16 %v5996
    %v7151 = vunpack.c.l.b16 %v5997
    %v7152 = vunpack.c.l.b16 %v5998
    %v7153 = vunpack.c.h.b16 %v5998
    %v7154 = vunpack.c.l.b16 %v5999
    %v7155 = vunpack.c.h.b16 %v5999
    %v7156 = vunpack.c.l.b16 %v6000
    %v7157 = vunpack.c.h.b16 %v6000
    %v7158 = vunpack.c.l.b16 %v6001
    %v7159 = vunpack.c.l.b16 %v6002
    %v7160 = vunpack.c.h.b16 %v6002
    %v7161 = vunpack.c.l.b16 %v6003
    %v7162 = vunpack.c.h.b16 %v6003
    %v7163 = vunpack.c.l.b16 %v6004
    %v7164 = vunpack.c.h.b16 %v6004
    %v7165 = vunpack.c.l.b16 %v6005
    %v7166 = vunpack.c.l.b16 %v6006
    %v7167 = vunpack.c.h.b16 %v6006
    %v7168 = vunpack.c.l.b16 %v6007
    %v7169 = vunpack.c.h.b16 %v6007
    %v7170 = vunpack.c.l.b16 %v6008
    %v7171 = vunpack.c.h.b16 %v6008
    %v7172 = vunpack.c.l.b16 %v6009
    %v7173 = vunpack.c.l.b16 %v6010
    %v7174 = vunpack.c.h.b16 %v6010
    %v7175 = vunpack.c.l.b16 %v6011
    %v7176 = vunpack.c.h.b16 %v6011
    %v7177 = vunpack.c.l.b16 %v6012
    %v7178 = vunpack.c.h.b16 %v6012
    %v7179 = vunpack.c.l.b16 %v6013
    %v7180 = vunpack.c.l.b16 %v6014
    %v7181 = vunpack.c.h.b16 %v6014
    %v7182 = vunpack.c.l.b16 %v6015
    %v7183 = vunpack.c.h.b16 %v6015
    %v7184 = vunpack.c.l.b16 %v6016
    %v7185 = vunpack.c.h.b16 %v6016
    %v7186 = vunpack.c.l.b16 %v6017
    %v7187 = vunpack.c.l.b16 %v6018
    %v7188 = vunpack.c.h.b16 %v6018
    %v7189 = vunpack.c.l.b16 %v6019
    %v7190 = vunpack.c.h.b16 %v6019
    %v7191 = vunpack.c.l.b16 %v6020
    %v7192 = vunpack.c.h.b16 %v6020
    %v7193 = vunpack.c.l.b16 %v6021
    %v7194 = vunpack.c.l.b16 %v6022
    %v7195 = vunpack.c.h.b16 %v6022
    %v7196 = vunpack.c.l.b16 %v6023
    %v7197 = vunpack.c.h.b16 %v6023
    %v7198 = vunpack.c.l.b16 %v6024
    %v7199 = vunpack.c.h.b16 %v6024
    %v7200 = vunpack.c.l.b16 %v6025
    %v7201 = vunpack.c.l.b16 %v6026
    %v7202 = vunpack.c.h.b16 %v6026
    %v7203 = vunpack.c.l.b16 %v6027
    %v7204 = vunpack.c.h.b16 %v6027
    %v7205 = vunpack.c.l.b16 %v6028
    %v7206 = vunpack.c.h.b16 %v6028
    %v7207 = vunpack.c.l.b16 %v6029
    %v7208 = vunpack.c.l.b16 %v6030
    %v7209 = vunpack.c.h.b16 %v6030
    %v7210 = vunpack.c.l.b16 %v6031
    %v7211 = vunpack.c.h.b16 %v6031
    %v7212 = vunpack.c.l.b16 %v6032
    %v7213 = vunpack.c.h.b16 %v6032
    %v7214 = vunpack.c.l.b16 %v6033
    %v7215 = vunpack.c.l.b16 %v6034
    %v7216 = vunpack.c.h.b16 %v6034
    %v7217 = vunpack.c.l.b16 %v6035
    %v7218 = vunpack.c.h.b16 %v6035
    %v7219 = vunpack.c.l.b16 %v6036
    %v7220 = vunpack.c.h.b16 %v6036
    %v7221 = vunpack.c.l.b16 %v6037
    %v7222 = vunpack.c.l.b16 %v6038
    %v7223 = vunpack.c.h.b16 %v6038
    %v7224 = vunpack.c.l.b16 %v6039
    %v7225 = vunpack.c.h.b16 %v6039
    %v7226 = vunpack.c.l.b16 %v6040
    %v7227 = vunpack.c.h.b16 %v6040
    %v7228 = vunpack.c.l.b16 %v6041
    %v7229 = vunpack.c.l.b16 %v6042
    %v7230 = vunpack.c.h.b16 %v6042
    %v7231 = vunpack.c.l.b16 %v6043
    %v7232 = vunpack.c.h.b16 %v6043
    %v7233 = vunpack.c.l.b16 %v6044
    %v7234 = vunpack.c.h.b16 %v6044
    %v7235 = vunpack.c.l.b16 %v6045
    %v7236 = vunpack.c.l.b16 %v6046
    %v7237 = vunpack.c.h.b16 %v6046
    %v7238 = vunpack.c.l.b16 %v6047
    %v7239 = vunpack.c.h.b16 %v6047
    %v7240 = vunpack.c.l.b16 %v6048
    %v7241 = vunpack.c.h.b16 %v6048
    %v7242 = vunpack.c.l.b16 %v6049
    %v7243 = vunpack.c.l.b16 %v6050
    %v7244 = vunpack.c.h.b16 %v6050
    %v7245 = vunpack.c.l.b16 %v6051
    %v7246 = vunpack.c.h.b16 %v6051
    %v7247 = vunpack.c.l.b16 %v6052
    %v7248 = vunpack.c.h.b16 %v6052
    %v7249 = vunpack.c.l.b16 %v6053
    %v7250 = vunpack.c.l.b16 %v6054
    %v7251 = vunpack.c.h.b16 %v6054
    %v7252 = vunpack.c.l.b16 %v6055
    %v7253 = vunpack.c.h.b16 %v6055
    %v7254 = vunpack.c.l.b16 %v6056
    %v7255 = vunpack.c.h.b16 %v6056
    %v7256 = vunpack.c.l.b16 %v6057
    %v7257 = vunpack.c.l.b16 %v6058
    %v7258 = vunpack.c.h.b16 %v6058
    %v7259 = vunpack.c.l.b16 %v6059
    %v7260 = vunpack.c.h.b16 %v6059
    %v7261 = vunpack.c.l.b16 %v6060
    %v7262 = vunpack.c.h.b16 %v6060
    %v7263 = vunpack.c.l.b16 %v6061
    %v7264 = vunpack.c.l.b16 %v6062
    %v7265 = vunpack.c.h.b16 %v6062
    %v7266 = vunpack.c.l.b16 %v6063
    %v7267 = vunpack.c.h.b16 %v6063
    %v7268 = vunpack.c.l.b16 %v6064
    %v7269 = vunpack.c.h.b16 %v6064
    %v7270 = vunpack.c.l.b16 %v6065
    %v7271 = vunpack.c.l.b16 %v6066
    %v7272 = vunpack.c.h.b16 %v6066
    %v7273 = vunpack.c.l.b16 %v6067
    %v7274 = vunpack.c.h.b16 %v6067
    %v7275 = vunpack.c.l.b16 %v6068
    %v7276 = vunpack.c.h.b16 %v6068
    %v7277 = vunpack.c.l.b16 %v6069
    %v7278 = vunpack.c.l.b16 %v6070
    %v7279 = vunpack.c.h.b16 %v6070
    %v7280 = vunpack.c.l.b16 %v6071
    %v7281 = vunpack.c.h.b16 %v6071
    %v7282 = vunpack.c.l.b16 %v6072
    %v7283 = vunpack.c.h.b16 %v6072
    %v7284 = vunpack.c.l.b16 %v6073
    %v7285 = vunpack.c.l.b16 %v6074
    %v7286 = vunpack.c.h.b16 %v6074
    %v7287 = vunpack.c.l.b16 %v6075
    %v7288 = vunpack.c.h.b16 %v6075
    %v7289 = vunpack.c.l.b16 %v6076
    %v7290 = vunpack.c.h.b16 %v6076
    %v7291 = vunpack.c.l.b16 %v6077
    %v7292 = vunpack.c.l.b16 %v6078
    %v7293 = vunpack.c.h.b16 %v6078
    %v7294 = vunpack.c.l.b16 %v6079
    %v7295 = vunpack.c.h.b16 %v6079
    %v7296 = vunpack.c.l.b16 %v6080
    %v7297 = vunpack.c.h.b16 %v6080
    %v7298 = vunpack.c.l.b16 %v6081
    %v7299 = vunpack.c.l.b16 %v6082
    %v7300 = vunpack.c.h.b16 %v6082
    %v7301 = vunpack.c.l.b16 %v6083
    %v7302 = vunpack.c.h.b16 %v6083
    %v7303 = vunpack.c.l.b16 %v6084
    %v7304 = vunpack.c.h.b16 %v6084
    %v7305 = vunpack.c.l.b16 %v6085
    %v7306 = vunpack.c.l.b16 %v6086
    %v7307 = vunpack.c.h.b16 %v6086
    %v7308 = vunpack.c.l.b16 %v6087
    %v7309 = vunpack.c.h.b16 %v6087
    %v7310 = vunpack.c.l.b16 %v6088
    %v7311 = vunpack.c.h.b16 %v6088
    %v7312 = vunpack.c.l.b16 %v6089
    %v7313 = vunpack.c.l.b16 %v6090
    %v7314 = vunpack.c.h.b16 %v6090
    %v7315 = vunpack.c.l.b16 %v6091
    %v7316 = vunpack.c.h.b16 %v6091
    %v7317 = vunpack.c.l.b16 %v6092
    %v7318 = vunpack.c.h.b16 %v6092
    %v7319 = vunpack.c.l.b16 %v6093
    %v7320 = vunpack.c.l.b16 %v6094
    %v7321 = vunpack.c.h.b16 %v6094
    %v7322 = vunpack.c.l.b16 %v6095
    %v7323 = vunpack.c.h.b16 %v6095
    %v7324 = vunpack.c.l.b16 %v6096
    %v7325 = vunpack.c.h.b16 %v6096
    %v7326 = vunpack.c.l.b16 %v6097
    %v7327 = vunpack.c.l.b16 %v6098
    %v7328 = vunpack.c.h.b16 %v6098
    %v7329 = vunpack.c.l.b16 %v6099
    %v7330 = vunpack.c.h.b16 %v6099
    %v7331 = vunpack.c.l.b16 %v6100
    %v7332 = vunpack.c.h.b16 %v6100
    %v7333 = vunpack.c.l.b16 %v6101
    %v7334 = vunpack.c.l.b16 %v6102
    %v7335 = vunpack.c.h.b16 %v6102
    %v7336 = vunpack.c.l.b16 %v6103
    %v7337 = vunpack.c.h.b16 %v6103
    %v7338 = vunpack.c.l.b16 %v6104
    %v7339 = vunpack.c.h.b16 %v6104
    %v7340 = vunpack.c.l.b16 %v6105
    %v7341 = vunpack.c.l.b16 %v6106
    %v7342 = vunpack.c.h.b16 %v6106
    %v7343 = vunpack.c.l.b16 %v6107
    %v7344 = vunpack.c.h.b16 %v6107
    %v7345 = vunpack.c.l.b16 %v6108
    %v7346 = vunpack.c.h.b16 %v6108
    %v7347 = vunpack.c.l.b16 %v6109
    %v7348 = vunpack.c.l.b16 %v6110
    %v7349 = vunpack.c.h.b16 %v6110
    %v7350 = vunpack.c.l.b16 %v6111
    %v7351 = vunpack.c.h.b16 %v6111
    %v7352 = vunpack.c.l.b16 %v6112
    %v7353 = vunpack.c.h.b16 %v6112
    %v7354 = vunpack.c.l.b16 %v6113
    %v7355 = vunpack.c.l.b16 %v6114
    %v7356 = vunpack.c.h.b16 %v6114
    %v7357 = vunpack.c.l.b16 %v6115
    %v7358 = vunpack.c.h.b16 %v6115
    %v7359 = vunpack.c.l.b16 %v6116
    %v7360 = vunpack.c.h.b16 %v6116
    %v7361 = vunpack.c.l.b16 %v6117
    %v7362 = vunpack.c.l.b16 %v6118
    %v7363 = vunpack.c.h.b16 %v6118
    %v7364 = vunpack.c.l.b16 %v6119
    %v7365 = vunpack.c.h.b16 %v6119
    %v7366 = vunpack.c.l.b16 %v6120
    %v7367 = vunpack.c.h.b16 %v6120
    %v7368 = vunpack.c.l.b16 %v6121
    %v7369 = vunpack.c.l.b16 %v6122
    %v7370 = vunpack.c.h.b16 %v6122
    %v7371 = vunpack.c.l.b16 %v6123
    %v7372 = vunpack.c.h.b16 %v6123
    %v7373 = vunpack.c.l.b16 %v6124
    %v7374 = vunpack.c.h.b16 %v6124
    %v7375 = vunpack.c.l.b16 %v6125
    %v7376 = vunpack.c.l.b16 %v6126
    %v7377 = vunpack.c.h.b16 %v6126
    %v7378 = vunpack.c.l.b16 %v6127
    %v7379 = vunpack.c.h.b16 %v6127
    %v7380 = vunpack.c.l.b16 %v6128
    %v7381 = vunpack.c.h.b16 %v6128
    %v7382 = vunpack.c.l.b16 %v6129
    %v7383 = vunpack.c.l.b16 %v6130
    %v7384 = vunpack.c.h.b16 %v6130
    %v7385 = vunpack.c.l.b16 %v6131
    %v7386 = vunpack.c.h.b16 %v6131
    %v7387 = vunpack.c.l.b16 %v6132
    %v7388 = vunpack.c.h.b16 %v6132
    %v7389 = vunpack.c.l.b16 %v6133
    %v7390 = vunpack.c.l.b16 %v6134
    %v7391 = vunpack.c.h.b16 %v6134
    %v7392 = vunpack.c.l.b16 %v6135
    %v7393 = vunpack.c.h.b16 %v6135
    %v7394 = vunpack.c.l.b16 %v6136
    %v7395 = vunpack.c.h.b16 %v6136
    %v7396 = vunpack.c.l.b16 %v6137
    %v7397 = vunpack.c.l.b16 %v6138
    %v7398 = vunpack.c.h.b16 %v6138
    %v7399 = vunpack.c.l.b16 %v6139
    %v7400 = vunpack.c.h.b16 %v6139
    %v7401 = vunpack.c.l.b16 %v6140
    %v7402 = vunpack.c.h.b16 %v6140
    %v7403 = vunpack.c.l.b16 %v6141
    %v7404 = vunpack.c.l.b16 %v6142
    %v7405 = vunpack.c.h.b16 %v6142
    %v7406 = vunpack.c.l.b16 %v6143
    %v7407 = vunpack.c.h.b16 %v6143
    %v7408 = vunpack.c.l.b16 %v6144
    %v7409 = vunpack.c.h.b16 %v6144
    %v7410 = vunpack.c.l.b16 %v6145
    %v7411 = vunpack.c.l.b16 %v6146
    %v7412 = vunpack.c.h.b16 %v6146
    %v7413 = vunpack.c.l.b16 %v6147
    %v7414 = vunpack.c.h.b16 %v6147
    %v7415 = vunpack.c.l.b16 %v6148
    %v7416 = vunpack.c.h.b16 %v6148
    %v7417 = vunpack.c.l.b16 %v6149
    %v7418 = vunpack.c.l.b16 %v6150
    %v7419 = vunpack.c.h.b16 %v6150
    %v7420 = vunpack.c.l.b16 %v6151
    %v7421 = vunpack.c.h.b16 %v6151
    %v7422 = vunpack.c.l.b16 %v6152
    %v7423 = vunpack.c.h.b16 %v6152
    %v7424 = vunpack.c.l.b16 %v6153
    %v7425 = vunpack.c.l.b16 %v6154
    %v7426 = vunpack.c.h.b16 %v6154
    %v7427 = vunpack.c.l.b16 %v6155
    %v7428 = vunpack.c.h.b16 %v6155
    %v7429 = vunpack.c.l.b16 %v6156
    %v7430 = vunpack.c.h.b16 %v6156
    %v7431 = vunpack.c.l.b16 %v6157
    %v7432 = vunpack.c.l.b16 %v6158
    %v7433 = vunpack.c.h.b16 %v6158
    %v7434 = vunpack.c.l.b16 %v6159
    %v7435 = vunpack.c.h.b16 %v6159
    %v7436 = vunpack.c.l.b16 %v6160
    %v7437 = vunpack.c.h.b16 %v6160
    %v7438 = vunpack.c.l.b16 %v6161
    %v7439 = vunpack.c.l.b16 %v6162
    %v7440 = vunpack.c.h.b16 %v6162
    %v7441 = vunpack.c.l.b16 %v6163
    %v7442 = vunpack.c.h.b16 %v6163
    %v7443 = vunpack.c.l.b16 %v6164
    %v7444 = vunpack.c.h.b16 %v6164
    %v7445 = vunpack.c.l.b16 %v6165
    %v7446 = vunpack.c.l.b16 %v6166
    %v7447 = vunpack.c.h.b16 %v6166
    %v7448 = vunpack.c.l.b16 %v6167
    %v7449 = vunpack.c.h.b16 %v6167
    %v7450 = vunpack.c.l.b16 %v6168
    %v7451 = vunpack.c.h.b16 %v6168
    %v7452 = vunpack.c.l.b16 %v6169
    %v7453 = vunpack.c.l.b16 %v6170
    %v7454 = vunpack.c.h.b16 %v6170
    %v7455 = vunpack.c.l.b16 %v6171
    %v7456 = vunpack.c.h.b16 %v6171
    %v7457 = vunpack.c.l.b16 %v6172
    %v7458 = vunpack.c.h.b16 %v6172
    %v7459 = vunpack.c.l.b16 %v6173
    %v7460 = vunpack.c.l.b16 %v6174
    %v7461 = vunpack.c.h.b16 %v6174
    %v7462 = vunpack.c.l.b16 %v6175
    %v7463 = vunpack.c.h.b16 %v6175
    %v7464 = vunpack.c.l.b16 %v6176
    %v7465 = vunpack.c.h.b16 %v6176
    %v7466 = vunpack.c.l.b16 %v6177
    %v7467 = vunpack.c.l.b16 %v6178
    %v7468 = vunpack.c.h.b16 %v6178
    %v7469 = vunpack.c.l.b16 %v6179
    %v7470 = vunpack.c.h.b16 %v6179
    %v7471 = vunpack.c.l.b16 %v6180
    %v7472 = vunpack.c.h.b16 %v6180
    %v7473 = vunpack.c.l.b16 %v6181
    %v7474 = vunpack.c.l.b16 %v6182
    %v7475 = vunpack.c.h.b16 %v6182
    %v7476 = vunpack.c.l.b16 %v6183
    %v7477 = vunpack.c.h.b16 %v6183
    %v7478 = vunpack.c.l.b16 %v6184
    %v7479 = vunpack.c.h.b16 %v6184
    %v7480 = vunpack.c.l.b16 %v6185
    %v7481 = vunpack.c.l.b16 %v6186
    %v7482 = vunpack.c.h.b16 %v6186
    %v7483 = vunpack.c.l.b16 %v6187
    %v7484 = vunpack.c.h.b16 %v6187
    %v7485 = vunpack.c.l.b16 %v6188
    %v7486 = vunpack.c.h.b16 %v6188
    %v7487 = vunpack.c.l.b16 %v6189
    %v7488 = vunpack.c.l.b16 %v6190
    %v7489 = vunpack.c.h.b16 %v6190
    %v7490 = vunpack.c.l.b16 %v6191
    %v7491 = vunpack.c.h.b16 %v6191
    %v7492 = vunpack.c.l.b16 %v6192
    %v7493 = vunpack.c.h.b16 %v6192
    %v7494 = vunpack.c.l.b16 %v6193
    %v7495 = vunpack.c.l.b16 %v6194
    %v7496 = vunpack.c.h.b16 %v6194
    %v7497 = vunpack.c.l.b16 %v6195
    %v7498 = vunpack.c.h.b16 %v6195
    %v7499 = vunpack.c.l.b16 %v6196
    %v7500 = vunpack.c.h.b16 %v6196
    %v7501 = vunpack.c.l.b16 %v6197
    %v7502 = vunpack.c.l.b16 %v6198
    %v7503 = vunpack.c.h.b16 %v6198
    %v7504 = vunpack.c.l.b16 %v6199
    %v7505 = vunpack.c.h.b16 %v6199
    %v7506 = vunpack.c.l.b16 %v6200
    %v7507 = vunpack.c.h.b16 %v6200
    %v7508 = vunpack.c.l.b16 %v6201
    %v7509 = vunpack.c.l.b16 %v6202
    %v7510 = vunpack.c.h.b16 %v6202
    %v7511 = vunpack.c.l.b16 %v6203
    %v7512 = vunpack.c.h.b16 %v6203
    %v7513 = vunpack.c.l.b16 %v6204
    %v7514 = vunpack.c.h.b16 %v6204
    %v7515 = vunpack.c.l.b16 %v6205
    %v7516 = vunpack.c.l.b16 %v6206
    %v7517 = vunpack.c.h.b16 %v6206
    %v7518 = vunpack.c.l.b16 %v6207
    %v7519 = vunpack.c.h.b16 %v6207
    %v7520 = vunpack.c.l.b16 %v6208
    %v7521 = vunpack.c.h.b16 %v6208
    %v7522 = vunpack.c.l.b16 %v6209
    %v7523 = vunpack.c.l.b16 %v6210
    %v7524 = vunpack.c.h.b16 %v6210
    %v7525 = vunpack.c.l.b16 %v6211
    %v7526 = vunpack.c.h.b16 %v6211
    %v7527 = vunpack.c.l.b16 %v6212
    %v7528 = vunpack.c.h.b16 %v6212
    %v7529 = vunpack.c.l.b16 %v6213
    %v7530 = vunpack.c.l.b16 %v6214
    %v7531 = vunpack.c.h.b16 %v6214
    %v7532 = vunpack.c.l.b16 %v6215
    %v7533 = vunpack.c.h.b16 %v6215
    %v7534 = vunpack.c.l.b16 %v6216
    %v7535 = vunpack.c.h.b16 %v6216
    %v7536 = vunpack.c.l.b16 %v6217
    %v7537 = vunpack.c.l.b16 %v6218
    %v7538 = vunpack.c.h.b16 %v6218
    %v7539 = vunpack.c.l.b16 %v6219
    %v7540 = vunpack.c.h.b16 %v6219
    %v7541 = vunpack.c.l.b16 %v6220
    %v7542 = vunpack.c.h.b16 %v6220
    %v7543 = vunpack.c.l.b16 %v6221
    %v7544 = vunpack.c.l.b16 %v6222
    %v7545 = vunpack.c.h.b16 %v6222
    %v7546 = vunpack.c.l.b16 %v6223
    %v7547 = vunpack.c.h.b16 %v6223
    %v7548 = vunpack.c.l.b16 %v6224
    %v7549 = vunpack.c.h.b16 %v6224
    %v7550 = vunpack.c.l.b16 %v6225
    %v7551 = vunpack.c.l.b16 %v6226
    %v7552 = vunpack.c.h.b16 %v6226
    %v7553 = vunpack.c.l.b16 %v6227
    %v7554 = vunpack.c.h.b16 %v6227
    %v7555 = vunpack.c.l.b16 %v6228
    %v7556 = vunpack.c.h.b16 %v6228
    %v7557 = vunpack.c.l.b16 %v6229
    %v7558 = vunpack.c.l.b16 %v6230
    %v7559 = vunpack.c.h.b16 %v6230
    %v7560 = vunpack.c.l.b16 %v6231
    %v7561 = vunpack.c.h.b16 %v6231
    %v7562 = vunpack.c.l.b16 %v6232
    %v7563 = vunpack.c.h.b16 %v6232
    %v7564 = vunpack.c.l.b16 %v6233
    %v7565 = vunpack.c.l.b16 %v6234
    %v7566 = vunpack.c.h.b16 %v6234
    %v7567 = vunpack.c.l.b16 %v6235
    %v7568 = vunpack.c.h.b16 %v6235
    %v7569 = vunpack.c.l.b16 %v6236
    %v7570 = vunpack.c.h.b16 %v6236
    %v7571 = vunpack.c.l.b16 %v6237
    %v7572 = vunpack.c.l.b16 %v6238
    %v7573 = vunpack.c.h.b16 %v6238
    %v7574 = vunpack.c.l.b16 %v6239
    %v7575 = vunpack.c.h.b16 %v6239
    %v7576 = vunpack.c.l.b16 %v6240
    %v7577 = vunpack.c.h.b16 %v6240
    %v7578 = vunpack.c.l.b16 %v6241
    %v7579 = vunpack.c.l.b16 %v6242
    %v7580 = vunpack.c.h.b16 %v6242
    %v7581 = vunpack.c.l.b16 %v6243
    %v7582 = vunpack.c.h.b16 %v6243
    %v7583 = vunpack.c.l.b16 %v6244
    %v7584 = vunpack.c.h.b16 %v6244
    %v7585 = vunpack.c.l.b16 %v6245
    %v7586 = vunpack.c.l.b16 %v6246
    %v7587 = vunpack.c.h.b16 %v6246
    %v7588 = vunpack.c.l.b16 %v6247
    %v7589 = vunpack.c.h.b16 %v6247
    %v7590 = vunpack.c.l.b16 %v6248
    %v7591 = vunpack.c.h.b16 %v6248
    %v7592 = vunpack.c.l.b16 %v6249
    %v7593 = vunpack.c.l.b16 %v6250
    %v7594 = vunpack.c.h.b16 %v6250
    %v7595 = vunpack.c.l.b16 %v6251
    %v7596 = vunpack.c.h.b16 %v6251
    %v7597 = vunpack.c.l.b16 %v6252
    %v7598 = vunpack.c.h.b16 %v6252
    %v7599 = vunpack.c.l.b16 %v6253
    %v7600 = vunpack.c.l.b16 %v6254
    %v7601 = vunpack.c.h.b16 %v6254
    %v7602 = vunpack.c.l.b16 %v6255
    %v7603 = vunpack.c.h.b16 %v6255
    %v7604 = vunpack.c.l.b16 %v6256
    %v7605 = vunpack.c.h.b16 %v6256
    %v7606 = vunpack.c.l.b16 %v6257
    %v7607 = vunpack.c.l.b16 %v6258
    %v7608 = vunpack.c.h.b16 %v6258
    %v7609 = vunpack.c.l.b16 %v6259
    %v7610 = vunpack.c.h.b16 %v6259
    %v7611 = vunpack.c.l.b16 %v6260
    %v7612 = vunpack.c.h.b16 %v6260
    %v7613 = vunpack.c.l.b16 %v6261
    %v7614 = vunpack.c.l.b16 %v6262
    %v7615 = vunpack.c.h.b16 %v6262
    %v7616 = vunpack.c.l.b16 %v6263
    %v7617 = vunpack.c.h.b16 %v6263
    %v7618 = vunpack.c.l.b16 %v6264
    %v7619 = vunpack.c.h.b16 %v6264
    %v7620 = vunpack.c.l.b16 %v6265
    %v7621 = vunpack.c.l.b16 %v6266
    %v7622 = vunpack.c.h.b16 %v6266
    %v7623 = vunpack.c.l.b16 %v6267
    %v7624 = vunpack.c.h.b16 %v6267
    %v7625 = vunpack.c.l.b16 %v6268
    %v7626 = vunpack.c.h.b16 %v6268
    %v7627 = vunpack.c.l.b16 %v6269
    %v7628 = vunpack.c.l.b16 %v6270
    %v7629 = vunpack.c.h.b16 %v6270
    %v7630 = vunpack.c.l.b16 %v6271
    %v7631 = vunpack.c.h.b16 %v6271
    %v7632 = vunpack.c.l.b16 %v6272
    %v7633 = vunpack.c.h.b16 %v6272
    %v7634 = vunpack.c.l.b16 %v6273
    %v7635 = vunpack.c.l.b16 %v6274
    %v7636 = vunpack.c.h.b16 %v6274
    %v7637 = vunpack.c.l.b16 %v6275
    %v7638 = vunpack.c.h.b16 %v6275
    %v7639 = vunpack.c.l.b16 %v6276
    %v7640 = vunpack.c.h.b16 %v6276
    %v7641 = vunpack.c.l.b16 %v6277
    %v7642 = vunpack.c.l.b16 %v6278
    %v7643 = vunpack.c.h.b16 %v6278
    %v7644 = vunpack.c.l.b16 %v6279
    %v7645 = vunpack.c.h.b16 %v6279
    %v7646 = vunpack.c.l.b16 %v6280
    %v7647 = vunpack.c.h.b16 %v6280
    %v7648 = vunpack.c.l.b16 %v6281
    %v7649 = vunpack.c.l.b16 %v6282
    %v7650 = vunpack.c.h.b16 %v6282
    %v7651 = vunpack.c.l.b16 %v6283
    %v7652 = vunpack.c.h.b16 %v6283
    %v7653 = vunpack.c.l.b16 %v6284
    %v7654 = vunpack.c.h.b16 %v6284
    %v7655 = vunpack.c.l.b16 %v6285
    %v7656 = vunpack.c.l.b16 %v6286
    %v7657 = vunpack.c.h.b16 %v6286
    %v7658 = vunpack.c.l.b16 %v6287
    %v7659 = vunpack.c.h.b16 %v6287
    %v7660 = vunpack.c.l.b16 %v6288
    %v7661 = vunpack.c.h.b16 %v6288
    %v7662 = vunpack.c.l.b16 %v6289
    %v7663 = vunpack.c.l.b16 %v6290
    %v7664 = vunpack.c.h.b16 %v6290
    %v7665 = vunpack.c.l.b16 %v6291
    %v7666 = vunpack.c.h.b16 %v6291
    %v7667 = vunpack.c.l.b16 %v6292
    %v7668 = vunpack.c.h.b16 %v6292
    %v7669 = vunpack.c.l.b16 %v6293
    %v7670 = vunpack.c.l.b16 %v6294
    %v7671 = vunpack.c.h.b16 %v6294
    %v7672 = vunpack.c.l.b16 %v6295
    %v7673 = vunpack.c.h.b16 %v6295
    %v7674 = vunpack.c.l.b16 %v6296
    %v7675 = vunpack.c.h.b16 %v6296
    %v7676 = vunpack.c.l.b16 %v6297
    %v7677 = vunpack.c.l.b16 %v6298
    %v7678 = vunpack.c.h.b16 %v6298
    %v7679 = vunpack.c.l.b16 %v6299
    %v7680 = vunpack.c.h.b16 %v6299
    %v7681 = vunpack.c.l.b16 %v6300
    %v7682 = vunpack.c.h.b16 %v6300
    %v7683 = vunpack.c.l.b16 %v6301
    %v7684 = vunpack.c.l.b16 %v6302
    %v7685 = vunpack.c.h.b16 %v6302
    %v7686 = vunpack.c.l.b16 %v6303
    %v7687 = vunpack.c.h.b16 %v6303
    %v7688 = vunpack.c.l.b16 %v6304
    %v7689 = vunpack.c.h.b16 %v6304
    %v7690 = vunpack.c.l.b16 %v6305
    %v7691 = vunpack.c.l.b16 %v6306
    %v7692 = vunpack.c.h.b16 %v6306
    %v7693 = vunpack.c.l.b16 %v6307
    %v7694 = vunpack.c.h.b16 %v6307
    %v7695 = vunpack.c.l.b16 %v6308
    %v7696 = vunpack.c.h.b16 %v6308
    %v7697 = vunpack.c.l.b16 %v6309
    %v7698 = vunpack.c.l.b16 %v6310
    %v7699 = vunpack.c.h.b16 %v6310
    %v7700 = vunpack.c.l.b16 %v6311
    %v7701 = vunpack.c.h.b16 %v6311
    %v7702 = vunpack.c.l.b16 %v6312
    %v7703 = vunpack.c.h.b16 %v6312
    %v7704 = vunpack.c.l.b16 %v6313
    %v7705 = vunpack.c.l.b16 %v6314
    %v7706 = vunpack.c.h.b16 %v6314
    %v7707 = vunpack.c.l.b16 %v6315
    %v7708 = vunpack.c.h.b16 %v6315
    %v7709 = vunpack.c.l.b16 %v6316
    %v7710 = vunpack.c.h.b16 %v6316
    %v7711 = vunpack.c.l.b16 %v6317
    %v7712 = vunpack.c.l.b16 %v6318
    %v7713 = vunpack.c.h.b16 %v6318
    %v7714 = vunpack.c.l.b16 %v6319
    %v7715 = vunpack.c.h.b16 %v6319
    %v7716 = vunpack.c.l.b16 %v6320
    %v7717 = vunpack.c.h.b16 %v6320
    %v7718 = vunpack.c.l.b16 %v6321
    %v7719 = vunpack.c.l.b16 %v6322
    %v7720 = vunpack.c.h.b16 %v6322
    %v7721 = vunpack.c.l.b16 %v6323
    %v7722 = vunpack.c.h.b16 %v6323
    %v7723 = vunpack.c.l.b16 %v6324
    %v7724 = vunpack.c.h.b16 %v6324
    %v7725 = vunpack.c.l.b16 %v6325
    %v7726 = vunpack.c.l.b16 %v6326
    %v7727 = vunpack.c.h.b16 %v6326
    %v7728 = vunpack.c.l.b16 %v6327
    %v7729 = vunpack.c.h.b16 %v6327
    %v7730 = vunpack.c.l.b16 %v6328
    %v7731 = vunpack.c.h.b16 %v6328
    %v7732 = vunpack.c.l.b16 %v6329
    %v7733 = vunpack.c.l.b16 %v6330
    %v7734 = vunpack.c.h.b16 %v6330
    %v7735 = vunpack.c.l.b16 %v6331
    %v7736 = vunpack.c.h.b16 %v6331
    %v7737 = vunpack.c.l.b16 %v6332
    %v7738 = vunpack.c.h.b16 %v6332
    %v7739 = vunpack.c.l.b16 %v6333
    %v7740 = vunpack.c.l.b16 %v6334
    %v7741 = vunpack.c.h.b16 %v6334
    %v7742 = vunpack.c.l.b16 %v6335
    %v7743 = vunpack.c.h.b16 %v6335
    %v7744 = vunpack.c.l.b16 %v6336
    %v7745 = vunpack.c.h.b16 %v6336
    %v7746 = vunpack.c.l.b16 %v6337
    %v7747 = vunpack.c.l.b16 %v6338
    %v7748 = vunpack.c.h.b16 %v6338
    %v7749 = vunpack.c.l.b16 %v6339
    %v7750 = vunpack.c.h.b16 %v6339
    %v7751 = vunpack.c.l.b16 %v6340
    %v7752 = vunpack.c.h.b16 %v6340
    %v7753 = vunpack.c.l.b16 %v6341
    %v7754 = vunpack.c.l.b16 %v6342
    %v7755 = vunpack.c.h.b16 %v6342
    %v7756 = vunpack.c.l.b16 %v6343
    %v7757 = vunpack.c.h.b16 %v6343
    %v7758 = vunpack.c.l.b16 %v6344
    %v7759 = vunpack.c.h.b16 %v6344
    %v7760 = vunpack.c.l.b16 %v6345
    %v7761 = vunpack.c.l.b16 %v6346
    %v7762 = vunpack.c.h.b16 %v6346
    %v7763 = vunpack.c.l.b16 %v6347
    %v7764 = vunpack.c.h.b16 %v6347
    %v7765 = vunpack.c.l.b16 %v6348
    %v7766 = vunpack.c.h.b16 %v6348
    %v7767 = vunpack.c.l.b16 %v6349
    %v7768 = vunpack.c.l.b16 %v6350
    %v7769 = vunpack.c.h.b16 %v6350
    %v7770 = vunpack.c.l.b16 %v6351
    %v7771 = vunpack.c.h.b16 %v6351
    %v7772 = vunpack.c.l.b16 %v6352
    %v7773 = vunpack.c.h.b16 %v6352
    %v7774 = vunpack.c.l.b16 %v6353
    %v7775 = vunpack.c.l.b16 %v6354
    %v7776 = vunpack.c.h.b16 %v6354
    %v7777 = vunpack.c.l.b16 %v6355
    %v7778 = vunpack.c.h.b16 %v6355
    %v7779 = vunpack.c.l.b16 %v6356
    %v7780 = vunpack.c.h.b16 %v6356
    %v7781 = vunpack.c.l.b16 %v6357
    %v7782 = vunpack.c.l.b16 %v6358
    %v7783 = vunpack.c.h.b16 %v6358
    %v7784 = vunpack.c.l.b16 %v6359
    %v7785 = vunpack.c.h.b16 %v6359
    %v7786 = vunpack.c.l.b16 %v6360
    %v7787 = vunpack.c.h.b16 %v6360
    %v7788 = vunpack.c.l.b16 %v6361
    %v7789 = vunpack.c.l.b16 %v6362
    %v7790 = vunpack.c.h.b16 %v6362
    %v7791 = vunpack.c.l.b16 %v6363
    %v7792 = vunpack.c.h.b16 %v6363
    %v7793 = vunpack.c.l.b16 %v6364
    %v7794 = vunpack.c.h.b16 %v6364
    %v7795 = vunpack.c.l.b16 %v6365
    %v7796 = vunpack.c.l.b16 %v6366
    %v7797 = vunpack.c.h.b16 %v6366
    %v7798 = vunpack.c.l.b16 %v6367
    %v7799 = vunpack.c.h.b16 %v6367
    %v7800 = vunpack.c.l.b16 %v6368
    %v7801 = vunpack.c.h.b16 %v6368
    %v7802 = vunpack.c.l.b16 %v6369
    %v7803 = vunpack.c.l.b16 %v6370
    %v7804 = vunpack.c.h.b16 %v6370
    %v7805 = vunpack.c.l.b16 %v6371
    %v7806 = vunpack.c.h.b16 %v6371
    %v7807 = vunpack.c.l.b16 %v6372
    %v7808 = vunpack.c.h.b16 %v6372
    %v7809 = vunpack.c.l.b16 %v6373
    %v7810 = vunpack.c.l.b16 %v6374
    %v7811 = vunpack.c.h.b16 %v6374
    %v7812 = vunpack.c.l.b16 %v6375
    %v7813 = vunpack.c.h.b16 %v6375
    %v7814 = vunpack.c.l.b16 %v6376
    %v7815 = vunpack.c.h.b16 %v6376
    %v7816 = vunpack.c.l.b16 %v6377
    %v7817 = vunpack.c.l.b16 %v6378
    %v7818 = vunpack.c.h.b16 %v6378
    %v7819 = vunpack.c.l.b16 %v6379
    %v7820 = vunpack.c.h.b16 %v6379
    %v7821 = vunpack.c.l.b16 %v6380
    %v7822 = vunpack.c.h.b16 %v6380
    %v7823 = vunpack.c.l.b16 %v6381
    %v7824 = vunpack.c.l.b16 %v6382
    %v7825 = vunpack.c.h.b16 %v6382
    %v7826 = vunpack.c.l.b16 %v6383
    %v7827 = vunpack.c.h.b16 %v6383
    %v7828 = vunpack.c.l.b16 %v6384
    %v7829 = vunpack.c.h.b16 %v6384
    %v7830 = vunpack.c.l.b16 %v6385
    %v7831 = vpack.c.b16 %v6942, %v6935
    %v7832 = vpack.c.b16 %v6943, %v6936
    %v7833 = vpack.c.b16 %v6944, %v6937
    %v7834 = vpack.c.b16 %v6945, %v6938
    %v7835 = vpack.c.b16 %v6946, %v6939
    %v7836 = vpack.c.b16 %v6947, %v6940
    %v7837 = vpack.c.b16 %v6948, %v6941
    %v7838 = vpack.c.b16 %v6956, %v6949
    %v7839 = vpack.c.b16 %v6957, %v6950
    %v7840 = vpack.c.b16 %v6958, %v6951
    %v7841 = vpack.c.b16 %v6959, %v6952
    %v7842 = vpack.c.b16 %v6960, %v6953
    %v7843 = vpack.c.b16 %v6961, %v6954
    %v7844 = vpack.c.b16 %v6962, %v6955
    %v7845 = vpack.c.b16 %v6970, %v6963
    %v7846 = vpack.c.b16 %v6971, %v6964
    %v7847 = vpack.c.b16 %v6972, %v6965
    %v7848 = vpack.c.b16 %v6973, %v6966
    %v7849 = vpack.c.b16 %v6974, %v6967
    %v7850 = vpack.c.b16 %v6975, %v6968
    %v7851 = vpack.c.b16 %v6976, %v6969
    %v7852 = vpack.c.b16 %v6984, %v6977
    %v7853 = vpack.c.b16 %v6985, %v6978
    %v7854 = vpack.c.b16 %v6986, %v6979
    %v7855 = vpack.c.b16 %v6987, %v6980
    %v7856 = vpack.c.b16 %v6988, %v6981
    %v7857 = vpack.c.b16 %v6989, %v6982
    %v7858 = vpack.c.b16 %v6990, %v6983
    %v7859 = vpack.c.b16 %v6998, %v6991
    %v7860 = vpack.c.b16 %v6999, %v6992
    %v7861 = vpack.c.b16 %v7000, %v6993
    %v7862 = vpack.c.b16 %v7001, %v6994
    %v7863 = vpack.c.b16 %v7002, %v6995
    %v7864 = vpack.c.b16 %v7003, %v6996
    %v7865 = vpack.c.b16 %v7004, %v6997
    %v7866 = vpack.c.b16 %v7012, %v7005
    %v7867 = vpack.c.b16 %v7013, %v7006
    %v7868 = vpack.c.b16 %v7014, %v7007
    %v7869 = vpack.c.b16 %v7015, %v7008
    %v7870 = vpack.c.b16 %v7016, %v7009
    %v7871 = vpack.c.b16 %v7017, %v7010
    %v7872 = vpack.c.b16 %v7018, %v7011
    %v7873 = vpack.c.b16 %v7026, %v7019
    %v7874 = vpack.c.b16 %v7027, %v7020
    %v7875 = vpack.c.b16 %v7028, %v7021
    %v7876 = vpack.c.b16 %v7029, %v7022
    %v7877 = vpack.c.b16 %v7030, %v7023
    %v7878 = vpack.c.b16 %v7031, %v7024
    %v7879 = vpack.c.b16 %v7032, %v7025
    %v7880 = vpack.c.b16 %v7040, %v7033
    %v7881 = vpack.c.b16 %v7041, %v7034
    %v7882 = vpack.c.b16 %v7042, %v7035
    %v7883 = vpack.c.b16 %v7043, %v7036
    %v7884 = vpack.c.b16 %v7044, %v7037
    %v7885 = vpack.c.b16 %v7045, %v7038
    %v7886 = vpack.c.b16 %v7046, %v7039
    %v7887 = vpack.c.b16 %v7054, %v7047
    %v7888 = vpack.c.b16 %v7055, %v7048
    %v7889 = vpack.c.b16 %v7056, %v7049
    %v7890 = vpack.c.b16 %v7057, %v7050
    %v7891 = vpack.c.b16 %v7058, %v7051
    %v7892 = vpack.c.b16 %v7059, %v7052
    %v7893 = vpack.c.b16 %v7060, %v7053
    %v7894 = vpack.c.b16 %v7068, %v7061
    %v7895 = vpack.c.b16 %v7069, %v7062
    %v7896 = vpack.c.b16 %v7070, %v7063
    %v7897 = vpack.c.b16 %v7071, %v7064
    %v7898 = vpack.c.b16 %v7072, %v7065
    %v7899 = vpack.c.b16 %v7073, %v7066
    %v7900 = vpack.c.b16 %v7074, %v7067
    %v7901 = vpack.c.b16 %v7082, %v7075
    %v7902 = vpack.c.b16 %v7083, %v7076
    %v7903 = vpack.c.b16 %v7084, %v7077
    %v7904 = vpack.c.b16 %v7085, %v7078
    %v7905 = vpack.c.b16 %v7086, %v7079
    %v7906 = vpack.c.b16 %v7087, %v7080
    %v7907 = vpack.c.b16 %v7088, %v7081
    %v7908 = vpack.c.b16 %v7096, %v7089
    %v7909 = vpack.c.b16 %v7097, %v7090
    %v7910 = vpack.c.b16 %v7098, %v7091
    %v7911 = vpack.c.b16 %v7099, %v7092
    %v7912 = vpack.c.b16 %v7100, %v7093
    %v7913 = vpack.c.b16 %v7101, %v7094
    %v7914 = vpack.c.b16 %v7102, %v7095
    %v7915 = vpack.c.b16 %v7110, %v7103
    %v7916 = vpack.c.b16 %v7111, %v7104
    %v7917 = vpack.c.b16 %v7112, %v7105
    %v7918 = vpack.c.b16 %v7113, %v7106
    %v7919 = vpack.c.b16 %v7114, %v7107
    %v7920 = vpack.c.b16 %v7115, %v7108
    %v7921 = vpack.c.b16 %v7116, %v7109
    %v7922 = vpack.c.b16 %v7124, %v7117
    %v7923 = vpack.c.b16 %v7125, %v7118
    %v7924 = vpack.c.b16 %v7126, %v7119
    %v7925 = vpack.c.b16 %v7127, %v7120
    %v7926 = vpack.c.b16 %v7128, %v7121
    %v7927 = vpack.c.b16 %v7129, %v7122
    %v7928 = vpack.c.b16 %v7130, %v7123
    %v7929 = vpack.c.b16 %v7138, %v7131
    %v7930 = vpack.c.b16 %v7139, %v7132
    %v7931 = vpack.c.b16 %v7140, %v7133
    %v7932 = vpack.c.b16 %v7141, %v7134
    %v7933 = vpack.c.b16 %v7142, %v7135
    %v7934 = vpack.c.b16 %v7143, %v7136
    %v7935 = vpack.c.b16 %v7144, %v7137
    %v7936 = vpack.c.b16 %v7152, %v7145
    %v7937 = vpack.c.b16 %v7153, %v7146
    %v7938 = vpack.c.b16 %v7154, %v7147
    %v7939 = vpack.c.b16 %v7155, %v7148
    %v7940 = vpack.c.b16 %v7156, %v7149
    %v7941 = vpack.c.b16 %v7157, %v7150
    %v7942 = vpack.c.b16 %v7158, %v7151
    %v7943 = vpack.c.b16 %v7166, %v7159
    %v7944 = vpack.c.b16 %v7167, %v7160
    %v7945 = vpack.c.b16 %v7168, %v7161
    %v7946 = vpack.c.b16 %v7169, %v7162
    %v7947 = vpack.c.b16 %v7170, %v7163
    %v7948 = vpack.c.b16 %v7171, %v7164
    %v7949 = vpack.c.b16 %v7172, %v7165
    %v7950 = vpack.c.b16 %v7180, %v7173
    %v7951 = vpack.c.b16 %v7181, %v7174
    %v7952 = vpack.c.b16 %v7182, %v7175
    %v7953 = vpack.c.b16 %v7183, %v7176
    %v7954 = vpack.c.b16 %v7184, %v7177
    %v7955 = vpack.c.b16 %v7185, %v7178
    %v7956 = vpack.c.b16 %v7186, %v7179
    %v7957 = vpack.c.b16 %v7194, %v7187
    %v7958 = vpack.c.b16 %v7195, %v7188
    %v7959 = vpack.c.b16 %v7196, %v7189
    %v7960 = vpack.c.b16 %v7197, %v7190
    %v7961 = vpack.c.b16 %v7198, %v7191
    %v7962 = vpack.c.b16 %v7199, %v7192
    %v7963 = vpack.c.b16 %v7200, %v7193
    %v7964 = vpack.c.b16 %v7208, %v7201
    %v7965 = vpack.c.b16 %v7209, %v7202
    %v7966 = vpack.c.b16 %v7210, %v7203
    %v7967 = vpack.c.b16 %v7211, %v7204
    %v7968 = vpack.c.b16 %v7212, %v7205
    %v7969 = vpack.c.b16 %v7213, %v7206
    %v7970 = vpack.c.b16 %v7214, %v7207
    %v7971 = vpack.c.b16 %v7222, %v7215
    %v7972 = vpack.c.b16 %v7223, %v7216
    %v7973 = vpack.c.b16 %v7224, %v7217
    %v7974 = vpack.c.b16 %v7225, %v7218
    %v7975 = vpack.c.b16 %v7226, %v7219
    %v7976 = vpack.c.b16 %v7227, %v7220
    %v7977 = vpack.c.b16 %v7228, %v7221
    %v7978 = vpack.c.b16 %v7236, %v7229
    %v7979 = vpack.c.b16 %v7237, %v7230
    %v7980 = vpack.c.b16 %v7238, %v7231
    %v7981 = vpack.c.b16 %v7239, %v7232
    %v7982 = vpack.c.b16 %v7240, %v7233
    %v7983 = vpack.c.b16 %v7241, %v7234
    %v7984 = vpack.c.b16 %v7242, %v7235
    %v7985 = vpack.c.b16 %v7250, %v7243
    %v7986 = vpack.c.b16 %v7251, %v7244
    %v7987 = vpack.c.b16 %v7252, %v7245
    %v7988 = vpack.c.b16 %v7253, %v7246
    %v7989 = vpack.c.b16 %v7254, %v7247
    %v7990 = vpack.c.b16 %v7255, %v7248
    %v7991 = vpack.c.b16 %v7256, %v7249
    %v7992 = vpack.c.b16 %v7264, %v7257
    %v7993 = vpack.c.b16 %v7265, %v7258
    %v7994 = vpack.c.b16 %v7266, %v7259
    %v7995 = vpack.c.b16 %v7267, %v7260
    %v7996 = vpack.c.b16 %v7268, %v7261
    %v7997 = vpack.c.b16 %v7269, %v7262
    %v7998 = vpack.c.b16 %v7270, %v7263
    %v7999 = vpack.c.b16 %v7278, %v7271
    %v8000 = vpack.c.b16 %v7279, %v7272
    %v8001 = vpack.c.b16 %v7280, %v7273
    %v8002 = vpack.c.b16 %v7281, %v7274
    %v8003 = vpack.c.b16 %v7282, %v7275
    %v8004 = vpack.c.b16 %v7283, %v7276
    %v8005 = vpack.c.b16 %v7284, %v7277
    %v8006 = vpack.c.b16 %v7292, %v7285
    %v8007 = vpack.c.b16 %v7293, %v7286
    %v8008 = vpack.c.b16 %v7294, %v7287
    %v8009 = vpack.c.b16 %v7295, %v7288
    %v8010 = vpack.c.b16 %v7296, %v7289
    %v8011 = vpack.c.b16 %v7297, %v7290
    %v8012 = vpack.c.b16 %v7298, %v7291
    %v8013 = vpack.c.b16 %v7306, %v7299
    %v8014 = vpack.c.b16 %v7307, %v7300
    %v8015 = vpack.c.b16 %v7308, %v7301
    %v8016 = vpack.c.b16 %v7309, %v7302
    %v8017 = vpack.c.b16 %v7310, %v7303
    %v8018 = vpack.c.b16 %v7311, %v7304
    %v8019 = vpack.c.b16 %v7312, %v7305
    %v8020 = vpack.c.b16 %v7320, %v7313
    %v8021 = vpack.c.b16 %v7321, %v7314
    %v8022 = vpack.c.b16 %v7322, %v7315
    %v8023 = vpack.c.b16 %v7323, %v7316
    %v8024 = vpack.c.b16 %v7324, %v7317
    %v8025 = vpack.c.b16 %v7325, %v7318
    %v8026 = vpack.c.b16 %v7326, %v7319
    %v8027 = vpack.c.b16 %v7334, %v7327
    %v8028 = vpack.c.b16 %v7335, %v7328
    %v8029 = vpack.c.b16 %v7336, %v7329
    %v8030 = vpack.c.b16 %v7337, %v7330
    %v8031 = vpack.c.b16 %v7338, %v7331
    %v8032 = vpack.c.b16 %v7339, %v7332
    %v8033 = vpack.c.b16 %v7340, %v7333
    %v8034 = vpack.c.b16 %v7348, %v7341
    %v8035 = vpack.c.b16 %v7349, %v7342
    %v8036 = vpack.c.b16 %v7350, %v7343
    %v8037 = vpack.c.b16 %v7351, %v7344
    %v8038 = vpack.c.b16 %v7352, %v7345
    %v8039 = vpack.c.b16 %v7353, %v7346
    %v8040 = vpack.c.b16 %v7354, %v7347
    %v8041 = vpack.c.b16 %v7362, %v7355
    %v8042 = vpack.c.b16 %v7363, %v7356
    %v8043 = vpack.c.b16 %v7364, %v7357
    %v8044 = vpack.c.b16 %v7365, %v7358
    %v8045 = vpack.c.b16 %v7366, %v7359
    %v8046 = vpack.c.b16 %v7367, %v7360
    %v8047 = vpack.c.b16 %v7368, %v7361
    %v8048 = vpack.c.b16 %v7376, %v7369
    %v8049 = vpack.c.b16 %v7377, %v7370
    %v8050 = vpack.c.b16 %v7378, %v7371
    %v8051 = vpack.c.b16 %v7379, %v7372
    %v8052 = vpack.c.b16 %v7380, %v7373
    %v8053 = vpack.c.b16 %v7381, %v7374
    %v8054 = vpack.c.b16 %v7382, %v7375
    %v8055 = vpack.c.b16 %v7390, %v7383
    %v8056 = vpack.c.b16 %v7391, %v7384
    %v8057 = vpack.c.b16 %v7392, %v7385
    %v8058 = vpack.c.b16 %v7393, %v7386
    %v8059 = vpack.c.b16 %v7394, %v7387
    %v8060 = vpack.c.b16 %v7395, %v7388
    %v8061 = vpack.c.b16 %v7396, %v7389
    %v8062 = vpack.c.b16 %v7404, %v7397
    %v8063 = vpack.c.b16 %v7405, %v7398
    %v8064 = vpack.c.b16 %v7406, %v7399
    %v8065 = vpack.c.b16 %v7407, %v7400
    %v8066 = vpack.c.b16 %v7408, %v7401
    %v8067 = vpack.c.b16 %v7409, %v7402
    %v8068 = vpack.c.b16 %v7410, %v7403
    %v8069 = vpack.c.b16 %v7418, %v7411
    %v8070 = vpack.c.b16 %v7419, %v7412
    %v8071 = vpack.c.b16 %v7420, %v7413
    %v8072 = vpack.c.b16 %v7421, %v7414
    %v8073 = vpack.c.b16 %v7422, %v7415
    %v8074 = vpack.c.b16 %v7423, %v7416
    %v8075 = vpack.c.b16 %v7424, %v7417
    %v8076 = vpack.c.b16 %v7432, %v7425
    %v8077 = vpack.c.b16 %v7433, %v7426
    %v8078 = vpack.c.b16 %v7434, %v7427
    %v8079 = vpack.c.b16 %v7435, %v7428
    %v8080 = vpack.c.b16 %v7436, %v7429
    %v8081 = vpack.c.b16 %v7437, %v7430
    %v8082 = vpack.c.b16 %v7438, %v7431
    %v8083 = vpack.c.b16 %v7446, %v7439
    %v8084 = vpack.c.b16 %v7447, %v7440
    %v8085 = vpack.c.b16 %v7448, %v7441
    %v8086 = vpack.c.b16 %v7449, %v7442
    %v8087 = vpack.c.b16 %v7450, %v7443
    %v8088 = vpack.c.b16 %v7451, %v7444
    %v8089 = vpack.c.b16 %v7452, %v7445
    %v8090 = vpack.c.b16 %v7460, %v7453
    %v8091 = vpack.c.b16 %v7461, %v7454
    %v8092 = vpack.c.b16 %v7462, %v7455
    %v8093 = vpack.c.b16 %v7463, %v7456
    %v8094 = vpack.c.b16 %v7464, %v7457
    %v8095 = vpack.c.b16 %v7465, %v7458
    %v8096 = vpack.c.b16 %v7466, %v7459
    %v8097 = vpack.c.b16 %v7474, %v7467
    %v8098 = vpack.c.b16 %v7475, %v7468
    %v8099 = vpack.c.b16 %v7476, %v7469
    %v8100 = vpack.c.b16 %v7477, %v7470
    %v8101 = vpack.c.b16 %v7478, %v7471
    %v8102 = vpack.c.b16 %v7479, %v7472
    %v8103 = vpack.c.b16 %v7480, %v7473
    %v8104 = vpack.c.b16 %v7488, %v7481
    %v8105 = vpack.c.b16 %v7489, %v7482
    %v8106 = vpack.c.b16 %v7490, %v7483
    %v8107 = vpack.c.b16 %v7491, %v7484
    %v8108 = vpack.c.b16 %v7492, %v7485
    %v8109 = vpack.c.b16 %v7493, %v7486
    %v8110 = vpack.c.b16 %v7494, %v7487
    %v8111 = vpack.c.b16 %v7502, %v7495
    %v8112 = vpack.c.b16 %v7503, %v7496
    %v8113 = vpack.c.b16 %v7504, %v7497
    %v8114 = vpack.c.b16 %v7505, %v7498
    %v8115 = vpack.c.b16 %v7506, %v7499
    %v8116 = vpack.c.b16 %v7507, %v7500
    %v8117 = vpack.c.b16 %v7508, %v7501
    %v8118 = vpack.c.b16 %v7516, %v7509
    %v8119 = vpack.c.b16 %v7517, %v7510
    %v8120 = vpack.c.b16 %v7518, %v7511
    %v8121 = vpack.c.b16 %v7519, %v7512
    %v8122 = vpack.c.b16 %v7520, %v7513
    %v8123 = vpack.c.b16 %v7521, %v7514
    %v8124 = vpack.c.b16 %v7522, %v7515
    %v8125 = vpack.c.b16 %v7530, %v7523
    %v8126 = vpack.c.b16 %v7531, %v7524
    %v8127 = vpack.c.b16 %v7532, %v7525
    %v8128 = vpack.c.b16 %v7533, %v7526
    %v8129 = vpack.c.b16 %v7534, %v7527
    %v8130 = vpack.c.b16 %v7535, %v7528
    %v8131 = vpack.c.b16 %v7536, %v7529
    %v8132 = vpack.c.b16 %v7544, %v7537
    %v8133 = vpack.c.b16 %v7545, %v7538
    %v8134 = vpack.c.b16 %v7546, %v7539
    %v8135 = vpack.c.b16 %v7547, %v7540
    %v8136 = vpack.c.b16 %v7548, %v7541
    %v8137 = vpack.c.b16 %v7549, %v7542
    %v8138 = vpack.c.b16 %v7550, %v7543
    %v8139 = vpack.c.b16 %v7558, %v7551
    %v8140 = vpack.c.b16 %v7559, %v7552
    %v8141 = vpack.c.b16 %v7560, %v7553
    %v8142 = vpack.c.b16 %v7561, %v7554
    %v8143 = vpack.c.b16 %v7562, %v7555
    %v8144 = vpack.c.b16 %v7563, %v7556
    %v8145 = vpack.c.b16 %v7564, %v7557
    %v8146 = vpack.c.b16 %v7572, %v7565
    %v8147 = vpack.c.b16 %v7573, %v7566
    %v8148 = vpack.c.b16 %v7574, %v7567
    %v8149 = vpack.c.b16 %v7575, %v7568
    %v8150 = vpack.c.b16 %v7576, %v7569
    %v8151 = vpack.c.b16 %v7577, %v7570
    %v8152 = vpack.c.b16 %v7578, %v7571
    %v8153 = vpack.c.b16 %v7586, %v7579
    %v8154 = vpack.c.b16 %v7587, %v7580
    %v8155 = vpack.c.b16 %v7588, %v7581
    %v8156 = vpack.c.b16 %v7589, %v7582
    %v8157 = vpack.c.b16 %v7590, %v7583
    %v8158 = vpack.c.b16 %v7591, %v7584
    %v8159 = vpack.c.b16 %v7592, %v7585
    %v8160 = vpack.c.b16 %v7600, %v7593
    %v8161 = vpack.c.b16 %v7601, %v7594
    %v8162 = vpack.c.b16 %v7602, %v7595
    %v8163 = vpack.c.b16 %v7603, %v7596
    %v8164 = vpack.c.b16 %v7604, %v7597
    %v8165 = vpack.c.b16 %v7605, %v7598
    %v8166 = vpack.c.b16 %v7606, %v7599
    %v8167 = vpack.c.b16 %v7614, %v7607
    %v8168 = vpack.c.b16 %v7615, %v7608
    %v8169 = vpack.c.b16 %v7616, %v7609
    %v8170 = vpack.c.b16 %v7617, %v7610
    %v8171 = vpack.c.b16 %v7618, %v7611
    %v8172 = vpack.c.b16 %v7619, %v7612
    %v8173 = vpack.c.b16 %v7620, %v7613
    %v8174 = vpack.c.b16 %v7628, %v7621
    %v8175 = vpack.c.b16 %v7629, %v7622
    %v8176 = vpack.c.b16 %v7630, %v7623
    %v8177 = vpack.c.b16 %v7631, %v7624
    %v8178 = vpack.c.b16 %v7632, %v7625
    %v8179 = vpack.c.b16 %v7633, %v7626
    %v8180 = vpack.c.b16 %v7634, %v7627
    %v8181 = vpack.c.b16 %v7642, %v7635
    %v8182 = vpack.c.b16 %v7643, %v7636
    %v8183 = vpack.c.b16 %v7644, %v7637
    %v8184 = vpack.c.b16 %v7645, %v7638
    %v8185 = vpack.c.b16 %v7646, %v7639
    %v8186 = vpack.c.b16 %v7647, %v7640
    %v8187 = vpack.c.b16 %v7648, %v7641
    %v8188 = vpack.c.b16 %v7656, %v7649
    %v8189 = vpack.c.b16 %v7657, %v7650
    %v8190 = vpack.c.b16 %v7658, %v7651
    %v8191 = vpack.c.b16 %v7659, %v7652
    %v8192 = vpack.c.b16 %v7660, %v7653
    %v8193 = vpack.c.b16 %v7661, %v7654
    %v8194 = vpack.c.b16 %v7662, %v7655
    %v8195 = vpack.c.b16 %v7670, %v7663
    %v8196 = vpack.c.b16 %v7671, %v7664
    %v8197 = vpack.c.b16 %v7672, %v7665
    %v8198 = vpack.c.b16 %v7673, %v7666
    %v8199 = vpack.c.b16 %v7674, %v7667
    %v8200 = vpack.c.b16 %v7675, %v7668
    %v8201 = vpack.c.b16 %v7676, %v7669
    %v8202 = vpack.c.b16 %v7684, %v7677
    %v8203 = vpack.c.b16 %v7685, %v7678
    %v8204 = vpack.c.b16 %v7686, %v7679
    %v8205 = vpack.c.b16 %v7687, %v7680
    %v8206 = vpack.c.b16 %v7688, %v7681
    %v8207 = vpack.c.b16 %v7689, %v7682
    %v8208 = vpack.c.b16 %v7690, %v7683
    %v8209 = vpack.c.b16 %v7698, %v7691
    %v8210 = vpack.c.b16 %v7699, %v7692
    %v8211 = vpack.c.b16 %v7700, %v7693
    %v8212 = vpack.c.b16 %v7701, %v7694
    %v8213 = vpack.c.b16 %v7702, %v7695
    %v8214 = vpack.c.b16 %v7703, %v7696
    %v8215 = vpack.c.b16 %v7704, %v7697
    %v8216 = vpack.c.b16 %v7712, %v7705
    %v8217 = vpack.c.b16 %v7713, %v7706
    %v8218 = vpack.c.b16 %v7714, %v7707
    %v8219 = vpack.c.b16 %v7715, %v7708
    %v8220 = vpack.c.b16 %v7716, %v7709
    %v8221 = vpack.c.b16 %v7717, %v7710
    %v8222 = vpack.c.b16 %v7718, %v7711
    %v8223 = vpack.c.b16 %v7726, %v7719
    %v8224 = vpack.c.b16 %v7727, %v7720
    %v8225 = vpack.c.b16 %v7728, %v7721
    %v8226 = vpack.c.b16 %v7729, %v7722
    %v8227 = vpack.c.b16 %v7730, %v7723
    %v8228 = vpack.c.b16 %v7731, %v7724
    %v8229 = vpack.c.b16 %v7732, %v7725
    %v8230 = vpack.c.b16 %v7740, %v7733
    %v8231 = vpack.c.b16 %v7741, %v7734
    %v8232 = vpack.c.b16 %v7742, %v7735
    %v8233 = vpack.c.b16 %v7743, %v7736
    %v8234 = vpack.c.b16 %v7744, %v7737
    %v8235 = vpack.c.b16 %v7745, %v7738
    %v8236 = vpack.c.b16 %v7746, %v7739
    %v8237 = vpack.c.b16 %v7754, %v7747
    %v8238 = vpack.c.b16 %v7755, %v7748
    %v8239 = vpack.c.b16 %v7756, %v7749
    %v8240 = vpack.c.b16 %v7757, %v7750
    %v8241 = vpack.c.b16 %v7758, %v7751
    %v8242 = vpack.c.b16 %v7759, %v7752
    %v8243 = vpack.c.b16 %v7760, %v7753
    %v8244 = vpack.c.b16 %v7768, %v7761
    %v8245 = vpack.c.b16 %v7769, %v7762
    %v8246 = vpack.c.b16 %v7770, %v7763
    %v8247 = vpack.c.b16 %v7771, %v7764
    %v8248 = vpack.c.b16 %v7772, %v7765
    %v8249 = vpack.c.b16 %v7773, %v7766
    %v8250 = vpack.c.b16 %v7774, %v7767
    %v8251 = vpack.c.b16 %v7782, %v7775
    %v8252 = vpack.c.b16 %v7783, %v7776
    %v8253 = vpack.c.b16 %v7784, %v7777
    %v8254 = vpack.c.b16 %v7785, %v7778
    %v8255 = vpack.c.b16 %v7786, %v7779
    %v8256 = vpack.c.b16 %v7787, %v7780
    %v8257 = vpack.c.b16 %v7788, %v7781
    %v8258 = vpack.c.b16 %v7796, %v7789
    %v8259 = vpack.c.b16 %v7797, %v7790
    %v8260 = vpack.c.b16 %v7798, %v7791
    %v8261 = vpack.c.b16 %v7799, %v7792
    %v8262 = vpack.c.b16 %v7800, %v7793
    %v8263 = vpack.c.b16 %v7801, %v7794
    %v8264 = vpack.c.b16 %v7802, %v7795
    %v8265 = vpack.c.b16 %v7810, %v7803
    %v8266 = vpack.c.b16 %v7811, %v7804
    %v8267 = vpack.c.b16 %v7812, %v7805
    %v8268 = vpack.c.b16 %v7813, %v7806
    %v8269 = vpack.c.b16 %v7814, %v7807
    %v8270 = vpack.c.b16 %v7815, %v7808
    %v8271 = vpack.c.b16 %v7816, %v7809
    %v8272 = vpack.c.b16 %v7824, %v7817
    %v8273 = vpack.c.b16 %v7825, %v7818
    %v8274 = vpack.c.b16 %v7826, %v7819
    %v8275 = vpack.c.b16 %v7827, %v7820
    %v8276 = vpack.c.b16 %v7828, %v7821
    %v8277 = vpack.c.b16 %v7829, %v7822
    %v8278 = vpack.c.b16 %v7830, %v7823
    %8727 = vmatprep.subr.bf16.mxu0 %v7832
    %8728 = vmatpush1.bf16.msra.mxu0 %v7831
    %8729 = vmatprep.subr.bf16.mxu0 %v7839
    %8730 = vmatpush1.bf16.msra.mxu0 %v7838
    %8731 = vmatprep.subr.bf16.mxu0 %v7846
    %8732 = vmatpush1.bf16.msra.mxu0 %v7845
    %8733 = vmatprep.subr.bf16.mxu0 %v7853
    %8734 = vmatpush1.bf16.msra.mxu0 %v7852
    %8735 = vmatprep.subr.bf16.mxu0 %v7860
    %8736 = vmatpush1.bf16.msra.mxu0 %v7859
    %8737 = vmatprep.subr.bf16.mxu0 %v7867
    %8738 = vmatpush1.bf16.msra.mxu0 %v7866
    %8739 = vmatprep.subr.bf16.mxu0 %v7874
    %8740 = vmatpush1.bf16.msra.mxu0 %v7873
    %8741 = vmatprep.subr.bf16.mxu0 %v7881
    %8742 = vmatpush1.bf16.msra.mxu0 %v7880
    %8743 = vmatprep.subr.bf16.mxu0 %v7888
    %8744 = vmatpush1.bf16.msra.mxu0 %v7887
    %8745 = vmatprep.subr.bf16.mxu0 %v7895
    %8746 = vmatpush1.bf16.msra.mxu0 %v7894
    %8747 = vmatprep.subr.bf16.mxu0 %v7902
    %8748 = vmatpush1.bf16.msra.mxu0 %v7901
    %8749 = vmatprep.subr.bf16.mxu0 %v7909
    %8750 = vmatpush1.bf16.msra.mxu0 %v7908
    %8751 = vmatprep.subr.bf16.mxu0 %v7916
    %8752 = vmatpush1.bf16.msra.mxu0 %v7915
    %8753 = vmatprep.subr.bf16.mxu0 %v7923
    %8754 = vmatpush1.bf16.msra.mxu0 %v7922
    %8755 = vmatprep.subr.bf16.mxu0 %v7930
    %8756 = vmatpush1.bf16.msra.mxu0 %v7929
    %8757 = vmatprep.subr.bf16.mxu0 %v7937
    %8758 = vmatpush1.bf16.msra.mxu0 %v7936
    %8759 = vmatprep.mubr.bf16.mxu0 %v5747
    %8760 = vmatmul.mubr.bf16.gmra.mrb[0].mxu0 %v5746
    %v8761 = vpop.f32.mrb[0].mxu0
    %v8762 = vadd.f32 %v6391, %v8761
    %v8763 = vpop.f32.mrb[0].mxu0
    %v8764 = vadd.f32 %v6395, %v8763
    %v8765 = vpop.f32.mrb[0].mxu0
    %v8766 = vadd.f32 %v6391, %v8765
    %v8767 = vpop.f32.mrb[0].mxu0
    %v8768 = vadd.f32 %v6395, %v8767
    %8769 = vmatprep.mubr.bf16.mxu0 %v5755
    %8770 = vmatmul.mubr.bf16.gmra.mrb[0].mxu0 %v5754
    %v8771 = vpop.f32.mrb[0].mxu0
    %v8772 = vadd.f32 %v6391, %v8771
    %v8773 = vpop.f32.mrb[0].mxu0
    %v8774 = vadd.f32 %v6395, %v8773
    %v8775 = vpop.f32.mrb[0].mxu0
    %v8776 = vadd.f32 %v6391, %v8775
    %v8777 = vpop.f32.mrb[0].mxu0
    %v8778 = vadd.f32 %v6395, %v8777
    %8779 = vmatprep.mubr.bf16.mxu0 %v5763
    %8780 = vmatmul.mubr.bf16.gmra.mrb[0].mxu0 %v5762
    %v8781 = vpop.f32.mrb[0].mxu0
    %v8782 = vadd.f32 %v6391, %v8781
    %v8783 = vpop.f32.mrb[0].mxu0
    %v8784 = vadd.f32 %v6395, %v8783
    %v8785 = vpop.f32.mrb[0].mxu0
    %v8786 = vadd.f32 %v6391, %v8785
    %v8787 = vpop.f32.mrb[0].mxu0
    %v8788 = vadd.f32 %v6395, %v8787
    %8789 = vmatprep.mubr.bf16.mxu0 %v5771
    %8790 = vmatmul.mubr.bf16.gmra.mrb[0].mxu0 %v5770
    %v8791 = vpop.f32.mrb[0].mxu0
    %v8792 = vadd.f32 %v6391, %v8791
    %v8793 = vpop.f32.mrb[0].mxu0
    %v8794 = vadd.f32 %v6395, %v8793
    %v8795 = vpop.f32.mrb[0].mxu0
    %v8796 = vadd.f32 %v6391, %v8795
    %v8797 = vpop.f32.mrb[0].mxu0
    %v8798 = vadd.f32 %v6395, %v8797
    %8799 = vmatprep.mubr.bf16.mxu0 %v5779
    %8800 = vmatmul.mubr.bf16.gmra.mrb[0].mxu0 %v5778
    %v8801 = vpop.f32.mrb[0].mxu0
    %v8802 = vadd.f32 %v6391, %v8801
    %v8803 = vpop.f32.mrb[0].mxu0
    %v8804 = vadd.f32 %v6395, %v8803
    %v8805 = vpop.f32.mrb[0].mxu0
    %v8806 = vadd.f32 %v6391, %v8805
    %v8807 = vpop.f32.mrb[0].mxu0
    %v8808 = vadd.f32 %v6395, %v8807
    %8809 = vmatprep.mubr.bf16.mxu0 %v5787
    %8810 = vmatmul.mubr.bf16.gmra.mrb[0].mxu0 %v5786
    %v8811 = vpop.f32.mrb[0].mxu0
    %v8812 = vadd.f32 %v6391, %v8811
    %v8813 = vpop.f32.mrb[0].mxu0
    %v8814 = vadd.f32 %v6395, %v8813
    %v8815 = vpop.f32.mrb[0].mxu0
    %v8816 = vadd.f32 %v6391, %v8815
    %v8817 = vpop.f32.mrb[0].mxu0
    %v8818 = vadd.f32 %v6395, %v8817
    %8819 = vmatprep.mubr.bf16.mxu0 %v5795
    %8820 = vmatmul.mubr.bf16.gmra.mrb[0].mxu0 %v5794
    %v8821 = vpop.f32.mrb[0].mxu0
    %v8822 = vadd.f32 %v6391, %v8821
    %v8823 = vpop.f32.mrb[0].mxu0
    %v8824 = vadd.f32 %v6395, %v8823
    %v8825 = vpop.f32.mrb[0].mxu0
    %v8826 = vadd.f32 %v6391, %v8825
    %v8827 = vpop.f32.mrb[0].mxu0
    %v8828 = vadd.f32 %v6395, %v8827
    %8829 = vmatprep.mubr.bf16.mxu0 %v5803
    %8830 = vmatmul.mubr.bf16.gmra.mrb[0].mxu0 %v5802
    %v8831 = vpop.f32.mrb[0].mxu0
    %v8832 = vadd.f32 %v6391, %v8831
    %v8833 = vpop.f32.mrb[0].mxu0
    %v8834 = vadd.f32 %v6395, %v8833
    %v8835 = vpop.f32.mrb[0].mxu0
    %v8836 = vadd.f32 %v6391, %v8835
    %v8837 = vpop.f32.mrb[0].mxu0
    %v8838 = vadd.f32 %v6395, %v8837
    %8839 = vmatprep.mubr.bf16.mxu0 %v5811
    %8840 = vmatmul.mubr.bf16.gmra.mrb[0].mxu0 %v5810
    %v8841 = vpop.f32.mrb[0].mxu0
    %v8842 = vadd.f32 %v6391, %v8841
    %v8843 = vpop.f32.mrb[0].mxu0
    %v8844 = vadd.f32 %v6395, %v8843
    %v8845 = vpop.f32.mrb[0].mxu0
    %v8846 = vadd.f32 %v6391, %v8845
    %v8847 = vpop.f32.mrb[0].mxu0
    %v8848 = vadd.f32 %v6395, %v8847
    %8849 = vmatprep.mubr.bf16.mxu0 %v5819
    %8850 = vmatmul.mubr.bf16.gmra.mrb[0].mxu0 %v5818
    %v8851 = vpop.f32.mrb[0].mxu0
    %v8852 = vadd.f32 %v6391, %v8851
    %v8853 = vpop.f32.mrb[0].mxu0
    %v8854 = vadd.f32 %v6395, %v8853
    %v8855 = vpop.f32.mrb[0].mxu0
    %v8856 = vadd.f32 %v6391, %v8855
    %v8857 = vpop.f32.mrb[0].mxu0
    %v8858 = vadd.f32 %v6395, %v8857
    %8859 = vmatprep.mubr.bf16.mxu0 %v5827
    %8860 = vmatmul.mubr.bf16.gmra.mrb[0].mxu0 %v5826
    %v8861 = vpop.f32.mrb[0].mxu0
    %v8862 = vadd.f32 %v6391, %v8861
    %v8863 = vpop.f32.mrb[0].mxu0
    %v8864 = vadd.f32 %v6395, %v8863
    %v8865 = vpop.f32.mrb[0].mxu0
    %v8866 = vadd.f32 %v6391, %v8865
    %v8867 = vpop.f32.mrb[0].mxu0
    %v8868 = vadd.f32 %v6395, %v8867
    %8869 = vmatprep.mubr.bf16.mxu0 %v5835
    %8870 = vmatmul.mubr.bf16.gmra.mrb[0].mxu0 %v5834
    %v8871 = vpop.f32.mrb[0].mxu0
    %v8872 = vadd.f32 %v6391, %v8871
    %v8873 = vpop.f32.mrb[0].mxu0
    %v8874 = vadd.f32 %v6395, %v8873
    %v8875 = vpop.f32.mrb[0].mxu0
    %v8876 = vadd.f32 %v6391, %v8875
    %v8877 = vpop.f32.mrb[0].mxu0
    %v8878 = vadd.f32 %v6395, %v8877
    %8879 = vmatprep.mubr.bf16.mxu0 %v5843
    %8880 = vmatmul.mubr.bf16.gmra.mrb[0].mxu0 %v5842
    %v8881 = vpop.f32.mrb[0].mxu0
    %v8882 = vadd.f32 %v6391, %v8881
    %v8883 = vpop.f32.mrb[0].mxu0
    %v8884 = vadd.f32 %v6395, %v8883
    %v8885 = vpop.f32.mrb[0].mxu0
    %v8886 = vadd.f32 %v6391, %v8885
    %v8887 = vpop.f32.mrb[0].mxu0
    %v8888 = vadd.f32 %v6395, %v8887
    %8889 = vmatprep.mubr.bf16.mxu0 %v5851
    %8890 = vmatmul.mubr.bf16.gmra.mrb[0].mxu0 %v5850
    %v8891 = vpop.f32.mrb[0].mxu0
    %v8892 = vadd.f32 %v6391, %v8891
    %v8893 = vpop.f32.mrb[0].mxu0
    %v8894 = vadd.f32 %v6395, %v8893
    %v8895 = vpop.f32.mrb[0].mxu0
    %v8896 = vadd.f32 %v6391, %v8895
    %v8897 = vpop.f32.mrb[0].mxu0
    %v8898 = vadd.f32 %v6395, %v8897
    %8899 = vmatprep.mubr.bf16.mxu0 %v5859
    %8900 = vmatmul.mubr.bf16.gmra.mrb[0].mxu0 %v5858
    %v8901 = vpop.f32.mrb[0].mxu0
    %v8902 = vadd.f32 %v6391, %v8901
    %v8903 = vpop.f32.mrb[0].mxu0
    %v8904 = vadd.f32 %v6395, %v8903
    %v8905 = vpop.f32.mrb[0].mxu0
    %v8906 = vadd.f32 %v6391, %v8905
    %v8907 = vpop.f32.mrb[0].mxu0
    %v8908 = vadd.f32 %v6395, %v8907
    %8909 = vmatprep.mubr.bf16.mxu0 %v5867
    %8910 = vmatmul.mubr.bf16.gmra.mrb[0].mxu0 %v5866
    %v8911 = vpop.f32.mrb[0].mxu0
    %v8912 = vadd.f32 %v6391, %v8911
    %v8913 = vpop.f32.mrb[0].mxu0
    %v8914 = vadd.f32 %v6395, %v8913
    %v8915 = vpop.f32.mrb[0].mxu0
    %v8916 = vadd.f32 %v6391, %v8915
    %v8917 = vpop.f32.mrb[0].mxu0
    %v8918 = vadd.f32 %v6395, %v8917
    %8919 = vdwg.mxu0
    %8920 = vmatprep.subr.bf16.mxu0 %v7944
    %8921 = vmatpush1.bf16.msra.mxu0 %v7943
    %8922 = vmatprep.subr.bf16.mxu0 %v7951
    %8923 = vmatpush1.bf16.msra.mxu0 %v7950
    %8924 = vmatprep.subr.bf16.mxu0 %v7958
    %8925 = vmatpush1.bf16.msra.mxu0 %v7957
    %8926 = vmatprep.subr.bf16.mxu0 %v7965
    %8927 = vmatpush1.bf16.msra.mxu0 %v7964
    %8928 = vmatprep.subr.bf16.mxu0 %v7972
    %8929 = vmatpush1.bf16.msra.mxu0 %v7971
    %8930 = vmatprep.subr.bf16.mxu0 %v7979
    %8931 = vmatpush1.bf16.msra.mxu0 %v7978
    %8932 = vmatprep.subr.bf16.mxu0 %v7986
    %8933 = vmatpush1.bf16.msra.mxu0 %v7985
    %8934 = vmatprep.subr.bf16.mxu0 %v7993
    %8935 = vmatpush1.bf16.msra.mxu0 %v7992
    %8936 = vmatprep.subr.bf16.mxu0 %v8000
    %8937 = vmatpush1.bf16.msra.mxu0 %v7999
    %8938 = vmatprep.subr.bf16.mxu0 %v8007
    %8939 = vmatpush1.bf16.msra.mxu0 %v8006
    %8940 = vmatprep.subr.bf16.mxu0 %v8014
    %8941 = vmatpush1.bf16.msra.mxu0 %v8013
    %8942 = vmatprep.subr.bf16.mxu0 %v8021
    %8943 = vmatpush1.bf16.msra.mxu0 %v8020
    %8944 = vmatprep.subr.bf16.mxu0 %v8028
    %8945 = vmatpush1.bf16.msra.mxu0 %v8027
    %8946 = vmatprep.subr.bf16.mxu0 %v8035
    %8947 = vmatpush1.bf16.msra.mxu0 %v8034
    %8948 = vmatprep.subr.bf16.mxu0 %v8042
    %8949 = vmatpush1.bf16.msra.mxu0 %v8041
    %8950 = vmatprep.subr.bf16.mxu0 %v8049
    %8951 = vmatpush1.bf16.msra.mxu0 %v8048
    %8952 = vmatprep.mubr.bf16.mxu0 %v5749
    %8953 = vmatmul.mubr.bf16.gmra.mrb[0].mxu0 %v5748
    %v8954 = vpop.f32.mrb[0].mxu0
    %v8955 = vadd.f32 %v8762, %v8954
    %v8956 = vpop.f32.mrb[0].mxu0
    %v8957 = vadd.f32 %v8764, %v8956
    %v8958 = vpop.f32.mrb[0].mxu0
    %v8959 = vadd.f32 %v8766, %v8958
    %v8960 = vpop.f32.mrb[0].mxu0
    %v8961 = vadd.f32 %v8768, %v8960
    %8962 = vmatprep.mubr.bf16.mxu0 %v5757
    %8963 = vmatmul.mubr.bf16.gmra.mrb[0].mxu0 %v5756
    %v8964 = vpop.f32.mrb[0].mxu0
    %v8965 = vadd.f32 %v8772, %v8964
    %v8966 = vpop.f32.mrb[0].mxu0
    %v8967 = vadd.f32 %v8774, %v8966
    %v8968 = vpop.f32.mrb[0].mxu0
    %v8969 = vadd.f32 %v8776, %v8968
    %v8970 = vpop.f32.mrb[0].mxu0
    %v8971 = vadd.f32 %v8778, %v8970
    %8972 = vmatprep.mubr.bf16.mxu0 %v5765
    %8973 = vmatmul.mubr.bf16.gmra.mrb[0].mxu0 %v5764
    %v8974 = vpop.f32.mrb[0].mxu0
    %v8975 = vadd.f32 %v8782, %v8974
    %v8976 = vpop.f32.mrb[0].mxu0
    %v8977 = vadd.f32 %v8784, %v8976
    %v8978 = vpop.f32.mrb[0].mxu0
    %v8979 = vadd.f32 %v8786, %v8978
    %v8980 = vpop.f32.mrb[0].mxu0
    %v8981 = vadd.f32 %v8788, %v8980
    %8982 = vmatprep.mubr.bf16.mxu0 %v5773
    %8983 = vmatmul.mubr.bf16.gmra.mrb[0].mxu0 %v5772
    %v8984 = vpop.f32.mrb[0].mxu0
    %v8985 = vadd.f32 %v8792, %v8984
    %v8986 = vpop.f32.mrb[0].mxu0
    %v8987 = vadd.f32 %v8794, %v8986
    %v8988 = vpop.f32.mrb[0].mxu0
    %v8989 = vadd.f32 %v8796, %v8988
    %v8990 = vpop.f32.mrb[0].mxu0
    %v8991 = vadd.f32 %v8798, %v8990
    %8992 = vmatprep.mubr.bf16.mxu0 %v5781
    %8993 = vmatmul.mubr.bf16.gmra.mrb[0].mxu0 %v5780
    %v8994 = vpop.f32.mrb[0].mxu0
    %v8995 = vadd.f32 %v8802, %v8994
    %v8996 = vpop.f32.mrb[0].mxu0
    %v8997 = vadd.f32 %v8804, %v8996
    %v8998 = vpop.f32.mrb[0].mxu0
    %v8999 = vadd.f32 %v8806, %v8998
    %v9000 = vpop.f32.mrb[0].mxu0
    %v9001 = vadd.f32 %v8808, %v9000
    %9002 = vmatprep.mubr.bf16.mxu0 %v5789
    %9003 = vmatmul.mubr.bf16.gmra.mrb[0].mxu0 %v5788
    %v9004 = vpop.f32.mrb[0].mxu0
    %v9005 = vadd.f32 %v8812, %v9004
    %v9006 = vpop.f32.mrb[0].mxu0
    %v9007 = vadd.f32 %v8814, %v9006
    %v9008 = vpop.f32.mrb[0].mxu0
    %v9009 = vadd.f32 %v8816, %v9008
    %v9010 = vpop.f32.mrb[0].mxu0
    %v9011 = vadd.f32 %v8818, %v9010
    %9012 = vmatprep.mubr.bf16.mxu0 %v5797
    %9013 = vmatmul.mubr.bf16.gmra.mrb[0].mxu0 %v5796
    %v9014 = vpop.f32.mrb[0].mxu0
    %v9015 = vadd.f32 %v8822, %v9014
    %v9016 = vpop.f32.mrb[0].mxu0
    %v9017 = vadd.f32 %v8824, %v9016
    %v9018 = vpop.f32.mrb[0].mxu0
    %v9019 = vadd.f32 %v8826, %v9018
    %v9020 = vpop.f32.mrb[0].mxu0
    %v9021 = vadd.f32 %v8828, %v9020
    %9022 = vmatprep.mubr.bf16.mxu0 %v5805
    %9023 = vmatmul.mubr.bf16.gmra.mrb[0].mxu0 %v5804
    %v9024 = vpop.f32.mrb[0].mxu0
    %v9025 = vadd.f32 %v8832, %v9024
    %v9026 = vpop.f32.mrb[0].mxu0
    %v9027 = vadd.f32 %v8834, %v9026
    %v9028 = vpop.f32.mrb[0].mxu0
    %v9029 = vadd.f32 %v8836, %v9028
    %v9030 = vpop.f32.mrb[0].mxu0
    %v9031 = vadd.f32 %v8838, %v9030
    %9032 = vmatprep.mubr.bf16.mxu0 %v5813
    %9033 = vmatmul.mubr.bf16.gmra.mrb[0].mxu0 %v5812
    %v9034 = vpop.f32.mrb[0].mxu0
    %v9035 = vadd.f32 %v8842, %v9034
    %v9036 = vpop.f32.mrb[0].mxu0
    %v9037 = vadd.f32 %v8844, %v9036
    %v9038 = vpop.f32.mrb[0].mxu0
    %v9039 = vadd.f32 %v8846, %v9038
    %v9040 = vpop.f32.mrb[0].mxu0
    %v9041 = vadd.f32 %v8848, %v9040
    %9042 = vmatprep.mubr.bf16.mxu0 %v5821
    %9043 = vmatmul.mubr.bf16.gmra.mrb[0].mxu0 %v5820
    %v9044 = vpop.f32.mrb[0].mxu0
    %v9045 = vadd.f32 %v8852, %v9044
    %v9046 = vpop.f32.mrb[0].mxu0
    %v9047 = vadd.f32 %v8854, %v9046
    %v9048 = vpop.f32.mrb[0].mxu0
    %v9049 = vadd.f32 %v8856, %v9048
    %v9050 = vpop.f32.mrb[0].mxu0
    %v9051 = vadd.f32 %v8858, %v9050
    %9052 = vmatprep.mubr.bf16.mxu0 %v5829
    %9053 = vmatmul.mubr.bf16.gmra.mrb[0].mxu0 %v5828
    %v9054 = vpop.f32.mrb[0].mxu0
    %v9055 = vadd.f32 %v8862, %v9054
    %v9056 = vpop.f32.mrb[0].mxu0
    %v9057 = vadd.f32 %v8864, %v9056
    %v9058 = vpop.f32.mrb[0].mxu0
    %v9059 = vadd.f32 %v8866, %v9058
    %v9060 = vpop.f32.mrb[0].mxu0
    %v9061 = vadd.f32 %v8868, %v9060
    %9062 = vmatprep.mubr.bf16.mxu0 %v5837
    %9063 = vmatmul.mubr.bf16.gmra.mrb[0].mxu0 %v5836
    %v9064 = vpop.f32.mrb[0].mxu0
    %v9065 = vadd.f32 %v8872, %v9064
    %v9066 = vpop.f32.mrb[0].mxu0
    %v9067 = vadd.f32 %v8874, %v9066
    %v9068 = vpop.f32.mrb[0].mxu0
    %v9069 = vadd.f32 %v8876, %v9068
    %v9070 = vpop.f32.mrb[0].mxu0
    %v9071 = vadd.f32 %v8878, %v9070
    %9072 = vmatprep.mubr.bf16.mxu0 %v5845
    %9073 = vmatmul.mubr.bf16.gmra.mrb[0].mxu0 %v5844
    %v9074 = vpop.f32.mrb[0].mxu0
    %v9075 = vadd.f32 %v8882, %v9074
    %v9076 = vpop.f32.mrb[0].mxu0
    %v9077 = vadd.f32 %v8884, %v9076
    %v9078 = vpop.f32.mrb[0].mxu0
    %v9079 = vadd.f32 %v8886, %v9078
    %v9080 = vpop.f32.mrb[0].mxu0
    %v9081 = vadd.f32 %v8888, %v9080
    %9082 = vmatprep.mubr.bf16.mxu0 %v5853
    %9083 = vmatmul.mubr.bf16.gmra.mrb[0].mxu0 %v5852
    %v9084 = vpop.f32.mrb[0].mxu0
    %v9085 = vadd.f32 %v8892, %v9084
    %v9086 = vpop.f32.mrb[0].mxu0
    %v9087 = vadd.f32 %v8894, %v9086
    %v9088 = vpop.f32.mrb[0].mxu0
    %v9089 = vadd.f32 %v8896, %v9088
    %v9090 = vpop.f32.mrb[0].mxu0
    %v9091 = vadd.f32 %v8898, %v9090
    %9092 = vmatprep.mubr.bf16.mxu0 %v5861
    %9093 = vmatmul.mubr.bf16.gmra.mrb[0].mxu0 %v5860
    %v9094 = vpop.f32.mrb[0].mxu0
    %v9095 = vadd.f32 %v8902, %v9094
    %v9096 = vpop.f32.mrb[0].mxu0
    %v9097 = vadd.f32 %v8904, %v9096
    %v9098 = vpop.f32.mrb[0].mxu0
    %v9099 = vadd.f32 %v8906, %v9098
    %v9100 = vpop.f32.mrb[0].mxu0
    %v9101 = vadd.f32 %v8908, %v9100
    %9102 = vmatprep.mubr.bf16.mxu0 %v5869
    %9103 = vmatmul.mubr.bf16.gmra.mrb[0].mxu0 %v5868
    %v9104 = vpop.f32.mrb[0].mxu0
    %v9105 = vadd.f32 %v8912, %v9104
    %v9106 = vpop.f32.mrb[0].mxu0
    %v9107 = vadd.f32 %v8914, %v9106
    %v9108 = vpop.f32.mrb[0].mxu0
    %v9109 = vadd.f32 %v8916, %v9108
    %v9110 = vpop.f32.mrb[0].mxu0
    %v9111 = vadd.f32 %v8918, %v9110
    %9112 = vdwg.mxu0
    %9113 = vmatprep.subr.bf16.mxu0 %v8056
    %9114 = vmatpush1.bf16.msra.mxu0 %v8055
    %9115 = vmatprep.subr.bf16.mxu0 %v8063
    %9116 = vmatpush1.bf16.msra.mxu0 %v8062
    %9117 = vmatprep.subr.bf16.mxu0 %v8070
    %9118 = vmatpush1.bf16.msra.mxu0 %v8069
    %9119 = vmatprep.subr.bf16.mxu0 %v8077
    %9120 = vmatpush1.bf16.msra.mxu0 %v8076
    %9121 = vmatprep.subr.bf16.mxu0 %v8084
    %9122 = vmatpush1.bf16.msra.mxu0 %v8083
    %9123 = vmatprep.subr.bf16.mxu0 %v8091
    %9124 = vmatpush1.bf16.msra.mxu0 %v8090
    %9125 = vmatprep.subr.bf16.mxu0 %v8098
    %9126 = vmatpush1.bf16.msra.mxu0 %v8097
    %9127 = vmatprep.subr.bf16.mxu0 %v8105
    %9128 = vmatpush1.bf16.msra.mxu0 %v8104
    %9129 = vmatprep.subr.bf16.mxu0 %v8112
    %9130 = vmatpush1.bf16.msra.mxu0 %v8111
    %9131 = vmatprep.subr.bf16.mxu0 %v8119
    %9132 = vmatpush1.bf16.msra.mxu0 %v8118
    %9133 = vmatprep.subr.bf16.mxu0 %v8126
    %9134 = vmatpush1.bf16.msra.mxu0 %v8125
    %9135 = vmatprep.subr.bf16.mxu0 %v8133
    %9136 = vmatpush1.bf16.msra.mxu0 %v8132
    %9137 = vmatprep.subr.bf16.mxu0 %v8140
    %9138 = vmatpush1.bf16.msra.mxu0 %v8139
    %9139 = vmatprep.subr.bf16.mxu0 %v8147
    %9140 = vmatpush1.bf16.msra.mxu0 %v8146
    %9141 = vmatprep.subr.bf16.mxu0 %v8154
    %9142 = vmatpush1.bf16.msra.mxu0 %v8153
    %9143 = vmatprep.subr.bf16.mxu0 %v8161
    %9144 = vmatpush1.bf16.msra.mxu0 %v8160
    %9145 = vmatprep.mubr.bf16.mxu0 %v5751
    %9146 = vmatmul.mubr.bf16.gmra.mrb[0].mxu0 %v5750
    %v9147 = vpop.f32.mrb[0].mxu0
    %v9148 = vadd.f32 %v8955, %v9147
    %v9149 = vpop.f32.mrb[0].mxu0
    %v9150 = vadd.f32 %v8957, %v9149
    %v9151 = vpop.f32.mrb[0].mxu0
    %v9152 = vadd.f32 %v8959, %v9151
    %v9153 = vpop.f32.mrb[0].mxu0
    %v9154 = vadd.f32 %v8961, %v9153
    %9155 = vmatprep.mubr.bf16.mxu0 %v5759
    %9156 = vmatmul.mubr.bf16.gmra.mrb[0].mxu0 %v5758
    %v9157 = vpop.f32.mrb[0].mxu0
    %v9158 = vadd.f32 %v8965, %v9157
    %v9159 = vpop.f32.mrb[0].mxu0
    %v9160 = vadd.f32 %v8967, %v9159
    %v9161 = vpop.f32.mrb[0].mxu0
    %v9162 = vadd.f32 %v8969, %v9161
    %v9163 = vpop.f32.mrb[0].mxu0
    %v9164 = vadd.f32 %v8971, %v9163
    %9165 = vmatprep.mubr.bf16.mxu0 %v5767
    %9166 = vmatmul.mubr.bf16.gmra.mrb[0].mxu0 %v5766
    %v9167 = vpop.f32.mrb[0].mxu0
    %v9168 = vadd.f32 %v8975, %v9167
    %v9169 = vpop.f32.mrb[0].mxu0
    %v9170 = vadd.f32 %v8977, %v9169
    %v9171 = vpop.f32.mrb[0].mxu0
    %v9172 = vadd.f32 %v8979, %v9171
    %v9173 = vpop.f32.mrb[0].mxu0
    %v9174 = vadd.f32 %v8981, %v9173
    %9175 = vmatprep.mubr.bf16.mxu0 %v5775
    %9176 = vmatmul.mubr.bf16.gmra.mrb[0].mxu0 %v5774
    %v9177 = vpop.f32.mrb[0].mxu0
    %v9178 = vadd.f32 %v8985, %v9177
    %v9179 = vpop.f32.mrb[0].mxu0
    %v9180 = vadd.f32 %v8987, %v9179
    %v9181 = vpop.f32.mrb[0].mxu0
    %v9182 = vadd.f32 %v8989, %v9181
    %v9183 = vpop.f32.mrb[0].mxu0
    %v9184 = vadd.f32 %v8991, %v9183
    %9185 = vmatprep.mubr.bf16.mxu0 %v5783
    %9186 = vmatmul.mubr.bf16.gmra.mrb[0].mxu0 %v5782
    %v9187 = vpop.f32.mrb[0].mxu0
    %v9188 = vadd.f32 %v8995, %v9187
    %v9189 = vpop.f32.mrb[0].mxu0
    %v9190 = vadd.f32 %v8997, %v9189
    %v9191 = vpop.f32.mrb[0].mxu0
    %v9192 = vadd.f32 %v8999, %v9191
    %v9193 = vpop.f32.mrb[0].mxu0
    %v9194 = vadd.f32 %v9001, %v9193
    %9195 = vmatprep.mubr.bf16.mxu0 %v5791
    %9196 = vmatmul.mubr.bf16.gmra.mrb[0].mxu0 %v5790
    %v9197 = vpop.f32.mrb[0].mxu0
    %v9198 = vadd.f32 %v9005, %v9197
    %v9199 = vpop.f32.mrb[0].mxu0
    %v9200 = vadd.f32 %v9007, %v9199
    %v9201 = vpop.f32.mrb[0].mxu0
    %v9202 = vadd.f32 %v9009, %v9201
    %v9203 = vpop.f32.mrb[0].mxu0
    %v9204 = vadd.f32 %v9011, %v9203
    %9205 = vmatprep.mubr.bf16.mxu0 %v5799
    %9206 = vmatmul.mubr.bf16.gmra.mrb[0].mxu0 %v5798
    %v9207 = vpop.f32.mrb[0].mxu0
    %v9208 = vadd.f32 %v9015, %v9207
    %v9209 = vpop.f32.mrb[0].mxu0
    %v9210 = vadd.f32 %v9017, %v9209
    %v9211 = vpop.f32.mrb[0].mxu0
    %v9212 = vadd.f32 %v9019, %v9211
    %v9213 = vpop.f32.mrb[0].mxu0
    %v9214 = vadd.f32 %v9021, %v9213
    %9215 = vmatprep.mubr.bf16.mxu0 %v5807
    %9216 = vmatmul.mubr.bf16.gmra.mrb[0].mxu0 %v5806
    %v9217 = vpop.f32.mrb[0].mxu0
    %v9218 = vadd.f32 %v9025, %v9217
    %v9219 = vpop.f32.mrb[0].mxu0
    %v9220 = vadd.f32 %v9027, %v9219
    %v9221 = vpop.f32.mrb[0].mxu0
    %v9222 = vadd.f32 %v9029, %v9221
    %v9223 = vpop.f32.mrb[0].mxu0
    %v9224 = vadd.f32 %v9031, %v9223
    %9225 = vmatprep.mubr.bf16.mxu0 %v5815
    %9226 = vmatmul.mubr.bf16.gmra.mrb[0].mxu0 %v5814
    %v9227 = vpop.f32.mrb[0].mxu0
    %v9228 = vadd.f32 %v9035, %v9227
    %v9229 = vpop.f32.mrb[0].mxu0
    %v9230 = vadd.f32 %v9037, %v9229
    %v9231 = vpop.f32.mrb[0].mxu0
    %v9232 = vadd.f32 %v9039, %v9231
    %v9233 = vpop.f32.mrb[0].mxu0
    %v9234 = vadd.f32 %v9041, %v9233
    %9235 = vmatprep.mubr.bf16.mxu0 %v5823
    %9236 = vmatmul.mubr.bf16.gmra.mrb[0].mxu0 %v5822
    %v9237 = vpop.f32.mrb[0].mxu0
    %v9238 = vadd.f32 %v9045, %v9237
    %v9239 = vpop.f32.mrb[0].mxu0
    %v9240 = vadd.f32 %v9047, %v9239
    %v9241 = vpop.f32.mrb[0].mxu0
    %v9242 = vadd.f32 %v9049, %v9241
    %v9243 = vpop.f32.mrb[0].mxu0
    %v9244 = vadd.f32 %v9051, %v9243
    %9245 = vmatprep.mubr.bf16.mxu0 %v5831
    %9246 = vmatmul.mubr.bf16.gmra.mrb[0].mxu0 %v5830
    %v9247 = vpop.f32.mrb[0].mxu0
    %v9248 = vadd.f32 %v9055, %v9247
    %v9249 = vpop.f32.mrb[0].mxu0
    %v9250 = vadd.f32 %v9057, %v9249
    %v9251 = vpop.f32.mrb[0].mxu0
    %v9252 = vadd.f32 %v9059, %v9251
    %v9253 = vpop.f32.mrb[0].mxu0
    %v9254 = vadd.f32 %v9061, %v9253
    %9255 = vmatprep.mubr.bf16.mxu0 %v5839
    %9256 = vmatmul.mubr.bf16.gmra.mrb[0].mxu0 %v5838
    %v9257 = vpop.f32.mrb[0].mxu0
    %v9258 = vadd.f32 %v9065, %v9257
    %v9259 = vpop.f32.mrb[0].mxu0
    %v9260 = vadd.f32 %v9067, %v9259
    %v9261 = vpop.f32.mrb[0].mxu0
    %v9262 = vadd.f32 %v9069, %v9261
    %v9263 = vpop.f32.mrb[0].mxu0
    %v9264 = vadd.f32 %v9071, %v9263
    %9265 = vmatprep.mubr.bf16.mxu0 %v5847
    %9266 = vmatmul.mubr.bf16.gmra.mrb[0].mxu0 %v5846
    %v9267 = vpop.f32.mrb[0].mxu0
    %v9268 = vadd.f32 %v9075, %v9267
    %v9269 = vpop.f32.mrb[0].mxu0
    %v9270 = vadd.f32 %v9077, %v9269
    %v9271 = vpop.f32.mrb[0].mxu0
    %v9272 = vadd.f32 %v9079, %v9271
    %v9273 = vpop.f32.mrb[0].mxu0
    %v9274 = vadd.f32 %v9081, %v9273
    %9275 = vmatprep.mubr.bf16.mxu0 %v5855
    %9276 = vmatmul.mubr.bf16.gmra.mrb[0].mxu0 %v5854
    %v9277 = vpop.f32.mrb[0].mxu0
    %v9278 = vadd.f32 %v9085, %v9277
    %v9279 = vpop.f32.mrb[0].mxu0
    %v9280 = vadd.f32 %v9087, %v9279
    %v9281 = vpop.f32.mrb[0].mxu0
    %v9282 = vadd.f32 %v9089, %v9281
    %v9283 = vpop.f32.mrb[0].mxu0
    %v9284 = vadd.f32 %v9091, %v9283
    %9285 = vmatprep.mubr.bf16.mxu0 %v5863
    %9286 = vmatmul.mubr.bf16.gmra.mrb[0].mxu0 %v5862
    %v9287 = vpop.f32.mrb[0].mxu0
    %v9288 = vadd.f32 %v9095, %v9287
    %v9289 = vpop.f32.mrb[0].mxu0
    %v9290 = vadd.f32 %v9097, %v9289
    %v9291 = vpop.f32.mrb[0].mxu0
    %v9292 = vadd.f32 %v9099, %v9291
    %v9293 = vpop.f32.mrb[0].mxu0
    %v9294 = vadd.f32 %v9101, %v9293
    %9295 = vmatprep.mubr.bf16.mxu0 %v5871
    %9296 = vmatmul.mubr.bf16.gmra.mrb[0].mxu0 %v5870
    %v9297 = vpop.f32.mrb[0].mxu0
    %v9298 = vadd.f32 %v9105, %v9297
    %v9299 = vpop.f32.mrb[0].mxu0
    %v9300 = vadd.f32 %v9107, %v9299
    %v9301 = vpop.f32.mrb[0].mxu0
    %v9302 = vadd.f32 %v9109, %v9301
    %v9303 = vpop.f32.mrb[0].mxu0
    %v9304 = vadd.f32 %v9111, %v9303
    %9305 = vdwg.mxu0
    %9306 = vmatprep.subr.bf16.mxu0 %v8168
    %9307 = vmatpush1.bf16.msra.mxu0 %v8167
    %9308 = vmatprep.subr.bf16.mxu0 %v8175
    %9309 = vmatpush1.bf16.msra.mxu0 %v8174
    %9310 = vmatprep.subr.bf16.mxu0 %v8182
    %9311 = vmatpush1.bf16.msra.mxu0 %v8181
    %9312 = vmatprep.subr.bf16.mxu0 %v8189
    %9313 = vmatpush1.bf16.msra.mxu0 %v8188
    %9314 = vmatprep.subr.bf16.mxu0 %v8196
    %9315 = vmatpush1.bf16.msra.mxu0 %v8195
    %9316 = vmatprep.subr.bf16.mxu0 %v8203
    %9317 = vmatpush1.bf16.msra.mxu0 %v8202
    %9318 = vmatprep.subr.bf16.mxu0 %v8210
    %9319 = vmatpush1.bf16.msra.mxu0 %v8209
    %9320 = vmatprep.subr.bf16.mxu0 %v8217
    %9321 = vmatpush1.bf16.msra.mxu0 %v8216
    %9322 = vmatprep.subr.bf16.mxu0 %v8224
    %9323 = vmatpush1.bf16.msra.mxu0 %v8223
    %9324 = vmatprep.subr.bf16.mxu0 %v8231
    %9325 = vmatpush1.bf16.msra.mxu0 %v8230
    %9326 = vmatprep.subr.bf16.mxu0 %v8238
    %9327 = vmatpush1.bf16.msra.mxu0 %v8237
    %9328 = vmatprep.subr.bf16.mxu0 %v8245
    %9329 = vmatpush1.bf16.msra.mxu0 %v8244
    %9330 = vmatprep.subr.bf16.mxu0 %v8252
    %9331 = vmatpush1.bf16.msra.mxu0 %v8251
    %9332 = vmatprep.subr.bf16.mxu0 %v8259
    %9333 = vmatpush1.bf16.msra.mxu0 %v8258
    %9334 = vmatprep.subr.bf16.mxu0 %v8266
    %9335 = vmatpush1.bf16.msra.mxu0 %v8265
    %9336 = vmatprep.subr.bf16.mxu0 %v8273
    %9337 = vmatpush1.bf16.msra.mxu0 %v8272
    %9338 = vmatprep.mubr.bf16.mxu0 %v5753
    %9339 = vmatmul.mubr.bf16.gmra.mrb[0].mxu0 %v5752
    %v9340 = vpop.f32.mrb[0].mxu0
    %v9341 = vadd.f32 %v9148, %v9340
    %v9342 = vpop.f32.mrb[0].mxu0
    %v9343 = vadd.f32 %v9150, %v9342
    %v9344 = vpop.f32.mrb[0].mxu0
    %v9345 = vadd.f32 %v9152, %v9344
    %v9346 = vpop.f32.mrb[0].mxu0
    %v9347 = vadd.f32 %v9154, %v9346
    %9348 = vmatprep.mubr.bf16.mxu0 %v5761
    %9349 = vmatmul.mubr.bf16.gmra.mrb[0].mxu0 %v5760
    %v9350 = vpop.f32.mrb[0].mxu0
    %v9351 = vadd.f32 %v9158, %v9350
    %v9352 = vpop.f32.mrb[0].mxu0
    %v9353 = vadd.f32 %v9160, %v9352
    %v9354 = vpop.f32.mrb[0].mxu0
    %v9355 = vadd.f32 %v9162, %v9354
    %v9356 = vpop.f32.mrb[0].mxu0
    %v9357 = vadd.f32 %v9164, %v9356
    %9358 = vmatprep.mubr.bf16.mxu0 %v5769
    %9359 = vmatmul.mubr.bf16.gmra.mrb[0].mxu0 %v5768
    %v9360 = vpop.f32.mrb[0].mxu0
    %v9361 = vadd.f32 %v9168, %v9360
    %v9362 = vpop.f32.mrb[0].mxu0
    %v9363 = vadd.f32 %v9170, %v9362
    %v9364 = vpop.f32.mrb[0].mxu0
    %v9365 = vadd.f32 %v9172, %v9364
    %v9366 = vpop.f32.mrb[0].mxu0
    %v9367 = vadd.f32 %v9174, %v9366
    %9368 = vmatprep.mubr.bf16.mxu0 %v5777
    %9369 = vmatmul.mubr.bf16.gmra.mrb[0].mxu0 %v5776
    %v9370 = vpop.f32.mrb[0].mxu0
    %v9371 = vadd.f32 %v9178, %v9370
    %v9372 = vpop.f32.mrb[0].mxu0
    %v9373 = vadd.f32 %v9180, %v9372
    %v9374 = vpop.f32.mrb[0].mxu0
    %v9375 = vadd.f32 %v9182, %v9374
    %v9376 = vpop.f32.mrb[0].mxu0
    %v9377 = vadd.f32 %v9184, %v9376
    %9378 = vmatprep.mubr.bf16.mxu0 %v5785
    %9379 = vmatmul.mubr.bf16.gmra.mrb[0].mxu0 %v5784
    %v9380 = vpop.f32.mrb[0].mxu0
    %v9381 = vadd.f32 %v9188, %v9380
    %v9382 = vpop.f32.mrb[0].mxu0
    %v9383 = vadd.f32 %v9190, %v9382
    %v9384 = vpop.f32.mrb[0].mxu0
    %v9385 = vadd.f32 %v9192, %v9384
    %v9386 = vpop.f32.mrb[0].mxu0
    %v9387 = vadd.f32 %v9194, %v9386
    %9388 = vmatprep.mubr.bf16.mxu0 %v5793
    %9389 = vmatmul.mubr.bf16.gmra.mrb[0].mxu0 %v5792
    %v9390 = vpop.f32.mrb[0].mxu0
    %v9391 = vadd.f32 %v9198, %v9390
    %v9392 = vpop.f32.mrb[0].mxu0
    %v9393 = vadd.f32 %v9200, %v9392
    %v9394 = vpop.f32.mrb[0].mxu0
    %v9395 = vadd.f32 %v9202, %v9394
    %v9396 = vpop.f32.mrb[0].mxu0
    %v9397 = vadd.f32 %v9204, %v9396
    %9398 = vmatprep.mubr.bf16.mxu0 %v5801
    %9399 = vmatmul.mubr.bf16.gmra.mrb[0].mxu0 %v5800
    %v9400 = vpop.f32.mrb[0].mxu0
    %v9401 = vadd.f32 %v9208, %v9400
    %v9402 = vpop.f32.mrb[0].mxu0
    %v9403 = vadd.f32 %v9210, %v9402
    %v9404 = vpop.f32.mrb[0].mxu0
    %v9405 = vadd.f32 %v9212, %v9404
    %v9406 = vpop.f32.mrb[0].mxu0
    %v9407 = vadd.f32 %v9214, %v9406
    %9408 = vmatprep.mubr.bf16.mxu0 %v5809
    %9409 = vmatmul.mubr.bf16.gmra.mrb[0].mxu0 %v5808
    %v9410 = vpop.f32.mrb[0].mxu0
    %v9411 = vadd.f32 %v9218, %v9410
    %v9412 = vpop.f32.mrb[0].mxu0
    %v9413 = vadd.f32 %v9220, %v9412
    %v9414 = vpop.f32.mrb[0].mxu0
    %v9415 = vadd.f32 %v9222, %v9414
    %v9416 = vpop.f32.mrb[0].mxu0
    %v9417 = vadd.f32 %v9224, %v9416
    %9418 = vmatprep.mubr.bf16.mxu0 %v5817
    %9419 = vmatmul.mubr.bf16.gmra.mrb[0].mxu0 %v5816
    %v9420 = vpop.f32.mrb[0].mxu0
    %v9421 = vadd.f32 %v9228, %v9420
    %v9422 = vpop.f32.mrb[0].mxu0
    %v9423 = vadd.f32 %v9230, %v9422
    %v9424 = vpop.f32.mrb[0].mxu0
    %v9425 = vadd.f32 %v9232, %v9424
    %v9426 = vpop.f32.mrb[0].mxu0
    %v9427 = vadd.f32 %v9234, %v9426
    %9428 = vmatprep.mubr.bf16.mxu0 %v5825
    %9429 = vmatmul.mubr.bf16.gmra.mrb[0].mxu0 %v5824
    %v9430 = vpop.f32.mrb[0].mxu0
    %v9431 = vadd.f32 %v9238, %v9430
    %v9432 = vpop.f32.mrb[0].mxu0
    %v9433 = vadd.f32 %v9240, %v9432
    %v9434 = vpop.f32.mrb[0].mxu0
    %v9435 = vadd.f32 %v9242, %v9434
    %v9436 = vpop.f32.mrb[0].mxu0
    %v9437 = vadd.f32 %v9244, %v9436
    %9438 = vmatprep.mubr.bf16.mxu0 %v5833
    %9439 = vmatmul.mubr.bf16.gmra.mrb[0].mxu0 %v5832
    %v9440 = vpop.f32.mrb[0].mxu0
    %v9441 = vadd.f32 %v9248, %v9440
    %v9442 = vpop.f32.mrb[0].mxu0
    %v9443 = vadd.f32 %v9250, %v9442
    %v9444 = vpop.f32.mrb[0].mxu0
    %v9445 = vadd.f32 %v9252, %v9444
    %v9446 = vpop.f32.mrb[0].mxu0
    %v9447 = vadd.f32 %v9254, %v9446
    %9448 = vmatprep.mubr.bf16.mxu0 %v5841
    %9449 = vmatmul.mubr.bf16.gmra.mrb[0].mxu0 %v5840
    %v9450 = vpop.f32.mrb[0].mxu0
    %v9451 = vadd.f32 %v9258, %v9450
    %v9452 = vpop.f32.mrb[0].mxu0
    %v9453 = vadd.f32 %v9260, %v9452
    %v9454 = vpop.f32.mrb[0].mxu0
    %v9455 = vadd.f32 %v9262, %v9454
    %v9456 = vpop.f32.mrb[0].mxu0
    %v9457 = vadd.f32 %v9264, %v9456
    %9458 = vmatprep.mubr.bf16.mxu0 %v5849
    %9459 = vmatmul.mubr.bf16.gmra.mrb[0].mxu0 %v5848
    %v9460 = vpop.f32.mrb[0].mxu0
    %v9461 = vadd.f32 %v9268, %v9460
    %v9462 = vpop.f32.mrb[0].mxu0
    %v9463 = vadd.f32 %v9270, %v9462
    %v9464 = vpop.f32.mrb[0].mxu0
    %v9465 = vadd.f32 %v9272, %v9464
    %v9466 = vpop.f32.mrb[0].mxu0
    %v9467 = vadd.f32 %v9274, %v9466
    %9468 = vmatprep.mubr.bf16.mxu0 %v5857
    %9469 = vmatmul.mubr.bf16.gmra.mrb[0].mxu0 %v5856
    %v9470 = vpop.f32.mrb[0].mxu0
    %v9471 = vadd.f32 %v9278, %v9470
    %v9472 = vpop.f32.mrb[0].mxu0
    %v9473 = vadd.f32 %v9280, %v9472
    %v9474 = vpop.f32.mrb[0].mxu0
    %v9475 = vadd.f32 %v9282, %v9474
    %v9476 = vpop.f32.mrb[0].mxu0
    %v9477 = vadd.f32 %v9284, %v9476
    %9478 = vmatprep.mubr.bf16.mxu0 %v5865
    %9479 = vmatmul.mubr.bf16.gmra.mrb[0].mxu0 %v5864
    %v9480 = vpop.f32.mrb[0].mxu0
    %v9481 = vadd.f32 %v9288, %v9480
    %v9482 = vpop.f32.mrb[0].mxu0
    %v9483 = vadd.f32 %v9290, %v9482
    %v9484 = vpop.f32.mrb[0].mxu0
    %v9485 = vadd.f32 %v9292, %v9484
    %v9486 = vpop.f32.mrb[0].mxu0
    %v9487 = vadd.f32 %v9294, %v9486
    %9488 = vmatprep.mubr.bf16.mxu0 %v5873
    %9489 = vmatmul.mubr.bf16.gmra.mrb[0].mxu0 %v5872
    %v9490 = vpop.f32.mrb[0].mxu0
    %v9491 = vadd.f32 %v9298, %v9490
    %v9492 = vpop.f32.mrb[0].mxu0
    %v9493 = vadd.f32 %v9300, %v9492
    %v9494 = vpop.f32.mrb[0].mxu0
    %v9495 = vadd.f32 %v9302, %v9494
    %v9496 = vpop.f32.mrb[0].mxu0
    %v9497 = vadd.f32 %v9304, %v9496
    %9498 = vdwg.mxu0
    %9499 = vmatprep.subr.bf16.mxu0 %v7834
    %9500 = vmatpush1.bf16.msra.mxu0 %v7833
    %9501 = vmatprep.subr.bf16.mxu0 %v7841
    %9502 = vmatpush1.bf16.msra.mxu0 %v7840
    %9503 = vmatprep.subr.bf16.mxu0 %v7848
    %9504 = vmatpush1.bf16.msra.mxu0 %v7847
    %9505 = vmatprep.subr.bf16.mxu0 %v7855
    %9506 = vmatpush1.bf16.msra.mxu0 %v7854
    %9507 = vmatprep.subr.bf16.mxu0 %v7862
    %9508 = vmatpush1.bf16.msra.mxu0 %v7861
    %9509 = vmatprep.subr.bf16.mxu0 %v7869
    %9510 = vmatpush1.bf16.msra.mxu0 %v7868
    %9511 = vmatprep.subr.bf16.mxu0 %v7876
    %9512 = vmatpush1.bf16.msra.mxu0 %v7875
    %9513 = vmatprep.subr.bf16.mxu0 %v7883
    %9514 = vmatpush1.bf16.msra.mxu0 %v7882
    %9515 = vmatprep.subr.bf16.mxu0 %v7890
    %9516 = vmatpush1.bf16.msra.mxu0 %v7889
    %9517 = vmatprep.subr.bf16.mxu0 %v7897
    %9518 = vmatpush1.bf16.msra.mxu0 %v7896
    %9519 = vmatprep.subr.bf16.mxu0 %v7904
    %9520 = vmatpush1.bf16.msra.mxu0 %v7903
    %9521 = vmatprep.subr.bf16.mxu0 %v7911
    %9522 = vmatpush1.bf16.msra.mxu0 %v7910
    %9523 = vmatprep.subr.bf16.mxu0 %v7918
    %9524 = vmatpush1.bf16.msra.mxu0 %v7917
    %9525 = vmatprep.subr.bf16.mxu0 %v7925
    %9526 = vmatpush1.bf16.msra.mxu0 %v7924
    %9527 = vmatprep.subr.bf16.mxu0 %v7932
    %9528 = vmatpush1.bf16.msra.mxu0 %v7931
    %9529 = vmatprep.subr.bf16.mxu0 %v7939
    %9530 = vmatpush1.bf16.msra.mxu0 %v7938
    %9531 = vmatprep.mubr.bf16.mxu0 %v5747
    %9532 = vmatmul.mubr.bf16.gmra.mrb[0].mxu0 %v5746
    %v9533 = vpop.f32.mrb[0].mxu0
    %v9534 = vadd.f32 %v6399, %v9533
    %v9535 = vpop.f32.mrb[0].mxu0
    %v9536 = vadd.f32 %v6403, %v9535
    %v9537 = vpop.f32.mrb[0].mxu0
    %v9538 = vadd.f32 %v6399, %v9537
    %v9539 = vpop.f32.mrb[0].mxu0
    %v9540 = vadd.f32 %v6403, %v9539
    %9541 = vmatprep.mubr.bf16.mxu0 %v5755
    %9542 = vmatmul.mubr.bf16.gmra.mrb[0].mxu0 %v5754
    %v9543 = vpop.f32.mrb[0].mxu0
    %v9544 = vadd.f32 %v6399, %v9543
    %v9545 = vpop.f32.mrb[0].mxu0
    %v9546 = vadd.f32 %v6403, %v9545
    %v9547 = vpop.f32.mrb[0].mxu0
    %v9548 = vadd.f32 %v6399, %v9547
    %v9549 = vpop.f32.mrb[0].mxu0
    %v9550 = vadd.f32 %v6403, %v9549
    %9551 = vmatprep.mubr.bf16.mxu0 %v5763
    %9552 = vmatmul.mubr.bf16.gmra.mrb[0].mxu0 %v5762
    %v9553 = vpop.f32.mrb[0].mxu0
    %v9554 = vadd.f32 %v6399, %v9553
    %v9555 = vpop.f32.mrb[0].mxu0
    %v9556 = vadd.f32 %v6403, %v9555
    %v9557 = vpop.f32.mrb[0].mxu0
    %v9558 = vadd.f32 %v6399, %v9557
    %v9559 = vpop.f32.mrb[0].mxu0
    %v9560 = vadd.f32 %v6403, %v9559
    %9561 = vmatprep.mubr.bf16.mxu0 %v5771
    %9562 = vmatmul.mubr.bf16.gmra.mrb[0].mxu0 %v5770
    %v9563 = vpop.f32.mrb[0].mxu0
    %v9564 = vadd.f32 %v6399, %v9563
    %v9565 = vpop.f32.mrb[0].mxu0
    %v9566 = vadd.f32 %v6403, %v9565
    %v9567 = vpop.f32.mrb[0].mxu0
    %v9568 = vadd.f32 %v6399, %v9567
    %v9569 = vpop.f32.mrb[0].mxu0
    %v9570 = vadd.f32 %v6403, %v9569
    %9571 = vmatprep.mubr.bf16.mxu0 %v5779
    %9572 = vmatmul.mubr.bf16.gmra.mrb[0].mxu0 %v5778
    %v9573 = vpop.f32.mrb[0].mxu0
    %v9574 = vadd.f32 %v6399, %v9573
    %v9575 = vpop.f32.mrb[0].mxu0
    %v9576 = vadd.f32 %v6403, %v9575
    %v9577 = vpop.f32.mrb[0].mxu0
    %v9578 = vadd.f32 %v6399, %v9577
    %v9579 = vpop.f32.mrb[0].mxu0
    %v9580 = vadd.f32 %v6403, %v9579
    %9581 = vmatprep.mubr.bf16.mxu0 %v5787
    %9582 = vmatmul.mubr.bf16.gmra.mrb[0].mxu0 %v5786
    %v9583 = vpop.f32.mrb[0].mxu0
    %v9584 = vadd.f32 %v6399, %v9583
    %v9585 = vpop.f32.mrb[0].mxu0
    %v9586 = vadd.f32 %v6403, %v9585
    %v9587 = vpop.f32.mrb[0].mxu0
    %v9588 = vadd.f32 %v6399, %v9587
    %v9589 = vpop.f32.mrb[0].mxu0
    %v9590 = vadd.f32 %v6403, %v9589
    %9591 = vmatprep.mubr.bf16.mxu0 %v5795
    %9592 = vmatmul.mubr.bf16.gmra.mrb[0].mxu0 %v5794
    %v9593 = vpop.f32.mrb[0].mxu0
    %v9594 = vadd.f32 %v6399, %v9593
    %v9595 = vpop.f32.mrb[0].mxu0
    %v9596 = vadd.f32 %v6403, %v9595
    %v9597 = vpop.f32.mrb[0].mxu0
    %v9598 = vadd.f32 %v6399, %v9597
    %v9599 = vpop.f32.mrb[0].mxu0
    %v9600 = vadd.f32 %v6403, %v9599
    %9601 = vmatprep.mubr.bf16.mxu0 %v5803
    %9602 = vmatmul.mubr.bf16.gmra.mrb[0].mxu0 %v5802
    %v9603 = vpop.f32.mrb[0].mxu0
    %v9604 = vadd.f32 %v6399, %v9603
    %v9605 = vpop.f32.mrb[0].mxu0
    %v9606 = vadd.f32 %v6403, %v9605
    %v9607 = vpop.f32.mrb[0].mxu0
    %v9608 = vadd.f32 %v6399, %v9607
    %v9609 = vpop.f32.mrb[0].mxu0
    %v9610 = vadd.f32 %v6403, %v9609
    %9611 = vmatprep.mubr.bf16.mxu0 %v5811
    %9612 = vmatmul.mubr.bf16.gmra.mrb[0].mxu0 %v5810
    %v9613 = vpop.f32.mrb[0].mxu0
    %v9614 = vadd.f32 %v6399, %v9613
    %v9615 = vpop.f32.mrb[0].mxu0
    %v9616 = vadd.f32 %v6403, %v9615
    %v9617 = vpop.f32.mrb[0].mxu0
    %v9618 = vadd.f32 %v6399, %v9617
    %v9619 = vpop.f32.mrb[0].mxu0
    %v9620 = vadd.f32 %v6403, %v9619
    %9621 = vmatprep.mubr.bf16.mxu0 %v5819
    %9622 = vmatmul.mubr.bf16.gmra.mrb[0].mxu0 %v5818
    %v9623 = vpop.f32.mrb[0].mxu0
    %v9624 = vadd.f32 %v6399, %v9623
    %v9625 = vpop.f32.mrb[0].mxu0
    %v9626 = vadd.f32 %v6403, %v9625
    %v9627 = vpop.f32.mrb[0].mxu0
    %v9628 = vadd.f32 %v6399, %v9627
    %v9629 = vpop.f32.mrb[0].mxu0
    %v9630 = vadd.f32 %v6403, %v9629
    %9631 = vmatprep.mubr.bf16.mxu0 %v5827
    %9632 = vmatmul.mubr.bf16.gmra.mrb[0].mxu0 %v5826
    %v9633 = vpop.f32.mrb[0].mxu0
    %v9634 = vadd.f32 %v6399, %v9633
    %v9635 = vpop.f32.mrb[0].mxu0
    %v9636 = vadd.f32 %v6403, %v9635
    %v9637 = vpop.f32.mrb[0].mxu0
    %v9638 = vadd.f32 %v6399, %v9637
    %v9639 = vpop.f32.mrb[0].mxu0
    %v9640 = vadd.f32 %v6403, %v9639
    %9641 = vmatprep.mubr.bf16.mxu0 %v5835
    %9642 = vmatmul.mubr.bf16.gmra.mrb[0].mxu0 %v5834
    %v9643 = vpop.f32.mrb[0].mxu0
    %v9644 = vadd.f32 %v6399, %v9643
    %v9645 = vpop.f32.mrb[0].mxu0
    %v9646 = vadd.f32 %v6403, %v9645
    %v9647 = vpop.f32.mrb[0].mxu0
    %v9648 = vadd.f32 %v6399, %v9647
    %v9649 = vpop.f32.mrb[0].mxu0
    %v9650 = vadd.f32 %v6403, %v9649
    %9651 = vmatprep.mubr.bf16.mxu0 %v5843
    %9652 = vmatmul.mubr.bf16.gmra.mrb[0].mxu0 %v5842
    %v9653 = vpop.f32.mrb[0].mxu0
    %v9654 = vadd.f32 %v6399, %v9653
    %v9655 = vpop.f32.mrb[0].mxu0
    %v9656 = vadd.f32 %v6403, %v9655
    %v9657 = vpop.f32.mrb[0].mxu0
    %v9658 = vadd.f32 %v6399, %v9657
    %v9659 = vpop.f32.mrb[0].mxu0
    %v9660 = vadd.f32 %v6403, %v9659
    %9661 = vmatprep.mubr.bf16.mxu0 %v5851
    %9662 = vmatmul.mubr.bf16.gmra.mrb[0].mxu0 %v5850
    %v9663 = vpop.f32.mrb[0].mxu0
    %v9664 = vadd.f32 %v6399, %v9663
    %v9665 = vpop.f32.mrb[0].mxu0
    %v9666 = vadd.f32 %v6403, %v9665
    %v9667 = vpop.f32.mrb[0].mxu0
    %v9668 = vadd.f32 %v6399, %v9667
    %v9669 = vpop.f32.mrb[0].mxu0
    %v9670 = vadd.f32 %v6403, %v9669
    %9671 = vmatprep.mubr.bf16.mxu0 %v5859
    %9672 = vmatmul.mubr.bf16.gmra.mrb[0].mxu0 %v5858
    %v9673 = vpop.f32.mrb[0].mxu0
    %v9674 = vadd.f32 %v6399, %v9673
    %v9675 = vpop.f32.mrb[0].mxu0
    %v9676 = vadd.f32 %v6403, %v9675
    %v9677 = vpop.f32.mrb[0].mxu0
    %v9678 = vadd.f32 %v6399, %v9677
    %v9679 = vpop.f32.mrb[0].mxu0
    %v9680 = vadd.f32 %v6403, %v9679
    %9681 = vmatprep.mubr.bf16.mxu0 %v5867
    %9682 = vmatmul.mubr.bf16.gmra.mrb[0].mxu0 %v5866
    %v9683 = vpop.f32.mrb[0].mxu0
    %v9684 = vadd.f32 %v6399, %v9683
    %v9685 = vpop.f32.mrb[0].mxu0
    %v9686 = vadd.f32 %v6403, %v9685
    %v9687 = vpop.f32.mrb[0].mxu0
    %v9688 = vadd.f32 %v6399, %v9687
    %v9689 = vpop.f32.mrb[0].mxu0
    %v9690 = vadd.f32 %v6403, %v9689
    %9691 = vdwg.mxu0
    %9692 = vmatprep.subr.bf16.mxu0 %v7946
    %9693 = vmatpush1.bf16.msra.mxu0 %v7945
    %9694 = vmatprep.subr.bf16.mxu0 %v7953
    %9695 = vmatpush1.bf16.msra.mxu0 %v7952
    %9696 = vmatprep.subr.bf16.mxu0 %v7960
    %9697 = vmatpush1.bf16.msra.mxu0 %v7959
    %9698 = vmatprep.subr.bf16.mxu0 %v7967
    %9699 = vmatpush1.bf16.msra.mxu0 %v7966
    %9700 = vmatprep.subr.bf16.mxu0 %v7974
    %9701 = vmatpush1.bf16.msra.mxu0 %v7973
    %9702 = vmatprep.subr.bf16.mxu0 %v7981
    %9703 = vmatpush1.bf16.msra.mxu0 %v7980
    %9704 = vmatprep.subr.bf16.mxu0 %v7988
    %9705 = vmatpush1.bf16.msra.mxu0 %v7987
    %9706 = vmatprep.subr.bf16.mxu0 %v7995
    %9707 = vmatpush1.bf16.msra.mxu0 %v7994
    %9708 = vmatprep.subr.bf16.mxu0 %v8002
    %9709 = vmatpush1.bf16.msra.mxu0 %v8001
    %9710 = vmatprep.subr.bf16.mxu0 %v8009
    %9711 = vmatpush1.bf16.msra.mxu0 %v8008
    %9712 = vmatprep.subr.bf16.mxu0 %v8016
    %9713 = vmatpush1.bf16.msra.mxu0 %v8015
    %9714 = vmatprep.subr.bf16.mxu0 %v8023
    %9715 = vmatpush1.bf16.msra.mxu0 %v8022
    %9716 = vmatprep.subr.bf16.mxu0 %v8030
    %9717 = vmatpush1.bf16.msra.mxu0 %v8029
    %9718 = vmatprep.subr.bf16.mxu0 %v8037
    %9719 = vmatpush1.bf16.msra.mxu0 %v8036
    %9720 = vmatprep.subr.bf16.mxu0 %v8044
    %9721 = vmatpush1.bf16.msra.mxu0 %v8043
    %9722 = vmatprep.subr.bf16.mxu0 %v8051
    %9723 = vmatpush1.bf16.msra.mxu0 %v8050
    %9724 = vmatprep.mubr.bf16.mxu0 %v5749
    %9725 = vmatmul.mubr.bf16.gmra.mrb[0].mxu0 %v5748
    %v9726 = vpop.f32.mrb[0].mxu0
    %v9727 = vadd.f32 %v9534, %v9726
    %v9728 = vpop.f32.mrb[0].mxu0
    %v9729 = vadd.f32 %v9536, %v9728
    %v9730 = vpop.f32.mrb[0].mxu0
    %v9731 = vadd.f32 %v9538, %v9730
    %v9732 = vpop.f32.mrb[0].mxu0
    %v9733 = vadd.f32 %v9540, %v9732
    %9734 = vmatprep.mubr.bf16.mxu0 %v5757
    %9735 = vmatmul.mubr.bf16.gmra.mrb[0].mxu0 %v5756
    %v9736 = vpop.f32.mrb[0].mxu0
    %v9737 = vadd.f32 %v9544, %v9736
    %v9738 = vpop.f32.mrb[0].mxu0
    %v9739 = vadd.f32 %v9546, %v9738
    %v9740 = vpop.f32.mrb[0].mxu0
    %v9741 = vadd.f32 %v9548, %v9740
    %v9742 = vpop.f32.mrb[0].mxu0
    %v9743 = vadd.f32 %v9550, %v9742
    %9744 = vmatprep.mubr.bf16.mxu0 %v5765
    %9745 = vmatmul.mubr.bf16.gmra.mrb[0].mxu0 %v5764
    %v9746 = vpop.f32.mrb[0].mxu0
    %v9747 = vadd.f32 %v9554, %v9746
    %v9748 = vpop.f32.mrb[0].mxu0
    %v9749 = vadd.f32 %v9556, %v9748
    %v9750 = vpop.f32.mrb[0].mxu0
    %v9751 = vadd.f32 %v9558, %v9750
    %v9752 = vpop.f32.mrb[0].mxu0
    %v9753 = vadd.f32 %v9560, %v9752
    %9754 = vmatprep.mubr.bf16.mxu0 %v5773
    %9755 = vmatmul.mubr.bf16.gmra.mrb[0].mxu0 %v5772
    %v9756 = vpop.f32.mrb[0].mxu0
    %v9757 = vadd.f32 %v9564, %v9756
    %v9758 = vpop.f32.mrb[0].mxu0
    %v9759 = vadd.f32 %v9566, %v9758
    %v9760 = vpop.f32.mrb[0].mxu0
    %v9761 = vadd.f32 %v9568, %v9760
    %v9762 = vpop.f32.mrb[0].mxu0
    %v9763 = vadd.f32 %v9570, %v9762
    %9764 = vmatprep.mubr.bf16.mxu0 %v5781
    %9765 = vmatmul.mubr.bf16.gmra.mrb[0].mxu0 %v5780
    %v9766 = vpop.f32.mrb[0].mxu0
    %v9767 = vadd.f32 %v9574, %v9766
    %v9768 = vpop.f32.mrb[0].mxu0
    %v9769 = vadd.f32 %v9576, %v9768
    %v9770 = vpop.f32.mrb[0].mxu0
    %v9771 = vadd.f32 %v9578, %v9770
    %v9772 = vpop.f32.mrb[0].mxu0
    %v9773 = vadd.f32 %v9580, %v9772
    %9774 = vmatprep.mubr.bf16.mxu0 %v5789
    %9775 = vmatmul.mubr.bf16.gmra.mrb[0].mxu0 %v5788
    %v9776 = vpop.f32.mrb[0].mxu0
    %v9777 = vadd.f32 %v9584, %v9776
    %v9778 = vpop.f32.mrb[0].mxu0
    %v9779 = vadd.f32 %v9586, %v9778
    %v9780 = vpop.f32.mrb[0].mxu0
    %v9781 = vadd.f32 %v9588, %v9780
    %v9782 = vpop.f32.mrb[0].mxu0
    %v9783 = vadd.f32 %v9590, %v9782
    %9784 = vmatprep.mubr.bf16.mxu0 %v5797
    %9785 = vmatmul.mubr.bf16.gmra.mrb[0].mxu0 %v5796
    %v9786 = vpop.f32.mrb[0].mxu0
    %v9787 = vadd.f32 %v9594, %v9786
    %v9788 = vpop.f32.mrb[0].mxu0
    %v9789 = vadd.f32 %v9596, %v9788
    %v9790 = vpop.f32.mrb[0].mxu0
    %v9791 = vadd.f32 %v9598, %v9790
    %v9792 = vpop.f32.mrb[0].mxu0
    %v9793 = vadd.f32 %v9600, %v9792
    %9794 = vmatprep.mubr.bf16.mxu0 %v5805
    %9795 = vmatmul.mubr.bf16.gmra.mrb[0].mxu0 %v5804
    %v9796 = vpop.f32.mrb[0].mxu0
    %v9797 = vadd.f32 %v9604, %v9796
    %v9798 = vpop.f32.mrb[0].mxu0
    %v9799 = vadd.f32 %v9606, %v9798
    %v9800 = vpop.f32.mrb[0].mxu0
    %v9801 = vadd.f32 %v9608, %v9800
    %v9802 = vpop.f32.mrb[0].mxu0
    %v9803 = vadd.f32 %v9610, %v9802
    %9804 = vmatprep.mubr.bf16.mxu0 %v5813
    %9805 = vmatmul.mubr.bf16.gmra.mrb[0].mxu0 %v5812
    %v9806 = vpop.f32.mrb[0].mxu0
    %v9807 = vadd.f32 %v9614, %v9806
    %v9808 = vpop.f32.mrb[0].mxu0
    %v9809 = vadd.f32 %v9616, %v9808
    %v9810 = vpop.f32.mrb[0].mxu0
    %v9811 = vadd.f32 %v9618, %v9810
    %v9812 = vpop.f32.mrb[0].mxu0
    %v9813 = vadd.f32 %v9620, %v9812
    %9814 = vmatprep.mubr.bf16.mxu0 %v5821
    %9815 = vmatmul.mubr.bf16.gmra.mrb[0].mxu0 %v5820
    %v9816 = vpop.f32.mrb[0].mxu0
    %v9817 = vadd.f32 %v9624, %v9816
    %v9818 = vpop.f32.mrb[0].mxu0
    %v9819 = vadd.f32 %v9626, %v9818
    %v9820 = vpop.f32.mrb[0].mxu0
    %v9821 = vadd.f32 %v9628, %v9820
    %v9822 = vpop.f32.mrb[0].mxu0
    %v9823 = vadd.f32 %v9630, %v9822
    %9824 = vmatprep.mubr.bf16.mxu0 %v5829
    %9825 = vmatmul.mubr.bf16.gmra.mrb[0].mxu0 %v5828
    %v9826 = vpop.f32.mrb[0].mxu0
    %v9827 = vadd.f32 %v9634, %v9826
    %v9828 = vpop.f32.mrb[0].mxu0
    %v9829 = vadd.f32 %v9636, %v9828
    %v9830 = vpop.f32.mrb[0].mxu0
    %v9831 = vadd.f32 %v9638, %v9830
    %v9832 = vpop.f32.mrb[0].mxu0
    %v9833 = vadd.f32 %v9640, %v9832
    %9834 = vmatprep.mubr.bf16.mxu0 %v5837
    %9835 = vmatmul.mubr.bf16.gmra.mrb[0].mxu0 %v5836
    %v9836 = vpop.f32.mrb[0].mxu0
    %v9837 = vadd.f32 %v9644, %v9836
    %v9838 = vpop.f32.mrb[0].mxu0
    %v9839 = vadd.f32 %v9646, %v9838
    %v9840 = vpop.f32.mrb[0].mxu0
    %v9841 = vadd.f32 %v9648, %v9840
    %v9842 = vpop.f32.mrb[0].mxu0
    %v9843 = vadd.f32 %v9650, %v9842
    %9844 = vmatprep.mubr.bf16.mxu0 %v5845
    %9845 = vmatmul.mubr.bf16.gmra.mrb[0].mxu0 %v5844
    %v9846 = vpop.f32.mrb[0].mxu0
    %v9847 = vadd.f32 %v9654, %v9846
    %v9848 = vpop.f32.mrb[0].mxu0
    %v9849 = vadd.f32 %v9656, %v9848
    %v9850 = vpop.f32.mrb[0].mxu0
    %v9851 = vadd.f32 %v9658, %v9850
    %v9852 = vpop.f32.mrb[0].mxu0
    %v9853 = vadd.f32 %v9660, %v9852
    %9854 = vmatprep.mubr.bf16.mxu0 %v5853
    %9855 = vmatmul.mubr.bf16.gmra.mrb[0].mxu0 %v5852
    %v9856 = vpop.f32.mrb[0].mxu0
    %v9857 = vadd.f32 %v9664, %v9856
    %v9858 = vpop.f32.mrb[0].mxu0
    %v9859 = vadd.f32 %v9666, %v9858
    %v9860 = vpop.f32.mrb[0].mxu0
    %v9861 = vadd.f32 %v9668, %v9860
    %v9862 = vpop.f32.mrb[0].mxu0
    %v9863 = vadd.f32 %v9670, %v9862
    %9864 = vmatprep.mubr.bf16.mxu0 %v5861
    %9865 = vmatmul.mubr.bf16.gmra.mrb[0].mxu0 %v5860
    %v9866 = vpop.f32.mrb[0].mxu0
    %v9867 = vadd.f32 %v9674, %v9866
    %v9868 = vpop.f32.mrb[0].mxu0
    %v9869 = vadd.f32 %v9676, %v9868
    %v9870 = vpop.f32.mrb[0].mxu0
    %v9871 = vadd.f32 %v9678, %v9870
    %v9872 = vpop.f32.mrb[0].mxu0
    %v9873 = vadd.f32 %v9680, %v9872
    %9874 = vmatprep.mubr.bf16.mxu0 %v5869
    %9875 = vmatmul.mubr.bf16.gmra.mrb[0].mxu0 %v5868
    %v9876 = vpop.f32.mrb[0].mxu0
    %v9877 = vadd.f32 %v9684, %v9876
    %v9878 = vpop.f32.mrb[0].mxu0
    %v9879 = vadd.f32 %v9686, %v9878
    %v9880 = vpop.f32.mrb[0].mxu0
    %v9881 = vadd.f32 %v9688, %v9880
    %v9882 = vpop.f32.mrb[0].mxu0
    %v9883 = vadd.f32 %v9690, %v9882
    %9884 = vdwg.mxu0
    %9885 = vmatprep.subr.bf16.mxu0 %v8058
    %9886 = vmatpush1.bf16.msra.mxu0 %v8057
    %9887 = vmatprep.subr.bf16.mxu0 %v8065
    %9888 = vmatpush1.bf16.msra.mxu0 %v8064
    %9889 = vmatprep.subr.bf16.mxu0 %v8072
    %9890 = vmatpush1.bf16.msra.mxu0 %v8071
    %9891 = vmatprep.subr.bf16.mxu0 %v8079
    %9892 = vmatpush1.bf16.msra.mxu0 %v8078
    %9893 = vmatprep.subr.bf16.mxu0 %v8086
    %9894 = vmatpush1.bf16.msra.mxu0 %v8085
    %9895 = vmatprep.subr.bf16.mxu0 %v8093
    %9896 = vmatpush1.bf16.msra.mxu0 %v8092
    %9897 = vmatprep.subr.bf16.mxu0 %v8100
    %9898 = vmatpush1.bf16.msra.mxu0 %v8099
    %9899 = vmatprep.subr.bf16.mxu0 %v8107
    %9900 = vmatpush1.bf16.msra.mxu0 %v8106
    %9901 = vmatprep.subr.bf16.mxu0 %v8114
    %9902 = vmatpush1.bf16.msra.mxu0 %v8113
    %9903 = vmatprep.subr.bf16.mxu0 %v8121
    %9904 = vmatpush1.bf16.msra.mxu0 %v8120
    %9905 = vmatprep.subr.bf16.mxu0 %v8128
    %9906 = vmatpush1.bf16.msra.mxu0 %v8127
    %9907 = vmatprep.subr.bf16.mxu0 %v8135
    %9908 = vmatpush1.bf16.msra.mxu0 %v8134
    %9909 = vmatprep.subr.bf16.mxu0 %v8142
    %9910 = vmatpush1.bf16.msra.mxu0 %v8141
    %9911 = vmatprep.subr.bf16.mxu0 %v8149
    %9912 = vmatpush1.bf16.msra.mxu0 %v8148
    %9913 = vmatprep.subr.bf16.mxu0 %v8156
    %9914 = vmatpush1.bf16.msra.mxu0 %v8155
    %9915 = vmatprep.subr.bf16.mxu0 %v8163
    %9916 = vmatpush1.bf16.msra.mxu0 %v8162
    %9917 = vmatprep.mubr.bf16.mxu0 %v5751
    %9918 = vmatmul.mubr.bf16.gmra.mrb[0].mxu0 %v5750
    %v9919 = vpop.f32.mrb[0].mxu0
    %v9920 = vadd.f32 %v9727, %v9919
    %v9921 = vpop.f32.mrb[0].mxu0
    %v9922 = vadd.f32 %v9729, %v9921
    %v9923 = vpop.f32.mrb[0].mxu0
    %v9924 = vadd.f32 %v9731, %v9923
    %v9925 = vpop.f32.mrb[0].mxu0
    %v9926 = vadd.f32 %v9733, %v9925
    %9927 = vmatprep.mubr.bf16.mxu0 %v5759
    %9928 = vmatmul.mubr.bf16.gmra.mrb[0].mxu0 %v5758
    %v9929 = vpop.f32.mrb[0].mxu0
    %v9930 = vadd.f32 %v9737, %v9929
    %v9931 = vpop.f32.mrb[0].mxu0
    %v9932 = vadd.f32 %v9739, %v9931
    %v9933 = vpop.f32.mrb[0].mxu0
    %v9934 = vadd.f32 %v9741, %v9933
    %v9935 = vpop.f32.mrb[0].mxu0
    %v9936 = vadd.f32 %v9743, %v9935
    %9937 = vmatprep.mubr.bf16.mxu0 %v5767
    %9938 = vmatmul.mubr.bf16.gmra.mrb[0].mxu0 %v5766
    %v9939 = vpop.f32.mrb[0].mxu0
    %v9940 = vadd.f32 %v9747, %v9939
    %v9941 = vpop.f32.mrb[0].mxu0
    %v9942 = vadd.f32 %v9749, %v9941
    %v9943 = vpop.f32.mrb[0].mxu0
    %v9944 = vadd.f32 %v9751, %v9943
    %v9945 = vpop.f32.mrb[0].mxu0
    %v9946 = vadd.f32 %v9753, %v9945
    %9947 = vmatprep.mubr.bf16.mxu0 %v5775
    %9948 = vmatmul.mubr.bf16.gmra.mrb[0].mxu0 %v5774
    %v9949 = vpop.f32.mrb[0].mxu0
    %v9950 = vadd.f32 %v9757, %v9949
    %v9951 = vpop.f32.mrb[0].mxu0
    %v9952 = vadd.f32 %v9759, %v9951
    %v9953 = vpop.f32.mrb[0].mxu0
    %v9954 = vadd.f32 %v9761, %v9953
    %v9955 = vpop.f32.mrb[0].mxu0
    %v9956 = vadd.f32 %v9763, %v9955
    %9957 = vmatprep.mubr.bf16.mxu0 %v5783
    %9958 = vmatmul.mubr.bf16.gmra.mrb[0].mxu0 %v5782
    %v9959 = vpop.f32.mrb[0].mxu0
    %v9960 = vadd.f32 %v9767, %v9959
    %v9961 = vpop.f32.mrb[0].mxu0
    %v9962 = vadd.f32 %v9769, %v9961
    %v9963 = vpop.f32.mrb[0].mxu0
    %v9964 = vadd.f32 %v9771, %v9963
    %v9965 = vpop.f32.mrb[0].mxu0
    %v9966 = vadd.f32 %v9773, %v9965
    %9967 = vmatprep.mubr.bf16.mxu0 %v5791
    %9968 = vmatmul.mubr.bf16.gmra.mrb[0].mxu0 %v5790
    %v9969 = vpop.f32.mrb[0].mxu0
    %v9970 = vadd.f32 %v9777, %v9969
    %v9971 = vpop.f32.mrb[0].mxu0
    %v9972 = vadd.f32 %v9779, %v9971
    %v9973 = vpop.f32.mrb[0].mxu0
    %v9974 = vadd.f32 %v9781, %v9973
    %v9975 = vpop.f32.mrb[0].mxu0
    %v9976 = vadd.f32 %v9783, %v9975
    %9977 = vmatprep.mubr.bf16.mxu0 %v5799
    %9978 = vmatmul.mubr.bf16.gmra.mrb[0].mxu0 %v5798
    %v9979 = vpop.f32.mrb[0].mxu0
    %v9980 = vadd.f32 %v9787, %v9979
    %v9981 = vpop.f32.mrb[0].mxu0
    %v9982 = vadd.f32 %v9789, %v9981
    %v9983 = vpop.f32.mrb[0].mxu0
    %v9984 = vadd.f32 %v9791, %v9983
    %v9985 = vpop.f32.mrb[0].mxu0
    %v9986 = vadd.f32 %v9793, %v9985
    %9987 = vmatprep.mubr.bf16.mxu0 %v5807
    %9988 = vmatmul.mubr.bf16.gmra.mrb[0].mxu0 %v5806
    %v9989 = vpop.f32.mrb[0].mxu0
    %v9990 = vadd.f32 %v9797, %v9989
    %v9991 = vpop.f32.mrb[0].mxu0
    %v9992 = vadd.f32 %v9799, %v9991
    %v9993 = vpop.f32.mrb[0].mxu0
    %v9994 = vadd.f32 %v9801, %v9993
    %v9995 = vpop.f32.mrb[0].mxu0
    %v9996 = vadd.f32 %v9803, %v9995
    %9997 = vmatprep.mubr.bf16.mxu0 %v5815
    %9998 = vmatmul.mubr.bf16.gmra.mrb[0].mxu0 %v5814
    %v9999 = vpop.f32.mrb[0].mxu0
    %v10000 = vadd.f32 %v9807, %v9999
    %v10001 = vpop.f32.mrb[0].mxu0
    %v10002 = vadd.f32 %v9809, %v10001
    %v10003 = vpop.f32.mrb[0].mxu0
    %v10004 = vadd.f32 %v9811, %v10003
    %v10005 = vpop.f32.mrb[0].mxu0
    %v10006 = vadd.f32 %v9813, %v10005
    %10007 = vmatprep.mubr.bf16.mxu0 %v5823
    %10008 = vmatmul.mubr.bf16.gmra.mrb[0].mxu0 %v5822
    %v10009 = vpop.f32.mrb[0].mxu0
    %v10010 = vadd.f32 %v9817, %v10009
    %v10011 = vpop.f32.mrb[0].mxu0
    %v10012 = vadd.f32 %v9819, %v10011
    %v10013 = vpop.f32.mrb[0].mxu0
    %v10014 = vadd.f32 %v9821, %v10013
    %v10015 = vpop.f32.mrb[0].mxu0
    %v10016 = vadd.f32 %v9823, %v10015
    %10017 = vmatprep.mubr.bf16.mxu0 %v5831
    %10018 = vmatmul.mubr.bf16.gmra.mrb[0].mxu0 %v5830
    %v10019 = vpop.f32.mrb[0].mxu0
    %v10020 = vadd.f32 %v9827, %v10019
    %v10021 = vpop.f32.mrb[0].mxu0
    %v10022 = vadd.f32 %v9829, %v10021
    %v10023 = vpop.f32.mrb[0].mxu0
    %v10024 = vadd.f32 %v9831, %v10023
    %v10025 = vpop.f32.mrb[0].mxu0
    %v10026 = vadd.f32 %v9833, %v10025
    %10027 = vmatprep.mubr.bf16.mxu0 %v5839
    %10028 = vmatmul.mubr.bf16.gmra.mrb[0].mxu0 %v5838
    %v10029 = vpop.f32.mrb[0].mxu0
    %v10030 = vadd.f32 %v9837, %v10029
    %v10031 = vpop.f32.mrb[0].mxu0
    %v10032 = vadd.f32 %v9839, %v10031
    %v10033 = vpop.f32.mrb[0].mxu0
    %v10034 = vadd.f32 %v9841, %v10033
    %v10035 = vpop.f32.mrb[0].mxu0
    %v10036 = vadd.f32 %v9843, %v10035
    %10037 = vmatprep.mubr.bf16.mxu0 %v5847
    %10038 = vmatmul.mubr.bf16.gmra.mrb[0].mxu0 %v5846
    %v10039 = vpop.f32.mrb[0].mxu0
    %v10040 = vadd.f32 %v9847, %v10039
    %v10041 = vpop.f32.mrb[0].mxu0
    %v10042 = vadd.f32 %v9849, %v10041
    %v10043 = vpop.f32.mrb[0].mxu0
    %v10044 = vadd.f32 %v9851, %v10043
    %v10045 = vpop.f32.mrb[0].mxu0
    %v10046 = vadd.f32 %v9853, %v10045
    %10047 = vmatprep.mubr.bf16.mxu0 %v5855
    %10048 = vmatmul.mubr.bf16.gmra.mrb[0].mxu0 %v5854
    %v10049 = vpop.f32.mrb[0].mxu0
    %v10050 = vadd.f32 %v9857, %v10049
    %v10051 = vpop.f32.mrb[0].mxu0
    %v10052 = vadd.f32 %v9859, %v10051
    %v10053 = vpop.f32.mrb[0].mxu0
    %v10054 = vadd.f32 %v9861, %v10053
    %v10055 = vpop.f32.mrb[0].mxu0
    %v10056 = vadd.f32 %v9863, %v10055
    %10057 = vmatprep.mubr.bf16.mxu0 %v5863
    %10058 = vmatmul.mubr.bf16.gmra.mrb[0].mxu0 %v5862
    %v10059 = vpop.f32.mrb[0].mxu0
    %v10060 = vadd.f32 %v9867, %v10059
    %v10061 = vpop.f32.mrb[0].mxu0
    %v10062 = vadd.f32 %v9869, %v10061
    %v10063 = vpop.f32.mrb[0].mxu0
    %v10064 = vadd.f32 %v9871, %v10063
    %v10065 = vpop.f32.mrb[0].mxu0
    %v10066 = vadd.f32 %v9873, %v10065
    %10067 = vmatprep.mubr.bf16.mxu0 %v5871
    %10068 = vmatmul.mubr.bf16.gmra.mrb[0].mxu0 %v5870
    %v10069 = vpop.f32.mrb[0].mxu0
    %v10070 = vadd.f32 %v9877, %v10069
    %v10071 = vpop.f32.mrb[0].mxu0
    %v10072 = vadd.f32 %v9879, %v10071
    %v10073 = vpop.f32.mrb[0].mxu0
    %v10074 = vadd.f32 %v9881, %v10073
    %v10075 = vpop.f32.mrb[0].mxu0
    %v10076 = vadd.f32 %v9883, %v10075
    %10077 = vdwg.mxu0
    %10078 = vmatprep.subr.bf16.mxu0 %v8170
    %10079 = vmatpush1.bf16.msra.mxu0 %v8169
    %10080 = vmatprep.subr.bf16.mxu0 %v8177
    %10081 = vmatpush1.bf16.msra.mxu0 %v8176
    %10082 = vmatprep.subr.bf16.mxu0 %v8184
    %10083 = vmatpush1.bf16.msra.mxu0 %v8183
    %10084 = vmatprep.subr.bf16.mxu0 %v8191
    %10085 = vmatpush1.bf16.msra.mxu0 %v8190
    %10086 = vmatprep.subr.bf16.mxu0 %v8198
    %10087 = vmatpush1.bf16.msra.mxu0 %v8197
    %10088 = vmatprep.subr.bf16.mxu0 %v8205
    %10089 = vmatpush1.bf16.msra.mxu0 %v8204
    %10090 = vmatprep.subr.bf16.mxu0 %v8212
    %10091 = vmatpush1.bf16.msra.mxu0 %v8211
    %10092 = vmatprep.subr.bf16.mxu0 %v8219
    %10093 = vmatpush1.bf16.msra.mxu0 %v8218
    %10094 = vmatprep.subr.bf16.mxu0 %v8226
    %10095 = vmatpush1.bf16.msra.mxu0 %v8225
    %10096 = vmatprep.subr.bf16.mxu0 %v8233
    %10097 = vmatpush1.bf16.msra.mxu0 %v8232
    %10098 = vmatprep.subr.bf16.mxu0 %v8240
    %10099 = vmatpush1.bf16.msra.mxu0 %v8239
    %10100 = vmatprep.subr.bf16.mxu0 %v8247
    %10101 = vmatpush1.bf16.msra.mxu0 %v8246
    %10102 = vmatprep.subr.bf16.mxu0 %v8254
    %10103 = vmatpush1.bf16.msra.mxu0 %v8253
    %10104 = vmatprep.subr.bf16.mxu0 %v8261
    %10105 = vmatpush1.bf16.msra.mxu0 %v8260
    %10106 = vmatprep.subr.bf16.mxu0 %v8268
    %10107 = vmatpush1.bf16.msra.mxu0 %v8267
    %10108 = vmatprep.subr.bf16.mxu0 %v8275
    %10109 = vmatpush1.bf16.msra.mxu0 %v8274
    %10110 = vmatprep.mubr.bf16.mxu0 %v5753
    %10111 = vmatmul.mubr.bf16.gmra.mrb[0].mxu0 %v5752
    %v10112 = vpop.f32.mrb[0].mxu0
    %v10113 = vadd.f32 %v9920, %v10112
    %v10114 = vpop.f32.mrb[0].mxu0
    %v10115 = vadd.f32 %v9922, %v10114
    %v10116 = vpop.f32.mrb[0].mxu0
    %v10117 = vadd.f32 %v9924, %v10116
    %v10118 = vpop.f32.mrb[0].mxu0
    %v10119 = vadd.f32 %v9926, %v10118
    %10120 = vmatprep.mubr.bf16.mxu0 %v5761
    %10121 = vmatmul.mubr.bf16.gmra.mrb[0].mxu0 %v5760
    %v10122 = vpop.f32.mrb[0].mxu0
    %v10123 = vadd.f32 %v9930, %v10122
    %v10124 = vpop.f32.mrb[0].mxu0
    %v10125 = vadd.f32 %v9932, %v10124
    %v10126 = vpop.f32.mrb[0].mxu0
    %v10127 = vadd.f32 %v9934, %v10126
    %v10128 = vpop.f32.mrb[0].mxu0
    %v10129 = vadd.f32 %v9936, %v10128
    %10130 = vmatprep.mubr.bf16.mxu0 %v5769
    %10131 = vmatmul.mubr.bf16.gmra.mrb[0].mxu0 %v5768
    %v10132 = vpop.f32.mrb[0].mxu0
    %v10133 = vadd.f32 %v9940, %v10132
    %v10134 = vpop.f32.mrb[0].mxu0
    %v10135 = vadd.f32 %v9942, %v10134
    %v10136 = vpop.f32.mrb[0].mxu0
    %v10137 = vadd.f32 %v9944, %v10136
    %v10138 = vpop.f32.mrb[0].mxu0
    %v10139 = vadd.f32 %v9946, %v10138
    %10140 = vmatprep.mubr.bf16.mxu0 %v5777
    %10141 = vmatmul.mubr.bf16.gmra.mrb[0].mxu0 %v5776
    %v10142 = vpop.f32.mrb[0].mxu0
    %v10143 = vadd.f32 %v9950, %v10142
    %v10144 = vpop.f32.mrb[0].mxu0
    %v10145 = vadd.f32 %v9952, %v10144
    %v10146 = vpop.f32.mrb[0].mxu0
    %v10147 = vadd.f32 %v9954, %v10146
    %v10148 = vpop.f32.mrb[0].mxu0
    %v10149 = vadd.f32 %v9956, %v10148
    %10150 = vmatprep.mubr.bf16.mxu0 %v5785
    %10151 = vmatmul.mubr.bf16.gmra.mrb[0].mxu0 %v5784
    %v10152 = vpop.f32.mrb[0].mxu0
    %v10153 = vadd.f32 %v9960, %v10152
    %v10154 = vpop.f32.mrb[0].mxu0
    %v10155 = vadd.f32 %v9962, %v10154
    %v10156 = vpop.f32.mrb[0].mxu0
    %v10157 = vadd.f32 %v9964, %v10156
    %v10158 = vpop.f32.mrb[0].mxu0
    %v10159 = vadd.f32 %v9966, %v10158
    %10160 = vmatprep.mubr.bf16.mxu0 %v5793
    %10161 = vmatmul.mubr.bf16.gmra.mrb[0].mxu0 %v5792
    %v10162 = vpop.f32.mrb[0].mxu0
    %v10163 = vadd.f32 %v9970, %v10162
    %v10164 = vpop.f32.mrb[0].mxu0
    %v10165 = vadd.f32 %v9972, %v10164
    %v10166 = vpop.f32.mrb[0].mxu0
    %v10167 = vadd.f32 %v9974, %v10166
    %v10168 = vpop.f32.mrb[0].mxu0
    %v10169 = vadd.f32 %v9976, %v10168
    %10170 = vmatprep.mubr.bf16.mxu0 %v5801
    %10171 = vmatmul.mubr.bf16.gmra.mrb[0].mxu0 %v5800
    %v10172 = vpop.f32.mrb[0].mxu0
    %v10173 = vadd.f32 %v9980, %v10172
    %v10174 = vpop.f32.mrb[0].mxu0
    %v10175 = vadd.f32 %v9982, %v10174
    %v10176 = vpop.f32.mrb[0].mxu0
    %v10177 = vadd.f32 %v9984, %v10176
    %v10178 = vpop.f32.mrb[0].mxu0
    %v10179 = vadd.f32 %v9986, %v10178
    %10180 = vmatprep.mubr.bf16.mxu0 %v5809
    %10181 = vmatmul.mubr.bf16.gmra.mrb[0].mxu0 %v5808
    %v10182 = vpop.f32.mrb[0].mxu0
    %v10183 = vadd.f32 %v9990, %v10182
    %v10184 = vpop.f32.mrb[0].mxu0
    %v10185 = vadd.f32 %v9992, %v10184
    %v10186 = vpop.f32.mrb[0].mxu0
    %v10187 = vadd.f32 %v9994, %v10186
    %v10188 = vpop.f32.mrb[0].mxu0
    %v10189 = vadd.f32 %v9996, %v10188
    %10190 = vmatprep.mubr.bf16.mxu0 %v5817
    %10191 = vmatmul.mubr.bf16.gmra.mrb[0].mxu0 %v5816
    %v10192 = vpop.f32.mrb[0].mxu0
    %v10193 = vadd.f32 %v10000, %v10192
    %v10194 = vpop.f32.mrb[0].mxu0
    %v10195 = vadd.f32 %v10002, %v10194
    %v10196 = vpop.f32.mrb[0].mxu0
    %v10197 = vadd.f32 %v10004, %v10196
    %v10198 = vpop.f32.mrb[0].mxu0
    %v10199 = vadd.f32 %v10006, %v10198
    %10200 = vmatprep.mubr.bf16.mxu0 %v5825
    %10201 = vmatmul.mubr.bf16.gmra.mrb[0].mxu0 %v5824
    %v10202 = vpop.f32.mrb[0].mxu0
    %v10203 = vadd.f32 %v10010, %v10202
    %v10204 = vpop.f32.mrb[0].mxu0
    %v10205 = vadd.f32 %v10012, %v10204
    %v10206 = vpop.f32.mrb[0].mxu0
    %v10207 = vadd.f32 %v10014, %v10206
    %v10208 = vpop.f32.mrb[0].mxu0
    %v10209 = vadd.f32 %v10016, %v10208
    %10210 = vmatprep.mubr.bf16.mxu0 %v5833
    %10211 = vmatmul.mubr.bf16.gmra.mrb[0].mxu0 %v5832
    %v10212 = vpop.f32.mrb[0].mxu0
    %v10213 = vadd.f32 %v10020, %v10212
    %v10214 = vpop.f32.mrb[0].mxu0
    %v10215 = vadd.f32 %v10022, %v10214
    %v10216 = vpop.f32.mrb[0].mxu0
    %v10217 = vadd.f32 %v10024, %v10216
    %v10218 = vpop.f32.mrb[0].mxu0
    %v10219 = vadd.f32 %v10026, %v10218
    %10220 = vmatprep.mubr.bf16.mxu0 %v5841
    %10221 = vmatmul.mubr.bf16.gmra.mrb[0].mxu0 %v5840
    %v10222 = vpop.f32.mrb[0].mxu0
    %v10223 = vadd.f32 %v10030, %v10222
    %v10224 = vpop.f32.mrb[0].mxu0
    %v10225 = vadd.f32 %v10032, %v10224
    %v10226 = vpop.f32.mrb[0].mxu0
    %v10227 = vadd.f32 %v10034, %v10226
    %v10228 = vpop.f32.mrb[0].mxu0
    %v10229 = vadd.f32 %v10036, %v10228
    %10230 = vmatprep.mubr.bf16.mxu0 %v5849
    %10231 = vmatmul.mubr.bf16.gmra.mrb[0].mxu0 %v5848
    %v10232 = vpop.f32.mrb[0].mxu0
    %v10233 = vadd.f32 %v10040, %v10232
    %v10234 = vpop.f32.mrb[0].mxu0
    %v10235 = vadd.f32 %v10042, %v10234
    %v10236 = vpop.f32.mrb[0].mxu0
    %v10237 = vadd.f32 %v10044, %v10236
    %v10238 = vpop.f32.mrb[0].mxu0
    %v10239 = vadd.f32 %v10046, %v10238
    %10240 = vmatprep.mubr.bf16.mxu0 %v5857
    %10241 = vmatmul.mubr.bf16.gmra.mrb[0].mxu0 %v5856
    %v10242 = vpop.f32.mrb[0].mxu0
    %v10243 = vadd.f32 %v10050, %v10242
    %v10244 = vpop.f32.mrb[0].mxu0
    %v10245 = vadd.f32 %v10052, %v10244
    %v10246 = vpop.f32.mrb[0].mxu0
    %v10247 = vadd.f32 %v10054, %v10246
    %v10248 = vpop.f32.mrb[0].mxu0
    %v10249 = vadd.f32 %v10056, %v10248
    %10250 = vmatprep.mubr.bf16.mxu0 %v5865
    %10251 = vmatmul.mubr.bf16.gmra.mrb[0].mxu0 %v5864
    %v10252 = vpop.f32.mrb[0].mxu0
    %v10253 = vadd.f32 %v10060, %v10252
    %v10254 = vpop.f32.mrb[0].mxu0
    %v10255 = vadd.f32 %v10062, %v10254
    %v10256 = vpop.f32.mrb[0].mxu0
    %v10257 = vadd.f32 %v10064, %v10256
    %v10258 = vpop.f32.mrb[0].mxu0
    %v10259 = vadd.f32 %v10066, %v10258
    %10260 = vmatprep.mubr.bf16.mxu0 %v5873
    %10261 = vmatmul.mubr.bf16.gmra.mrb[0].mxu0 %v5872
    %v10262 = vpop.f32.mrb[0].mxu0
    %v10263 = vadd.f32 %v10070, %v10262
    %v10264 = vpop.f32.mrb[0].mxu0
    %v10265 = vadd.f32 %v10072, %v10264
    %v10266 = vpop.f32.mrb[0].mxu0
    %v10267 = vadd.f32 %v10074, %v10266
    %v10268 = vpop.f32.mrb[0].mxu0
    %v10269 = vadd.f32 %v10076, %v10268
    %10270 = vdwg.mxu0
    %10271 = vmatprep.subr.bf16.mxu0 %v7836
    %10272 = vmatpush1.bf16.msra.mxu0 %v7835
    %10273 = vmatprep.subr.bf16.mxu0 %v7843
    %10274 = vmatpush1.bf16.msra.mxu0 %v7842
    %10275 = vmatprep.subr.bf16.mxu0 %v7850
    %10276 = vmatpush1.bf16.msra.mxu0 %v7849
    %10277 = vmatprep.subr.bf16.mxu0 %v7857
    %10278 = vmatpush1.bf16.msra.mxu0 %v7856
    %10279 = vmatprep.subr.bf16.mxu0 %v7864
    %10280 = vmatpush1.bf16.msra.mxu0 %v7863
    %10281 = vmatprep.subr.bf16.mxu0 %v7871
    %10282 = vmatpush1.bf16.msra.mxu0 %v7870
    %10283 = vmatprep.subr.bf16.mxu0 %v7878
    %10284 = vmatpush1.bf16.msra.mxu0 %v7877
    %10285 = vmatprep.subr.bf16.mxu0 %v7885
    %10286 = vmatpush1.bf16.msra.mxu0 %v7884
    %10287 = vmatprep.subr.bf16.mxu0 %v7892
    %10288 = vmatpush1.bf16.msra.mxu0 %v7891
    %10289 = vmatprep.subr.bf16.mxu0 %v7899
    %10290 = vmatpush1.bf16.msra.mxu0 %v7898
    %10291 = vmatprep.subr.bf16.mxu0 %v7906
    %10292 = vmatpush1.bf16.msra.mxu0 %v7905
    %10293 = vmatprep.subr.bf16.mxu0 %v7913
    %10294 = vmatpush1.bf16.msra.mxu0 %v7912
    %10295 = vmatprep.subr.bf16.mxu0 %v7920
    %10296 = vmatpush1.bf16.msra.mxu0 %v7919
    %10297 = vmatprep.subr.bf16.mxu0 %v7927
    %10298 = vmatpush1.bf16.msra.mxu0 %v7926
    %10299 = vmatprep.subr.bf16.mxu0 %v7934
    %10300 = vmatpush1.bf16.msra.mxu0 %v7933
    %10301 = vmatprep.subr.bf16.mxu0 %v7941
    %10302 = vmatpush1.bf16.msra.mxu0 %v7940
    %10303 = vmatprep.mubr.bf16.mxu0 %v5747
    %10304 = vmatmul.mubr.bf16.gmra.mrb[0].mxu0 %v5746
    %v10305 = vpop.f32.mrb[0].mxu0
    %v10306 = vadd.f32 %v6407, %v10305
    %v10307 = vpop.f32.mrb[0].mxu0
    %v10308 = vadd.f32 %v6411, %v10307
    %v10309 = vpop.f32.mrb[0].mxu0
    %v10310 = vadd.f32 %v6407, %v10309
    %v10311 = vpop.f32.mrb[0].mxu0
    %v10312 = vadd.f32 %v6411, %v10311
    %10313 = vmatprep.mubr.bf16.mxu0 %v5755
    %10314 = vmatmul.mubr.bf16.gmra.mrb[0].mxu0 %v5754
    %v10315 = vpop.f32.mrb[0].mxu0
    %v10316 = vadd.f32 %v6407, %v10315
    %v10317 = vpop.f32.mrb[0].mxu0
    %v10318 = vadd.f32 %v6411, %v10317
    %v10319 = vpop.f32.mrb[0].mxu0
    %v10320 = vadd.f32 %v6407, %v10319
    %v10321 = vpop.f32.mrb[0].mxu0
    %v10322 = vadd.f32 %v6411, %v10321
    %10323 = vmatprep.mubr.bf16.mxu0 %v5763
    %10324 = vmatmul.mubr.bf16.gmra.mrb[0].mxu0 %v5762
    %v10325 = vpop.f32.mrb[0].mxu0
    %v10326 = vadd.f32 %v6407, %v10325
    %v10327 = vpop.f32.mrb[0].mxu0
    %v10328 = vadd.f32 %v6411, %v10327
    %v10329 = vpop.f32.mrb[0].mxu0
    %v10330 = vadd.f32 %v6407, %v10329
    %v10331 = vpop.f32.mrb[0].mxu0
    %v10332 = vadd.f32 %v6411, %v10331
    %10333 = vmatprep.mubr.bf16.mxu0 %v5771
    %10334 = vmatmul.mubr.bf16.gmra.mrb[0].mxu0 %v5770
    %v10335 = vpop.f32.mrb[0].mxu0
    %v10336 = vadd.f32 %v6407, %v10335
    %v10337 = vpop.f32.mrb[0].mxu0
    %v10338 = vadd.f32 %v6411, %v10337
    %v10339 = vpop.f32.mrb[0].mxu0
    %v10340 = vadd.f32 %v6407, %v10339
    %v10341 = vpop.f32.mrb[0].mxu0
    %v10342 = vadd.f32 %v6411, %v10341
    %10343 = vmatprep.mubr.bf16.mxu0 %v5779
    %10344 = vmatmul.mubr.bf16.gmra.mrb[0].mxu0 %v5778
    %v10345 = vpop.f32.mrb[0].mxu0
    %v10346 = vadd.f32 %v6407, %v10345
    %v10347 = vpop.f32.mrb[0].mxu0
    %v10348 = vadd.f32 %v6411, %v10347
    %v10349 = vpop.f32.mrb[0].mxu0
    %v10350 = vadd.f32 %v6407, %v10349
    %v10351 = vpop.f32.mrb[0].mxu0
    %v10352 = vadd.f32 %v6411, %v10351
    %10353 = vmatprep.mubr.bf16.mxu0 %v5787
    %10354 = vmatmul.mubr.bf16.gmra.mrb[0].mxu0 %v5786
    %v10355 = vpop.f32.mrb[0].mxu0
    %v10356 = vadd.f32 %v6407, %v10355
    %v10357 = vpop.f32.mrb[0].mxu0
    %v10358 = vadd.f32 %v6411, %v10357
    %v10359 = vpop.f32.mrb[0].mxu0
    %v10360 = vadd.f32 %v6407, %v10359
    %v10361 = vpop.f32.mrb[0].mxu0
    %v10362 = vadd.f32 %v6411, %v10361
    %10363 = vmatprep.mubr.bf16.mxu0 %v5795
    %10364 = vmatmul.mubr.bf16.gmra.mrb[0].mxu0 %v5794
    %v10365 = vpop.f32.mrb[0].mxu0
    %v10366 = vadd.f32 %v6407, %v10365
    %v10367 = vpop.f32.mrb[0].mxu0
    %v10368 = vadd.f32 %v6411, %v10367
    %v10369 = vpop.f32.mrb[0].mxu0
    %v10370 = vadd.f32 %v6407, %v10369
    %v10371 = vpop.f32.mrb[0].mxu0
    %v10372 = vadd.f32 %v6411, %v10371
    %10373 = vmatprep.mubr.bf16.mxu0 %v5803
    %10374 = vmatmul.mubr.bf16.gmra.mrb[0].mxu0 %v5802
    %v10375 = vpop.f32.mrb[0].mxu0
    %v10376 = vadd.f32 %v6407, %v10375
    %v10377 = vpop.f32.mrb[0].mxu0
    %v10378 = vadd.f32 %v6411, %v10377
    %v10379 = vpop.f32.mrb[0].mxu0
    %v10380 = vadd.f32 %v6407, %v10379
    %v10381 = vpop.f32.mrb[0].mxu0
    %v10382 = vadd.f32 %v6411, %v10381
    %10383 = vmatprep.mubr.bf16.mxu0 %v5811
    %10384 = vmatmul.mubr.bf16.gmra.mrb[0].mxu0 %v5810
    %v10385 = vpop.f32.mrb[0].mxu0
    %v10386 = vadd.f32 %v6407, %v10385
    %v10387 = vpop.f32.mrb[0].mxu0
    %v10388 = vadd.f32 %v6411, %v10387
    %v10389 = vpop.f32.mrb[0].mxu0
    %v10390 = vadd.f32 %v6407, %v10389
    %v10391 = vpop.f32.mrb[0].mxu0
    %v10392 = vadd.f32 %v6411, %v10391
    %10393 = vmatprep.mubr.bf16.mxu0 %v5819
    %10394 = vmatmul.mubr.bf16.gmra.mrb[0].mxu0 %v5818
    %v10395 = vpop.f32.mrb[0].mxu0
    %v10396 = vadd.f32 %v6407, %v10395
    %v10397 = vpop.f32.mrb[0].mxu0
    %v10398 = vadd.f32 %v6411, %v10397
    %v10399 = vpop.f32.mrb[0].mxu0
    %v10400 = vadd.f32 %v6407, %v10399
    %v10401 = vpop.f32.mrb[0].mxu0
    %v10402 = vadd.f32 %v6411, %v10401
    %10403 = vmatprep.mubr.bf16.mxu0 %v5827
    %10404 = vmatmul.mubr.bf16.gmra.mrb[0].mxu0 %v5826
    %v10405 = vpop.f32.mrb[0].mxu0
    %v10406 = vadd.f32 %v6407, %v10405
    %v10407 = vpop.f32.mrb[0].mxu0
    %v10408 = vadd.f32 %v6411, %v10407
    %v10409 = vpop.f32.mrb[0].mxu0
    %v10410 = vadd.f32 %v6407, %v10409
    %v10411 = vpop.f32.mrb[0].mxu0
    %v10412 = vadd.f32 %v6411, %v10411
    %10413 = vmatprep.mubr.bf16.mxu0 %v5835
    %10414 = vmatmul.mubr.bf16.gmra.mrb[0].mxu0 %v5834
    %v10415 = vpop.f32.mrb[0].mxu0
    %v10416 = vadd.f32 %v6407, %v10415
    %v10417 = vpop.f32.mrb[0].mxu0
    %v10418 = vadd.f32 %v6411, %v10417
    %v10419 = vpop.f32.mrb[0].mxu0
    %v10420 = vadd.f32 %v6407, %v10419
    %v10421 = vpop.f32.mrb[0].mxu0
    %v10422 = vadd.f32 %v6411, %v10421
    %10423 = vmatprep.mubr.bf16.mxu0 %v5843
    %10424 = vmatmul.mubr.bf16.gmra.mrb[0].mxu0 %v5842
    %v10425 = vpop.f32.mrb[0].mxu0
    %v10426 = vadd.f32 %v6407, %v10425
    %v10427 = vpop.f32.mrb[0].mxu0
    %v10428 = vadd.f32 %v6411, %v10427
    %v10429 = vpop.f32.mrb[0].mxu0
    %v10430 = vadd.f32 %v6407, %v10429
    %v10431 = vpop.f32.mrb[0].mxu0
    %v10432 = vadd.f32 %v6411, %v10431
    %10433 = vmatprep.mubr.bf16.mxu0 %v5851
    %10434 = vmatmul.mubr.bf16.gmra.mrb[0].mxu0 %v5850
    %v10435 = vpop.f32.mrb[0].mxu0
    %v10436 = vadd.f32 %v6407, %v10435
    %v10437 = vpop.f32.mrb[0].mxu0
    %v10438 = vadd.f32 %v6411, %v10437
    %v10439 = vpop.f32.mrb[0].mxu0
    %v10440 = vadd.f32 %v6407, %v10439
    %v10441 = vpop.f32.mrb[0].mxu0
    %v10442 = vadd.f32 %v6411, %v10441
    %10443 = vmatprep.mubr.bf16.mxu0 %v5859
    %10444 = vmatmul.mubr.bf16.gmra.mrb[0].mxu0 %v5858
    %v10445 = vpop.f32.mrb[0].mxu0
    %v10446 = vadd.f32 %v6407, %v10445
    %v10447 = vpop.f32.mrb[0].mxu0
    %v10448 = vadd.f32 %v6411, %v10447
    %v10449 = vpop.f32.mrb[0].mxu0
    %v10450 = vadd.f32 %v6407, %v10449
    %v10451 = vpop.f32.mrb[0].mxu0
    %v10452 = vadd.f32 %v6411, %v10451
    %10453 = vmatprep.mubr.bf16.mxu0 %v5867
    %10454 = vmatmul.mubr.bf16.gmra.mrb[0].mxu0 %v5866
    %v10455 = vpop.f32.mrb[0].mxu0
    %v10456 = vadd.f32 %v6407, %v10455
    %v10457 = vpop.f32.mrb[0].mxu0
    %v10458 = vadd.f32 %v6411, %v10457
    %v10459 = vpop.f32.mrb[0].mxu0
    %v10460 = vadd.f32 %v6407, %v10459
    %v10461 = vpop.f32.mrb[0].mxu0
    %v10462 = vadd.f32 %v6411, %v10461
    %10463 = vdwg.mxu0
    %10464 = vmatprep.subr.bf16.mxu0 %v7948
    %10465 = vmatpush1.bf16.msra.mxu0 %v7947
    %10466 = vmatprep.subr.bf16.mxu0 %v7955
    %10467 = vmatpush1.bf16.msra.mxu0 %v7954
    %10468 = vmatprep.subr.bf16.mxu0 %v7962
    %10469 = vmatpush1.bf16.msra.mxu0 %v7961
    %10470 = vmatprep.subr.bf16.mxu0 %v7969
    %10471 = vmatpush1.bf16.msra.mxu0 %v7968
    %10472 = vmatprep.subr.bf16.mxu0 %v7976
    %10473 = vmatpush1.bf16.msra.mxu0 %v7975
    %10474 = vmatprep.subr.bf16.mxu0 %v7983
    %10475 = vmatpush1.bf16.msra.mxu0 %v7982
    %10476 = vmatprep.subr.bf16.mxu0 %v7990
    %10477 = vmatpush1.bf16.msra.mxu0 %v7989
    %10478 = vmatprep.subr.bf16.mxu0 %v7997
    %10479 = vmatpush1.bf16.msra.mxu0 %v7996
    %10480 = vmatprep.subr.bf16.mxu0 %v8004
    %10481 = vmatpush1.bf16.msra.mxu0 %v8003
    %10482 = vmatprep.subr.bf16.mxu0 %v8011
    %10483 = vmatpush1.bf16.msra.mxu0 %v8010
    %10484 = vmatprep.subr.bf16.mxu0 %v8018
    %10485 = vmatpush1.bf16.msra.mxu0 %v8017
    %10486 = vmatprep.subr.bf16.mxu0 %v8025
    %10487 = vmatpush1.bf16.msra.mxu0 %v8024
    %10488 = vmatprep.subr.bf16.mxu0 %v8032
    %10489 = vmatpush1.bf16.msra.mxu0 %v8031
    %10490 = vmatprep.subr.bf16.mxu0 %v8039
    %10491 = vmatpush1.bf16.msra.mxu0 %v8038
    %10492 = vmatprep.subr.bf16.mxu0 %v8046
    %10493 = vmatpush1.bf16.msra.mxu0 %v8045
    %10494 = vmatprep.subr.bf16.mxu0 %v8053
    %10495 = vmatpush1.bf16.msra.mxu0 %v8052
    %10496 = vmatprep.mubr.bf16.mxu0 %v5749
    %10497 = vmatmul.mubr.bf16.gmra.mrb[0].mxu0 %v5748
    %v10498 = vpop.f32.mrb[0].mxu0
    %v10499 = vadd.f32 %v10306, %v10498
    %v10500 = vpop.f32.mrb[0].mxu0
    %v10501 = vadd.f32 %v10308, %v10500
    %v10502 = vpop.f32.mrb[0].mxu0
    %v10503 = vadd.f32 %v10310, %v10502
    %v10504 = vpop.f32.mrb[0].mxu0
    %v10505 = vadd.f32 %v10312, %v10504
    %10506 = vmatprep.mubr.bf16.mxu0 %v5757
    %10507 = vmatmul.mubr.bf16.gmra.mrb[0].mxu0 %v5756
    %v10508 = vpop.f32.mrb[0].mxu0
    %v10509 = vadd.f32 %v10316, %v10508
    %v10510 = vpop.f32.mrb[0].mxu0
    %v10511 = vadd.f32 %v10318, %v10510
    %v10512 = vpop.f32.mrb[0].mxu0
    %v10513 = vadd.f32 %v10320, %v10512
    %v10514 = vpop.f32.mrb[0].mxu0
    %v10515 = vadd.f32 %v10322, %v10514
    %10516 = vmatprep.mubr.bf16.mxu0 %v5765
    %10517 = vmatmul.mubr.bf16.gmra.mrb[0].mxu0 %v5764
    %v10518 = vpop.f32.mrb[0].mxu0
    %v10519 = vadd.f32 %v10326, %v10518
    %v10520 = vpop.f32.mrb[0].mxu0
    %v10521 = vadd.f32 %v10328, %v10520
    %v10522 = vpop.f32.mrb[0].mxu0
    %v10523 = vadd.f32 %v10330, %v10522
    %v10524 = vpop.f32.mrb[0].mxu0
    %v10525 = vadd.f32 %v10332, %v10524
    %10526 = vmatprep.mubr.bf16.mxu0 %v5773
    %10527 = vmatmul.mubr.bf16.gmra.mrb[0].mxu0 %v5772
    %v10528 = vpop.f32.mrb[0].mxu0
    %v10529 = vadd.f32 %v10336, %v10528
    %v10530 = vpop.f32.mrb[0].mxu0
    %v10531 = vadd.f32 %v10338, %v10530
    %v10532 = vpop.f32.mrb[0].mxu0
    %v10533 = vadd.f32 %v10340, %v10532
    %v10534 = vpop.f32.mrb[0].mxu0
    %v10535 = vadd.f32 %v10342, %v10534
    %10536 = vmatprep.mubr.bf16.mxu0 %v5781
    %10537 = vmatmul.mubr.bf16.gmra.mrb[0].mxu0 %v5780
    %v10538 = vpop.f32.mrb[0].mxu0
    %v10539 = vadd.f32 %v10346, %v10538
    %v10540 = vpop.f32.mrb[0].mxu0
    %v10541 = vadd.f32 %v10348, %v10540
    %v10542 = vpop.f32.mrb[0].mxu0
    %v10543 = vadd.f32 %v10350, %v10542
    %v10544 = vpop.f32.mrb[0].mxu0
    %v10545 = vadd.f32 %v10352, %v10544
    %10546 = vmatprep.mubr.bf16.mxu0 %v5789
    %10547 = vmatmul.mubr.bf16.gmra.mrb[0].mxu0 %v5788
    %v10548 = vpop.f32.mrb[0].mxu0
    %v10549 = vadd.f32 %v10356, %v10548
    %v10550 = vpop.f32.mrb[0].mxu0
    %v10551 = vadd.f32 %v10358, %v10550
    %v10552 = vpop.f32.mrb[0].mxu0
    %v10553 = vadd.f32 %v10360, %v10552
    %v10554 = vpop.f32.mrb[0].mxu0
    %v10555 = vadd.f32 %v10362, %v10554
    %10556 = vmatprep.mubr.bf16.mxu0 %v5797
    %10557 = vmatmul.mubr.bf16.gmra.mrb[0].mxu0 %v5796
    %v10558 = vpop.f32.mrb[0].mxu0
    %v10559 = vadd.f32 %v10366, %v10558
    %v10560 = vpop.f32.mrb[0].mxu0
    %v10561 = vadd.f32 %v10368, %v10560
    %v10562 = vpop.f32.mrb[0].mxu0
    %v10563 = vadd.f32 %v10370, %v10562
    %v10564 = vpop.f32.mrb[0].mxu0
    %v10565 = vadd.f32 %v10372, %v10564
    %10566 = vmatprep.mubr.bf16.mxu0 %v5805
    %10567 = vmatmul.mubr.bf16.gmra.mrb[0].mxu0 %v5804
    %v10568 = vpop.f32.mrb[0].mxu0
    %v10569 = vadd.f32 %v10376, %v10568
    %v10570 = vpop.f32.mrb[0].mxu0
    %v10571 = vadd.f32 %v10378, %v10570
    %v10572 = vpop.f32.mrb[0].mxu0
    %v10573 = vadd.f32 %v10380, %v10572
    %v10574 = vpop.f32.mrb[0].mxu0
    %v10575 = vadd.f32 %v10382, %v10574
    %10576 = vmatprep.mubr.bf16.mxu0 %v5813
    %10577 = vmatmul.mubr.bf16.gmra.mrb[0].mxu0 %v5812
    %v10578 = vpop.f32.mrb[0].mxu0
    %v10579 = vadd.f32 %v10386, %v10578
    %v10580 = vpop.f32.mrb[0].mxu0
    %v10581 = vadd.f32 %v10388, %v10580
    %v10582 = vpop.f32.mrb[0].mxu0
    %v10583 = vadd.f32 %v10390, %v10582
    %v10584 = vpop.f32.mrb[0].mxu0
    %v10585 = vadd.f32 %v10392, %v10584
    %10586 = vmatprep.mubr.bf16.mxu0 %v5821
    %10587 = vmatmul.mubr.bf16.gmra.mrb[0].mxu0 %v5820
    %v10588 = vpop.f32.mrb[0].mxu0
    %v10589 = vadd.f32 %v10396, %v10588
    %v10590 = vpop.f32.mrb[0].mxu0
    %v10591 = vadd.f32 %v10398, %v10590
    %v10592 = vpop.f32.mrb[0].mxu0
    %v10593 = vadd.f32 %v10400, %v10592
    %v10594 = vpop.f32.mrb[0].mxu0
    %v10595 = vadd.f32 %v10402, %v10594
    %10596 = vmatprep.mubr.bf16.mxu0 %v5829
    %10597 = vmatmul.mubr.bf16.gmra.mrb[0].mxu0 %v5828
    %v10598 = vpop.f32.mrb[0].mxu0
    %v10599 = vadd.f32 %v10406, %v10598
    %v10600 = vpop.f32.mrb[0].mxu0
    %v10601 = vadd.f32 %v10408, %v10600
    %v10602 = vpop.f32.mrb[0].mxu0
    %v10603 = vadd.f32 %v10410, %v10602
    %v10604 = vpop.f32.mrb[0].mxu0
    %v10605 = vadd.f32 %v10412, %v10604
    %10606 = vmatprep.mubr.bf16.mxu0 %v5837
    %10607 = vmatmul.mubr.bf16.gmra.mrb[0].mxu0 %v5836
    %v10608 = vpop.f32.mrb[0].mxu0
    %v10609 = vadd.f32 %v10416, %v10608
    %v10610 = vpop.f32.mrb[0].mxu0
    %v10611 = vadd.f32 %v10418, %v10610
    %v10612 = vpop.f32.mrb[0].mxu0
    %v10613 = vadd.f32 %v10420, %v10612
    %v10614 = vpop.f32.mrb[0].mxu0
    %v10615 = vadd.f32 %v10422, %v10614
    %10616 = vmatprep.mubr.bf16.mxu0 %v5845
    %10617 = vmatmul.mubr.bf16.gmra.mrb[0].mxu0 %v5844
    %v10618 = vpop.f32.mrb[0].mxu0
    %v10619 = vadd.f32 %v10426, %v10618
    %v10620 = vpop.f32.mrb[0].mxu0
    %v10621 = vadd.f32 %v10428, %v10620
    %v10622 = vpop.f32.mrb[0].mxu0
    %v10623 = vadd.f32 %v10430, %v10622
    %v10624 = vpop.f32.mrb[0].mxu0
    %v10625 = vadd.f32 %v10432, %v10624
    %10626 = vmatprep.mubr.bf16.mxu0 %v5853
    %10627 = vmatmul.mubr.bf16.gmra.mrb[0].mxu0 %v5852
    %v10628 = vpop.f32.mrb[0].mxu0
    %v10629 = vadd.f32 %v10436, %v10628
    %v10630 = vpop.f32.mrb[0].mxu0
    %v10631 = vadd.f32 %v10438, %v10630
    %v10632 = vpop.f32.mrb[0].mxu0
    %v10633 = vadd.f32 %v10440, %v10632
    %v10634 = vpop.f32.mrb[0].mxu0
    %v10635 = vadd.f32 %v10442, %v10634
    %10636 = vmatprep.mubr.bf16.mxu0 %v5861
    %10637 = vmatmul.mubr.bf16.gmra.mrb[0].mxu0 %v5860
    %v10638 = vpop.f32.mrb[0].mxu0
    %v10639 = vadd.f32 %v10446, %v10638
    %v10640 = vpop.f32.mrb[0].mxu0
    %v10641 = vadd.f32 %v10448, %v10640
    %v10642 = vpop.f32.mrb[0].mxu0
    %v10643 = vadd.f32 %v10450, %v10642
    %v10644 = vpop.f32.mrb[0].mxu0
    %v10645 = vadd.f32 %v10452, %v10644
    %10646 = vmatprep.mubr.bf16.mxu0 %v5869
    %10647 = vmatmul.mubr.bf16.gmra.mrb[0].mxu0 %v5868
    %v10648 = vpop.f32.mrb[0].mxu0
    %v10649 = vadd.f32 %v10456, %v10648
    %v10650 = vpop.f32.mrb[0].mxu0
    %v10651 = vadd.f32 %v10458, %v10650
    %v10652 = vpop.f32.mrb[0].mxu0
    %v10653 = vadd.f32 %v10460, %v10652
    %v10654 = vpop.f32.mrb[0].mxu0
    %v10655 = vadd.f32 %v10462, %v10654
    %10656 = vdwg.mxu0
    %10657 = vmatprep.subr.bf16.mxu0 %v8060
    %10658 = vmatpush1.bf16.msra.mxu0 %v8059
    %10659 = vmatprep.subr.bf16.mxu0 %v8067
    %10660 = vmatpush1.bf16.msra.mxu0 %v8066
    %10661 = vmatprep.subr.bf16.mxu0 %v8074
    %10662 = vmatpush1.bf16.msra.mxu0 %v8073
    %10663 = vmatprep.subr.bf16.mxu0 %v8081
    %10664 = vmatpush1.bf16.msra.mxu0 %v8080
    %10665 = vmatprep.subr.bf16.mxu0 %v8088
    %10666 = vmatpush1.bf16.msra.mxu0 %v8087
    %10667 = vmatprep.subr.bf16.mxu0 %v8095
    %10668 = vmatpush1.bf16.msra.mxu0 %v8094
    %10669 = vmatprep.subr.bf16.mxu0 %v8102
    %10670 = vmatpush1.bf16.msra.mxu0 %v8101
    %10671 = vmatprep.subr.bf16.mxu0 %v8109
    %10672 = vmatpush1.bf16.msra.mxu0 %v8108
    %10673 = vmatprep.subr.bf16.mxu0 %v8116
    %10674 = vmatpush1.bf16.msra.mxu0 %v8115
    %10675 = vmatprep.subr.bf16.mxu0 %v8123
    %10676 = vmatpush1.bf16.msra.mxu0 %v8122
    %10677 = vmatprep.subr.bf16.mxu0 %v8130
    %10678 = vmatpush1.bf16.msra.mxu0 %v8129
    %10679 = vmatprep.subr.bf16.mxu0 %v8137
    %10680 = vmatpush1.bf16.msra.mxu0 %v8136
    %10681 = vmatprep.subr.bf16.mxu0 %v8144
    %10682 = vmatpush1.bf16.msra.mxu0 %v8143
    %10683 = vmatprep.subr.bf16.mxu0 %v8151
    %10684 = vmatpush1.bf16.msra.mxu0 %v8150
    %10685 = vmatprep.subr.bf16.mxu0 %v8158
    %10686 = vmatpush1.bf16.msra.mxu0 %v8157
    %10687 = vmatprep.subr.bf16.mxu0 %v8165
    %10688 = vmatpush1.bf16.msra.mxu0 %v8164
    %10689 = vmatprep.mubr.bf16.mxu0 %v5751
    %10690 = vmatmul.mubr.bf16.gmra.mrb[0].mxu0 %v5750
    %v10691 = vpop.f32.mrb[0].mxu0
    %v10692 = vadd.f32 %v10499, %v10691
    %v10693 = vpop.f32.mrb[0].mxu0
    %v10694 = vadd.f32 %v10501, %v10693
    %v10695 = vpop.f32.mrb[0].mxu0
    %v10696 = vadd.f32 %v10503, %v10695
    %v10697 = vpop.f32.mrb[0].mxu0
    %v10698 = vadd.f32 %v10505, %v10697
    %10699 = vmatprep.mubr.bf16.mxu0 %v5759
    %10700 = vmatmul.mubr.bf16.gmra.mrb[0].mxu0 %v5758
    %v10701 = vpop.f32.mrb[0].mxu0
    %v10702 = vadd.f32 %v10509, %v10701
    %v10703 = vpop.f32.mrb[0].mxu0
    %v10704 = vadd.f32 %v10511, %v10703
    %v10705 = vpop.f32.mrb[0].mxu0
    %v10706 = vadd.f32 %v10513, %v10705
    %v10707 = vpop.f32.mrb[0].mxu0
    %v10708 = vadd.f32 %v10515, %v10707
    %10709 = vmatprep.mubr.bf16.mxu0 %v5767
    %10710 = vmatmul.mubr.bf16.gmra.mrb[0].mxu0 %v5766
    %v10711 = vpop.f32.mrb[0].mxu0
    %v10712 = vadd.f32 %v10519, %v10711
    %v10713 = vpop.f32.mrb[0].mxu0
    %v10714 = vadd.f32 %v10521, %v10713
    %v10715 = vpop.f32.mrb[0].mxu0
    %v10716 = vadd.f32 %v10523, %v10715
    %v10717 = vpop.f32.mrb[0].mxu0
    %v10718 = vadd.f32 %v10525, %v10717
    %10719 = vmatprep.mubr.bf16.mxu0 %v5775
    %10720 = vmatmul.mubr.bf16.gmra.mrb[0].mxu0 %v5774
    %v10721 = vpop.f32.mrb[0].mxu0
    %v10722 = vadd.f32 %v10529, %v10721
    %v10723 = vpop.f32.mrb[0].mxu0
    %v10724 = vadd.f32 %v10531, %v10723
    %v10725 = vpop.f32.mrb[0].mxu0
    %v10726 = vadd.f32 %v10533, %v10725
    %v10727 = vpop.f32.mrb[0].mxu0
    %v10728 = vadd.f32 %v10535, %v10727
    %10729 = vmatprep.mubr.bf16.mxu0 %v5783
    %10730 = vmatmul.mubr.bf16.gmra.mrb[0].mxu0 %v5782
    %v10731 = vpop.f32.mrb[0].mxu0
    %v10732 = vadd.f32 %v10539, %v10731
    %v10733 = vpop.f32.mrb[0].mxu0
    %v10734 = vadd.f32 %v10541, %v10733
    %v10735 = vpop.f32.mrb[0].mxu0
    %v10736 = vadd.f32 %v10543, %v10735
    %v10737 = vpop.f32.mrb[0].mxu0
    %v10738 = vadd.f32 %v10545, %v10737
    %10739 = vmatprep.mubr.bf16.mxu0 %v5791
    %10740 = vmatmul.mubr.bf16.gmra.mrb[0].mxu0 %v5790
    %v10741 = vpop.f32.mrb[0].mxu0
    %v10742 = vadd.f32 %v10549, %v10741
    %v10743 = vpop.f32.mrb[0].mxu0
    %v10744 = vadd.f32 %v10551, %v10743
    %v10745 = vpop.f32.mrb[0].mxu0
    %v10746 = vadd.f32 %v10553, %v10745
    %v10747 = vpop.f32.mrb[0].mxu0
    %v10748 = vadd.f32 %v10555, %v10747
    %10749 = vmatprep.mubr.bf16.mxu0 %v5799
    %10750 = vmatmul.mubr.bf16.gmra.mrb[0].mxu0 %v5798
    %v10751 = vpop.f32.mrb[0].mxu0
    %v10752 = vadd.f32 %v10559, %v10751
    %v10753 = vpop.f32.mrb[0].mxu0
    %v10754 = vadd.f32 %v10561, %v10753
    %v10755 = vpop.f32.mrb[0].mxu0
    %v10756 = vadd.f32 %v10563, %v10755
    %v10757 = vpop.f32.mrb[0].mxu0
    %v10758 = vadd.f32 %v10565, %v10757
    %10759 = vmatprep.mubr.bf16.mxu0 %v5807
    %10760 = vmatmul.mubr.bf16.gmra.mrb[0].mxu0 %v5806
    %v10761 = vpop.f32.mrb[0].mxu0
    %v10762 = vadd.f32 %v10569, %v10761
    %v10763 = vpop.f32.mrb[0].mxu0
    %v10764 = vadd.f32 %v10571, %v10763
    %v10765 = vpop.f32.mrb[0].mxu0
    %v10766 = vadd.f32 %v10573, %v10765
    %v10767 = vpop.f32.mrb[0].mxu0
    %v10768 = vadd.f32 %v10575, %v10767
    %10769 = vmatprep.mubr.bf16.mxu0 %v5815
    %10770 = vmatmul.mubr.bf16.gmra.mrb[0].mxu0 %v5814
    %v10771 = vpop.f32.mrb[0].mxu0
    %v10772 = vadd.f32 %v10579, %v10771
    %v10773 = vpop.f32.mrb[0].mxu0
    %v10774 = vadd.f32 %v10581, %v10773
    %v10775 = vpop.f32.mrb[0].mxu0
    %v10776 = vadd.f32 %v10583, %v10775
    %v10777 = vpop.f32.mrb[0].mxu0
    %v10778 = vadd.f32 %v10585, %v10777
    %10779 = vmatprep.mubr.bf16.mxu0 %v5823
    %10780 = vmatmul.mubr.bf16.gmra.mrb[0].mxu0 %v5822
    %v10781 = vpop.f32.mrb[0].mxu0
    %v10782 = vadd.f32 %v10589, %v10781
    %v10783 = vpop.f32.mrb[0].mxu0
    %v10784 = vadd.f32 %v10591, %v10783
    %v10785 = vpop.f32.mrb[0].mxu0
    %v10786 = vadd.f32 %v10593, %v10785
    %v10787 = vpop.f32.mrb[0].mxu0
    %v10788 = vadd.f32 %v10595, %v10787
    %10789 = vmatprep.mubr.bf16.mxu0 %v5831
    %10790 = vmatmul.mubr.bf16.gmra.mrb[0].mxu0 %v5830
    %v10791 = vpop.f32.mrb[0].mxu0
    %v10792 = vadd.f32 %v10599, %v10791
    %v10793 = vpop.f32.mrb[0].mxu0
    %v10794 = vadd.f32 %v10601, %v10793
    %v10795 = vpop.f32.mrb[0].mxu0
    %v10796 = vadd.f32 %v10603, %v10795
    %v10797 = vpop.f32.mrb[0].mxu0
    %v10798 = vadd.f32 %v10605, %v10797
    %10799 = vmatprep.mubr.bf16.mxu0 %v5839
    %10800 = vmatmul.mubr.bf16.gmra.mrb[0].mxu0 %v5838
    %v10801 = vpop.f32.mrb[0].mxu0
    %v10802 = vadd.f32 %v10609, %v10801
    %v10803 = vpop.f32.mrb[0].mxu0
    %v10804 = vadd.f32 %v10611, %v10803
    %v10805 = vpop.f32.mrb[0].mxu0
    %v10806 = vadd.f32 %v10613, %v10805
    %v10807 = vpop.f32.mrb[0].mxu0
    %v10808 = vadd.f32 %v10615, %v10807
    %10809 = vmatprep.mubr.bf16.mxu0 %v5847
    %10810 = vmatmul.mubr.bf16.gmra.mrb[0].mxu0 %v5846
    %v10811 = vpop.f32.mrb[0].mxu0
    %v10812 = vadd.f32 %v10619, %v10811
    %v10813 = vpop.f32.mrb[0].mxu0
    %v10814 = vadd.f32 %v10621, %v10813
    %v10815 = vpop.f32.mrb[0].mxu0
    %v10816 = vadd.f32 %v10623, %v10815
    %v10817 = vpop.f32.mrb[0].mxu0
    %v10818 = vadd.f32 %v10625, %v10817
    %10819 = vmatprep.mubr.bf16.mxu0 %v5855
    %10820 = vmatmul.mubr.bf16.gmra.mrb[0].mxu0 %v5854
    %v10821 = vpop.f32.mrb[0].mxu0
    %v10822 = vadd.f32 %v10629, %v10821
    %v10823 = vpop.f32.mrb[0].mxu0
    %v10824 = vadd.f32 %v10631, %v10823
    %v10825 = vpop.f32.mrb[0].mxu0
    %v10826 = vadd.f32 %v10633, %v10825
    %v10827 = vpop.f32.mrb[0].mxu0
    %v10828 = vadd.f32 %v10635, %v10827
    %10829 = vmatprep.mubr.bf16.mxu0 %v5863
    %10830 = vmatmul.mubr.bf16.gmra.mrb[0].mxu0 %v5862
    %v10831 = vpop.f32.mrb[0].mxu0
    %v10832 = vadd.f32 %v10639, %v10831
    %v10833 = vpop.f32.mrb[0].mxu0
    %v10834 = vadd.f32 %v10641, %v10833
    %v10835 = vpop.f32.mrb[0].mxu0
    %v10836 = vadd.f32 %v10643, %v10835
    %v10837 = vpop.f32.mrb[0].mxu0
    %v10838 = vadd.f32 %v10645, %v10837
    %10839 = vmatprep.mubr.bf16.mxu0 %v5871
    %10840 = vmatmul.mubr.bf16.gmra.mrb[0].mxu0 %v5870
    %v10841 = vpop.f32.mrb[0].mxu0
    %v10842 = vadd.f32 %v10649, %v10841
    %v10843 = vpop.f32.mrb[0].mxu0
    %v10844 = vadd.f32 %v10651, %v10843
    %v10845 = vpop.f32.mrb[0].mxu0
    %v10846 = vadd.f32 %v10653, %v10845
    %v10847 = vpop.f32.mrb[0].mxu0
    %v10848 = vadd.f32 %v10655, %v10847
    %10849 = vdwg.mxu0
    %10850 = vmatprep.subr.bf16.mxu0 %v8172
    %10851 = vmatpush1.bf16.msra.mxu0 %v8171
    %10852 = vmatprep.subr.bf16.mxu0 %v8179
    %10853 = vmatpush1.bf16.msra.mxu0 %v8178
    %10854 = vmatprep.subr.bf16.mxu0 %v8186
    %10855 = vmatpush1.bf16.msra.mxu0 %v8185
    %10856 = vmatprep.subr.bf16.mxu0 %v8193
    %10857 = vmatpush1.bf16.msra.mxu0 %v8192
    %10858 = vmatprep.subr.bf16.mxu0 %v8200
    %10859 = vmatpush1.bf16.msra.mxu0 %v8199
    %10860 = vmatprep.subr.bf16.mxu0 %v8207
    %10861 = vmatpush1.bf16.msra.mxu0 %v8206
    %10862 = vmatprep.subr.bf16.mxu0 %v8214
    %10863 = vmatpush1.bf16.msra.mxu0 %v8213
    %10864 = vmatprep.subr.bf16.mxu0 %v8221
    %10865 = vmatpush1.bf16.msra.mxu0 %v8220
    %10866 = vmatprep.subr.bf16.mxu0 %v8228
    %10867 = vmatpush1.bf16.msra.mxu0 %v8227
    %10868 = vmatprep.subr.bf16.mxu0 %v8235
    %10869 = vmatpush1.bf16.msra.mxu0 %v8234
    %10870 = vmatprep.subr.bf16.mxu0 %v8242
    %10871 = vmatpush1.bf16.msra.mxu0 %v8241
    %10872 = vmatprep.subr.bf16.mxu0 %v8249
    %10873 = vmatpush1.bf16.msra.mxu0 %v8248
    %10874 = vmatprep.subr.bf16.mxu0 %v8256
    %10875 = vmatpush1.bf16.msra.mxu0 %v8255
    %10876 = vmatprep.subr.bf16.mxu0 %v8263
    %10877 = vmatpush1.bf16.msra.mxu0 %v8262
    %10878 = vmatprep.subr.bf16.mxu0 %v8270
    %10879 = vmatpush1.bf16.msra.mxu0 %v8269
    %10880 = vmatprep.subr.bf16.mxu0 %v8277
    %10881 = vmatpush1.bf16.msra.mxu0 %v8276
    %10882 = vmatprep.mubr.bf16.mxu0 %v5753
    %10883 = vmatmul.mubr.bf16.gmra.mrb[0].mxu0 %v5752
    %v10884 = vpop.f32.mrb[0].mxu0
    %v10885 = vadd.f32 %v10692, %v10884
    %v10886 = vpop.f32.mrb[0].mxu0
    %v10887 = vadd.f32 %v10694, %v10886
    %v10888 = vpop.f32.mrb[0].mxu0
    %v10889 = vadd.f32 %v10696, %v10888
    %v10890 = vpop.f32.mrb[0].mxu0
    %v10891 = vadd.f32 %v10698, %v10890
    %10892 = vmatprep.mubr.bf16.mxu0 %v5761
    %10893 = vmatmul.mubr.bf16.gmra.mrb[0].mxu0 %v5760
    %v10894 = vpop.f32.mrb[0].mxu0
    %v10895 = vadd.f32 %v10702, %v10894
    %v10896 = vpop.f32.mrb[0].mxu0
    %v10897 = vadd.f32 %v10704, %v10896
    %v10898 = vpop.f32.mrb[0].mxu0
    %v10899 = vadd.f32 %v10706, %v10898
    %v10900 = vpop.f32.mrb[0].mxu0
    %v10901 = vadd.f32 %v10708, %v10900
    %10902 = vmatprep.mubr.bf16.mxu0 %v5769
    %10903 = vmatmul.mubr.bf16.gmra.mrb[0].mxu0 %v5768
    %v10904 = vpop.f32.mrb[0].mxu0
    %v10905 = vadd.f32 %v10712, %v10904
    %v10906 = vpop.f32.mrb[0].mxu0
    %v10907 = vadd.f32 %v10714, %v10906
    %v10908 = vpop.f32.mrb[0].mxu0
    %v10909 = vadd.f32 %v10716, %v10908
    %v10910 = vpop.f32.mrb[0].mxu0
    %v10911 = vadd.f32 %v10718, %v10910
    %10912 = vmatprep.mubr.bf16.mxu0 %v5777
    %10913 = vmatmul.mubr.bf16.gmra.mrb[0].mxu0 %v5776
    %v10914 = vpop.f32.mrb[0].mxu0
    %v10915 = vadd.f32 %v10722, %v10914
    %v10916 = vpop.f32.mrb[0].mxu0
    %v10917 = vadd.f32 %v10724, %v10916
    %v10918 = vpop.f32.mrb[0].mxu0
    %v10919 = vadd.f32 %v10726, %v10918
    %v10920 = vpop.f32.mrb[0].mxu0
    %v10921 = vadd.f32 %v10728, %v10920
    %10922 = vmatprep.mubr.bf16.mxu0 %v5785
    %10923 = vmatmul.mubr.bf16.gmra.mrb[0].mxu0 %v5784
    %v10924 = vpop.f32.mrb[0].mxu0
    %v10925 = vadd.f32 %v10732, %v10924
    %v10926 = vpop.f32.mrb[0].mxu0
    %v10927 = vadd.f32 %v10734, %v10926
    %v10928 = vpop.f32.mrb[0].mxu0
    %v10929 = vadd.f32 %v10736, %v10928
    %v10930 = vpop.f32.mrb[0].mxu0
    %v10931 = vadd.f32 %v10738, %v10930
    %10932 = vmatprep.mubr.bf16.mxu0 %v5793
    %10933 = vmatmul.mubr.bf16.gmra.mrb[0].mxu0 %v5792
    %v10934 = vpop.f32.mrb[0].mxu0
    %v10935 = vadd.f32 %v10742, %v10934
    %v10936 = vpop.f32.mrb[0].mxu0
    %v10937 = vadd.f32 %v10744, %v10936
    %v10938 = vpop.f32.mrb[0].mxu0
    %v10939 = vadd.f32 %v10746, %v10938
    %v10940 = vpop.f32.mrb[0].mxu0
    %v10941 = vadd.f32 %v10748, %v10940
    %10942 = vmatprep.mubr.bf16.mxu0 %v5801
    %10943 = vmatmul.mubr.bf16.gmra.mrb[0].mxu0 %v5800
    %v10944 = vpop.f32.mrb[0].mxu0
    %v10945 = vadd.f32 %v10752, %v10944
    %v10946 = vpop.f32.mrb[0].mxu0
    %v10947 = vadd.f32 %v10754, %v10946
    %v10948 = vpop.f32.mrb[0].mxu0
    %v10949 = vadd.f32 %v10756, %v10948
    %v10950 = vpop.f32.mrb[0].mxu0
    %v10951 = vadd.f32 %v10758, %v10950
    %10952 = vmatprep.mubr.bf16.mxu0 %v5809
    %10953 = vmatmul.mubr.bf16.gmra.mrb[0].mxu0 %v5808
    %v10954 = vpop.f32.mrb[0].mxu0
    %v10955 = vadd.f32 %v10762, %v10954
    %v10956 = vpop.f32.mrb[0].mxu0
    %v10957 = vadd.f32 %v10764, %v10956
    %v10958 = vpop.f32.mrb[0].mxu0
    %v10959 = vadd.f32 %v10766, %v10958
    %v10960 = vpop.f32.mrb[0].mxu0
    %v10961 = vadd.f32 %v10768, %v10960
    %10962 = vmatprep.mubr.bf16.mxu0 %v5817
    %10963 = vmatmul.mubr.bf16.gmra.mrb[0].mxu0 %v5816
    %v10964 = vpop.f32.mrb[0].mxu0
    %v10965 = vadd.f32 %v10772, %v10964
    %v10966 = vpop.f32.mrb[0].mxu0
    %v10967 = vadd.f32 %v10774, %v10966
    %v10968 = vpop.f32.mrb[0].mxu0
    %v10969 = vadd.f32 %v10776, %v10968
    %v10970 = vpop.f32.mrb[0].mxu0
    %v10971 = vadd.f32 %v10778, %v10970
    %10972 = vmatprep.mubr.bf16.mxu0 %v5825
    %10973 = vmatmul.mubr.bf16.gmra.mrb[0].mxu0 %v5824
    %v10974 = vpop.f32.mrb[0].mxu0
    %v10975 = vadd.f32 %v10782, %v10974
    %v10976 = vpop.f32.mrb[0].mxu0
    %v10977 = vadd.f32 %v10784, %v10976
    %v10978 = vpop.f32.mrb[0].mxu0
    %v10979 = vadd.f32 %v10786, %v10978
    %v10980 = vpop.f32.mrb[0].mxu0
    %v10981 = vadd.f32 %v10788, %v10980
    %10982 = vmatprep.mubr.bf16.mxu0 %v5833
    %10983 = vmatmul.mubr.bf16.gmra.mrb[0].mxu0 %v5832
    %v10984 = vpop.f32.mrb[0].mxu0
    %v10985 = vadd.f32 %v10792, %v10984
    %v10986 = vpop.f32.mrb[0].mxu0
    %v10987 = vadd.f32 %v10794, %v10986
    %v10988 = vpop.f32.mrb[0].mxu0
    %v10989 = vadd.f32 %v10796, %v10988
    %v10990 = vpop.f32.mrb[0].mxu0
    %v10991 = vadd.f32 %v10798, %v10990
    %10992 = vmatprep.mubr.bf16.mxu0 %v5841
    %10993 = vmatmul.mubr.bf16.gmra.mrb[0].mxu0 %v5840
    %v10994 = vpop.f32.mrb[0].mxu0
    %v10995 = vadd.f32 %v10802, %v10994
    %v10996 = vpop.f32.mrb[0].mxu0
    %v10997 = vadd.f32 %v10804, %v10996
    %v10998 = vpop.f32.mrb[0].mxu0
    %v10999 = vadd.f32 %v10806, %v10998
    %v11000 = vpop.f32.mrb[0].mxu0
    %v11001 = vadd.f32 %v10808, %v11000
    %11002 = vmatprep.mubr.bf16.mxu0 %v5849
    %11003 = vmatmul.mubr.bf16.gmra.mrb[0].mxu0 %v5848
    %v11004 = vpop.f32.mrb[0].mxu0
    %v11005 = vadd.f32 %v10812, %v11004
    %v11006 = vpop.f32.mrb[0].mxu0
    %v11007 = vadd.f32 %v10814, %v11006
    %v11008 = vpop.f32.mrb[0].mxu0
    %v11009 = vadd.f32 %v10816, %v11008
    %v11010 = vpop.f32.mrb[0].mxu0
    %v11011 = vadd.f32 %v10818, %v11010
    %11012 = vmatprep.mubr.bf16.mxu0 %v5857
    %11013 = vmatmul.mubr.bf16.gmra.mrb[0].mxu0 %v5856
    %v11014 = vpop.f32.mrb[0].mxu0
    %v11015 = vadd.f32 %v10822, %v11014
    %v11016 = vpop.f32.mrb[0].mxu0
    %v11017 = vadd.f32 %v10824, %v11016
    %v11018 = vpop.f32.mrb[0].mxu0
    %v11019 = vadd.f32 %v10826, %v11018
    %v11020 = vpop.f32.mrb[0].mxu0
    %v11021 = vadd.f32 %v10828, %v11020
    %11022 = vmatprep.mubr.bf16.mxu0 %v5865
    %11023 = vmatmul.mubr.bf16.gmra.mrb[0].mxu0 %v5864
    %v11024 = vpop.f32.mrb[0].mxu0
    %v11025 = vadd.f32 %v10832, %v11024
    %v11026 = vpop.f32.mrb[0].mxu0
    %v11027 = vadd.f32 %v10834, %v11026
    %v11028 = vpop.f32.mrb[0].mxu0
    %v11029 = vadd.f32 %v10836, %v11028
    %v11030 = vpop.f32.mrb[0].mxu0
    %v11031 = vadd.f32 %v10838, %v11030
    %11032 = vmatprep.mubr.bf16.mxu0 %v5873
    %11033 = vmatmul.mubr.bf16.gmra.mrb[0].mxu0 %v5872
    %v11034 = vpop.f32.mrb[0].mxu0
    %v11035 = vadd.f32 %v10842, %v11034
    %v11036 = vpop.f32.mrb[0].mxu0
    %v11037 = vadd.f32 %v10844, %v11036
    %v11038 = vpop.f32.mrb[0].mxu0
    %v11039 = vadd.f32 %v10846, %v11038
    %v11040 = vpop.f32.mrb[0].mxu0
    %v11041 = vadd.f32 %v10848, %v11040
    %11042 = vdwg.mxu0
    %11043 = vmatprep.subr.bf16.mxu0 0
    %11044 = vmatpush1.bf16.msra.mxu0 %v7837
    %11045 = vmatprep.subr.bf16.mxu0 0
    %11046 = vmatpush1.bf16.msra.mxu0 %v7844
    %11047 = vmatprep.subr.bf16.mxu0 0
    %11048 = vmatpush1.bf16.msra.mxu0 %v7851
    %11049 = vmatprep.subr.bf16.mxu0 0
    %11050 = vmatpush1.bf16.msra.mxu0 %v7858
    %11051 = vmatprep.subr.bf16.mxu0 0
    %11052 = vmatpush1.bf16.msra.mxu0 %v7865
    %11053 = vmatprep.subr.bf16.mxu0 0
    %11054 = vmatpush1.bf16.msra.mxu0 %v7872
    %11055 = vmatprep.subr.bf16.mxu0 0
    %11056 = vmatpush1.bf16.msra.mxu0 %v7879
    %11057 = vmatprep.subr.bf16.mxu0 0
    %11058 = vmatpush1.bf16.msra.mxu0 %v7886
    %11059 = vmatprep.subr.bf16.mxu0 0
    %11060 = vmatpush1.bf16.msra.mxu0 %v7893
    %11061 = vmatprep.subr.bf16.mxu0 0
    %11062 = vmatpush1.bf16.msra.mxu0 %v7900
    %11063 = vmatprep.subr.bf16.mxu0 0
    %11064 = vmatpush1.bf16.msra.mxu0 %v7907
    %11065 = vmatprep.subr.bf16.mxu0 0
    %11066 = vmatpush1.bf16.msra.mxu0 %v7914
    %11067 = vmatprep.subr.bf16.mxu0 0
    %11068 = vmatpush1.bf16.msra.mxu0 %v7921
    %11069 = vmatprep.subr.bf16.mxu0 0
    %11070 = vmatpush1.bf16.msra.mxu0 %v7928
    %11071 = vmatprep.subr.bf16.mxu0 0
    %11072 = vmatpush1.bf16.msra.mxu0 %v7935
    %11073 = vmatprep.subr.bf16.mxu0 0
    %11074 = vmatpush1.bf16.msra.mxu0 %v7942
    %11075 = vmatprep.mubr.bf16.mxu0 %v5747
    %11076 = vmatmul.mubr.bf16.gmra.mrb[0].mxu0 %v5746
    %v11077 = vpop.f32.mrb[0].mxu0
    %v11078 = vadd.f32 %v6415, %v11077
    %v11079 = vpop.f32.mrb[0].mxu0
    %v11080 = vpop.f32.mrb[0].mxu0
    %v11081 = vadd.f32 %v6415, %v11080
    %v11082 = vpop.f32.mrb[0].mxu0
    %11083 = vmatprep.mubr.bf16.mxu0 %v5755
    %11084 = vmatmul.mubr.bf16.gmra.mrb[0].mxu0 %v5754
    %v11085 = vpop.f32.mrb[0].mxu0
    %v11086 = vadd.f32 %v6415, %v11085
    %v11087 = vpop.f32.mrb[0].mxu0
    %v11088 = vpop.f32.mrb[0].mxu0
    %v11089 = vadd.f32 %v6415, %v11088
    %v11090 = vpop.f32.mrb[0].mxu0
    %11091 = vmatprep.mubr.bf16.mxu0 %v5763
    %11092 = vmatmul.mubr.bf16.gmra.mrb[0].mxu0 %v5762
    %v11093 = vpop.f32.mrb[0].mxu0
    %v11094 = vadd.f32 %v6415, %v11093
    %v11095 = vpop.f32.mrb[0].mxu0
    %v11096 = vpop.f32.mrb[0].mxu0
    %v11097 = vadd.f32 %v6415, %v11096
    %v11098 = vpop.f32.mrb[0].mxu0
    %11099 = vmatprep.mubr.bf16.mxu0 %v5771
    %11100 = vmatmul.mubr.bf16.gmra.mrb[0].mxu0 %v5770
    %v11101 = vpop.f32.mrb[0].mxu0
    %v11102 = vadd.f32 %v6415, %v11101
    %v11103 = vpop.f32.mrb[0].mxu0
    %v11104 = vpop.f32.mrb[0].mxu0
    %v11105 = vadd.f32 %v6415, %v11104
    %v11106 = vpop.f32.mrb[0].mxu0
    %11107 = vmatprep.mubr.bf16.mxu0 %v5779
    %11108 = vmatmul.mubr.bf16.gmra.mrb[0].mxu0 %v5778
    %v11109 = vpop.f32.mrb[0].mxu0
    %v11110 = vadd.f32 %v6415, %v11109
    %v11111 = vpop.f32.mrb[0].mxu0
    %v11112 = vpop.f32.mrb[0].mxu0
    %v11113 = vadd.f32 %v6415, %v11112
    %v11114 = vpop.f32.mrb[0].mxu0
    %11115 = vmatprep.mubr.bf16.mxu0 %v5787
    %11116 = vmatmul.mubr.bf16.gmra.mrb[0].mxu0 %v5786
    %v11117 = vpop.f32.mrb[0].mxu0
    %v11118 = vadd.f32 %v6415, %v11117
    %v11119 = vpop.f32.mrb[0].mxu0
    %v11120 = vpop.f32.mrb[0].mxu0
    %v11121 = vadd.f32 %v6415, %v11120
    %v11122 = vpop.f32.mrb[0].mxu0
    %11123 = vmatprep.mubr.bf16.mxu0 %v5795
    %11124 = vmatmul.mubr.bf16.gmra.mrb[0].mxu0 %v5794
    %v11125 = vpop.f32.mrb[0].mxu0
    %v11126 = vadd.f32 %v6415, %v11125
    %v11127 = vpop.f32.mrb[0].mxu0
    %v11128 = vpop.f32.mrb[0].mxu0
    %v11129 = vadd.f32 %v6415, %v11128
    %v11130 = vpop.f32.mrb[0].mxu0
    %11131 = vmatprep.mubr.bf16.mxu0 %v5803
    %11132 = vmatmul.mubr.bf16.gmra.mrb[0].mxu0 %v5802
    %v11133 = vpop.f32.mrb[0].mxu0
    %v11134 = vadd.f32 %v6415, %v11133
    %v11135 = vpop.f32.mrb[0].mxu0
    %v11136 = vpop.f32.mrb[0].mxu0
    %v11137 = vadd.f32 %v6415, %v11136
    %v11138 = vpop.f32.mrb[0].mxu0
    %11139 = vmatprep.mubr.bf16.mxu0 %v5811
    %11140 = vmatmul.mubr.bf16.gmra.mrb[0].mxu0 %v5810
    %v11141 = vpop.f32.mrb[0].mxu0
    %v11142 = vadd.f32 %v6415, %v11141
    %v11143 = vpop.f32.mrb[0].mxu0
    %v11144 = vpop.f32.mrb[0].mxu0
    %v11145 = vadd.f32 %v6415, %v11144
    %v11146 = vpop.f32.mrb[0].mxu0
    %11147 = vmatprep.mubr.bf16.mxu0 %v5819
    %11148 = vmatmul.mubr.bf16.gmra.mrb[0].mxu0 %v5818
    %v11149 = vpop.f32.mrb[0].mxu0
    %v11150 = vadd.f32 %v6415, %v11149
    %v11151 = vpop.f32.mrb[0].mxu0
    %v11152 = vpop.f32.mrb[0].mxu0
    %v11153 = vadd.f32 %v6415, %v11152
    %v11154 = vpop.f32.mrb[0].mxu0
    %11155 = vmatprep.mubr.bf16.mxu0 %v5827
    %11156 = vmatmul.mubr.bf16.gmra.mrb[0].mxu0 %v5826
    %v11157 = vpop.f32.mrb[0].mxu0
    %v11158 = vadd.f32 %v6415, %v11157
    %v11159 = vpop.f32.mrb[0].mxu0
    %v11160 = vpop.f32.mrb[0].mxu0
    %v11161 = vadd.f32 %v6415, %v11160
    %v11162 = vpop.f32.mrb[0].mxu0
    %11163 = vmatprep.mubr.bf16.mxu0 %v5835
    %11164 = vmatmul.mubr.bf16.gmra.mrb[0].mxu0 %v5834
    %v11165 = vpop.f32.mrb[0].mxu0
    %v11166 = vadd.f32 %v6415, %v11165
    %v11167 = vpop.f32.mrb[0].mxu0
    %v11168 = vpop.f32.mrb[0].mxu0
    %v11169 = vadd.f32 %v6415, %v11168
    %v11170 = vpop.f32.mrb[0].mxu0
    %11171 = vmatprep.mubr.bf16.mxu0 %v5843
    %11172 = vmatmul.mubr.bf16.gmra.mrb[0].mxu0 %v5842
    %v11173 = vpop.f32.mrb[0].mxu0
    %v11174 = vadd.f32 %v6415, %v11173
    %v11175 = vpop.f32.mrb[0].mxu0
    %v11176 = vpop.f32.mrb[0].mxu0
    %v11177 = vadd.f32 %v6415, %v11176
    %v11178 = vpop.f32.mrb[0].mxu0
    %11179 = vmatprep.mubr.bf16.mxu0 %v5851
    %11180 = vmatmul.mubr.bf16.gmra.mrb[0].mxu0 %v5850
    %v11181 = vpop.f32.mrb[0].mxu0
    %v11182 = vadd.f32 %v6415, %v11181
    %v11183 = vpop.f32.mrb[0].mxu0
    %v11184 = vpop.f32.mrb[0].mxu0
    %v11185 = vadd.f32 %v6415, %v11184
    %v11186 = vpop.f32.mrb[0].mxu0
    %11187 = vmatprep.mubr.bf16.mxu0 %v5859
    %11188 = vmatmul.mubr.bf16.gmra.mrb[0].mxu0 %v5858
    %v11189 = vpop.f32.mrb[0].mxu0
    %v11190 = vadd.f32 %v6415, %v11189
    %v11191 = vpop.f32.mrb[0].mxu0
    %v11192 = vpop.f32.mrb[0].mxu0
    %v11193 = vadd.f32 %v6415, %v11192
    %v11194 = vpop.f32.mrb[0].mxu0
    %11195 = vmatprep.mubr.bf16.mxu0 %v5867
    %11196 = vmatmul.mubr.bf16.gmra.mrb[0].mxu0 %v5866
    %v11197 = vpop.f32.mrb[0].mxu0
    %v11198 = vadd.f32 %v6415, %v11197
    %v11199 = vpop.f32.mrb[0].mxu0
    %v11200 = vpop.f32.mrb[0].mxu0
    %v11201 = vadd.f32 %v6415, %v11200
    %v11202 = vpop.f32.mrb[0].mxu0
    %11203 = vdwg.mxu0
    %11204 = vmatprep.subr.bf16.mxu0 0
    %11205 = vmatpush1.bf16.msra.mxu0 %v7949
    %11206 = vmatprep.subr.bf16.mxu0 0
    %11207 = vmatpush1.bf16.msra.mxu0 %v7956
    %11208 = vmatprep.subr.bf16.mxu0 0
    %11209 = vmatpush1.bf16.msra.mxu0 %v7963
    %11210 = vmatprep.subr.bf16.mxu0 0
    %11211 = vmatpush1.bf16.msra.mxu0 %v7970
    %11212 = vmatprep.subr.bf16.mxu0 0
    %11213 = vmatpush1.bf16.msra.mxu0 %v7977
    %11214 = vmatprep.subr.bf16.mxu0 0
    %11215 = vmatpush1.bf16.msra.mxu0 %v7984
    %11216 = vmatprep.subr.bf16.mxu0 0
    %11217 = vmatpush1.bf16.msra.mxu0 %v7991
    %11218 = vmatprep.subr.bf16.mxu0 0
    %11219 = vmatpush1.bf16.msra.mxu0 %v7998
    %11220 = vmatprep.subr.bf16.mxu0 0
    %11221 = vmatpush1.bf16.msra.mxu0 %v8005
    %11222 = vmatprep.subr.bf16.mxu0 0
    %11223 = vmatpush1.bf16.msra.mxu0 %v8012
    %11224 = vmatprep.subr.bf16.mxu0 0
    %11225 = vmatpush1.bf16.msra.mxu0 %v8019
    %11226 = vmatprep.subr.bf16.mxu0 0
    %11227 = vmatpush1.bf16.msra.mxu0 %v8026
    %11228 = vmatprep.subr.bf16.mxu0 0
    %11229 = vmatpush1.bf16.msra.mxu0 %v8033
    %11230 = vmatprep.subr.bf16.mxu0 0
    %11231 = vmatpush1.bf16.msra.mxu0 %v8040
    %11232 = vmatprep.subr.bf16.mxu0 0
    %11233 = vmatpush1.bf16.msra.mxu0 %v8047
    %11234 = vmatprep.subr.bf16.mxu0 0
    %11235 = vmatpush1.bf16.msra.mxu0 %v8054
    %11236 = vmatprep.mubr.bf16.mxu0 %v5749
    %11237 = vmatmul.mubr.bf16.gmra.mrb[0].mxu0 %v5748
    %v11238 = vpop.f32.mrb[0].mxu0
    %v11239 = vadd.f32 %v11078, %v11238
    %v11240 = vpop.f32.mrb[0].mxu0
    %v11241 = vpop.f32.mrb[0].mxu0
    %v11242 = vadd.f32 %v11081, %v11241
    %v11243 = vpop.f32.mrb[0].mxu0
    %11244 = vmatprep.mubr.bf16.mxu0 %v5757
    %11245 = vmatmul.mubr.bf16.gmra.mrb[0].mxu0 %v5756
    %v11246 = vpop.f32.mrb[0].mxu0
    %v11247 = vadd.f32 %v11086, %v11246
    %v11248 = vpop.f32.mrb[0].mxu0
    %v11249 = vpop.f32.mrb[0].mxu0
    %v11250 = vadd.f32 %v11089, %v11249
    %v11251 = vpop.f32.mrb[0].mxu0
    %11252 = vmatprep.mubr.bf16.mxu0 %v5765
    %11253 = vmatmul.mubr.bf16.gmra.mrb[0].mxu0 %v5764
    %v11254 = vpop.f32.mrb[0].mxu0
    %v11255 = vadd.f32 %v11094, %v11254
    %v11256 = vpop.f32.mrb[0].mxu0
    %v11257 = vpop.f32.mrb[0].mxu0
    %v11258 = vadd.f32 %v11097, %v11257
    %v11259 = vpop.f32.mrb[0].mxu0
    %11260 = vmatprep.mubr.bf16.mxu0 %v5773
    %11261 = vmatmul.mubr.bf16.gmra.mrb[0].mxu0 %v5772
    %v11262 = vpop.f32.mrb[0].mxu0
    %v11263 = vadd.f32 %v11102, %v11262
    %v11264 = vpop.f32.mrb[0].mxu0
    %v11265 = vpop.f32.mrb[0].mxu0
    %v11266 = vadd.f32 %v11105, %v11265
    %v11267 = vpop.f32.mrb[0].mxu0
    %11268 = vmatprep.mubr.bf16.mxu0 %v5781
    %11269 = vmatmul.mubr.bf16.gmra.mrb[0].mxu0 %v5780
    %v11270 = vpop.f32.mrb[0].mxu0
    %v11271 = vadd.f32 %v11110, %v11270
    %v11272 = vpop.f32.mrb[0].mxu0
    %v11273 = vpop.f32.mrb[0].mxu0
    %v11274 = vadd.f32 %v11113, %v11273
    %v11275 = vpop.f32.mrb[0].mxu0
    %11276 = vmatprep.mubr.bf16.mxu0 %v5789
    %11277 = vmatmul.mubr.bf16.gmra.mrb[0].mxu0 %v5788
    %v11278 = vpop.f32.mrb[0].mxu0
    %v11279 = vadd.f32 %v11118, %v11278
    %v11280 = vpop.f32.mrb[0].mxu0
    %v11281 = vpop.f32.mrb[0].mxu0
    %v11282 = vadd.f32 %v11121, %v11281
    %v11283 = vpop.f32.mrb[0].mxu0
    %11284 = vmatprep.mubr.bf16.mxu0 %v5797
    %11285 = vmatmul.mubr.bf16.gmra.mrb[0].mxu0 %v5796
    %v11286 = vpop.f32.mrb[0].mxu0
    %v11287 = vadd.f32 %v11126, %v11286
    %v11288 = vpop.f32.mrb[0].mxu0
    %v11289 = vpop.f32.mrb[0].mxu0
    %v11290 = vadd.f32 %v11129, %v11289
    %v11291 = vpop.f32.mrb[0].mxu0
    %11292 = vmatprep.mubr.bf16.mxu0 %v5805
    %11293 = vmatmul.mubr.bf16.gmra.mrb[0].mxu0 %v5804
    %v11294 = vpop.f32.mrb[0].mxu0
    %v11295 = vadd.f32 %v11134, %v11294
    %v11296 = vpop.f32.mrb[0].mxu0
    %v11297 = vpop.f32.mrb[0].mxu0
    %v11298 = vadd.f32 %v11137, %v11297
    %v11299 = vpop.f32.mrb[0].mxu0
    %11300 = vmatprep.mubr.bf16.mxu0 %v5813
    %11301 = vmatmul.mubr.bf16.gmra.mrb[0].mxu0 %v5812
    %v11302 = vpop.f32.mrb[0].mxu0
    %v11303 = vadd.f32 %v11142, %v11302
    %v11304 = vpop.f32.mrb[0].mxu0
    %v11305 = vpop.f32.mrb[0].mxu0
    %v11306 = vadd.f32 %v11145, %v11305
    %v11307 = vpop.f32.mrb[0].mxu0
    %11308 = vmatprep.mubr.bf16.mxu0 %v5821
    %11309 = vmatmul.mubr.bf16.gmra.mrb[0].mxu0 %v5820
    %v11310 = vpop.f32.mrb[0].mxu0
    %v11311 = vadd.f32 %v11150, %v11310
    %v11312 = vpop.f32.mrb[0].mxu0
    %v11313 = vpop.f32.mrb[0].mxu0
    %v11314 = vadd.f32 %v11153, %v11313
    %v11315 = vpop.f32.mrb[0].mxu0
    %11316 = vmatprep.mubr.bf16.mxu0 %v5829
    %11317 = vmatmul.mubr.bf16.gmra.mrb[0].mxu0 %v5828
    %v11318 = vpop.f32.mrb[0].mxu0
    %v11319 = vadd.f32 %v11158, %v11318
    %v11320 = vpop.f32.mrb[0].mxu0
    %v11321 = vpop.f32.mrb[0].mxu0
    %v11322 = vadd.f32 %v11161, %v11321
    %v11323 = vpop.f32.mrb[0].mxu0
    %11324 = vmatprep.mubr.bf16.mxu0 %v5837
    %11325 = vmatmul.mubr.bf16.gmra.mrb[0].mxu0 %v5836
    %v11326 = vpop.f32.mrb[0].mxu0
    %v11327 = vadd.f32 %v11166, %v11326
    %v11328 = vpop.f32.mrb[0].mxu0
    %v11329 = vpop.f32.mrb[0].mxu0
    %v11330 = vadd.f32 %v11169, %v11329
    %v11331 = vpop.f32.mrb[0].mxu0
    %11332 = vmatprep.mubr.bf16.mxu0 %v5845
    %11333 = vmatmul.mubr.bf16.gmra.mrb[0].mxu0 %v5844
    %v11334 = vpop.f32.mrb[0].mxu0
    %v11335 = vadd.f32 %v11174, %v11334
    %v11336 = vpop.f32.mrb[0].mxu0
    %v11337 = vpop.f32.mrb[0].mxu0
    %v11338 = vadd.f32 %v11177, %v11337
    %v11339 = vpop.f32.mrb[0].mxu0
    %11340 = vmatprep.mubr.bf16.mxu0 %v5853
    %11341 = vmatmul.mubr.bf16.gmra.mrb[0].mxu0 %v5852
    %v11342 = vpop.f32.mrb[0].mxu0
    %v11343 = vadd.f32 %v11182, %v11342
    %v11344 = vpop.f32.mrb[0].mxu0
    %v11345 = vpop.f32.mrb[0].mxu0
    %v11346 = vadd.f32 %v11185, %v11345
    %v11347 = vpop.f32.mrb[0].mxu0
    %11348 = vmatprep.mubr.bf16.mxu0 %v5861
    %11349 = vmatmul.mubr.bf16.gmra.mrb[0].mxu0 %v5860
    %v11350 = vpop.f32.mrb[0].mxu0
    %v11351 = vadd.f32 %v11190, %v11350
    %v11352 = vpop.f32.mrb[0].mxu0
    %v11353 = vpop.f32.mrb[0].mxu0
    %v11354 = vadd.f32 %v11193, %v11353
    %v11355 = vpop.f32.mrb[0].mxu0
    %11356 = vmatprep.mubr.bf16.mxu0 %v5869
    %11357 = vmatmul.mubr.bf16.gmra.mrb[0].mxu0 %v5868
    %v11358 = vpop.f32.mrb[0].mxu0
    %v11359 = vadd.f32 %v11198, %v11358
    %v11360 = vpop.f32.mrb[0].mxu0
    %v11361 = vpop.f32.mrb[0].mxu0
    %v11362 = vadd.f32 %v11201, %v11361
    %v11363 = vpop.f32.mrb[0].mxu0
    %11364 = vdwg.mxu0
    %11365 = vmatprep.subr.bf16.mxu0 0
    %11366 = vmatpush1.bf16.msra.mxu0 %v8061
    %11367 = vmatprep.subr.bf16.mxu0 0
    %11368 = vmatpush1.bf16.msra.mxu0 %v8068
    %11369 = vmatprep.subr.bf16.mxu0 0
    %11370 = vmatpush1.bf16.msra.mxu0 %v8075
    %11371 = vmatprep.subr.bf16.mxu0 0
    %11372 = vmatpush1.bf16.msra.mxu0 %v8082
    %11373 = vmatprep.subr.bf16.mxu0 0
    %11374 = vmatpush1.bf16.msra.mxu0 %v8089
    %11375 = vmatprep.subr.bf16.mxu0 0
    %11376 = vmatpush1.bf16.msra.mxu0 %v8096
    %11377 = vmatprep.subr.bf16.mxu0 0
    %11378 = vmatpush1.bf16.msra.mxu0 %v8103
    %11379 = vmatprep.subr.bf16.mxu0 0
    %11380 = vmatpush1.bf16.msra.mxu0 %v8110
    %11381 = vmatprep.subr.bf16.mxu0 0
    %11382 = vmatpush1.bf16.msra.mxu0 %v8117
    %11383 = vmatprep.subr.bf16.mxu0 0
    %11384 = vmatpush1.bf16.msra.mxu0 %v8124
    %11385 = vmatprep.subr.bf16.mxu0 0
    %11386 = vmatpush1.bf16.msra.mxu0 %v8131
    %11387 = vmatprep.subr.bf16.mxu0 0
    %11388 = vmatpush1.bf16.msra.mxu0 %v8138
    %11389 = vmatprep.subr.bf16.mxu0 0
    %11390 = vmatpush1.bf16.msra.mxu0 %v8145
    %11391 = vmatprep.subr.bf16.mxu0 0
    %11392 = vmatpush1.bf16.msra.mxu0 %v8152
    %11393 = vmatprep.subr.bf16.mxu0 0
    %11394 = vmatpush1.bf16.msra.mxu0 %v8159
    %11395 = vmatprep.subr.bf16.mxu0 0
    %11396 = vmatpush1.bf16.msra.mxu0 %v8166
    %11397 = vmatprep.mubr.bf16.mxu0 %v5751
    %11398 = vmatmul.mubr.bf16.gmra.mrb[0].mxu0 %v5750
    %v11399 = vpop.f32.mrb[0].mxu0
    %v11400 = vadd.f32 %v11239, %v11399
    %v11401 = vpop.f32.mrb[0].mxu0
    %v11402 = vpop.f32.mrb[0].mxu0
    %v11403 = vadd.f32 %v11242, %v11402
    %v11404 = vpop.f32.mrb[0].mxu0
    %11405 = vmatprep.mubr.bf16.mxu0 %v5759
    %11406 = vmatmul.mubr.bf16.gmra.mrb[0].mxu0 %v5758
    %v11407 = vpop.f32.mrb[0].mxu0
    %v11408 = vadd.f32 %v11247, %v11407
    %v11409 = vpop.f32.mrb[0].mxu0
    %v11410 = vpop.f32.mrb[0].mxu0
    %v11411 = vadd.f32 %v11250, %v11410
    %v11412 = vpop.f32.mrb[0].mxu0
    %11413 = vmatprep.mubr.bf16.mxu0 %v5767
    %11414 = vmatmul.mubr.bf16.gmra.mrb[0].mxu0 %v5766
    %v11415 = vpop.f32.mrb[0].mxu0
    %v11416 = vadd.f32 %v11255, %v11415
    %v11417 = vpop.f32.mrb[0].mxu0
    %v11418 = vpop.f32.mrb[0].mxu0
    %v11419 = vadd.f32 %v11258, %v11418
    %v11420 = vpop.f32.mrb[0].mxu0
    %11421 = vmatprep.mubr.bf16.mxu0 %v5775
    %11422 = vmatmul.mubr.bf16.gmra.mrb[0].mxu0 %v5774
    %v11423 = vpop.f32.mrb[0].mxu0
    %v11424 = vadd.f32 %v11263, %v11423
    %v11425 = vpop.f32.mrb[0].mxu0
    %v11426 = vpop.f32.mrb[0].mxu0
    %v11427 = vadd.f32 %v11266, %v11426
    %v11428 = vpop.f32.mrb[0].mxu0
    %11429 = vmatprep.mubr.bf16.mxu0 %v5783
    %11430 = vmatmul.mubr.bf16.gmra.mrb[0].mxu0 %v5782
    %v11431 = vpop.f32.mrb[0].mxu0
    %v11432 = vadd.f32 %v11271, %v11431
    %v11433 = vpop.f32.mrb[0].mxu0
    %v11434 = vpop.f32.mrb[0].mxu0
    %v11435 = vadd.f32 %v11274, %v11434
    %v11436 = vpop.f32.mrb[0].mxu0
    %11437 = vmatprep.mubr.bf16.mxu0 %v5791
    %11438 = vmatmul.mubr.bf16.gmra.mrb[0].mxu0 %v5790
    %v11439 = vpop.f32.mrb[0].mxu0
    %v11440 = vadd.f32 %v11279, %v11439
    %v11441 = vpop.f32.mrb[0].mxu0
    %v11442 = vpop.f32.mrb[0].mxu0
    %v11443 = vadd.f32 %v11282, %v11442
    %v11444 = vpop.f32.mrb[0].mxu0
    %11445 = vmatprep.mubr.bf16.mxu0 %v5799
    %11446 = vmatmul.mubr.bf16.gmra.mrb[0].mxu0 %v5798
    %v11447 = vpop.f32.mrb[0].mxu0
    %v11448 = vadd.f32 %v11287, %v11447
    %v11449 = vpop.f32.mrb[0].mxu0
    %v11450 = vpop.f32.mrb[0].mxu0
    %v11451 = vadd.f32 %v11290, %v11450
    %v11452 = vpop.f32.mrb[0].mxu0
    %11453 = vmatprep.mubr.bf16.mxu0 %v5807
    %11454 = vmatmul.mubr.bf16.gmra.mrb[0].mxu0 %v5806
    %v11455 = vpop.f32.mrb[0].mxu0
    %v11456 = vadd.f32 %v11295, %v11455
    %v11457 = vpop.f32.mrb[0].mxu0
    %v11458 = vpop.f32.mrb[0].mxu0
    %v11459 = vadd.f32 %v11298, %v11458
    %v11460 = vpop.f32.mrb[0].mxu0
    %11461 = vmatprep.mubr.bf16.mxu0 %v5815
    %11462 = vmatmul.mubr.bf16.gmra.mrb[0].mxu0 %v5814
    %v11463 = vpop.f32.mrb[0].mxu0
    %v11464 = vadd.f32 %v11303, %v11463
    %v11465 = vpop.f32.mrb[0].mxu0
    %v11466 = vpop.f32.mrb[0].mxu0
    %v11467 = vadd.f32 %v11306, %v11466
    %v11468 = vpop.f32.mrb[0].mxu0
    %11469 = vmatprep.mubr.bf16.mxu0 %v5823
    %11470 = vmatmul.mubr.bf16.gmra.mrb[0].mxu0 %v5822
    %v11471 = vpop.f32.mrb[0].mxu0
    %v11472 = vadd.f32 %v11311, %v11471
    %v11473 = vpop.f32.mrb[0].mxu0
    %v11474 = vpop.f32.mrb[0].mxu0
    %v11475 = vadd.f32 %v11314, %v11474
    %v11476 = vpop.f32.mrb[0].mxu0
    %11477 = vmatprep.mubr.bf16.mxu0 %v5831
    %11478 = vmatmul.mubr.bf16.gmra.mrb[0].mxu0 %v5830
    %v11479 = vpop.f32.mrb[0].mxu0
    %v11480 = vadd.f32 %v11319, %v11479
    %v11481 = vpop.f32.mrb[0].mxu0
    %v11482 = vpop.f32.mrb[0].mxu0
    %v11483 = vadd.f32 %v11322, %v11482
    %v11484 = vpop.f32.mrb[0].mxu0
    %11485 = vmatprep.mubr.bf16.mxu0 %v5839
    %11486 = vmatmul.mubr.bf16.gmra.mrb[0].mxu0 %v5838
    %v11487 = vpop.f32.mrb[0].mxu0
    %v11488 = vadd.f32 %v11327, %v11487
    %v11489 = vpop.f32.mrb[0].mxu0
    %v11490 = vpop.f32.mrb[0].mxu0
    %v11491 = vadd.f32 %v11330, %v11490
    %v11492 = vpop.f32.mrb[0].mxu0
    %11493 = vmatprep.mubr.bf16.mxu0 %v5847
    %11494 = vmatmul.mubr.bf16.gmra.mrb[0].mxu0 %v5846
    %v11495 = vpop.f32.mrb[0].mxu0
    %v11496 = vadd.f32 %v11335, %v11495
    %v11497 = vpop.f32.mrb[0].mxu0
    %v11498 = vpop.f32.mrb[0].mxu0
    %v11499 = vadd.f32 %v11338, %v11498
    %v11500 = vpop.f32.mrb[0].mxu0
    %11501 = vmatprep.mubr.bf16.mxu0 %v5855
    %11502 = vmatmul.mubr.bf16.gmra.mrb[0].mxu0 %v5854
    %v11503 = vpop.f32.mrb[0].mxu0
    %v11504 = vadd.f32 %v11343, %v11503
    %v11505 = vpop.f32.mrb[0].mxu0
    %v11506 = vpop.f32.mrb[0].mxu0
    %v11507 = vadd.f32 %v11346, %v11506
    %v11508 = vpop.f32.mrb[0].mxu0
    %11509 = vmatprep.mubr.bf16.mxu0 %v5863
    %11510 = vmatmul.mubr.bf16.gmra.mrb[0].mxu0 %v5862
    %v11511 = vpop.f32.mrb[0].mxu0
    %v11512 = vadd.f32 %v11351, %v11511
    %v11513 = vpop.f32.mrb[0].mxu0
    %v11514 = vpop.f32.mrb[0].mxu0
    %v11515 = vadd.f32 %v11354, %v11514
    %v11516 = vpop.f32.mrb[0].mxu0
    %11517 = vmatprep.mubr.bf16.mxu0 %v5871
    %11518 = vmatmul.mubr.bf16.gmra.mrb[0].mxu0 %v5870
    %v11519 = vpop.f32.mrb[0].mxu0
    %v11520 = vadd.f32 %v11359, %v11519
    %v11521 = vpop.f32.mrb[0].mxu0
    %v11522 = vpop.f32.mrb[0].mxu0
    %v11523 = vadd.f32 %v11362, %v11522
    %v11524 = vpop.f32.mrb[0].mxu0
    %11525 = vdwg.mxu0
    %11526 = vmatprep.subr.bf16.mxu0 0
    %11527 = vmatpush1.bf16.msra.mxu0 %v8173
    %11528 = vmatprep.subr.bf16.mxu0 0
    %11529 = vmatpush1.bf16.msra.mxu0 %v8180
    %11530 = vmatprep.subr.bf16.mxu0 0
    %11531 = vmatpush1.bf16.msra.mxu0 %v8187
    %11532 = vmatprep.subr.bf16.mxu0 0
    %11533 = vmatpush1.bf16.msra.mxu0 %v8194
    %11534 = vmatprep.subr.bf16.mxu0 0
    %11535 = vmatpush1.bf16.msra.mxu0 %v8201
    %11536 = vmatprep.subr.bf16.mxu0 0
    %11537 = vmatpush1.bf16.msra.mxu0 %v8208
    %11538 = vmatprep.subr.bf16.mxu0 0
    %11539 = vmatpush1.bf16.msra.mxu0 %v8215
    %11540 = vmatprep.subr.bf16.mxu0 0
    %11541 = vmatpush1.bf16.msra.mxu0 %v8222
    %11542 = vmatprep.subr.bf16.mxu0 0
    %11543 = vmatpush1.bf16.msra.mxu0 %v8229
    %11544 = vmatprep.subr.bf16.mxu0 0
    %11545 = vmatpush1.bf16.msra.mxu0 %v8236
    %11546 = vmatprep.subr.bf16.mxu0 0
    %11547 = vmatpush1.bf16.msra.mxu0 %v8243
    %11548 = vmatprep.subr.bf16.mxu0 0
    %11549 = vmatpush1.bf16.msra.mxu0 %v8250
    %11550 = vmatprep.subr.bf16.mxu0 0
    %11551 = vmatpush1.bf16.msra.mxu0 %v8257
    %11552 = vmatprep.subr.bf16.mxu0 0
    %11553 = vmatpush1.bf16.msra.mxu0 %v8264
    %11554 = vmatprep.subr.bf16.mxu0 0
    %11555 = vmatpush1.bf16.msra.mxu0 %v8271
    %11556 = vmatprep.subr.bf16.mxu0 0
    %11557 = vmatpush1.bf16.msra.mxu0 %v8278
    %11558 = vmatprep.mubr.bf16.mxu0 %v5753
    %11559 = vmatmul.mubr.bf16.gmra.mrb[0].mxu0 %v5752
    %v11560 = vpop.f32.mrb[0].mxu0
    %v11561 = vadd.f32 %v11400, %v11560
    %v11562 = vpop.f32.mrb[0].mxu0
    %v11563 = vpop.f32.mrb[0].mxu0
    %v11564 = vadd.f32 %v11403, %v11563
    %v11565 = vpop.f32.mrb[0].mxu0
    %11566 = vmatprep.mubr.bf16.mxu0 %v5761
    %11567 = vmatmul.mubr.bf16.gmra.mrb[0].mxu0 %v5760
    %v11568 = vpop.f32.mrb[0].mxu0
    %v11569 = vadd.f32 %v11408, %v11568
    %v11570 = vpop.f32.mrb[0].mxu0
    %v11571 = vpop.f32.mrb[0].mxu0
    %v11572 = vadd.f32 %v11411, %v11571
    %v11573 = vpop.f32.mrb[0].mxu0
    %11574 = vmatprep.mubr.bf16.mxu0 %v5769
    %11575 = vmatmul.mubr.bf16.gmra.mrb[0].mxu0 %v5768
    %v11576 = vpop.f32.mrb[0].mxu0
    %v11577 = vadd.f32 %v11416, %v11576
    %v11578 = vpop.f32.mrb[0].mxu0
    %v11579 = vpop.f32.mrb[0].mxu0
    %v11580 = vadd.f32 %v11419, %v11579
    %v11581 = vpop.f32.mrb[0].mxu0
    %11582 = vmatprep.mubr.bf16.mxu0 %v5777
    %11583 = vmatmul.mubr.bf16.gmra.mrb[0].mxu0 %v5776
    %v11584 = vpop.f32.mrb[0].mxu0
    %v11585 = vadd.f32 %v11424, %v11584
    %v11586 = vpop.f32.mrb[0].mxu0
    %v11587 = vpop.f32.mrb[0].mxu0
    %v11588 = vadd.f32 %v11427, %v11587
    %v11589 = vpop.f32.mrb[0].mxu0
    %11590 = vmatprep.mubr.bf16.mxu0 %v5785
    %11591 = vmatmul.mubr.bf16.gmra.mrb[0].mxu0 %v5784
    %v11592 = vpop.f32.mrb[0].mxu0
    %v11593 = vadd.f32 %v11432, %v11592
    %v11594 = vpop.f32.mrb[0].mxu0
    %v11595 = vpop.f32.mrb[0].mxu0
    %v11596 = vadd.f32 %v11435, %v11595
    %v11597 = vpop.f32.mrb[0].mxu0
    %11598 = vmatprep.mubr.bf16.mxu0 %v5793
    %11599 = vmatmul.mubr.bf16.gmra.mrb[0].mxu0 %v5792
    %v11600 = vpop.f32.mrb[0].mxu0
    %v11601 = vadd.f32 %v11440, %v11600
    %v11602 = vpop.f32.mrb[0].mxu0
    %v11603 = vpop.f32.mrb[0].mxu0
    %v11604 = vadd.f32 %v11443, %v11603
    %v11605 = vpop.f32.mrb[0].mxu0
    %11606 = vmatprep.mubr.bf16.mxu0 %v5801
    %11607 = vmatmul.mubr.bf16.gmra.mrb[0].mxu0 %v5800
    %v11608 = vpop.f32.mrb[0].mxu0
    %v11609 = vadd.f32 %v11448, %v11608
    %v11610 = vpop.f32.mrb[0].mxu0
    %v11611 = vpop.f32.mrb[0].mxu0
    %v11612 = vadd.f32 %v11451, %v11611
    %v11613 = vpop.f32.mrb[0].mxu0
    %11614 = vmatprep.mubr.bf16.mxu0 %v5809
    %11615 = vmatmul.mubr.bf16.gmra.mrb[0].mxu0 %v5808
    %v11616 = vpop.f32.mrb[0].mxu0
    %v11617 = vadd.f32 %v11456, %v11616
    %v11618 = vpop.f32.mrb[0].mxu0
    %v11619 = vpop.f32.mrb[0].mxu0
    %v11620 = vadd.f32 %v11459, %v11619
    %v11621 = vpop.f32.mrb[0].mxu0
    %11622 = vmatprep.mubr.bf16.mxu0 %v5817
    %11623 = vmatmul.mubr.bf16.gmra.mrb[0].mxu0 %v5816
    %v11624 = vpop.f32.mrb[0].mxu0
    %v11625 = vadd.f32 %v11464, %v11624
    %v11626 = vpop.f32.mrb[0].mxu0
    %v11627 = vpop.f32.mrb[0].mxu0
    %v11628 = vadd.f32 %v11467, %v11627
    %v11629 = vpop.f32.mrb[0].mxu0
    %11630 = vmatprep.mubr.bf16.mxu0 %v5825
    %11631 = vmatmul.mubr.bf16.gmra.mrb[0].mxu0 %v5824
    %v11632 = vpop.f32.mrb[0].mxu0
    %v11633 = vadd.f32 %v11472, %v11632
    %v11634 = vpop.f32.mrb[0].mxu0
    %v11635 = vpop.f32.mrb[0].mxu0
    %v11636 = vadd.f32 %v11475, %v11635
    %v11637 = vpop.f32.mrb[0].mxu0
    %11638 = vmatprep.mubr.bf16.mxu0 %v5833
    %11639 = vmatmul.mubr.bf16.gmra.mrb[0].mxu0 %v5832
    %v11640 = vpop.f32.mrb[0].mxu0
    %v11641 = vadd.f32 %v11480, %v11640
    %v11642 = vpop.f32.mrb[0].mxu0
    %v11643 = vpop.f32.mrb[0].mxu0
    %v11644 = vadd.f32 %v11483, %v11643
    %v11645 = vpop.f32.mrb[0].mxu0
    %11646 = vmatprep.mubr.bf16.mxu0 %v5841
    %11647 = vmatmul.mubr.bf16.gmra.mrb[0].mxu0 %v5840
    %v11648 = vpop.f32.mrb[0].mxu0
    %v11649 = vadd.f32 %v11488, %v11648
    %v11650 = vpop.f32.mrb[0].mxu0
    %v11651 = vpop.f32.mrb[0].mxu0
    %v11652 = vadd.f32 %v11491, %v11651
    %v11653 = vpop.f32.mrb[0].mxu0
    %11654 = vmatprep.mubr.bf16.mxu0 %v5849
    %11655 = vmatmul.mubr.bf16.gmra.mrb[0].mxu0 %v5848
    %v11656 = vpop.f32.mrb[0].mxu0
    %v11657 = vadd.f32 %v11496, %v11656
    %v11658 = vpop.f32.mrb[0].mxu0
    %v11659 = vpop.f32.mrb[0].mxu0
    %v11660 = vadd.f32 %v11499, %v11659
    %v11661 = vpop.f32.mrb[0].mxu0
    %11662 = vmatprep.mubr.bf16.mxu0 %v5857
    %11663 = vmatmul.mubr.bf16.gmra.mrb[0].mxu0 %v5856
    %v11664 = vpop.f32.mrb[0].mxu0
    %v11665 = vadd.f32 %v11504, %v11664
    %v11666 = vpop.f32.mrb[0].mxu0
    %v11667 = vpop.f32.mrb[0].mxu0
    %v11668 = vadd.f32 %v11507, %v11667
    %v11669 = vpop.f32.mrb[0].mxu0
    %11670 = vmatprep.mubr.bf16.mxu0 %v5865
    %11671 = vmatmul.mubr.bf16.gmra.mrb[0].mxu0 %v5864
    %v11672 = vpop.f32.mrb[0].mxu0
    %v11673 = vadd.f32 %v11512, %v11672
    %v11674 = vpop.f32.mrb[0].mxu0
    %v11675 = vpop.f32.mrb[0].mxu0
    %v11676 = vadd.f32 %v11515, %v11675
    %v11677 = vpop.f32.mrb[0].mxu0
    %11678 = vmatprep.mubr.bf16.mxu0 %v5873
    %11679 = vmatmul.mubr.bf16.gmra.mrb[0].mxu0 %v5872
    %v11680 = vpop.f32.mrb[0].mxu0
    %v11681 = vadd.f32 %v11520, %v11680
    %v11682 = vpop.f32.mrb[0].mxu0
    %v11683 = vpop.f32.mrb[0].mxu0
    %v11684 = vadd.f32 %v11523, %v11683
    %v11685 = vpop.f32.mrb[0].mxu0
    %11686 = vdwg.mxu0
    %v11687 = vtanh.pop %v9341
    %v11688 = vtanh.pop %v9343
    %v11689 = vtanh.pop %v10113
    %v11690 = vtanh.pop %v10115
    %v11691 = vtanh.pop %v10885
    %v11692 = vtanh.pop %v10887
    %v11693 = vtanh.pop %v11561
    %v11694 = vtanh.pop %v9345
    %v11695 = vtanh.pop %v9347
    %v11696 = vtanh.pop %v10117
    %v11697 = vtanh.pop %v10119
    %v11698 = vtanh.pop %v10889
    %v11699 = vtanh.pop %v10891
    %v11700 = vtanh.pop %v11564
    %v11701 = vtanh.pop %v9351
    %v11702 = vtanh.pop %v9353
    %v11703 = vtanh.pop %v10123
    %v11704 = vtanh.pop %v10125
    %v11705 = vtanh.pop %v10895
    %v11706 = vtanh.pop %v10897
    %v11707 = vtanh.pop %v11569
    %v11708 = vtanh.pop %v9355
    %v11709 = vtanh.pop %v9357
    %v11710 = vtanh.pop %v10127
    %v11711 = vtanh.pop %v10129
    %v11712 = vtanh.pop %v10899
    %v11713 = vtanh.pop %v10901
    %v11714 = vtanh.pop %v11572
    %v11715 = vtanh.pop %v9361
    %v11716 = vtanh.pop %v9363
    %v11717 = vtanh.pop %v10133
    %v11718 = vtanh.pop %v10135
    %v11719 = vtanh.pop %v10905
    %v11720 = vtanh.pop %v10907
    %v11721 = vtanh.pop %v11577
    %v11722 = vtanh.pop %v9365
    %v11723 = vtanh.pop %v9367
    %v11724 = vtanh.pop %v10137
    %v11725 = vtanh.pop %v10139
    %v11726 = vtanh.pop %v10909
    %v11727 = vtanh.pop %v10911
    %v11728 = vtanh.pop %v11580
    %v11729 = vtanh.pop %v9371
    %v11730 = vtanh.pop %v9373
    %v11731 = vtanh.pop %v10143
    %v11732 = vtanh.pop %v10145
    %v11733 = vtanh.pop %v10915
    %v11734 = vtanh.pop %v10917
    %v11735 = vtanh.pop %v11585
    %v11736 = vtanh.pop %v9375
    %v11737 = vtanh.pop %v9377
    %v11738 = vtanh.pop %v10147
    %v11739 = vtanh.pop %v10149
    %v11740 = vtanh.pop %v10919
    %v11741 = vtanh.pop %v10921
    %v11742 = vtanh.pop %v11588
    %v11743 = vtanh.pop %v9381
    %v11744 = vtanh.pop %v9383
    %v11745 = vtanh.pop %v10153
    %v11746 = vtanh.pop %v10155
    %v11747 = vtanh.pop %v10925
    %v11748 = vtanh.pop %v10927
    %v11749 = vtanh.pop %v11593
    %v11750 = vtanh.pop %v9385
    %v11751 = vtanh.pop %v9387
    %v11752 = vtanh.pop %v10157
    %v11753 = vtanh.pop %v10159
    %v11754 = vtanh.pop %v10929
    %v11755 = vtanh.pop %v10931
    %v11756 = vtanh.pop %v11596
    %v11757 = vtanh.pop %v9391
    %v11758 = vtanh.pop %v9393
    %v11759 = vtanh.pop %v10163
    %v11760 = vtanh.pop %v10165
    %v11761 = vtanh.pop %v10935
    %v11762 = vtanh.pop %v10937
    %v11763 = vtanh.pop %v11601
    %v11764 = vtanh.pop %v9395
    %v11765 = vtanh.pop %v9397
    %v11766 = vtanh.pop %v10167
    %v11767 = vtanh.pop %v10169
    %v11768 = vtanh.pop %v10939
    %v11769 = vtanh.pop %v10941
    %v11770 = vtanh.pop %v11604
    %v11771 = vtanh.pop %v9401
    %v11772 = vtanh.pop %v9403
    %v11773 = vtanh.pop %v10173
    %v11774 = vtanh.pop %v10175
    %v11775 = vtanh.pop %v10945
    %v11776 = vtanh.pop %v10947
    %v11777 = vtanh.pop %v11609
    %v11778 = vtanh.pop %v9405
    %v11779 = vtanh.pop %v9407
    %v11780 = vtanh.pop %v10177
    %v11781 = vtanh.pop %v10179
    %v11782 = vtanh.pop %v10949
    %v11783 = vtanh.pop %v10951
    %v11784 = vtanh.pop %v11612
    %v11785 = vtanh.pop %v9411
    %v11786 = vtanh.pop %v9413
    %v11787 = vtanh.pop %v10183
    %v11788 = vtanh.pop %v10185
    %v11789 = vtanh.pop %v10955
    %v11790 = vtanh.pop %v10957
    %v11791 = vtanh.pop %v11617
    %v11792 = vtanh.pop %v9415
    %v11793 = vtanh.pop %v9417
    %v11794 = vtanh.pop %v10187
    %v11795 = vtanh.pop %v10189
    %v11796 = vtanh.pop %v10959
    %v11797 = vtanh.pop %v10961
    %v11798 = vtanh.pop %v11620
    %v11799 = vtanh.pop %v9421
    %v11800 = vtanh.pop %v9423
    %v11801 = vtanh.pop %v10193
    %v11802 = vtanh.pop %v10195
    %v11803 = vtanh.pop %v10965
    %v11804 = vtanh.pop %v10967
    %v11805 = vtanh.pop %v11625
    %v11806 = vtanh.pop %v9425
    %v11807 = vtanh.pop %v9427
    %v11808 = vtanh.pop %v10197
    %v11809 = vtanh.pop %v10199
    %v11810 = vtanh.pop %v10969
    %v11811 = vtanh.pop %v10971
    %v11812 = vtanh.pop %v11628
    %v11813 = vtanh.pop %v9431
    %v11814 = vtanh.pop %v9433
    %v11815 = vtanh.pop %v10203
    %v11816 = vtanh.pop %v10205
    %v11817 = vtanh.pop %v10975
    %v11818 = vtanh.pop %v10977
    %v11819 = vtanh.pop %v11633
    %v11820 = vtanh.pop %v9435
    %v11821 = vtanh.pop %v9437
    %v11822 = vtanh.pop %v10207
    %v11823 = vtanh.pop %v10209
    %v11824 = vtanh.pop %v10979
    %v11825 = vtanh.pop %v10981
    %v11826 = vtanh.pop %v11636
    %v11827 = vtanh.pop %v9441
    %v11828 = vtanh.pop %v9443
    %v11829 = vtanh.pop %v10213
    %v11830 = vtanh.pop %v10215
    %v11831 = vtanh.pop %v10985
    %v11832 = vtanh.pop %v10987
    %v11833 = vtanh.pop %v11641
    %v11834 = vtanh.pop %v9445
    %v11835 = vtanh.pop %v9447
    %v11836 = vtanh.pop %v10217
    %v11837 = vtanh.pop %v10219
    %v11838 = vtanh.pop %v10989
    %v11839 = vtanh.pop %v10991
    %v11840 = vtanh.pop %v11644
    %v11841 = vtanh.pop %v9451
    %v11842 = vtanh.pop %v9453
    %v11843 = vtanh.pop %v10223
    %v11844 = vtanh.pop %v10225
    %v11845 = vtanh.pop %v10995
    %v11846 = vtanh.pop %v10997
    %v11847 = vtanh.pop %v11649
    %v11848 = vtanh.pop %v9455
    %v11849 = vtanh.pop %v9457
    %v11850 = vtanh.pop %v10227
    %v11851 = vtanh.pop %v10229
    %v11852 = vtanh.pop %v10999
    %v11853 = vtanh.pop %v11001
    %v11854 = vtanh.pop %v11652
    %v11855 = vtanh.pop %v9461
    %v11856 = vtanh.pop %v9463
    %v11857 = vtanh.pop %v10233
    %v11858 = vtanh.pop %v10235
    %v11859 = vtanh.pop %v11005
    %v11860 = vtanh.pop %v11007
    %v11861 = vtanh.pop %v11657
    %v11862 = vtanh.pop %v9465
    %v11863 = vtanh.pop %v9467
    %v11864 = vtanh.pop %v10237
    %v11865 = vtanh.pop %v10239
    %v11866 = vtanh.pop %v11009
    %v11867 = vtanh.pop %v11011
    %v11868 = vtanh.pop %v11660
    %v11869 = vtanh.pop %v9471
    %v11870 = vtanh.pop %v9473
    %v11871 = vtanh.pop %v10243
    %v11872 = vtanh.pop %v10245
    %v11873 = vtanh.pop %v11015
    %v11874 = vtanh.pop %v11017
    %v11875 = vtanh.pop %v11665
    %v11876 = vtanh.pop %v9475
    %v11877 = vtanh.pop %v9477
    %v11878 = vtanh.pop %v10247
    %v11879 = vtanh.pop %v10249
    %v11880 = vtanh.pop %v11019
    %v11881 = vtanh.pop %v11021
    %v11882 = vtanh.pop %v11668
    %v11883 = vtanh.pop %v9481
    %v11884 = vtanh.pop %v9483
    %v11885 = vtanh.pop %v10253
    %v11886 = vtanh.pop %v10255
    %v11887 = vtanh.pop %v11025
    %v11888 = vtanh.pop %v11027
    %v11889 = vtanh.pop %v11673
    %v11890 = vtanh.pop %v9485
    %v11891 = vtanh.pop %v9487
    %v11892 = vtanh.pop %v10257
    %v11893 = vtanh.pop %v10259
    %v11894 = vtanh.pop %v11029
    %v11895 = vtanh.pop %v11031
    %v11896 = vtanh.pop %v11676
    %v11897 = vtanh.pop %v9491
    %v11898 = vtanh.pop %v9493
    %v11899 = vtanh.pop %v10263
    %v11900 = vtanh.pop %v10265
    %v11901 = vtanh.pop %v11035
    %v11902 = vtanh.pop %v11037
    %v11903 = vtanh.pop %v11681
    %v11904 = vtanh.pop %v9495
    %v11905 = vtanh.pop %v9497
    %v11906 = vtanh.pop %v10267
    %v11907 = vtanh.pop %v10269
    %v11908 = vtanh.pop %v11039
    %v11909 = vtanh.pop %v11041
    %v11910 = vtanh.pop %v11684
    %11911 = vst [vmem:[#allocation20] sm:$0xff] %v11687
    %11912 = vst [vmem:[#allocation20 + $0x8] sm:$0xff] %v11688
    %11913 = vst [vmem:[#allocation20 + $0x10] sm:$0xff] %v11689
    %11914 = vst [vmem:[#allocation20 + $0x18] sm:$0xff] %v11690
    %11915 = vst [vmem:[#allocation20 + $0x20] sm:$0xff] %v11691
    %11916 = vst [vmem:[#allocation20 + $0x28] sm:$0xff] %v11692
    %11917 = vst [vmem:[#allocation20 + $0x30] sm:$0xff] %v11693
    %11918 = vst [vmem:[#allocation20 + $0x38] sm:$0xff] %v11694
    %11919 = vst [vmem:[#allocation20 + $0x40] sm:$0xff] %v11695
    %11920 = vst [vmem:[#allocation20 + $0x48] sm:$0xff] %v11696
    %11921 = vst [vmem:[#allocation20 + $0x50] sm:$0xff] %v11697
    %11922 = vst [vmem:[#allocation20 + $0x58] sm:$0xff] %v11698
    %11923 = vst [vmem:[#allocation20 + $0x60] sm:$0xff] %v11699
    %11924 = vst [vmem:[#allocation20 + $0x68] sm:$0xff] %v11700
    %11925 = vst [vmem:[#allocation20 + $0x70] sm:$0xff] %v11701
    %11926 = vst [vmem:[#allocation20 + $0x78] sm:$0xff] %v11702
    %11927 = vst [vmem:[#allocation20 + $0x80] sm:$0xff] %v11703
    %11928 = vst [vmem:[#allocation20 + $0x88] sm:$0xff] %v11704
    %11929 = vst [vmem:[#allocation20 + $0x90] sm:$0xff] %v11705
    %11930 = vst [vmem:[#allocation20 + $0x98] sm:$0xff] %v11706
    %11931 = vst [vmem:[#allocation20 + $0xa0] sm:$0xff] %v11707
    %11932 = vst [vmem:[#allocation20 + $0xa8] sm:$0xff] %v11708
    %11933 = vst [vmem:[#allocation20 + $0xb0] sm:$0xff] %v11709
    %11934 = vst [vmem:[#allocation20 + $0xb8] sm:$0xff] %v11710
    %11935 = vst [vmem:[#allocation20 + $0xc0] sm:$0xff] %v11711
    %11936 = vst [vmem:[#allocation20 + $0xc8] sm:$0xff] %v11712
    %11937 = vst [vmem:[#allocation20 + $0xd0] sm:$0xff] %v11713
    %11938 = vst [vmem:[#allocation20 + $0xd8] sm:$0xff] %v11714
    %11939 = vst [vmem:[#allocation20 + $0xe0] sm:$0xff] %v11715
    %11940 = vst [vmem:[#allocation20 + $0xe8] sm:$0xff] %v11716
    %11941 = vst [vmem:[#allocation20 + $0xf0] sm:$0xff] %v11717
    %11942 = vst [vmem:[#allocation20 + $0xf8] sm:$0xff] %v11718
    %11943 = vst [vmem:[#allocation20 + $0x100] sm:$0xff] %v11719
    %11944 = vst [vmem:[#allocation20 + $0x108] sm:$0xff] %v11720
    %11945 = vst [vmem:[#allocation20 + $0x110] sm:$0xff] %v11721
    %11946 = vst [vmem:[#allocation20 + $0x118] sm:$0xff] %v11722
    %11947 = vst [vmem:[#allocation20 + $0x120] sm:$0xff] %v11723
    %11948 = vst [vmem:[#allocation20 + $0x128] sm:$0xff] %v11724
    %11949 = vst [vmem:[#allocation20 + $0x130] sm:$0xff] %v11725
    %11950 = vst [vmem:[#allocation20 + $0x138] sm:$0xff] %v11726
    %11951 = vst [vmem:[#allocation20 + $0x140] sm:$0xff] %v11727
    %11952 = vst [vmem:[#allocation20 + $0x148] sm:$0xff] %v11728
    %11953 = vst [vmem:[#allocation20 + $0x150] sm:$0xff] %v11729
    %11954 = vst [vmem:[#allocation20 + $0x158] sm:$0xff] %v11730
    %11955 = vst [vmem:[#allocation20 + $0x160] sm:$0xff] %v11731
    %11956 = vst [vmem:[#allocation20 + $0x168] sm:$0xff] %v11732
    %11957 = vst [vmem:[#allocation20 + $0x170] sm:$0xff] %v11733
    %11958 = vst [vmem:[#allocation20 + $0x178] sm:$0xff] %v11734
    %11959 = vst [vmem:[#allocation20 + $0x180] sm:$0xff] %v11735
    %11960 = vst [vmem:[#allocation20 + $0x188] sm:$0xff] %v11736
    %11961 = vst [vmem:[#allocation20 + $0x190] sm:$0xff] %v11737
    %11962 = vst [vmem:[#allocation20 + $0x198] sm:$0xff] %v11738
    %11963 = vst [vmem:[#allocation20 + $0x1a0] sm:$0xff] %v11739
    %11964 = vst [vmem:[#allocation20 + $0x1a8] sm:$0xff] %v11740
    %11965 = vst [vmem:[#allocation20 + $0x1b0] sm:$0xff] %v11741
    %11966 = vst [vmem:[#allocation20 + $0x1b8] sm:$0xff] %v11742
    %11967 = vst [vmem:[#allocation20 + $0x1c0] sm:$0xff] %v11743
    %11968 = vst [vmem:[#allocation20 + $0x1c8] sm:$0xff] %v11744
    %11969 = vst [vmem:[#allocation20 + $0x1d0] sm:$0xff] %v11745
    %11970 = vst [vmem:[#allocation20 + $0x1d8] sm:$0xff] %v11746
    %11971 = vst [vmem:[#allocation20 + $0x1e0] sm:$0xff] %v11747
    %11972 = vst [vmem:[#allocation20 + $0x1e8] sm:$0xff] %v11748
    %11973 = vst [vmem:[#allocation20 + $0x1f0] sm:$0xff] %v11749
    %11974 = vst [vmem:[#allocation20 + $0x1f8] sm:$0xff] %v11750
    %11975 = vst [vmem:[#allocation20 + $0x200] sm:$0xff] %v11751
    %11976 = vst [vmem:[#allocation20 + $0x208] sm:$0xff] %v11752
    %11977 = vst [vmem:[#allocation20 + $0x210] sm:$0xff] %v11753
    %11978 = vst [vmem:[#allocation20 + $0x218] sm:$0xff] %v11754
    %11979 = vst [vmem:[#allocation20 + $0x220] sm:$0xff] %v11755
    %11980 = vst [vmem:[#allocation20 + $0x228] sm:$0xff] %v11756
    %11981 = vst [vmem:[#allocation20 + $0x230] sm:$0xff] %v11757
    %11982 = vst [vmem:[#allocation20 + $0x238] sm:$0xff] %v11758
    %11983 = vst [vmem:[#allocation20 + $0x240] sm:$0xff] %v11759
    %11984 = vst [vmem:[#allocation20 + $0x248] sm:$0xff] %v11760
    %11985 = vst [vmem:[#allocation20 + $0x250] sm:$0xff] %v11761
    %11986 = vst [vmem:[#allocation20 + $0x258] sm:$0xff] %v11762
    %11987 = vst [vmem:[#allocation20 + $0x260] sm:$0xff] %v11763
    %11988 = vst [vmem:[#allocation20 + $0x268] sm:$0xff] %v11764
    %11989 = vst [vmem:[#allocation20 + $0x270] sm:$0xff] %v11765
    %11990 = vst [vmem:[#allocation20 + $0x278] sm:$0xff] %v11766
    %11991 = vst [vmem:[#allocation20 + $0x280] sm:$0xff] %v11767
    %11992 = vst [vmem:[#allocation20 + $0x288] sm:$0xff] %v11768
    %11993 = vst [vmem:[#allocation20 + $0x290] sm:$0xff] %v11769
    %11994 = vst [vmem:[#allocation20 + $0x298] sm:$0xff] %v11770
    %11995 = vst [vmem:[#allocation20 + $0x2a0] sm:$0xff] %v11771
    %11996 = vst [vmem:[#allocation20 + $0x2a8] sm:$0xff] %v11772
    %11997 = vst [vmem:[#allocation20 + $0x2b0] sm:$0xff] %v11773
    %11998 = vst [vmem:[#allocation20 + $0x2b8] sm:$0xff] %v11774
    %11999 = vst [vmem:[#allocation20 + $0x2c0] sm:$0xff] %v11775
    %12000 = vst [vmem:[#allocation20 + $0x2c8] sm:$0xff] %v11776
    %12001 = vst [vmem:[#allocation20 + $0x2d0] sm:$0xff] %v11777
    %12002 = vst [vmem:[#allocation20 + $0x2d8] sm:$0xff] %v11778
    %12003 = vst [vmem:[#allocation20 + $0x2e0] sm:$0xff] %v11779
    %12004 = vst [vmem:[#allocation20 + $0x2e8] sm:$0xff] %v11780
    %12005 = vst [vmem:[#allocation20 + $0x2f0] sm:$0xff] %v11781
    %12006 = vst [vmem:[#allocation20 + $0x2f8] sm:$0xff] %v11782
    %12007 = vst [vmem:[#allocation20 + $0x300] sm:$0xff] %v11783
    %12008 = vst [vmem:[#allocation20 + $0x308] sm:$0xff] %v11784
    %12009 = vst [vmem:[#allocation20 + $0x310] sm:$0xff] %v11785
    %12010 = vst [vmem:[#allocation20 + $0x318] sm:$0xff] %v11786
    %12011 = vst [vmem:[#allocation20 + $0x320] sm:$0xff] %v11787
    %12012 = vst [vmem:[#allocation20 + $0x328] sm:$0xff] %v11788
    %12013 = vst [vmem:[#allocation20 + $0x330] sm:$0xff] %v11789
    %12014 = vst [vmem:[#allocation20 + $0x338] sm:$0xff] %v11790
    %12015 = vst [vmem:[#allocation20 + $0x340] sm:$0xff] %v11791
    %12016 = vst [vmem:[#allocation20 + $0x348] sm:$0xff] %v11792
    %12017 = vst [vmem:[#allocation20 + $0x350] sm:$0xff] %v11793
    %12018 = vst [vmem:[#allocation20 + $0x358] sm:$0xff] %v11794
    %12019 = vst [vmem:[#allocation20 + $0x360] sm:$0xff] %v11795
    %12020 = vst [vmem:[#allocation20 + $0x368] sm:$0xff] %v11796
    %12021 = vst [vmem:[#allocation20 + $0x370] sm:$0xff] %v11797
    %12022 = vst [vmem:[#allocation20 + $0x378] sm:$0xff] %v11798
    %12023 = vst [vmem:[#allocation20 + $0x380] sm:$0xff] %v11799
    %12024 = vst [vmem:[#allocation20 + $0x388] sm:$0xff] %v11800
    %12025 = vst [vmem:[#allocation20 + $0x390] sm:$0xff] %v11801
    %12026 = vst [vmem:[#allocation20 + $0x398] sm:$0xff] %v11802
    %12027 = vst [vmem:[#allocation20 + $0x3a0] sm:$0xff] %v11803
    %12028 = vst [vmem:[#allocation20 + $0x3a8] sm:$0xff] %v11804
    %12029 = vst [vmem:[#allocation20 + $0x3b0] sm:$0xff] %v11805
    %12030 = vst [vmem:[#allocation20 + $0x3b8] sm:$0xff] %v11806
    %12031 = vst [vmem:[#allocation20 + $0x3c0] sm:$0xff] %v11807
    %12032 = vst [vmem:[#allocation20 + $0x3c8] sm:$0xff] %v11808
    %12033 = vst [vmem:[#allocation20 + $0x3d0] sm:$0xff] %v11809
    %12034 = vst [vmem:[#allocation20 + $0x3d8] sm:$0xff] %v11810
    %12035 = vst [vmem:[#allocation20 + $0x3e0] sm:$0xff] %v11811
    %12036 = vst [vmem:[#allocation20 + $0x3e8] sm:$0xff] %v11812
    %12037 = vst [vmem:[#allocation20 + $0x3f0] sm:$0xff] %v11813
    %12038 = vst [vmem:[#allocation20 + $0x3f8] sm:$0xff] %v11814
    %12039 = vst [vmem:[#allocation20 + $0x400] sm:$0xff] %v11815
    %12040 = vst [vmem:[#allocation20 + $0x408] sm:$0xff] %v11816
    %12041 = vst [vmem:[#allocation20 + $0x410] sm:$0xff] %v11817
    %12042 = vst [vmem:[#allocation20 + $0x418] sm:$0xff] %v11818
    %12043 = vst [vmem:[#allocation20 + $0x420] sm:$0xff] %v11819
    %12044 = vst [vmem:[#allocation20 + $0x428] sm:$0xff] %v11820
    %12045 = vst [vmem:[#allocation20 + $0x430] sm:$0xff] %v11821
    %12046 = vst [vmem:[#allocation20 + $0x438] sm:$0xff] %v11822
    %12047 = vst [vmem:[#allocation20 + $0x440] sm:$0xff] %v11823
    %12048 = vst [vmem:[#allocation20 + $0x448] sm:$0xff] %v11824
    %12049 = vst [vmem:[#allocation20 + $0x450] sm:$0xff] %v11825
    %12050 = vst [vmem:[#allocation20 + $0x458] sm:$0xff] %v11826
    %12051 = vst [vmem:[#allocation20 + $0x460] sm:$0xff] %v11827
    %12052 = vst [vmem:[#allocation20 + $0x468] sm:$0xff] %v11828
    %12053 = vst [vmem:[#allocation20 + $0x470] sm:$0xff] %v11829
    %12054 = vst [vmem:[#allocation20 + $0x478] sm:$0xff] %v11830
    %12055 = vst [vmem:[#allocation20 + $0x480] sm:$0xff] %v11831
    %12056 = vst [vmem:[#allocation20 + $0x488] sm:$0xff] %v11832
    %12057 = vst [vmem:[#allocation20 + $0x490] sm:$0xff] %v11833
    %12058 = vst [vmem:[#allocation20 + $0x498] sm:$0xff] %v11834
    %12059 = vst [vmem:[#allocation20 + $0x4a0] sm:$0xff] %v11835
    %12060 = vst [vmem:[#allocation20 + $0x4a8] sm:$0xff] %v11836
    %12061 = vst [vmem:[#allocation20 + $0x4b0] sm:$0xff] %v11837
    %12062 = vst [vmem:[#allocation20 + $0x4b8] sm:$0xff] %v11838
    %12063 = vst [vmem:[#allocation20 + $0x4c0] sm:$0xff] %v11839
    %12064 = vst [vmem:[#allocation20 + $0x4c8] sm:$0xff] %v11840
    %12065 = vst [vmem:[#allocation20 + $0x4d0] sm:$0xff] %v11841
    %12066 = vst [vmem:[#allocation20 + $0x4d8] sm:$0xff] %v11842
    %12067 = vst [vmem:[#allocation20 + $0x4e0] sm:$0xff] %v11843
    %12068 = vst [vmem:[#allocation20 + $0x4e8] sm:$0xff] %v11844
    %12069 = vst [vmem:[#allocation20 + $0x4f0] sm:$0xff] %v11845
    %12070 = vst [vmem:[#allocation20 + $0x4f8] sm:$0xff] %v11846
    %12071 = vst [vmem:[#allocation20 + $0x500] sm:$0xff] %v11847
    %12072 = vst [vmem:[#allocation20 + $0x508] sm:$0xff] %v11848
    %12073 = vst [vmem:[#allocation20 + $0x510] sm:$0xff] %v11849
    %12074 = vst [vmem:[#allocation20 + $0x518] sm:$0xff] %v11850
    %12075 = vst [vmem:[#allocation20 + $0x520] sm:$0xff] %v11851
    %12076 = vst [vmem:[#allocation20 + $0x528] sm:$0xff] %v11852
    %12077 = vst [vmem:[#allocation20 + $0x530] sm:$0xff] %v11853
    %12078 = vst [vmem:[#allocation20 + $0x538] sm:$0xff] %v11854
    %12079 = vst [vmem:[#allocation20 + $0x540] sm:$0xff] %v11855
    %12080 = vst [vmem:[#allocation20 + $0x548] sm:$0xff] %v11856
    %12081 = vst [vmem:[#allocation20 + $0x550] sm:$0xff] %v11857
    %12082 = vst [vmem:[#allocation20 + $0x558] sm:$0xff] %v11858
    %12083 = vst [vmem:[#allocation20 + $0x560] sm:$0xff] %v11859
    %12084 = vst [vmem:[#allocation20 + $0x568] sm:$0xff] %v11860
    %12085 = vst [vmem:[#allocation20 + $0x570] sm:$0xff] %v11861
    %12086 = vst [vmem:[#allocation20 + $0x578] sm:$0xff] %v11862
    %12087 = vst [vmem:[#allocation20 + $0x580] sm:$0xff] %v11863
    %12088 = vst [vmem:[#allocation20 + $0x588] sm:$0xff] %v11864
    %12089 = vst [vmem:[#allocation20 + $0x590] sm:$0xff] %v11865
    %12090 = vst [vmem:[#allocation20 + $0x598] sm:$0xff] %v11866
    %12091 = vst [vmem:[#allocation20 + $0x5a0] sm:$0xff] %v11867
    %12092 = vst [vmem:[#allocation20 + $0x5a8] sm:$0xff] %v11868
    %12093 = vst [vmem:[#allocation20 + $0x5b0] sm:$0xff] %v11869
    %12094 = vst [vmem:[#allocation20 + $0x5b8] sm:$0xff] %v11870
    %12095 = vst [vmem:[#allocation20 + $0x5c0] sm:$0xff] %v11871
    %12096 = vst [vmem:[#allocation20 + $0x5c8] sm:$0xff] %v11872
    %12097 = vst [vmem:[#allocation20 + $0x5d0] sm:$0xff] %v11873
    %12098 = vst [vmem:[#allocation20 + $0x5d8] sm:$0xff] %v11874
    %12099 = vst [vmem:[#allocation20 + $0x5e0] sm:$0xff] %v11875
    %12100 = vst [vmem:[#allocation20 + $0x5e8] sm:$0xff] %v11876
    %12101 = vst [vmem:[#allocation20 + $0x5f0] sm:$0xff] %v11877
    %12102 = vst [vmem:[#allocation20 + $0x5f8] sm:$0xff] %v11878
    %12103 = vst [vmem:[#allocation20 + $0x600] sm:$0xff] %v11879
    %12104 = vst [vmem:[#allocation20 + $0x608] sm:$0xff] %v11880
    %12105 = vst [vmem:[#allocation20 + $0x610] sm:$0xff] %v11881
    %12106 = vst [vmem:[#allocation20 + $0x618] sm:$0xff] %v11882
    %12107 = vst [vmem:[#allocation20 + $0x620] sm:$0xff] %v11883
    %12108 = vst [vmem:[#allocation20 + $0x628] sm:$0xff] %v11884
    %12109 = vst [vmem:[#allocation20 + $0x630] sm:$0xff] %v11885
    %12110 = vst [vmem:[#allocation20 + $0x638] sm:$0xff] %v11886
    %12111 = vst [vmem:[#allocation20 + $0x640] sm:$0xff] %v11887
    %12112 = vst [vmem:[#allocation20 + $0x648] sm:$0xff] %v11888
    %12113 = vst [vmem:[#allocation20 + $0x650] sm:$0xff] %v11889
    %12114 = vst [vmem:[#allocation20 + $0x658] sm:$0xff] %v11890
    %12115 = vst [vmem:[#allocation20 + $0x660] sm:$0xff] %v11891
    %12116 = vst [vmem:[#allocation20 + $0x668] sm:$0xff] %v11892
    %12117 = vst [vmem:[#allocation20 + $0x670] sm:$0xff] %v11893
    %12118 = vst [vmem:[#allocation20 + $0x678] sm:$0xff] %v11894
    %12119 = vst [vmem:[#allocation20 + $0x680] sm:$0xff] %v11895
    %12120 = vst [vmem:[#allocation20 + $0x688] sm:$0xff] %v11896
    %12121 = vst [vmem:[#allocation20 + $0x690] sm:$0xff] %v11897
    %12122 = vst [vmem:[#allocation20 + $0x698] sm:$0xff] %v11898
    %12123 = vst [vmem:[#allocation20 + $0x6a0] sm:$0xff] %v11899
    %12124 = vst [vmem:[#allocation20 + $0x6a8] sm:$0xff] %v11900
    %12125 = vst [vmem:[#allocation20 + $0x6b0] sm:$0xff] %v11901
    %12126 = vst [vmem:[#allocation20 + $0x6b8] sm:$0xff] %v11902
    %12127 = vst [vmem:[#allocation20 + $0x6c0] sm:$0xff] %v11903
    %12128 = vst [vmem:[#allocation20 + $0x6c8] sm:$0xff] %v11904
    %12129 = vst [vmem:[#allocation20 + $0x6d0] sm:$0xff] %v11905
    %12130 = vst [vmem:[#allocation20 + $0x6d8] sm:$0xff] %v11906
    %12131 = vst [vmem:[#allocation20 + $0x6e0] sm:$0xff] %v11907
    %12132 = vst [vmem:[#allocation20 + $0x6e8] sm:$0xff] %v11908
    %12133 = vst [vmem:[#allocation20 + $0x6f0] sm:$0xff] %v11909
    %12134 = vst [vmem:[#allocation20 + $0x6f8] sm:$0xff] %v11910
    // Predicated region
    $region90: #{tpu_custom_call.1} parent=1 // pred_check
      _
    $region91: #{tpu_custom_call.1} parent=1 // pred_check_branch
      %12136 = sbr.rel (0) target = $region93
    $region92: #{tpu_custom_call.1} parent=1 // pred_region
      %s12138 = ssub.s32 28672, 28672
      %12139 = vsyncadd [#allocation4], %s12138
      %s12140 = sshll.u32 [#allocation20], 4
      %s12141 = int_to_ptr.vmem [resolvable:$true] %s12140
      %12146 = dma.vmem_to_hbm [thread:$0]  %s12141, 28672, %s11, [#allocation4], 896, 896, 56
    $region93: #{tpu_custom_call.1} parent=1 // pred_fallthru
      _
    // Predicated region
    $region94: #{tpu_custom_call.1} parent=1 // pred_check
      _
    $region95: #{tpu_custom_call.1} parent=1 // pred_check_branch
      %12148 = sbr.rel (0) target = $region97
    $region96: #{tpu_custom_call.1} parent=1 // pred_region
      %12149 = dma.done [#allocation4], 28672
    $region97: #{tpu_custom_call.1} parent=1 // pred_fallthru
      _
    %12150 = vsyncpa [#allocation3], 1
    %12151 = vsyncpa [#allocation6], 1
    %12152 = vsyncpa [#allocation9], 1
    %12153 = vsyncpa [#allocation12], 1
    %12154 = vsyncpa [#allocation15], 1
    %12155 = vsyncpa [#allocation18], 1
    %12156 = vsyncpa [#allocation4], 1

</llo_original>
